<compile_context>
chip_gen: v7x
topology: tpu7x:2x2x1
jax: 0.10.0
libtpu: 0.0.40
codegen_flags: <defaults>
</compile_context>

<pallas_src>
import functools
import jax
import jax.numpy as jnp
from jax.experimental import pallas as pl
from jax.experimental.pallas import tpu as pltpu

LANE = 128  # TPU lane width; GEMM/pool output channels are padded to this.


def _round_up(x, m):
    return (x + m - 1) // m * m


# ----------------------------------------------------------------------------
# Pallas kernels
# ----------------------------------------------------------------------------
def _make_gemm_kernel(apply_relu: bool, add_residual: bool):
    """im2col-conv GEMM; BN scale pre-folded into weights, shift added as bias;
    optional fused residual add + ReLU.  bf16 inputs, f32 accumulation."""
    if add_residual:
        def kernel(p_ref, w_ref, b_ref, r_ref, o_ref):
            acc = jnp.dot(p_ref[...], w_ref[...],
                          preferred_element_type=jnp.float32)
            acc = acc + b_ref[...] + r_ref[...].astype(jnp.float32)
            if apply_relu:
                acc = jnp.maximum(acc, 0.0)
            o_ref[...] = acc.astype(o_ref.dtype)
    else:
        def kernel(p_ref, w_ref, b_ref, o_ref):
            acc = jnp.dot(p_ref[...], w_ref[...],
                          preferred_element_type=jnp.float32)
            acc = acc + b_ref[...]
            if apply_relu:
                acc = jnp.maximum(acc, 0.0)
            o_ref[...] = acc.astype(o_ref.dtype)
    return kernel


def _maxpool_kernel(win_ref, o_ref):
    # win_ref: (KK, TM, CP) stacked windows; elementwise max over the window
    # axis (pure VPU work, no cross-lane movement).
    o_ref[...] = jnp.max(win_ref[...], axis=0)


def _head_kernel(x_ref, w_ref, b_ref, o_ref):
    # x_ref: (Np, S, C) bf16 -> global average pool over S (f32), then fc.
    feat = jnp.mean(x_ref[...].astype(jnp.float32), axis=1)          # (Np, C)
    o_ref[...] = jnp.dot(feat, w_ref[...],
                         preferred_element_type=jnp.float32) + b_ref[...]


# ----------------------------------------------------------------------------
# Wrappers (glue: padding / im2col / reshapes) around the Pallas kernels
# ----------------------------------------------------------------------------
def conv_bn_act(x, w, scale, shift, *, stride, pad, relu=True, residual=None):
    """x: (N,H,W,Cin) NHWC bf16, w: (kh,kw,Cin,Cout) f32, scale/shift: (Cout,).

    Returns (N,Ho,Wo,Cout) bf16 (true channel count)."""
    N, H, W, Cin = x.shape
    kh, kw, _, Cout = w.shape
    Ho = (H + 2 * pad - kh) // stride + 1
    Wo = (W + 2 * pad - kw) // stride + 1

    # im2col (XLA glue).  K is ordered tap-major / Cin-minor to match
    # w.reshape(kh*kw*Cin, Cout).
    xp = jnp.pad(x, ((0, 0), (pad, pad), (pad, pad), (0, 0)))
    cols = []
    for i in range(kh):
        for j in range(kw):
            cols.append(xp[:, i:i + Ho * stride:stride,
                           j:j + Wo * stride:stride, :])
    patches = jnp.concatenate(cols, axis=-1).reshape(
        N * Ho * Wo, kh * kw * Cin).astype(jnp.bfloat16)

    # Fold BN scale into the weights; pad Cout to the lane width so kernel
    # stores are unmasked.  Padded channels have zero weight & zero shift, so
    # they stay exactly zero (and are sliced off below).
    K = kh * kw * Cin
    Kp = _round_up(K, 8)
    CP = _round_up(Cout, LANE)
    wmat = w.reshape(K, Cout) * scale[None, :]
    wmat = jnp.pad(wmat, ((0, Kp - K), (0, CP - Cout))).astype(jnp.bfloat16)
    shiftp = jnp.pad(shift, (0, CP - Cout)).reshape(1, CP).astype(jnp.float32)

    M = N * Ho * Wo
    TM = 512 if M >= 512 else _round_up(M, 8)
    Mp = _round_up(M, TM)
    patches = jnp.pad(patches, ((0, Mp - M), (0, Kp - K)))

    args = [patches, wmat, shiftp]
    in_specs = [
        pl.BlockSpec((TM, Kp), lambda i: (i, 0)),
        pl.BlockSpec((Kp, CP), lambda i: (0, 0)),
        pl.BlockSpec((1, CP), lambda i: (0, 0)),
    ]
    io_aliases = {}
    add_res = residual is not None
    if add_res:
        r = residual.reshape(M, Cout).astype(jnp.bfloat16)
        r = jnp.pad(r, ((0, Mp - M), (0, CP - Cout)))
        args.append(r)
        in_specs.append(pl.BlockSpec((TM, CP), lambda i: (i, 0)))
        io_aliases = {3: 0}  # reuse the residual buffer for the output

    out = pl.pallas_call(
        _make_gemm_kernel(relu, add_res),
        out_shape=jax.ShapeDtypeStruct((Mp, CP), jnp.bfloat16),
        grid=(Mp // TM,),
        in_specs=in_specs,
        out_specs=pl.BlockSpec((TM, CP), lambda i: (i, 0)),
        input_output_aliases=io_aliases,
        compiler_params=pltpu.CompilerParams(
            dimension_semantics=("parallel",)),
    )(*args)
    return out[:M, :Cout].reshape(N, Ho, Wo, Cout)


def maxpool_3x3_s2_p1(x):
    """PyTorch nn.MaxPool2d(kernel_size=3, stride=2, padding=1), NHWC bf16."""
    N, H, W, C = x.shape
    k, s, p = 3, 2, 1
    Ho = (H + 2 * p - k) // s + 1
    Wo = (W + 2 * p - k) // s + 1
    xp = jnp.pad(x, ((0, 0), (p, p), (p, p), (0, 0)),
                 constant_values=-jnp.inf)
    wins = []
    for i in range(k):
        for j in range(k):
            wins.append(xp[:, i:i + Ho * s:s, j:j + Wo * s:s, :])
    stk = jnp.stack(wins, axis=0).reshape(k * k, N * Ho * Wo, C)

    M = N * Ho * Wo
    TM = 512 if M >= 512 else _round_up(M, 8)
    Mp = _round_up(M, TM)
    CP = _round_up(C, LANE)
    stk = jnp.pad(stk, ((0, 0), (0, Mp - M), (0, CP - C)),
                  constant_values=-jnp.inf)

    out = pl.pallas_call(
        _maxpool_kernel,
        out_shape=jax.ShapeDtypeStruct((Mp, CP), x.dtype),
        grid=(Mp // TM,),
        in_specs=[pl.BlockSpec((k * k, TM, CP), lambda i: (0, i, 0))],
        out_specs=pl.BlockSpec((TM, CP), lambda i: (i, 0)),
        compiler_params=pltpu.CompilerParams(
            dimension_semantics=("parallel",)),
    )(stk)
    return out[:M, :C].reshape(N, Ho, Wo, C)


def avgpool_flatten_fc(x, w_fc, b_fc):
    """Adaptive avg pool to 1x1 + flatten + fc, fused in one Pallas kernel."""
    N, H, W, C = x.shape
    ncls = w_fc.shape[1]
    S = H * W
    Np = _round_up(max(N, 8), 8)
    NCp = _round_up(ncls, LANE)   # lane-dense head output; sliced back below
    xf = jnp.pad(x.reshape(N, S, C), ((0, Np - N), (0, 0), (0, 0)))
    wp = jnp.pad(w_fc, ((0, 0), (0, NCp - ncls))).astype(jnp.float32)
    bp = jnp.pad(b_fc, (0, NCp - ncls)).reshape(1, NCp).astype(jnp.float32)

    out = pl.pallas_call(
        _head_kernel,
        out_shape=jax.ShapeDtypeStruct((Np, NCp), jnp.float32),
        grid=(1,),
        in_specs=[
            pl.BlockSpec((Np, S, C), lambda i: (0, 0, 0)),
            pl.BlockSpec((C, NCp), lambda i: (0, 0)),
            pl.BlockSpec((1, NCp), lambda i: (0, 0)),
        ],
        out_specs=pl.BlockSpec((Np, NCp), lambda i: (0, 0)),
    )(xf, wp, bp)
    return out[:N, :ncls]


# ----------------------------------------------------------------------------
# Parameter construction (deterministic, synthetic)
# ----------------------------------------------------------------------------
def _conv_w(key, kh, kw, cin, cout):
    # Stored directly in (kh, kw, Cin, Cout); equivalent to PyTorch
    # (Cout, Cin, kh, kw) transposed to (2, 3, 1, 0).
    return 0.1 * jax.random.normal(key, (kh, kw, cin, cout), jnp.float32)


def _bn(key, c, eps=1e-5):
    k1, k2, k3, k4 = jax.random.split(key, 4)
    gamma = 1.0 + 0.1 * jax.random.normal(k1, (c,), jnp.float32)
    beta = 0.1 * jax.random.normal(k2, (c,), jnp.float32)
    mean = 0.1 * jax.random.normal(k3, (c,), jnp.float32)
    var = jnp.abs(1.0 + 0.1 * jax.random.normal(k4, (c,), jnp.float32))
    scale = gamma / jnp.sqrt(var + eps)
    shift = beta - mean * scale
    return scale, shift


def _basic_block_params(key, cin, cout, stride):
    ks = jax.random.split(key, 6)
    p = {
        "w1": _conv_w(ks[0], 3, 3, cin, cout),
        "bn1": _bn(ks[1], cout),
        "w2": _conv_w(ks[2], 3, 3, cout, cout),
        "bn2": _bn(ks[3], cout),
        "stride": stride,
    }
    if stride != 1 or cin != cout:
        p["wd"] = _conv_w(ks[4], 1, 1, cin, cout)
        p["bnd"] = _bn(ks[5], cout)
    return p


def _make_layer_params(key, cin, cout, blocks, stride):
    ks = jax.random.split(key, blocks)
    layer = [_basic_block_params(ks[0], cin, cout, stride)]
    for b in range(1, blocks):
        layer.append(_basic_block_params(ks[b], cout, cout, 1))
    return layer


def init_params(key, num_classes=10):
    ks = jax.random.split(key, 12)
    params = {
        "conv1": _conv_w(ks[0], 3, 3, 3, 8),   "bn1": _bn(ks[1], 8),
        "conv2": _conv_w(ks[2], 3, 3, 8, 8),   "bn2": _bn(ks[3], 8),
        "conv3": _conv_w(ks[4], 3, 3, 8, 16),  "bn3": _bn(ks[5], 16),
        "layer1": _make_layer_params(ks[6], 16, 16, 2, 1),
        "layer2": _make_layer_params(ks[7], 16, 32, 2, 2),
        "layer3": _make_layer_params(ks[8], 32, 64, 2, 2),
        "layer4": _make_layer_params(ks[9], 64, 128, 2, 2),
        "fc_w": 0.1 * jax.random.normal(ks[10], (128, num_classes), jnp.float32),
        "fc_b": 0.1 * jax.random.normal(ks[11], (num_classes,), jnp.float32),
    }
    return params


# ----------------------------------------------------------------------------
# Forward pass
# ----------------------------------------------------------------------------
def _basic_block(x, p):
    stride = p["stride"]
    out = conv_bn_act(x, p["w1"], *p["bn1"], stride=stride, pad=1, relu=True)
    if "wd" in p:
        identity = conv_bn_act(x, p["wd"], *p["bnd"], stride=stride, pad=0,
                               relu=False)
    else:
        identity = x
    # conv2 + bn2 + residual add + relu fused in one Pallas GEMM kernel
    out = conv_bn_act(out, p["w2"], *p["bn2"], stride=1, pad=1, relu=True,
                      residual=identity)
    return out


def resnet_forward(x_nchw, params):
    # layout: NCHW in -> NHWC bf16 internally -> (N, num_classes) f32 out
    x = jnp.transpose(x_nchw, (0, 2, 3, 1)).astype(jnp.bfloat16)

    x = conv_bn_act(x, params["conv1"], *params["bn1"], stride=2, pad=1)
    x = conv_bn_act(x, params["conv2"], *params["bn2"], stride=1, pad=1)
    x = conv_bn_act(x, params["conv3"], *params["bn3"], stride=1, pad=1)
    x = maxpool_3x3_s2_p1(x)

    for name in ("layer1", "layer2", "layer3", "layer4"):
        for blk in params[name]:
            x = _basic_block(x, blk)

    return avgpool_flatten_fc(x, params["fc_w"], params["fc_b"])


if __name__ == "__main__":
    key = jax.random.PRNGKey(0)
    kx, kp = jax.random.split(key)
    # Small shapes: batch=2, RGB input, 32x32 spatial (NCHW, PyTorch convention)
    x = jax.random.normal(kx, (2, 3, 32, 32), jnp.float32)
    params = init_params(kp, num_classes=10)

    out = jax.jit(functools.partial(resnet_forward, params=params))(x)
    out = jax.block_until_ready(out)
    assert out.shape == (2, 10), out.shape
    assert jnp.all(jnp.isfinite(out))
    print("KERNEL_OK")
</pallas_src>

<mosaic_0001>
module attributes {stable_mosaic.version = 11 : i64} {
  func.func @kernel(%arg0: i32, %arg1: memref<512x32xbf16, #tpu.memory_space<vmem>>, %arg2: memref<32x128xbf16, #tpu.memory_space<vmem>>, %arg3: memref<1x128xf32, #tpu.memory_space<vmem>>, %arg4: memref<512x128xbf16, #tpu.memory_space<vmem>>) attributes {dimension_semantics = [#tpu.dimension_semantics<parallel>], iteration_bounds = array<i64: 1>, scalar_prefetch = 0 : i64, scratch_operands = 0 : i64, tpu.core_type = #tpu.core_type<tc>, window_params = [{transform_indices = @transform_0, window_bounds = array<i64: 512, 32>}, {pipeline_mode = #tpu.pipeline_mode<synchronous>, transform_indices = @transform_1, window_bounds = array<i64: 32, 128>}, {pipeline_mode = #tpu.pipeline_mode<synchronous>, transform_indices = @transform_2, window_bounds = array<i64: 1, 128>}, {transform_indices = @transform_3, window_bounds = array<i64: 512, 128>}]} {
    %c0 = arith.constant 0 : index
    %c0_0 = arith.constant 0 : index
    %0 = vector.load %arg1[%c0, %c0_0] : memref<512x32xbf16, #tpu.memory_space<vmem>>, vector<512x32xbf16>
    %c0_1 = arith.constant 0 : index
    %c0_2 = arith.constant 0 : index
    %1 = vector.load %arg2[%c0_1, %c0_2] : memref<32x128xbf16, #tpu.memory_space<vmem>>, vector<32x128xbf16>
    %cst = arith.constant dense<0.000000e+00> : vector<512x128xf32>
    %2 = tpu.matmul %0, %1, %cst {dimension_numbers = #tpu.dot_dimension_numbers<[1], [0], [0], [1], [0, 0, 1, 1], [], []>} : vector<512x32xbf16>, vector<32x128xbf16>, vector<512x128xf32> -> vector<512x128xf32>
    %c0_3 = arith.constant 0 : index
    %c0_4 = arith.constant 0 : index
    %3 = vector.load %arg3[%c0_3, %c0_4] : memref<1x128xf32, #tpu.memory_space<vmem>>, vector<1x128xf32>
    %4 = vector.broadcast %3 : vector<1x128xf32> to vector<512x128xf32>
    %5 = arith.addf %2, %4 : vector<512x128xf32>
    %cst_5 = arith.constant 0.000000e+00 : f32
    %6 = vector.broadcast %cst_5 : f32 to vector<512x128xf32>
    %7 = arith.maximumf %5, %6 : vector<512x128xf32>
    %8 = arith.truncf %7 : vector<512x128xf32> to vector<512x128xbf16>
    %c0_6 = arith.constant 0 : index
    %c0_7 = arith.constant 0 : index
    %9 = vector.load %arg4[%c0_6, %c0_7] : memref<512x128xbf16, #tpu.memory_space<vmem>>, vector<512x128xbf16>
    tpu.vector_store %arg4[%c0_6, %c0_7], %8 {strides = array<i32>} : memref<512x128xbf16, #tpu.memory_space<vmem>>, vector<512x128xbf16>,
    return
  }
  func.func @transform_0(%arg0: i32) -> (i32, i32) {
    %c0_i32 = arith.constant 0 : i32
    %c0_i32_0 = arith.constant 0 : i32
    return %arg0, %c0_i32 : i32, i32
  }
  func.func @transform_1(%arg0: i32) -> (i32, i32) {
    %c0_i32 = arith.constant 0 : i32
    %c0_i32_0 = arith.constant 0 : i32
    %c0_i32_1 = arith.constant 0 : i32
    return %c0_i32, %c0_i32_0 : i32, i32
  }
  func.func @transform_2(%arg0: i32) -> (i32, i32) {
    %c0_i32 = arith.constant 0 : i32
    %c0_i32_0 = arith.constant 0 : i32
    %c0_i32_1 = arith.constant 0 : i32
    return %c0_i32, %c0_i32_0 : i32, i32
  }
  func.func @transform_3(%arg0: i32) -> (i32, i32) {
    %c0_i32 = arith.constant 0 : i32
    %c0_i32_0 = arith.constant 0 : i32
    return %arg0, %c0_i32 : i32, i32
  }
}

module attributes {stable_mosaic.version = 11 : i64} {
  func.func @kernel(%arg0: i32, %arg1: memref<512x72xbf16, #tpu.memory_space<vmem>>, %arg2: memref<72x128xbf16, #tpu.memory_space<vmem>>, %arg3: memref<1x128xf32, #tpu.memory_space<vmem>>, %arg4: memref<512x128xbf16, #tpu.memory_space<vmem>>) attributes {dimension_semantics = [#tpu.dimension_semantics<parallel>], iteration_bounds = array<i64: 1>, scalar_prefetch = 0 : i64, scratch_operands = 0 : i64, tpu.core_type = #tpu.core_type<tc>, window_params = [{transform_indices = @transform_0, window_bounds = array<i64: 512, 72>}, {pipeline_mode = #tpu.pipeline_mode<synchronous>, transform_indices = @transform_1, window_bounds = array<i64: 72, 128>}, {pipeline_mode = #tpu.pipeline_mode<synchronous>, transform_indices = @transform_2, window_bounds = array<i64: 1, 128>}, {transform_indices = @transform_3, window_bounds = array<i64: 512, 128>}]} {
    %c0 = arith.constant 0 : index
    %c0_0 = arith.constant 0 : index
    %0 = vector.load %arg1[%c0, %c0_0] : memref<512x72xbf16, #tpu.memory_space<vmem>>, vector<512x72xbf16>
    %c0_1 = arith.constant 0 : index
    %c0_2 = arith.constant 0 : index
    %1 = vector.load %arg2[%c0_1, %c0_2] : memref<72x128xbf16, #tpu.memory_space<vmem>>, vector<72x128xbf16>
    %cst = arith.constant dense<0.000000e+00> : vector<512x128xf32>
    %2 = tpu.matmul %0, %1, %cst {dimension_numbers = #tpu.dot_dimension_numbers<[1], [0], [0], [1], [0, 0, 1, 1], [], []>} : vector<512x72xbf16>, vector<72x128xbf16>, vector<512x128xf32> -> vector<512x128xf32>
    %c0_3 = arith.constant 0 : index
    %c0_4 = arith.constant 0 : index
    %3 = vector.load %arg3[%c0_3, %c0_4] : memref<1x128xf32, #tpu.memory_space<vmem>>, vector<1x128xf32>
    %4 = vector.broadcast %3 : vector<1x128xf32> to vector<512x128xf32>
    %5 = arith.addf %2, %4 : vector<512x128xf32>
    %cst_5 = arith.constant 0.000000e+00 : f32
    %6 = vector.broadcast %cst_5 : f32 to vector<512x128xf32>
    %7 = arith.maximumf %5, %6 : vector<512x128xf32>
    %8 = arith.truncf %7 : vector<512x128xf32> to vector<512x128xbf16>
    %c0_6 = arith.constant 0 : index
    %c0_7 = arith.constant 0 : index
    %9 = vector.load %arg4[%c0_6, %c0_7] : memref<512x128xbf16, #tpu.memory_space<vmem>>, vector<512x128xbf16>
    tpu.vector_store %arg4[%c0_6, %c0_7], %8 {strides = array<i32>} : memref<512x128xbf16, #tpu.memory_space<vmem>>, vector<512x128xbf16>,
    return
  }
  func.func @transform_0(%arg0: i32) -> (i32, i32) {
    %c0_i32 = arith.constant 0 : i32
    %c0_i32_0 = arith.constant 0 : i32
    return %arg0, %c0_i32 : i32, i32
  }
  func.func @transform_1(%arg0: i32) -> (i32, i32) {
    %c0_i32 = arith.constant 0 : i32
    %c0_i32_0 = arith.constant 0 : i32
    %c0_i32_1 = arith.constant 0 : i32
    return %c0_i32, %c0_i32_0 : i32, i32
  }
  func.func @transform_2(%arg0: i32) -> (i32, i32) {
    %c0_i32 = arith.constant 0 : i32
    %c0_i32_0 = arith.constant 0 : i32
    %c0_i32_1 = arith.constant 0 : i32
    return %c0_i32, %c0_i32_0 : i32, i32
  }
  func.func @transform_3(%arg0: i32) -> (i32, i32) {
    %c0_i32 = arith.constant 0 : i32
    %c0_i32_0 = arith.constant 0 : i32
    return %arg0, %c0_i32 : i32, i32
  }
}

module attributes {stable_mosaic.version = 11 : i64} {
  func.func @_maxpool_kernel(%arg0: i32, %arg1: memref<9x128x128xbf16, #tpu.memory_space<vmem>>, %arg2: memref<128x128xbf16, #tpu.memory_space<vmem>>) attributes {dimension_semantics = [#tpu.dimension_semantics<parallel>], iteration_bounds = array<i64: 1>, scalar_prefetch = 0 : i64, scratch_operands = 0 : i64, tpu.core_type = #tpu.core_type<tc>, window_params = [{transform_indices = @transform_0, window_bounds = array<i64: 9, 128, 128>}, {transform_indices = @transform_1, window_bounds = array<i64: 128, 128>}]} {
    %c0 = arith.constant 0 : index
    %c0_0 = arith.constant 0 : index
    %c0_1 = arith.constant 0 : index
    %0 = vector.load %arg1[%c0, %c0_0, %c0_1] : memref<9x128x128xbf16, #tpu.memory_space<vmem>>, vector<9x128x128xbf16>
    %cst = arith.constant dense<0xFF80> : vector<128x128xbf16>
    %1 = vector.multi_reduction <maximumf>, %0, %cst [0] : vector<9x128x128xbf16> to vector<128x128xbf16>
    %c0_2 = arith.constant 0 : index
    %c0_3 = arith.constant 0 : index
    %2 = vector.load %arg2[%c0_2, %c0_3] : memref<128x128xbf16, #tpu.memory_space<vmem>>, vector<128x128xbf16>
    tpu.vector_store %arg2[%c0_2, %c0_3], %1 {strides = array<i32>} : memref<128x128xbf16, #tpu.memory_space<vmem>>, vector<128x128xbf16>,
    return
  }
  func.func @transform_0(%arg0: i32) -> (i32, i32, i32) {
    %c0_i32 = arith.constant 0 : i32
    %c0_i32_0 = arith.constant 0 : i32
    %c0_i32_1 = arith.constant 0 : i32
    return %c0_i32, %arg0, %c0_i32_0 : i32, i32, i32
  }
  func.func @transform_1(%arg0: i32) -> (i32, i32) {
    %c0_i32 = arith.constant 0 : i32
    %c0_i32_0 = arith.constant 0 : i32
    return %arg0, %c0_i32 : i32, i32
  }
}

module attributes {stable_mosaic.version = 11 : i64} {
  func.func @kernel(%arg0: i32, %arg1: memref<128x144xbf16, #tpu.memory_space<vmem>>, %arg2: memref<144x128xbf16, #tpu.memory_space<vmem>>, %arg3: memref<1x128xf32, #tpu.memory_space<vmem>>, %arg4: memref<128x128xbf16, #tpu.memory_space<vmem>>) attributes {dimension_semantics = [#tpu.dimension_semantics<parallel>], iteration_bounds = array<i64: 1>, scalar_prefetch = 0 : i64, scratch_operands = 0 : i64, tpu.core_type = #tpu.core_type<tc>, window_params = [{transform_indices = @transform_0, window_bounds = array<i64: 128, 144>}, {pipeline_mode = #tpu.pipeline_mode<synchronous>, transform_indices = @transform_1, window_bounds = array<i64: 144, 128>}, {pipeline_mode = #tpu.pipeline_mode<synchronous>, transform_indices = @transform_2, window_bounds = array<i64: 1, 128>}, {transform_indices = @transform_3, window_bounds = array<i64: 128, 128>}]} {
    %c0 = arith.constant 0 : index
    %c0_0 = arith.constant 0 : index
    %0 = vector.load %arg1[%c0, %c0_0] : memref<128x144xbf16, #tpu.memory_space<vmem>>, vector<128x144xbf16>
    %c0_1 = arith.constant 0 : index
    %c0_2 = arith.constant 0 : index
    %1 = vector.load %arg2[%c0_1, %c0_2] : memref<144x128xbf16, #tpu.memory_space<vmem>>, vector<144x128xbf16>
    %cst = arith.constant dense<0.000000e+00> : vector<128x128xf32>
    %2 = tpu.matmul %0, %1, %cst {dimension_numbers = #tpu.dot_dimension_numbers<[1], [0], [0], [1], [0, 0, 1, 1], [], []>} : vector<128x144xbf16>, vector<144x128xbf16>, vector<128x128xf32> -> vector<128x128xf32>
    %c0_3 = arith.constant 0 : index
    %c0_4 = arith.constant 0 : index
    %3 = vector.load %arg3[%c0_3, %c0_4] : memref<1x128xf32, #tpu.memory_space<vmem>>, vector<1x128xf32>
    %4 = vector.broadcast %3 : vector<1x128xf32> to vector<128x128xf32>
    %5 = arith.addf %2, %4 : vector<128x128xf32>
    %cst_5 = arith.constant 0.000000e+00 : f32
    %6 = vector.broadcast %cst_5 : f32 to vector<128x128xf32>
    %7 = arith.maximumf %5, %6 : vector<128x128xf32>
    %8 = arith.truncf %7 : vector<128x128xf32> to vector<128x128xbf16>
    %c0_6 = arith.constant 0 : index
    %c0_7 = arith.constant 0 : index
    %9 = vector.load %arg4[%c0_6, %c0_7] : memref<128x128xbf16, #tpu.memory_space<vmem>>, vector<128x128xbf16>
    tpu.vector_store %arg4[%c0_6, %c0_7], %8 {strides = array<i32>} : memref<128x128xbf16, #tpu.memory_space<vmem>>, vector<128x128xbf16>,
    return
  }
  func.func @transform_0(%arg0: i32) -> (i32, i32) {
    %c0_i32 = arith.constant 0 : i32
    %c0_i32_0 = arith.constant 0 : i32
    return %arg0, %c0_i32 : i32, i32
  }
  func.func @transform_1(%arg0: i32) -> (i32, i32) {
    %c0_i32 = arith.constant 0 : i32
    %c0_i32_0 = arith.constant 0 : i32
    %c0_i32_1 = arith.constant 0 : i32
    return %c0_i32, %c0_i32_0 : i32, i32
  }
  func.func @transform_2(%arg0: i32) -> (i32, i32) {
    %c0_i32 = arith.constant 0 : i32
    %c0_i32_0 = arith.constant 0 : i32
    %c0_i32_1 = arith.constant 0 : i32
    return %c0_i32, %c0_i32_0 : i32, i32
  }
  func.func @transform_3(%arg0: i32) -> (i32, i32) {
    %c0_i32 = arith.constant 0 : i32
    %c0_i32_0 = arith.constant 0 : i32
    return %arg0, %c0_i32 : i32, i32
  }
}

module attributes {stable_mosaic.version = 11 : i64} {
  func.func @kernel(%arg0: i32, %arg1: memref<128x144xbf16, #tpu.memory_space<vmem>>, %arg2: memref<144x128xbf16, #tpu.memory_space<vmem>>, %arg3: memref<1x128xf32, #tpu.memory_space<vmem>>, %arg4: memref<128x128xbf16, #tpu.memory_space<vmem>>, %arg5: memref<128x128xbf16, #tpu.memory_space<vmem>>) attributes {dimension_semantics = [#tpu.dimension_semantics<parallel>], iteration_bounds = array<i64: 1>, scalar_prefetch = 0 : i64, scratch_operands = 0 : i64, tpu.core_type = #tpu.core_type<tc>, window_params = [{transform_indices = @transform_0, window_bounds = array<i64: 128, 144>}, {pipeline_mode = #tpu.pipeline_mode<synchronous>, transform_indices = @transform_1, window_bounds = array<i64: 144, 128>}, {pipeline_mode = #tpu.pipeline_mode<synchronous>, transform_indices = @transform_2, window_bounds = array<i64: 1, 128>}, {transform_indices = @transform_3, window_bounds = array<i64: 128, 128>}, {transform_indices = @transform_4, window_bounds = array<i64: 128, 128>}]} {
    %c0 = arith.constant 0 : index
    %c0_0 = arith.constant 0 : index
    %0 = vector.load %arg1[%c0, %c0_0] : memref<128x144xbf16, #tpu.memory_space<vmem>>, vector<128x144xbf16>
    %c0_1 = arith.constant 0 : index
    %c0_2 = arith.constant 0 : index
    %1 = vector.load %arg2[%c0_1, %c0_2] : memref<144x128xbf16, #tpu.memory_space<vmem>>, vector<144x128xbf16>
    %cst = arith.constant dense<0.000000e+00> : vector<128x128xf32>
    %2 = tpu.matmul %0, %1, %cst {dimension_numbers = #tpu.dot_dimension_numbers<[1], [0], [0], [1], [0, 0, 1, 1], [], []>} : vector<128x144xbf16>, vector<144x128xbf16>, vector<128x128xf32> -> vector<128x128xf32>
    %c0_3 = arith.constant 0 : index
    %c0_4 = arith.constant 0 : index
    %3 = vector.load %arg3[%c0_3, %c0_4] : memref<1x128xf32, #tpu.memory_space<vmem>>, vector<1x128xf32>
    %4 = vector.broadcast %3 : vector<1x128xf32> to vector<128x128xf32>
    %5 = arith.addf %2, %4 : vector<128x128xf32>
    %c0_5 = arith.constant 0 : index
    %c0_6 = arith.constant 0 : index
    %6 = vector.load %arg4[%c0_5, %c0_6] : memref<128x128xbf16, #tpu.memory_space<vmem>>, vector<128x128xbf16>
    %7 = arith.extf %6 : vector<128x128xbf16> to vector<128x128xf32>
    %8 = arith.addf %5, %7 : vector<128x128xf32>
    %cst_7 = arith.constant 0.000000e+00 : f32
    %9 = vector.broadcast %cst_7 : f32 to vector<128x128xf32>
    %10 = arith.maximumf %8, %9 : vector<128x128xf32>
    %11 = arith.truncf %10 : vector<128x128xf32> to vector<128x128xbf16>
    %c0_8 = arith.constant 0 : index
    %c0_9 = arith.constant 0 : index
    %12 = vector.load %arg5[%c0_8, %c0_9] : memref<128x128xbf16, #tpu.memory_space<vmem>>, vector<128x128xbf16>
    tpu.vector_store %arg5[%c0_8, %c0_9], %11 {strides = array<i32>} : memref<128x128xbf16, #tpu.memory_space<vmem>>, vector<128x128xbf16>,
    return
  }
  func.func @transform_0(%arg0: i32) -> (i32, i32) {
    %c0_i32 = arith.constant 0 : i32
    %c0_i32_0 = arith.constant 0 : i32
    return %arg0, %c0_i32 : i32, i32
  }
  func.func @transform_1(%arg0: i32) -> (i32, i32) {
    %c0_i32 = arith.constant 0 : i32
    %c0_i32_0 = arith.constant 0 : i32
    %c0_i32_1 = arith.constant 0 : i32
    return %c0_i32, %c0_i32_0 : i32, i32
  }
  func.func @transform_2(%arg0: i32) -> (i32, i32) {
    %c0_i32 = arith.constant 0 : i32
    %c0_i32_0 = arith.constant 0 : i32
    %c0_i32_1 = arith.constant 0 : i32
    return %c0_i32, %c0_i32_0 : i32, i32
  }
  func.func @transform_3(%arg0: i32) -> (i32, i32) {
    %c0_i32 = arith.constant 0 : i32
    %c0_i32_0 = arith.constant 0 : i32
    return %arg0, %c0_i32 : i32, i32
  }
  func.func @transform_4(%arg0: i32) -> (i32, i32) {
    %c0_i32 = arith.constant 0 : i32
    %c0_i32_0 = arith.constant 0 : i32
    return %arg0, %c0_i32 : i32, i32
  }
}

module attributes {stable_mosaic.version = 11 : i64} {
  func.func @kernel(%arg0: i32, %arg1: memref<32x144xbf16, #tpu.memory_space<vmem>>, %arg2: memref<144x128xbf16, #tpu.memory_space<vmem>>, %arg3: memref<1x128xf32, #tpu.memory_space<vmem>>, %arg4: memref<32x128xbf16, #tpu.memory_space<vmem>>) attributes {dimension_semantics = [#tpu.dimension_semantics<parallel>], iteration_bounds = array<i64: 1>, scalar_prefetch = 0 : i64, scratch_operands = 0 : i64, tpu.core_type = #tpu.core_type<tc>, window_params = [{transform_indices = @transform_0, window_bounds = array<i64: 32, 144>}, {pipeline_mode = #tpu.pipeline_mode<synchronous>, transform_indices = @transform_1, window_bounds = array<i64: 144, 128>}, {pipeline_mode = #tpu.pipeline_mode<synchronous>, transform_indices = @transform_2, window_bounds = array<i64: 1, 128>}, {transform_indices = @transform_3, window_bounds = array<i64: 32, 128>}]} {
    %c0 = arith.constant 0 : index
    %c0_0 = arith.constant 0 : index
    %0 = vector.load %arg1[%c0, %c0_0] : memref<32x144xbf16, #tpu.memory_space<vmem>>, vector<32x144xbf16>
    %c0_1 = arith.constant 0 : index
    %c0_2 = arith.constant 0 : index
    %1 = vector.load %arg2[%c0_1, %c0_2] : memref<144x128xbf16, #tpu.memory_space<vmem>>, vector<144x128xbf16>
    %cst = arith.constant dense<0.000000e+00> : vector<32x128xf32>
    %2 = tpu.matmul %0, %1, %cst {dimension_numbers = #tpu.dot_dimension_numbers<[1], [0], [0], [1], [0, 0, 1, 1], [], []>} : vector<32x144xbf16>, vector<144x128xbf16>, vector<32x128xf32> -> vector<32x128xf32>
    %c0_3 = arith.constant 0 : index
    %c0_4 = arith.constant 0 : index
    %3 = vector.load %arg3[%c0_3, %c0_4] : memref<1x128xf32, #tpu.memory_space<vmem>>, vector<1x128xf32>
    %4 = vector.broadcast %3 : vector<1x128xf32> to vector<32x128xf32>
    %5 = arith.addf %2, %4 : vector<32x128xf32>
    %cst_5 = arith.constant 0.000000e+00 : f32
    %6 = vector.broadcast %cst_5 : f32 to vector<32x128xf32>
    %7 = arith.maximumf %5, %6 : vector<32x128xf32>
    %8 = arith.truncf %7 : vector<32x128xf32> to vector<32x128xbf16>
    %c0_6 = arith.constant 0 : index
    %c0_7 = arith.constant 0 : index
    %9 = vector.load %arg4[%c0_6, %c0_7] : memref<32x128xbf16, #tpu.memory_space<vmem>>, vector<32x128xbf16>
    tpu.vector_store %arg4[%c0_6, %c0_7], %8 {strides = array<i32>} : memref<32x128xbf16, #tpu.memory_space<vmem>>, vector<32x128xbf16>,
    return
  }
  func.func @transform_0(%arg0: i32) -> (i32, i32) {
    %c0_i32 = arith.constant 0 : i32
    %c0_i32_0 = arith.constant 0 : i32
    return %arg0, %c0_i32 : i32, i32
  }
  func.func @transform_1(%arg0: i32) -> (i32, i32) {
    %c0_i32 = arith.constant 0 : i32
    %c0_i32_0 = arith.constant 0 : i32
    %c0_i32_1 = arith.constant 0 : i32
    return %c0_i32, %c0_i32_0 : i32, i32
  }
  func.func @transform_2(%arg0: i32) -> (i32, i32) {
    %c0_i32 = arith.constant 0 : i32
    %c0_i32_0 = arith.constant 0 : i32
    %c0_i32_1 = arith.constant 0 : i32
    return %c0_i32, %c0_i32_0 : i32, i32
  }
  func.func @transform_3(%arg0: i32) -> (i32, i32) {
    %c0_i32 = arith.constant 0 : i32
    %c0_i32_0 = arith.constant 0 : i32
    return %arg0, %c0_i32 : i32, i32
  }
}

module attributes {stable_mosaic.version = 11 : i64} {
  func.func @kernel(%arg0: i32, %arg1: memref<32x16xbf16, #tpu.memory_space<vmem>>, %arg2: memref<16x128xbf16, #tpu.memory_space<vmem>>, %arg3: memref<1x128xf32, #tpu.memory_space<vmem>>, %arg4: memref<32x128xbf16, #tpu.memory_space<vmem>>) attributes {dimension_semantics = [#tpu.dimension_semantics<parallel>], iteration_bounds = array<i64: 1>, scalar_prefetch = 0 : i64, scratch_operands = 0 : i64, tpu.core_type = #tpu.core_type<tc>, window_params = [{transform_indices = @transform_0, window_bounds = array<i64: 32, 16>}, {pipeline_mode = #tpu.pipeline_mode<synchronous>, transform_indices = @transform_1, window_bounds = array<i64: 16, 128>}, {pipeline_mode = #tpu.pipeline_mode<synchronous>, transform_indices = @transform_2, window_bounds = array<i64: 1, 128>}, {transform_indices = @transform_3, window_bounds = array<i64: 32, 128>}]} {
    %c0 = arith.constant 0 : index
    %c0_0 = arith.constant 0 : index
    %0 = vector.load %arg1[%c0, %c0_0] : memref<32x16xbf16, #tpu.memory_space<vmem>>, vector<32x16xbf16>
    %c0_1 = arith.constant 0 : index
    %c0_2 = arith.constant 0 : index
    %1 = vector.load %arg2[%c0_1, %c0_2] : memref<16x128xbf16, #tpu.memory_space<vmem>>, vector<16x128xbf16>
    %cst = arith.constant dense<0.000000e+00> : vector<32x128xf32>
    %2 = tpu.matmul %0, %1, %cst {dimension_numbers = #tpu.dot_dimension_numbers<[1], [0], [0], [1], [0, 0, 1, 1], [], []>} : vector<32x16xbf16>, vector<16x128xbf16>, vector<32x128xf32> -> vector<32x128xf32>
    %c0_3 = arith.constant 0 : index
    %c0_4 = arith.constant 0 : index
    %3 = vector.load %arg3[%c0_3, %c0_4] : memref<1x128xf32, #tpu.memory_space<vmem>>, vector<1x128xf32>
    %4 = vector.broadcast %3 : vector<1x128xf32> to vector<32x128xf32>
    %5 = arith.addf %2, %4 : vector<32x128xf32>
    %6 = arith.truncf %5 : vector<32x128xf32> to vector<32x128xbf16>
    %c0_5 = arith.constant 0 : index
    %c0_6 = arith.constant 0 : index
    %7 = vector.load %arg4[%c0_5, %c0_6] : memref<32x128xbf16, #tpu.memory_space<vmem>>, vector<32x128xbf16>
    tpu.vector_store %arg4[%c0_5, %c0_6], %6 {strides = array<i32>} : memref<32x128xbf16, #tpu.memory_space<vmem>>, vector<32x128xbf16>,
    return
  }
  func.func @transform_0(%arg0: i32) -> (i32, i32) {
    %c0_i32 = arith.constant 0 : i32
    %c0_i32_0 = arith.constant 0 : i32
    return %arg0, %c0_i32 : i32, i32
  }
  func.func @transform_1(%arg0: i32) -> (i32, i32) {
    %c0_i32 = arith.constant 0 : i32
    %c0_i32_0 = arith.constant 0 : i32
    %c0_i32_1 = arith.constant 0 : i32
    return %c0_i32, %c0_i32_0 : i32, i32
  }
  func.func @transform_2(%arg0: i32) -> (i32, i32) {
    %c0_i32 = arith.constant 0 : i32
    %c0_i32_0 = arith.constant 0 : i32
    %c0_i32_1 = arith.constant 0 : i32
    return %c0_i32, %c0_i32_0 : i32, i32
  }
  func.func @transform_3(%arg0: i32) -> (i32, i32) {
    %c0_i32 = arith.constant 0 : i32
    %c0_i32_0 = arith.constant 0 : i32
    return %arg0, %c0_i32 : i32, i32
  }
}

module attributes {stable_mosaic.version = 11 : i64} {
  func.func @kernel(%arg0: i32, %arg1: memref<32x288xbf16, #tpu.memory_space<vmem>>, %arg2: memref<288x128xbf16, #tpu.memory_space<vmem>>, %arg3: memref<1x128xf32, #tpu.memory_space<vmem>>, %arg4: memref<32x128xbf16, #tpu.memory_space<vmem>>) attributes {dimension_semantics = [#tpu.dimension_semantics<parallel>], iteration_bounds = array<i64: 1>, scalar_prefetch = 0 : i64, scratch_operands = 0 : i64, tpu.core_type = #tpu.core_type<tc>, window_params = [{transform_indices = @transform_0, window_bounds = array<i64: 32, 288>}, {pipeline_mode = #tpu.pipeline_mode<synchronous>, transform_indices = @transform_1, window_bounds = array<i64: 288, 128>}, {pipeline_mode = #tpu.pipeline_mode<synchronous>, transform_indices = @transform_2, window_bounds = array<i64: 1, 128>}, {transform_indices = @transform_3, window_bounds = array<i64: 32, 128>}]} {
    %c0 = arith.constant 0 : index
    %c0_0 = arith.constant 0 : index
    %0 = vector.load %arg1[%c0, %c0_0] : memref<32x288xbf16, #tpu.memory_space<vmem>>, vector<32x288xbf16>
    %c0_1 = arith.constant 0 : index
    %c0_2 = arith.constant 0 : index
    %1 = vector.load %arg2[%c0_1, %c0_2] : memref<288x128xbf16, #tpu.memory_space<vmem>>, vector<288x128xbf16>
    %cst = arith.constant dense<0.000000e+00> : vector<32x128xf32>
    %2 = tpu.matmul %0, %1, %cst {dimension_numbers = #tpu.dot_dimension_numbers<[1], [0], [0], [1], [0, 0, 1, 1], [], []>} : vector<32x288xbf16>, vector<288x128xbf16>, vector<32x128xf32> -> vector<32x128xf32>
    %c0_3 = arith.constant 0 : index
    %c0_4 = arith.constant 0 : index
    %3 = vector.load %arg3[%c0_3, %c0_4] : memref<1x128xf32, #tpu.memory_space<vmem>>, vector<1x128xf32>
    %4 = vector.broadcast %3 : vector<1x128xf32> to vector<32x128xf32>
    %5 = arith.addf %2, %4 : vector<32x128xf32>
    %cst_5 = arith.constant 0.000000e+00 : f32
    %6 = vector.broadcast %cst_5 : f32 to vector<32x128xf32>
    %7 = arith.maximumf %5, %6 : vector<32x128xf32>
    %8 = arith.truncf %7 : vector<32x128xf32> to vector<32x128xbf16>
    %c0_6 = arith.constant 0 : index
    %c0_7 = arith.constant 0 : index
    %9 = vector.load %arg4[%c0_6, %c0_7] : memref<32x128xbf16, #tpu.memory_space<vmem>>, vector<32x128xbf16>
    tpu.vector_store %arg4[%c0_6, %c0_7], %8 {strides = array<i32>} : memref<32x128xbf16, #tpu.memory_space<vmem>>, vector<32x128xbf16>,
    return
  }
  func.func @transform_0(%arg0: i32) -> (i32, i32) {
    %c0_i32 = arith.constant 0 : i32
    %c0_i32_0 = arith.constant 0 : i32
    return %arg0, %c0_i32 : i32, i32
  }
  func.func @transform_1(%arg0: i32) -> (i32, i32) {
    %c0_i32 = arith.constant 0 : i32
    %c0_i32_0 = arith.constant 0 : i32
    %c0_i32_1 = arith.constant 0 : i32
    return %c0_i32, %c0_i32_0 : i32, i32
  }
  func.func @transform_2(%arg0: i32) -> (i32, i32) {
    %c0_i32 = arith.constant 0 : i32
    %c0_i32_0 = arith.constant 0 : i32
    %c0_i32_1 = arith.constant 0 : i32
    return %c0_i32, %c0_i32_0 : i32, i32
  }
  func.func @transform_3(%arg0: i32) -> (i32, i32) {
    %c0_i32 = arith.constant 0 : i32
    %c0_i32_0 = arith.constant 0 : i32
    return %arg0, %c0_i32 : i32, i32
  }
}

module attributes {stable_mosaic.version = 11 : i64} {
  func.func @kernel(%arg0: i32, %arg1: memref<32x288xbf16, #tpu.memory_space<vmem>>, %arg2: memref<288x128xbf16, #tpu.memory_space<vmem>>, %arg3: memref<1x128xf32, #tpu.memory_space<vmem>>, %arg4: memref<32x128xbf16, #tpu.memory_space<vmem>>, %arg5: memref<32x128xbf16, #tpu.memory_space<vmem>>) attributes {dimension_semantics = [#tpu.dimension_semantics<parallel>], iteration_bounds = array<i64: 1>, scalar_prefetch = 0 : i64, scratch_operands = 0 : i64, tpu.core_type = #tpu.core_type<tc>, window_params = [{transform_indices = @transform_0, window_bounds = array<i64: 32, 288>}, {pipeline_mode = #tpu.pipeline_mode<synchronous>, transform_indices = @transform_1, window_bounds = array<i64: 288, 128>}, {pipeline_mode = #tpu.pipeline_mode<synchronous>, transform_indices = @transform_2, window_bounds = array<i64: 1, 128>}, {transform_indices = @transform_3, window_bounds = array<i64: 32, 128>}, {transform_indices = @transform_4, window_bounds = array<i64: 32, 128>}]} {
    %c0 = arith.constant 0 : index
    %c0_0 = arith.constant 0 : index
    %0 = vector.load %arg1[%c0, %c0_0] : memref<32x288xbf16, #tpu.memory_space<vmem>>, vector<32x288xbf16>
    %c0_1 = arith.constant 0 : index
    %c0_2 = arith.constant 0 : index
    %1 = vector.load %arg2[%c0_1, %c0_2] : memref<288x128xbf16, #tpu.memory_space<vmem>>, vector<288x128xbf16>
    %cst = arith.constant dense<0.000000e+00> : vector<32x128xf32>
    %2 = tpu.matmul %0, %1, %cst {dimension_numbers = #tpu.dot_dimension_numbers<[1], [0], [0], [1], [0, 0, 1, 1], [], []>} : vector<32x288xbf16>, vector<288x128xbf16>, vector<32x128xf32> -> vector<32x128xf32>
    %c0_3 = arith.constant 0 : index
    %c0_4 = arith.constant 0 : index
    %3 = vector.load %arg3[%c0_3, %c0_4] : memref<1x128xf32, #tpu.memory_space<vmem>>, vector<1x128xf32>
    %4 = vector.broadcast %3 : vector<1x128xf32> to vector<32x128xf32>
    %5 = arith.addf %2, %4 : vector<32x128xf32>
    %c0_5 = arith.constant 0 : index
    %c0_6 = arith.constant 0 : index
    %6 = vector.load %arg4[%c0_5, %c0_6] : memref<32x128xbf16, #tpu.memory_space<vmem>>, vector<32x128xbf16>
    %7 = arith.extf %6 : vector<32x128xbf16> to vector<32x128xf32>
    %8 = arith.addf %5, %7 : vector<32x128xf32>
    %cst_7 = arith.constant 0.000000e+00 : f32
    %9 = vector.broadcast %cst_7 : f32 to vector<32x128xf32>
    %10 = arith.maximumf %8, %9 : vector<32x128xf32>
    %11 = arith.truncf %10 : vector<32x128xf32> to vector<32x128xbf16>
    %c0_8 = arith.constant 0 : index
    %c0_9 = arith.constant 0 : index
    %12 = vector.load %arg5[%c0_8, %c0_9] : memref<32x128xbf16, #tpu.memory_space<vmem>>, vector<32x128xbf16>
    tpu.vector_store %arg5[%c0_8, %c0_9], %11 {strides = array<i32>} : memref<32x128xbf16, #tpu.memory_space<vmem>>, vector<32x128xbf16>,
    return
  }
  func.func @transform_0(%arg0: i32) -> (i32, i32) {
    %c0_i32 = arith.constant 0 : i32
    %c0_i32_0 = arith.constant 0 : i32
    return %arg0, %c0_i32 : i32, i32
  }
  func.func @transform_1(%arg0: i32) -> (i32, i32) {
    %c0_i32 = arith.constant 0 : i32
    %c0_i32_0 = arith.constant 0 : i32
    %c0_i32_1 = arith.constant 0 : i32
    return %c0_i32, %c0_i32_0 : i32, i32
  }
  func.func @transform_2(%arg0: i32) -> (i32, i32) {
    %c0_i32 = arith.constant 0 : i32
    %c0_i32_0 = arith.constant 0 : i32
    %c0_i32_1 = arith.constant 0 : i32
    return %c0_i32, %c0_i32_0 : i32, i32
  }
  func.func @transform_3(%arg0: i32) -> (i32, i32) {
    %c0_i32 = arith.constant 0 : i32
    %c0_i32_0 = arith.constant 0 : i32
    return %arg0, %c0_i32 : i32, i32
  }
  func.func @transform_4(%arg0: i32) -> (i32, i32) {
    %c0_i32 = arith.constant 0 : i32
    %c0_i32_0 = arith.constant 0 : i32
    return %arg0, %c0_i32 : i32, i32
  }
}

module attributes {stable_mosaic.version = 11 : i64} {
  func.func @kernel(%arg0: i32, %arg1: memref<8x288xbf16, #tpu.memory_space<vmem>>, %arg2: memref<288x128xbf16, #tpu.memory_space<vmem>>, %arg3: memref<1x128xf32, #tpu.memory_space<vmem>>, %arg4: memref<8x128xbf16, #tpu.memory_space<vmem>>) attributes {dimension_semantics = [#tpu.dimension_semantics<parallel>], iteration_bounds = array<i64: 1>, scalar_prefetch = 0 : i64, scratch_operands = 0 : i64, tpu.core_type = #tpu.core_type<tc>, window_params = [{transform_indices = @transform_0, window_bounds = array<i64: 8, 288>}, {pipeline_mode = #tpu.pipeline_mode<synchronous>, transform_indices = @transform_1, window_bounds = array<i64: 288, 128>}, {pipeline_mode = #tpu.pipeline_mode<synchronous>, transform_indices = @transform_2, window_bounds = array<i64: 1, 128>}, {transform_indices = @transform_3, window_bounds = array<i64: 8, 128>}]} {
    %c0 = arith.constant 0 : index
    %c0_0 = arith.constant 0 : index
    %0 = vector.load %arg1[%c0, %c0_0] : memref<8x288xbf16, #tpu.memory_space<vmem>>, vector<8x288xbf16>
    %c0_1 = arith.constant 0 : index
    %c0_2 = arith.constant 0 : index
    %1 = vector.load %arg2[%c0_1, %c0_2] : memref<288x128xbf16, #tpu.memory_space<vmem>>, vector<288x128xbf16>
    %cst = arith.constant dense<0.000000e+00> : vector<8x128xf32>
    %2 = tpu.matmul %0, %1, %cst {dimension_numbers = #tpu.dot_dimension_numbers<[1], [0], [0], [1], [0, 0, 1, 1], [], []>} : vector<8x288xbf16>, vector<288x128xbf16>, vector<8x128xf32> -> vector<8x128xf32>
    %c0_3 = arith.constant 0 : index
    %c0_4 = arith.constant 0 : index
    %3 = vector.load %arg3[%c0_3, %c0_4] : memref<1x128xf32, #tpu.memory_space<vmem>>, vector<1x128xf32>
    %4 = vector.broadcast %3 : vector<1x128xf32> to vector<8x128xf32>
    %5 = arith.addf %2, %4 : vector<8x128xf32>
    %cst_5 = arith.constant 0.000000e+00 : f32
    %6 = vector.broadcast %cst_5 : f32 to vector<8x128xf32>
    %7 = arith.maximumf %5, %6 : vector<8x128xf32>
    %8 = arith.truncf %7 : vector<8x128xf32> to vector<8x128xbf16>
    %c0_6 = arith.constant 0 : index
    %c0_7 = arith.constant 0 : index
    %9 = vector.load %arg4[%c0_6, %c0_7] : memref<8x128xbf16, #tpu.memory_space<vmem>>, vector<8x128xbf16>
    tpu.vector_store %arg4[%c0_6, %c0_7], %8 {strides = array<i32>} : memref<8x128xbf16, #tpu.memory_space<vmem>>, vector<8x128xbf16>,
    return
  }
  func.func @transform_0(%arg0: i32) -> (i32, i32) {
    %c0_i32 = arith.constant 0 : i32
    %c0_i32_0 = arith.constant 0 : i32
    return %arg0, %c0_i32 : i32, i32
  }
  func.func @transform_1(%arg0: i32) -> (i32, i32) {
    %c0_i32 = arith.constant 0 : i32
    %c0_i32_0 = arith.constant 0 : i32
    %c0_i32_1 = arith.constant 0 : i32
    return %c0_i32, %c0_i32_0 : i32, i32
  }
  func.func @transform_2(%arg0: i32) -> (i32, i32) {
    %c0_i32 = arith.constant 0 : i32
    %c0_i32_0 = arith.constant 0 : i32
    %c0_i32_1 = arith.constant 0 : i32
    return %c0_i32, %c0_i32_0 : i32, i32
  }
  func.func @transform_3(%arg0: i32) -> (i32, i32) {
    %c0_i32 = arith.constant 0 : i32
    %c0_i32_0 = arith.constant 0 : i32
    return %arg0, %c0_i32 : i32, i32
  }
}

module attributes {stable_mosaic.version = 11 : i64} {
  func.func @kernel(%arg0: i32, %arg1: memref<8x576xbf16, #tpu.memory_space<vmem>>, %arg2: memref<576x128xbf16, #tpu.memory_space<vmem>>, %arg3: memref<1x128xf32, #tpu.memory_space<vmem>>, %arg4: memref<8x128xbf16, #tpu.memory_space<vmem>>) attributes {dimension_semantics = [#tpu.dimension_semantics<parallel>], iteration_bounds = array<i64: 1>, scalar_prefetch = 0 : i64, scratch_operands = 0 : i64, tpu.core_type = #tpu.core_type<tc>, window_params = [{transform_indices = @transform_0, window_bounds = array<i64: 8, 576>}, {pipeline_mode = #tpu.pipeline_mode<synchronous>, transform_indices = @transform_1, window_bounds = array<i64: 576, 128>}, {pipeline_mode = #tpu.pipeline_mode<synchronous>, transform_indices = @transform_2, window_bounds = array<i64: 1, 128>}, {transform_indices = @transform_3, window_bounds = array<i64: 8, 128>}]} {
    %c0 = arith.constant 0 : index
    %c0_0 = arith.constant 0 : index
    %0 = vector.load %arg1[%c0, %c0_0] : memref<8x576xbf16, #tpu.memory_space<vmem>>, vector<8x576xbf16>
    %c0_1 = arith.constant 0 : index
    %c0_2 = arith.constant 0 : index
    %1 = vector.load %arg2[%c0_1, %c0_2] : memref<576x128xbf16, #tpu.memory_space<vmem>>, vector<576x128xbf16>
    %cst = arith.constant dense<0.000000e+00> : vector<8x128xf32>
    %2 = tpu.matmul %0, %1, %cst {dimension_numbers = #tpu.dot_dimension_numbers<[1], [0], [0], [1], [0, 0, 1, 1], [], []>} : vector<8x576xbf16>, vector<576x128xbf16>, vector<8x128xf32> -> vector<8x128xf32>
    %c0_3 = arith.constant 0 : index
    %c0_4 = arith.constant 0 : index
    %3 = vector.load %arg3[%c0_3, %c0_4] : memref<1x128xf32, #tpu.memory_space<vmem>>, vector<1x128xf32>
    %4 = vector.broadcast %3 : vector<1x128xf32> to vector<8x128xf32>
    %5 = arith.addf %2, %4 : vector<8x128xf32>
    %cst_5 = arith.constant 0.000000e+00 : f32
    %6 = vector.broadcast %cst_5 : f32 to vector<8x128xf32>
    %7 = arith.maximumf %5, %6 : vector<8x128xf32>
    %8 = arith.truncf %7 : vector<8x128xf32> to vector<8x128xbf16>
    %c0_6 = arith.constant 0 : index
    %c0_7 = arith.constant 0 : index
    %9 = vector.load %arg4[%c0_6, %c0_7] : memref<8x128xbf16, #tpu.memory_space<vmem>>, vector<8x128xbf16>
    tpu.vector_store %arg4[%c0_6, %c0_7], %8 {strides = array<i32>} : memref<8x128xbf16, #tpu.memory_space<vmem>>, vector<8x128xbf16>,
    return
  }
  func.func @transform_0(%arg0: i32) -> (i32, i32) {
    %c0_i32 = arith.constant 0 : i32
    %c0_i32_0 = arith.constant 0 : i32
    return %arg0, %c0_i32 : i32, i32
  }
  func.func @transform_1(%arg0: i32) -> (i32, i32) {
    %c0_i32 = arith.constant 0 : i32
    %c0_i32_0 = arith.constant 0 : i32
    %c0_i32_1 = arith.constant 0 : i32
    return %c0_i32, %c0_i32_0 : i32, i32
  }
  func.func @transform_2(%arg0: i32) -> (i32, i32) {
    %c0_i32 = arith.constant 0 : i32
    %c0_i32_0 = arith.constant 0 : i32
    %c0_i32_1 = arith.constant 0 : i32
    return %c0_i32, %c0_i32_0 : i32, i32
  }
  func.func @transform_3(%arg0: i32) -> (i32, i32) {
    %c0_i32 = arith.constant 0 : i32
    %c0_i32_0 = arith.constant 0 : i32
    return %arg0, %c0_i32 : i32, i32
  }
}

module attributes {stable_mosaic.version = 11 : i64} {
  func.func @kernel(%arg0: i32, %arg1: memref<8x32xbf16, #tpu.memory_space<vmem>>, %arg2: memref<32x128xbf16, #tpu.memory_space<vmem>>, %arg3: memref<1x128xf32, #tpu.memory_space<vmem>>, %arg4: memref<8x128xbf16, #tpu.memory_space<vmem>>) attributes {dimension_semantics = [#tpu.dimension_semantics<parallel>], iteration_bounds = array<i64: 1>, scalar_prefetch = 0 : i64, scratch_operands = 0 : i64, tpu.core_type = #tpu.core_type<tc>, window_params = [{transform_indices = @transform_0, window_bounds = array<i64: 8, 32>}, {pipeline_mode = #tpu.pipeline_mode<synchronous>, transform_indices = @transform_1, window_bounds = array<i64: 32, 128>}, {pipeline_mode = #tpu.pipeline_mode<synchronous>, transform_indices = @transform_2, window_bounds = array<i64: 1, 128>}, {transform_indices = @transform_3, window_bounds = array<i64: 8, 128>}]} {
    %c0 = arith.constant 0 : index
    %c0_0 = arith.constant 0 : index
    %0 = vector.load %arg1[%c0, %c0_0] : memref<8x32xbf16, #tpu.memory_space<vmem>>, vector<8x32xbf16>
    %c0_1 = arith.constant 0 : index
    %c0_2 = arith.constant 0 : index
    %1 = vector.load %arg2[%c0_1, %c0_2] : memref<32x128xbf16, #tpu.memory_space<vmem>>, vector<32x128xbf16>
    %cst = arith.constant dense<0.000000e+00> : vector<8x128xf32>
    %2 = tpu.matmul %0, %1, %cst {dimension_numbers = #tpu.dot_dimension_numbers<[1], [0], [0], [1], [0, 0, 1, 1], [], []>} : vector<8x32xbf16>, vector<32x128xbf16>, vector<8x128xf32> -> vector<8x128xf32>
    %c0_3 = arith.constant 0 : index
    %c0_4 = arith.constant 0 : index
    %3 = vector.load %arg3[%c0_3, %c0_4] : memref<1x128xf32, #tpu.memory_space<vmem>>, vector<1x128xf32>
    %4 = vector.broadcast %3 : vector<1x128xf32> to vector<8x128xf32>
    %5 = arith.addf %2, %4 : vector<8x128xf32>
    %6 = arith.truncf %5 : vector<8x128xf32> to vector<8x128xbf16>
    %c0_5 = arith.constant 0 : index
    %c0_6 = arith.constant 0 : index
    %7 = vector.load %arg4[%c0_5, %c0_6] : memref<8x128xbf16, #tpu.memory_space<vmem>>, vector<8x128xbf16>
    tpu.vector_store %arg4[%c0_5, %c0_6], %6 {strides = array<i32>} : memref<8x128xbf16, #tpu.memory_space<vmem>>, vector<8x128xbf16>,
    return
  }
  func.func @transform_0(%arg0: i32) -> (i32, i32) {
    %c0_i32 = arith.constant 0 : i32
    %c0_i32_0 = arith.constant 0 : i32
    return %arg0, %c0_i32 : i32, i32
  }
  func.func @transform_1(%arg0: i32) -> (i32, i32) {
    %c0_i32 = arith.constant 0 : i32
    %c0_i32_0 = arith.constant 0 : i32
    %c0_i32_1 = arith.constant 0 : i32
    return %c0_i32, %c0_i32_0 : i32, i32
  }
  func.func @transform_2(%arg0: i32) -> (i32, i32) {
    %c0_i32 = arith.constant 0 : i32
    %c0_i32_0 = arith.constant 0 : i32
    %c0_i32_1 = arith.constant 0 : i32
    return %c0_i32, %c0_i32_0 : i32, i32
  }
  func.func @transform_3(%arg0: i32) -> (i32, i32) {
    %c0_i32 = arith.constant 0 : i32
    %c0_i32_0 = arith.constant 0 : i32
    return %arg0, %c0_i32 : i32, i32
  }
}

module attributes {stable_mosaic.version = 11 : i64} {
  func.func @kernel(%arg0: i32, %arg1: memref<8x576xbf16, #tpu.memory_space<vmem>>, %arg2: memref<576x128xbf16, #tpu.memory_space<vmem>>, %arg3: memref<1x128xf32, #tpu.memory_space<vmem>>, %arg4: memref<8x128xbf16, #tpu.memory_space<vmem>>, %arg5: memref<8x128xbf16, #tpu.memory_space<vmem>>) attributes {dimension_semantics = [#tpu.dimension_semantics<parallel>], iteration_bounds = array<i64: 1>, scalar_prefetch = 0 : i64, scratch_operands = 0 : i64, tpu.core_type = #tpu.core_type<tc>, window_params = [{transform_indices = @transform_0, window_bounds = array<i64: 8, 576>}, {pipeline_mode = #tpu.pipeline_mode<synchronous>, transform_indices = @transform_1, window_bounds = array<i64: 576, 128>}, {pipeline_mode = #tpu.pipeline_mode<synchronous>, transform_indices = @transform_2, window_bounds = array<i64: 1, 128>}, {transform_indices = @transform_3, window_bounds = array<i64: 8, 128>}, {transform_indices = @transform_4, window_bounds = array<i64: 8, 128>}]} {
    %c0 = arith.constant 0 : index
    %c0_0 = arith.constant 0 : index
    %0 = vector.load %arg1[%c0, %c0_0] : memref<8x576xbf16, #tpu.memory_space<vmem>>, vector<8x576xbf16>
    %c0_1 = arith.constant 0 : index
    %c0_2 = arith.constant 0 : index
    %1 = vector.load %arg2[%c0_1, %c0_2] : memref<576x128xbf16, #tpu.memory_space<vmem>>, vector<576x128xbf16>
    %cst = arith.constant dense<0.000000e+00> : vector<8x128xf32>
    %2 = tpu.matmul %0, %1, %cst {dimension_numbers = #tpu.dot_dimension_numbers<[1], [0], [0], [1], [0, 0, 1, 1], [], []>} : vector<8x576xbf16>, vector<576x128xbf16>, vector<8x128xf32> -> vector<8x128xf32>
    %c0_3 = arith.constant 0 : index
    %c0_4 = arith.constant 0 : index
    %3 = vector.load %arg3[%c0_3, %c0_4] : memref<1x128xf32, #tpu.memory_space<vmem>>, vector<1x128xf32>
    %4 = vector.broadcast %3 : vector<1x128xf32> to vector<8x128xf32>
    %5 = arith.addf %2, %4 : vector<8x128xf32>
    %c0_5 = arith.constant 0 : index
    %c0_6 = arith.constant 0 : index
    %6 = vector.load %arg4[%c0_5, %c0_6] : memref<8x128xbf16, #tpu.memory_space<vmem>>, vector<8x128xbf16>
    %7 = arith.extf %6 : vector<8x128xbf16> to vector<8x128xf32>
    %8 = arith.addf %5, %7 : vector<8x128xf32>
    %cst_7 = arith.constant 0.000000e+00 : f32
    %9 = vector.broadcast %cst_7 : f32 to vector<8x128xf32>
    %10 = arith.maximumf %8, %9 : vector<8x128xf32>
    %11 = arith.truncf %10 : vector<8x128xf32> to vector<8x128xbf16>
    %c0_8 = arith.constant 0 : index
    %c0_9 = arith.constant 0 : index
    %12 = vector.load %arg5[%c0_8, %c0_9] : memref<8x128xbf16, #tpu.memory_space<vmem>>, vector<8x128xbf16>
    tpu.vector_store %arg5[%c0_8, %c0_9], %11 {strides = array<i32>} : memref<8x128xbf16, #tpu.memory_space<vmem>>, vector<8x128xbf16>,
    return
  }
  func.func @transform_0(%arg0: i32) -> (i32, i32) {
    %c0_i32 = arith.constant 0 : i32
    %c0_i32_0 = arith.constant 0 : i32
    return %arg0, %c0_i32 : i32, i32
  }
  func.func @transform_1(%arg0: i32) -> (i32, i32) {
    %c0_i32 = arith.constant 0 : i32
    %c0_i32_0 = arith.constant 0 : i32
    %c0_i32_1 = arith.constant 0 : i32
    return %c0_i32, %c0_i32_0 : i32, i32
  }
  func.func @transform_2(%arg0: i32) -> (i32, i32) {
    %c0_i32 = arith.constant 0 : i32
    %c0_i32_0 = arith.constant 0 : i32
    %c0_i32_1 = arith.constant 0 : i32
    return %c0_i32, %c0_i32_0 : i32, i32
  }
  func.func @transform_3(%arg0: i32) -> (i32, i32) {
    %c0_i32 = arith.constant 0 : i32
    %c0_i32_0 = arith.constant 0 : i32
    return %arg0, %c0_i32 : i32, i32
  }
  func.func @transform_4(%arg0: i32) -> (i32, i32) {
    %c0_i32 = arith.constant 0 : i32
    %c0_i32_0 = arith.constant 0 : i32
    return %arg0, %c0_i32 : i32, i32
  }
}

module attributes {stable_mosaic.version = 11 : i64} {
  func.func @kernel(%arg0: i32, %arg1: memref<8x64xbf16, #tpu.memory_space<vmem>>, %arg2: memref<64x128xbf16, #tpu.memory_space<vmem>>, %arg3: memref<1x128xf32, #tpu.memory_space<vmem>>, %arg4: memref<8x128xbf16, #tpu.memory_space<vmem>>) attributes {dimension_semantics = [#tpu.dimension_semantics<parallel>], iteration_bounds = array<i64: 1>, scalar_prefetch = 0 : i64, scratch_operands = 0 : i64, tpu.core_type = #tpu.core_type<tc>, window_params = [{transform_indices = @transform_0, window_bounds = array<i64: 8, 64>}, {pipeline_mode = #tpu.pipeline_mode<synchronous>, transform_indices = @transform_1, window_bounds = array<i64: 64, 128>}, {pipeline_mode = #tpu.pipeline_mode<synchronous>, transform_indices = @transform_2, window_bounds = array<i64: 1, 128>}, {transform_indices = @transform_3, window_bounds = array<i64: 8, 128>}]} {
    %c0 = arith.constant 0 : index
    %c0_0 = arith.constant 0 : index
    %0 = vector.load %arg1[%c0, %c0_0] : memref<8x64xbf16, #tpu.memory_space<vmem>>, vector<8x64xbf16>
    %c0_1 = arith.constant 0 : index
    %c0_2 = arith.constant 0 : index
    %1 = vector.load %arg2[%c0_1, %c0_2] : memref<64x128xbf16, #tpu.memory_space<vmem>>, vector<64x128xbf16>
    %cst = arith.constant dense<0.000000e+00> : vector<8x128xf32>
    %2 = tpu.matmul %0, %1, %cst {dimension_numbers = #tpu.dot_dimension_numbers<[1], [0], [0], [1], [0, 0, 1, 1], [], []>} : vector<8x64xbf16>, vector<64x128xbf16>, vector<8x128xf32> -> vector<8x128xf32>
    %c0_3 = arith.constant 0 : index
    %c0_4 = arith.constant 0 : index
    %3 = vector.load %arg3[%c0_3, %c0_4] : memref<1x128xf32, #tpu.memory_space<vmem>>, vector<1x128xf32>
    %4 = vector.broadcast %3 : vector<1x128xf32> to vector<8x128xf32>
    %5 = arith.addf %2, %4 : vector<8x128xf32>
    %6 = arith.truncf %5 : vector<8x128xf32> to vector<8x128xbf16>
    %c0_5 = arith.constant 0 : index
    %c0_6 = arith.constant 0 : index
    %7 = vector.load %arg4[%c0_5, %c0_6] : memref<8x128xbf16, #tpu.memory_space<vmem>>, vector<8x128xbf16>
    tpu.vector_store %arg4[%c0_5, %c0_6], %6 {strides = array<i32>} : memref<8x128xbf16, #tpu.memory_space<vmem>>, vector<8x128xbf16>,
    return
  }
  func.func @transform_0(%arg0: i32) -> (i32, i32) {
    %c0_i32 = arith.constant 0 : i32
    %c0_i32_0 = arith.constant 0 : i32
    return %arg0, %c0_i32 : i32, i32
  }
  func.func @transform_1(%arg0: i32) -> (i32, i32) {
    %c0_i32 = arith.constant 0 : i32
    %c0_i32_0 = arith.constant 0 : i32
    %c0_i32_1 = arith.constant 0 : i32
    return %c0_i32, %c0_i32_0 : i32, i32
  }
  func.func @transform_2(%arg0: i32) -> (i32, i32) {
    %c0_i32 = arith.constant 0 : i32
    %c0_i32_0 = arith.constant 0 : i32
    %c0_i32_1 = arith.constant 0 : i32
    return %c0_i32, %c0_i32_0 : i32, i32
  }
  func.func @transform_3(%arg0: i32) -> (i32, i32) {
    %c0_i32 = arith.constant 0 : i32
    %c0_i32_0 = arith.constant 0 : i32
    return %arg0, %c0_i32 : i32, i32
  }
}

module attributes {stable_mosaic.version = 11 : i64} {
  func.func @kernel(%arg0: i32, %arg1: memref<8x1152xbf16, #tpu.memory_space<vmem>>, %arg2: memref<1152x128xbf16, #tpu.memory_space<vmem>>, %arg3: memref<1x128xf32, #tpu.memory_space<vmem>>, %arg4: memref<8x128xbf16, #tpu.memory_space<vmem>>, %arg5: memref<8x128xbf16, #tpu.memory_space<vmem>>) attributes {dimension_semantics = [#tpu.dimension_semantics<parallel>], iteration_bounds = array<i64: 1>, scalar_prefetch = 0 : i64, scratch_operands = 0 : i64, tpu.core_type = #tpu.core_type<tc>, window_params = [{transform_indices = @transform_0, window_bounds = array<i64: 8, 1152>}, {pipeline_mode = #tpu.pipeline_mode<synchronous>, transform_indices = @transform_1, window_bounds = array<i64: 1152, 128>}, {pipeline_mode = #tpu.pipeline_mode<synchronous>, transform_indices = @transform_2, window_bounds = array<i64: 1, 128>}, {transform_indices = @transform_3, window_bounds = array<i64: 8, 128>}, {transform_indices = @transform_4, window_bounds = array<i64: 8, 128>}]} {
    %c0 = arith.constant 0 : index
    %c0_0 = arith.constant 0 : index
    %0 = vector.load %arg1[%c0, %c0_0] : memref<8x1152xbf16, #tpu.memory_space<vmem>>, vector<8x1152xbf16>
    %c0_1 = arith.constant 0 : index
    %c0_2 = arith.constant 0 : index
    %1 = vector.load %arg2[%c0_1, %c0_2] : memref<1152x128xbf16, #tpu.memory_space<vmem>>, vector<1152x128xbf16>
    %cst = arith.constant dense<0.000000e+00> : vector<8x128xf32>
    %2 = tpu.matmul %0, %1, %cst {dimension_numbers = #tpu.dot_dimension_numbers<[1], [0], [0], [1], [0, 0, 1, 1], [], []>} : vector<8x1152xbf16>, vector<1152x128xbf16>, vector<8x128xf32> -> vector<8x128xf32>
    %c0_3 = arith.constant 0 : index
    %c0_4 = arith.constant 0 : index
    %3 = vector.load %arg3[%c0_3, %c0_4] : memref<1x128xf32, #tpu.memory_space<vmem>>, vector<1x128xf32>
    %4 = vector.broadcast %3 : vector<1x128xf32> to vector<8x128xf32>
    %5 = arith.addf %2, %4 : vector<8x128xf32>
    %c0_5 = arith.constant 0 : index
    %c0_6 = arith.constant 0 : index
    %6 = vector.load %arg4[%c0_5, %c0_6] : memref<8x128xbf16, #tpu.memory_space<vmem>>, vector<8x128xbf16>
    %7 = arith.extf %6 : vector<8x128xbf16> to vector<8x128xf32>
    %8 = arith.addf %5, %7 : vector<8x128xf32>
    %cst_7 = arith.constant 0.000000e+00 : f32
    %9 = vector.broadcast %cst_7 : f32 to vector<8x128xf32>
    %10 = arith.maximumf %8, %9 : vector<8x128xf32>
    %11 = arith.truncf %10 : vector<8x128xf32> to vector<8x128xbf16>
    %c0_8 = arith.constant 0 : index
    %c0_9 = arith.constant 0 : index
    %12 = vector.load %arg5[%c0_8, %c0_9] : memref<8x128xbf16, #tpu.memory_space<vmem>>, vector<8x128xbf16>
    tpu.vector_store %arg5[%c0_8, %c0_9], %11 {strides = array<i32>} : memref<8x128xbf16, #tpu.memory_space<vmem>>, vector<8x128xbf16>,
    return
  }
  func.func @transform_0(%arg0: i32) -> (i32, i32) {
    %c0_i32 = arith.constant 0 : i32
    %c0_i32_0 = arith.constant 0 : i32
    return %arg0, %c0_i32 : i32, i32
  }
  func.func @transform_1(%arg0: i32) -> (i32, i32) {
    %c0_i32 = arith.constant 0 : i32
    %c0_i32_0 = arith.constant 0 : i32
    %c0_i32_1 = arith.constant 0 : i32
    return %c0_i32, %c0_i32_0 : i32, i32
  }
  func.func @transform_2(%arg0: i32) -> (i32, i32) {
    %c0_i32 = arith.constant 0 : i32
    %c0_i32_0 = arith.constant 0 : i32
    %c0_i32_1 = arith.constant 0 : i32
    return %c0_i32, %c0_i32_0 : i32, i32
  }
  func.func @transform_3(%arg0: i32) -> (i32, i32) {
    %c0_i32 = arith.constant 0 : i32
    %c0_i32_0 = arith.constant 0 : i32
    return %arg0, %c0_i32 : i32, i32
  }
  func.func @transform_4(%arg0: i32) -> (i32, i32) {
    %c0_i32 = arith.constant 0 : i32
    %c0_i32_0 = arith.constant 0 : i32
    return %arg0, %c0_i32 : i32, i32
  }
}

module attributes {stable_mosaic.version = 11 : i64} {
  func.func @kernel(%arg0: i32, %arg1: memref<8x1152xbf16, #tpu.memory_space<vmem>>, %arg2: memref<1152x128xbf16, #tpu.memory_space<vmem>>, %arg3: memref<1x128xf32, #tpu.memory_space<vmem>>, %arg4: memref<8x128xbf16, #tpu.memory_space<vmem>>) attributes {dimension_semantics = [#tpu.dimension_semantics<parallel>], iteration_bounds = array<i64: 1>, scalar_prefetch = 0 : i64, scratch_operands = 0 : i64, tpu.core_type = #tpu.core_type<tc>, window_params = [{transform_indices = @transform_0, window_bounds = array<i64: 8, 1152>}, {pipeline_mode = #tpu.pipeline_mode<synchronous>, transform_indices = @transform_1, window_bounds = array<i64: 1152, 128>}, {pipeline_mode = #tpu.pipeline_mode<synchronous>, transform_indices = @transform_2, window_bounds = array<i64: 1, 128>}, {transform_indices = @transform_3, window_bounds = array<i64: 8, 128>}]} {
    %c0 = arith.constant 0 : index
    %c0_0 = arith.constant 0 : index
    %0 = vector.load %arg1[%c0, %c0_0] : memref<8x1152xbf16, #tpu.memory_space<vmem>>, vector<8x1152xbf16>
    %c0_1 = arith.constant 0 : index
    %c0_2 = arith.constant 0 : index
    %1 = vector.load %arg2[%c0_1, %c0_2] : memref<1152x128xbf16, #tpu.memory_space<vmem>>, vector<1152x128xbf16>
    %cst = arith.constant dense<0.000000e+00> : vector<8x128xf32>
    %2 = tpu.matmul %0, %1, %cst {dimension_numbers = #tpu.dot_dimension_numbers<[1], [0], [0], [1], [0, 0, 1, 1], [], []>} : vector<8x1152xbf16>, vector<1152x128xbf16>, vector<8x128xf32> -> vector<8x128xf32>
    %c0_3 = arith.constant 0 : index
    %c0_4 = arith.constant 0 : index
    %3 = vector.load %arg3[%c0_3, %c0_4] : memref<1x128xf32, #tpu.memory_space<vmem>>, vector<1x128xf32>
    %4 = vector.broadcast %3 : vector<1x128xf32> to vector<8x128xf32>
    %5 = arith.addf %2, %4 : vector<8x128xf32>
    %cst_5 = arith.constant 0.000000e+00 : f32
    %6 = vector.broadcast %cst_5 : f32 to vector<8x128xf32>
    %7 = arith.maximumf %5, %6 : vector<8x128xf32>
    %8 = arith.truncf %7 : vector<8x128xf32> to vector<8x128xbf16>
    %c0_6 = arith.constant 0 : index
    %c0_7 = arith.constant 0 : index
    %9 = vector.load %arg4[%c0_6, %c0_7] : memref<8x128xbf16, #tpu.memory_space<vmem>>, vector<8x128xbf16>
    tpu.vector_store %arg4[%c0_6, %c0_7], %8 {strides = array<i32>} : memref<8x128xbf16, #tpu.memory_space<vmem>>, vector<8x128xbf16>,
    return
  }
  func.func @transform_0(%arg0: i32) -> (i32, i32) {
    %c0_i32 = arith.constant 0 : i32
    %c0_i32_0 = arith.constant 0 : i32
    return %arg0, %c0_i32 : i32, i32
  }
  func.func @transform_1(%arg0: i32) -> (i32, i32) {
    %c0_i32 = arith.constant 0 : i32
    %c0_i32_0 = arith.constant 0 : i32
    %c0_i32_1 = arith.constant 0 : i32
    return %c0_i32, %c0_i32_0 : i32, i32
  }
  func.func @transform_2(%arg0: i32) -> (i32, i32) {
    %c0_i32 = arith.constant 0 : i32
    %c0_i32_0 = arith.constant 0 : i32
    %c0_i32_1 = arith.constant 0 : i32
    return %c0_i32, %c0_i32_0 : i32, i32
  }
  func.func @transform_3(%arg0: i32) -> (i32, i32) {
    %c0_i32 = arith.constant 0 : i32
    %c0_i32_0 = arith.constant 0 : i32
    return %arg0, %c0_i32 : i32, i32
  }
}

module attributes {stable_mosaic.version = 11 : i64} {
  func.func @_head_kernel(%arg0: i32, %arg1: memref<8x1x128xbf16, #tpu.memory_space<vmem>>, %arg2: memref<128x128xf32, #tpu.memory_space<vmem>>, %arg3: memref<1x128xf32, #tpu.memory_space<vmem>>, %arg4: memref<8x128xf32, #tpu.memory_space<vmem>>) attributes {dimension_semantics = [#tpu.dimension_semantics<arbitrary>], iteration_bounds = array<i64: 1>, scalar_prefetch = 0 : i64, scratch_operands = 0 : i64, tpu.core_type = #tpu.core_type<tc>, window_params = [{pipeline_mode = #tpu.pipeline_mode<synchronous>, transform_indices = @transform_0, window_bounds = array<i64: 8, 1, 128>}, {pipeline_mode = #tpu.pipeline_mode<synchronous>, transform_indices = @transform_1, window_bounds = array<i64: 128, 128>}, {pipeline_mode = #tpu.pipeline_mode<synchronous>, transform_indices = @transform_2, window_bounds = array<i64: 1, 128>}, {pipeline_mode = #tpu.pipeline_mode<synchronous>, transform_indices = @transform_3, window_bounds = array<i64: 8, 128>}]} {
    %c0 = arith.constant 0 : index
    %c0_0 = arith.constant 0 : index
    %c0_1 = arith.constant 0 : index
    %0 = vector.load %arg1[%c0, %c0_0, %c0_1] : memref<8x1x128xbf16, #tpu.memory_space<vmem>>, vector<8x1x128xbf16>
    %1 = arith.extf %0 : vector<8x1x128xbf16> to vector<8x1x128xf32>
    %cst = arith.constant dense<0.000000e+00> : vector<8x128xf32>
    %2 = vector.multi_reduction <add>, %1, %cst [1] : vector<8x1x128xf32> to vector<8x128xf32>
    %cst_2 = arith.constant 1.000000e+00 : f32
    %3 = vector.broadcast %cst_2 : f32 to vector<8x128xf32>
    %4 = arith.divf %2, %3 : vector<8x128xf32>
    %c0_3 = arith.constant 0 : index
    %c0_4 = arith.constant 0 : index
    %5 = vector.load %arg2[%c0_3, %c0_4] : memref<128x128xf32, #tpu.memory_space<vmem>>, vector<128x128xf32>
    %cst_5 = arith.constant dense<0.000000e+00> : vector<8x128xf32>
    %6 = tpu.matmul %4, %5, %cst_5 {dimension_numbers = #tpu.dot_dimension_numbers<[1], [0], [0], [1], [0, 0, 1, 1], [], []>} : vector<8x128xf32>, vector<128x128xf32>, vector<8x128xf32> -> vector<8x128xf32>
    %c0_6 = arith.constant 0 : index
    %c0_7 = arith.constant 0 : index
    %7 = vector.load %arg3[%c0_6, %c0_7] : memref<1x128xf32, #tpu.memory_space<vmem>>, vector<1x128xf32>
    %8 = vector.broadcast %7 : vector<1x128xf32> to vector<8x128xf32>
    %9 = arith.addf %6, %8 : vector<8x128xf32>
    %c0_8 = arith.constant 0 : index
    %c0_9 = arith.constant 0 : index
    %10 = vector.load %arg4[%c0_8, %c0_9] : memref<8x128xf32, #tpu.memory_space<vmem>>, vector<8x128xf32>
    tpu.vector_store %arg4[%c0_8, %c0_9], %9 {strides = array<i32>} : memref<8x128xf32, #tpu.memory_space<vmem>>, vector<8x128xf32>,
    return
  }
  func.func @transform_0(%arg0: i32) -> (i32, i32, i32) {
    %c0_i32 = arith.constant 0 : i32
    %c0_i32_0 = arith.constant 0 : i32
    %c0_i32_1 = arith.constant 0 : i32
    %c0_i32_2 = arith.constant 0 : i32
    return %c0_i32, %c0_i32_0, %c0_i32_1 : i32, i32, i32
  }
  func.func @transform_1(%arg0: i32) -> (i32, i32) {
    %c0_i32 = arith.constant 0 : i32
    %c0_i32_0 = arith.constant 0 : i32
    %c0_i32_1 = arith.constant 0 : i32
    return %c0_i32, %c0_i32_0 : i32, i32
  }
  func.func @transform_2(%arg0: i32) -> (i32, i32) {
    %c0_i32 = arith.constant 0 : i32
    %c0_i32_0 = arith.constant 0 : i32
    %c0_i32_1 = arith.constant 0 : i32
    return %c0_i32, %c0_i32_0 : i32, i32
  }
  func.func @transform_3(%arg0: i32) -> (i32, i32) {
    %c0_i32 = arith.constant 0 : i32
    %c0_i32_0 = arith.constant 0 : i32
    %c0_i32_1 = arith.constant 0 : i32
    return %c0_i32, %c0_i32_0 : i32, i32
  }
}

</mosaic_0001>

<llo_original>
// kernel: resnet_forward.24
$region0: #{resnet_forward.24}
  #allocation0 [shape = 'u32[]', space=smem, size = 0x4, offset = 0x4, fixed_abs, tag = 'smem constant byte address 0x4 - core index']
  #allocation1 [shape = 'u32[144,128]{1,0:T(1,128)}', space=vmem, size = 0x12000, scoped, tag = 'internal scratch']
  %s0 = inlined_call_operand.vmem [shape: bf16[512,32], index: 0, kind: input, shape index: {}]
  %s1 = inlined_call_operand.vmem [shape: bf16[32,128], index: 1, kind: input, shape index: {}]
  %s2 = inlined_call_operand.vmem [shape: f32[1,128], index: 2, kind: input, shape index: {}]
  %s3 = inlined_call_operand.vmem [shape: bf16[512,128], index: 3, kind: output, shape index: {}]
  %s4 = sld [smem:[#allocation0]]
  $region22: #{resnet_forward.24} parent=0
    _
  %s6 = ssub.s32 1, %s4
  %s7 = scalar_select 0, %s6, %s4
  // Predicated region
  $region2: #{resnet_forward.24} parent=0 // pred_check
    _
  $region3: #{resnet_forward.24} parent=0 // pred_check_branch
    %9 = sbr.rel (0) target = $region5
  $region4: #{resnet_forward.24} parent=0 // pred_region
    _
  $region5: #{resnet_forward.24} parent=0 // pred_fallthru
    _
  // Predicated region
  $region6: #{resnet_forward.24} parent=0 // pred_check
    _
  $region7: #{resnet_forward.24} parent=0 // pred_check_branch
    %11 = sbr.rel (0) target = $region9
  $region8: #{resnet_forward.24} parent=0 // pred_region
    _
  $region9: #{resnet_forward.24} parent=0 // pred_fallthru
    _
  // Predicated region
  $region10: #{resnet_forward.24} parent=0 // pred_check
    _
  $region11: #{resnet_forward.24} parent=0 // pred_check_branch
    %13 = sbr.rel (0) target = $region13
  $region12: #{resnet_forward.24} parent=0 // pred_region
    _
  $region13: #{resnet_forward.24} parent=0 // pred_fallthru
    _
  %v15 = vld [vmem:[%s0] sm:$0xf]
  %v16 = vld [vmem:[%s0 + $0x4] sm:$0xf]
  %v17 = vld [vmem:[%s0 + $0x8] sm:$0xf]
  %v18 = vld [vmem:[%s0 + $0xc] sm:$0xf]
  %v19 = vld [vmem:[%s0 + $0x10] sm:$0xf]
  %v20 = vld [vmem:[%s0 + $0x14] sm:$0xf]
  %v21 = vld [vmem:[%s0 + $0x18] sm:$0xf]
  %v22 = vld [vmem:[%s0 + $0x1c] sm:$0xf]
  %v23 = vld [vmem:[%s0 + $0x20] sm:$0xf]
  %v24 = vld [vmem:[%s0 + $0x24] sm:$0xf]
  %v25 = vld [vmem:[%s0 + $0x28] sm:$0xf]
  %v26 = vld [vmem:[%s0 + $0x2c] sm:$0xf]
  %v27 = vld [vmem:[%s0 + $0x30] sm:$0xf]
  %v28 = vld [vmem:[%s0 + $0x34] sm:$0xf]
  %v29 = vld [vmem:[%s0 + $0x38] sm:$0xf]
  %v30 = vld [vmem:[%s0 + $0x3c] sm:$0xf]
  %v31 = vld [vmem:[%s0 + $0x40] sm:$0xf]
  %v32 = vld [vmem:[%s0 + $0x44] sm:$0xf]
  %v33 = vld [vmem:[%s0 + $0x48] sm:$0xf]
  %v34 = vld [vmem:[%s0 + $0x4c] sm:$0xf]
  %v35 = vld [vmem:[%s0 + $0x50] sm:$0xf]
  %v36 = vld [vmem:[%s0 + $0x54] sm:$0xf]
  %v37 = vld [vmem:[%s0 + $0x58] sm:$0xf]
  %v38 = vld [vmem:[%s0 + $0x5c] sm:$0xf]
  %v39 = vld [vmem:[%s0 + $0x60] sm:$0xf]
  %v40 = vld [vmem:[%s0 + $0x64] sm:$0xf]
  %v41 = vld [vmem:[%s0 + $0x68] sm:$0xf]
  %v42 = vld [vmem:[%s0 + $0x6c] sm:$0xf]
  %v43 = vld [vmem:[%s0 + $0x70] sm:$0xf]
  %v44 = vld [vmem:[%s0 + $0x74] sm:$0xf]
  %v45 = vld [vmem:[%s0 + $0x78] sm:$0xf]
  %v46 = vld [vmem:[%s0 + $0x7c] sm:$0xf]
  %v47 = vld [vmem:[%s0 + $0x80] sm:$0xf]
  %v48 = vld [vmem:[%s0 + $0x84] sm:$0xf]
  %v49 = vld [vmem:[%s0 + $0x88] sm:$0xf]
  %v50 = vld [vmem:[%s0 + $0x8c] sm:$0xf]
  %v51 = vld [vmem:[%s0 + $0x90] sm:$0xf]
  %v52 = vld [vmem:[%s0 + $0x94] sm:$0xf]
  %v53 = vld [vmem:[%s0 + $0x98] sm:$0xf]
  %v54 = vld [vmem:[%s0 + $0x9c] sm:$0xf]
  %v55 = vld [vmem:[%s0 + $0xa0] sm:$0xf]
  %v56 = vld [vmem:[%s0 + $0xa4] sm:$0xf]
  %v57 = vld [vmem:[%s0 + $0xa8] sm:$0xf]
  %v58 = vld [vmem:[%s0 + $0xac] sm:$0xf]
  %v59 = vld [vmem:[%s0 + $0xb0] sm:$0xf]
  %v60 = vld [vmem:[%s0 + $0xb4] sm:$0xf]
  %v61 = vld [vmem:[%s0 + $0xb8] sm:$0xf]
  %v62 = vld [vmem:[%s0 + $0xbc] sm:$0xf]
  %v63 = vld [vmem:[%s0 + $0xc0] sm:$0xf]
  %v64 = vld [vmem:[%s0 + $0xc4] sm:$0xf]
  %v65 = vld [vmem:[%s0 + $0xc8] sm:$0xf]
  %v66 = vld [vmem:[%s0 + $0xcc] sm:$0xf]
  %v67 = vld [vmem:[%s0 + $0xd0] sm:$0xf]
  %v68 = vld [vmem:[%s0 + $0xd4] sm:$0xf]
  %v69 = vld [vmem:[%s0 + $0xd8] sm:$0xf]
  %v70 = vld [vmem:[%s0 + $0xdc] sm:$0xf]
  %v71 = vld [vmem:[%s0 + $0xe0] sm:$0xf]
  %v72 = vld [vmem:[%s0 + $0xe4] sm:$0xf]
  %v73 = vld [vmem:[%s0 + $0xe8] sm:$0xf]
  %v74 = vld [vmem:[%s0 + $0xec] sm:$0xf]
  %v75 = vld [vmem:[%s0 + $0xf0] sm:$0xf]
  %v76 = vld [vmem:[%s0 + $0xf4] sm:$0xf]
  %v77 = vld [vmem:[%s0 + $0xf8] sm:$0xf]
  %v78 = vld [vmem:[%s0 + $0xfc] sm:$0xf]
  %v79 = vld [vmem:[%s1] sm:$0xf]
  %v80 = vld [vmem:[%s1 + $0x4] sm:$0xf]
  %v81 = vld [vmem:[%s1 + $0x8] sm:$0xf]
  %v82 = vld [vmem:[%s1 + $0xc] sm:$0xf]
  %v83 = vld [vmem:[%s2] sm:$0x1]
  %v85 = vlaneseq
  %v86 = vshrl.u32 %v85, 7
  %v87 = vsub.s32 0, %v86
  %v88 = vrot.slane %v83, %v87
  %v154 = vunpack.c.l.b16 %v15
  %v155 = vunpack.c.l.b16 %v16
  %v156 = vunpack.c.l.b16 %v17
  %v157 = vunpack.c.l.b16 %v18
  %v158 = vunpack.c.l.b16 %v19
  %v159 = vunpack.c.l.b16 %v20
  %v160 = vunpack.c.l.b16 %v21
  %v161 = vunpack.c.l.b16 %v22
  %v162 = vunpack.c.l.b16 %v23
  %v163 = vunpack.c.l.b16 %v24
  %v164 = vunpack.c.l.b16 %v25
  %v165 = vunpack.c.l.b16 %v26
  %v166 = vunpack.c.l.b16 %v27
  %v167 = vunpack.c.l.b16 %v28
  %v168 = vunpack.c.l.b16 %v29
  %v169 = vunpack.c.l.b16 %v30
  %v170 = vunpack.c.l.b16 %v31
  %v171 = vunpack.c.l.b16 %v32
  %v172 = vunpack.c.l.b16 %v33
  %v173 = vunpack.c.l.b16 %v34
  %v174 = vunpack.c.l.b16 %v35
  %v175 = vunpack.c.l.b16 %v36
  %v176 = vunpack.c.l.b16 %v37
  %v177 = vunpack.c.l.b16 %v38
  %v178 = vunpack.c.l.b16 %v39
  %v179 = vunpack.c.l.b16 %v40
  %v180 = vunpack.c.l.b16 %v41
  %v181 = vunpack.c.l.b16 %v42
  %v182 = vunpack.c.l.b16 %v43
  %v183 = vunpack.c.l.b16 %v44
  %v184 = vunpack.c.l.b16 %v45
  %v185 = vunpack.c.l.b16 %v46
  %v186 = vunpack.c.l.b16 %v47
  %v187 = vunpack.c.l.b16 %v48
  %v188 = vunpack.c.l.b16 %v49
  %v189 = vunpack.c.l.b16 %v50
  %v190 = vunpack.c.l.b16 %v51
  %v191 = vunpack.c.l.b16 %v52
  %v192 = vunpack.c.l.b16 %v53
  %v193 = vunpack.c.l.b16 %v54
  %v194 = vunpack.c.l.b16 %v55
  %v195 = vunpack.c.l.b16 %v56
  %v196 = vunpack.c.l.b16 %v57
  %v197 = vunpack.c.l.b16 %v58
  %v198 = vunpack.c.l.b16 %v59
  %v199 = vunpack.c.l.b16 %v60
  %v200 = vunpack.c.l.b16 %v61
  %v201 = vunpack.c.l.b16 %v62
  %v202 = vunpack.c.l.b16 %v63
  %v203 = vunpack.c.l.b16 %v64
  %v204 = vunpack.c.l.b16 %v65
  %v205 = vunpack.c.l.b16 %v66
  %v206 = vunpack.c.l.b16 %v67
  %v207 = vunpack.c.l.b16 %v68
  %v208 = vunpack.c.l.b16 %v69
  %v209 = vunpack.c.l.b16 %v70
  %v210 = vunpack.c.l.b16 %v71
  %v211 = vunpack.c.l.b16 %v72
  %v212 = vunpack.c.l.b16 %v73
  %v213 = vunpack.c.l.b16 %v74
  %v214 = vunpack.c.l.b16 %v75
  %v215 = vunpack.c.l.b16 %v76
  %v216 = vunpack.c.l.b16 %v77
  %v217 = vunpack.c.l.b16 %v78
  %v218 = vpack.c.b16 %v155, %v154
  %v219 = vpack.c.b16 %v157, %v156
  %v220 = vpack.c.b16 %v159, %v158
  %v221 = vpack.c.b16 %v161, %v160
  %v222 = vpack.c.b16 %v163, %v162
  %v223 = vpack.c.b16 %v165, %v164
  %v224 = vpack.c.b16 %v167, %v166
  %v225 = vpack.c.b16 %v169, %v168
  %v226 = vpack.c.b16 %v171, %v170
  %v227 = vpack.c.b16 %v173, %v172
  %v228 = vpack.c.b16 %v175, %v174
  %v229 = vpack.c.b16 %v177, %v176
  %v230 = vpack.c.b16 %v179, %v178
  %v231 = vpack.c.b16 %v181, %v180
  %v232 = vpack.c.b16 %v183, %v182
  %v233 = vpack.c.b16 %v185, %v184
  %v234 = vpack.c.b16 %v187, %v186
  %v235 = vpack.c.b16 %v189, %v188
  %v236 = vpack.c.b16 %v191, %v190
  %v237 = vpack.c.b16 %v193, %v192
  %v238 = vpack.c.b16 %v195, %v194
  %v239 = vpack.c.b16 %v197, %v196
  %v240 = vpack.c.b16 %v199, %v198
  %v241 = vpack.c.b16 %v201, %v200
  %v242 = vpack.c.b16 %v203, %v202
  %v243 = vpack.c.b16 %v205, %v204
  %v244 = vpack.c.b16 %v207, %v206
  %v245 = vpack.c.b16 %v209, %v208
  %v246 = vpack.c.b16 %v211, %v210
  %v247 = vpack.c.b16 %v213, %v212
  %v248 = vpack.c.b16 %v215, %v214
  %v249 = vpack.c.b16 %v217, %v216
  %v254 = vunpack.c.l.b16 %v79
  %v255 = vunpack.c.l.b16 %v80
  %v256 = vunpack.c.l.b16 %v81
  %v257 = vunpack.c.l.b16 %v82
  %v258 = vpack.c.b16 %v255, %v254
  %v259 = vpack.c.b16 %v257, %v256
  %vm262 = vcmask 261120
  %v264 = vsel %vm262, %v218, 0
  %v267 = vsel %vm262, %v219, 0
  %v270 = vsel %vm262, %v220, 0
  %v273 = vsel %vm262, %v221, 0
  %v276 = vsel %vm262, %v222, 0
  %v279 = vsel %vm262, %v223, 0
  %v282 = vsel %vm262, %v224, 0
  %v285 = vsel %vm262, %v225, 0
  %v288 = vsel %vm262, %v226, 0
  %v291 = vsel %vm262, %v227, 0
  %v294 = vsel %vm262, %v228, 0
  %v297 = vsel %vm262, %v229, 0
  %v300 = vsel %vm262, %v230, 0
  %v303 = vsel %vm262, %v231, 0
  %v306 = vsel %vm262, %v232, 0
  %v309 = vsel %vm262, %v233, 0
  %v312 = vsel %vm262, %v234, 0
  %v315 = vsel %vm262, %v235, 0
  %v318 = vsel %vm262, %v236, 0
  %v321 = vsel %vm262, %v237, 0
  %v324 = vsel %vm262, %v238, 0
  %v327 = vsel %vm262, %v239, 0
  %v330 = vsel %vm262, %v240, 0
  %v333 = vsel %vm262, %v241, 0
  %v336 = vsel %vm262, %v242, 0
  %v339 = vsel %vm262, %v243, 0
  %v342 = vsel %vm262, %v244, 0
  %v345 = vsel %vm262, %v245, 0
  %v348 = vsel %vm262, %v246, 0
  %v351 = vsel %vm262, %v247, 0
  %v354 = vsel %vm262, %v248, 0
  %v357 = vsel %vm262, %v249, 0
  %359 = vmatprep.subr.bf16.mxu0 0
  %360 = vmatpush1.bf16.msra.mxu0 %v258
  %361 = vmatprep.subr.bf16.mxu0 0
  %362 = vmatpush1.bf16.msra.mxu0 %v259
  %363 = vmatprep.subr.bf16.mxu0 0
  %364 = vmatpush1.bf16.msra.mxu0 0
  %365 = vmatprep.subr.bf16.mxu0 0
  %366 = vmatpush1.bf16.msra.mxu0 0
  %367 = vmatprep.subr.bf16.mxu0 0
  %368 = vmatpush1.bf16.msra.mxu0 0
  %369 = vmatprep.subr.bf16.mxu0 0
  %370 = vmatpush1.bf16.msra.mxu0 0
  %371 = vmatprep.subr.bf16.mxu0 0
  %372 = vmatpush1.bf16.msra.mxu0 0
  %373 = vmatprep.subr.bf16.mxu0 0
  %374 = vmatpush1.bf16.msra.mxu0 0
  %375 = vmatprep.subr.bf16.mxu0 0
  %376 = vmatpush1.bf16.msra.mxu0 0
  %377 = vmatprep.subr.bf16.mxu0 0
  %378 = vmatpush1.bf16.msra.mxu0 0
  %379 = vmatprep.subr.bf16.mxu0 0
  %380 = vmatpush1.bf16.msra.mxu0 0
  %381 = vmatprep.subr.bf16.mxu0 0
  %382 = vmatpush1.bf16.msra.mxu0 0
  %383 = vmatprep.subr.bf16.mxu0 0
  %384 = vmatpush1.bf16.msra.mxu0 0
  %385 = vmatprep.subr.bf16.mxu0 0
  %386 = vmatpush1.bf16.msra.mxu0 0
  %387 = vmatprep.subr.bf16.mxu0 0
  %388 = vmatpush1.bf16.msra.mxu0 0
  %389 = vmatprep.subr.bf16.mxu0 0
  %390 = vmatpush1.bf16.msra.mxu0 0
  %391 = vmatprep.mubr.bf16.mxu0 0
  %392 = vmatmul.mubr.bf16.gmra.mrb[0].mxu0 %v264
  %v393 = vpop.f32.mrb[0].mxu0
  %v394 = vadd.f32 %v88, %v393
  %v395 = vpop.f32.mrb[0].mxu0
  %v396 = vpop.f32.mrb[0].mxu0
  %v397 = vadd.f32 %v88, %v396
  %v398 = vpop.f32.mrb[0].mxu0
  %399 = vmatprep.mubr.bf16.mxu0 0
  %400 = vmatmul.mubr.bf16.gmra.mrb[0].mxu0 %v267
  %v401 = vpop.f32.mrb[0].mxu0
  %v402 = vadd.f32 %v88, %v401
  %v403 = vpop.f32.mrb[0].mxu0
  %v404 = vpop.f32.mrb[0].mxu0
  %v405 = vadd.f32 %v88, %v404
  %v406 = vpop.f32.mrb[0].mxu0
  %407 = vmatprep.mubr.bf16.mxu0 0
  %408 = vmatmul.mubr.bf16.gmra.mrb[0].mxu0 %v270
  %v409 = vpop.f32.mrb[0].mxu0
  %v410 = vadd.f32 %v88, %v409
  %v411 = vpop.f32.mrb[0].mxu0
  %v412 = vpop.f32.mrb[0].mxu0
  %v413 = vadd.f32 %v88, %v412
  %v414 = vpop.f32.mrb[0].mxu0
  %415 = vmatprep.mubr.bf16.mxu0 0
  %416 = vmatmul.mubr.bf16.gmra.mrb[0].mxu0 %v273
  %v417 = vpop.f32.mrb[0].mxu0
  %v418 = vadd.f32 %v88, %v417
  %v419 = vpop.f32.mrb[0].mxu0
  %v420 = vpop.f32.mrb[0].mxu0
  %v421 = vadd.f32 %v88, %v420
  %v422 = vpop.f32.mrb[0].mxu0
  %423 = vmatprep.mubr.bf16.mxu0 0
  %424 = vmatmul.mubr.bf16.gmra.mrb[0].mxu0 %v276
  %v425 = vpop.f32.mrb[0].mxu0
  %v426 = vadd.f32 %v88, %v425
  %v427 = vpop.f32.mrb[0].mxu0
  %v428 = vpop.f32.mrb[0].mxu0
  %v429 = vadd.f32 %v88, %v428
  %v430 = vpop.f32.mrb[0].mxu0
  %431 = vmatprep.mubr.bf16.mxu0 0
  %432 = vmatmul.mubr.bf16.gmra.mrb[0].mxu0 %v279
  %v433 = vpop.f32.mrb[0].mxu0
  %v434 = vadd.f32 %v88, %v433
  %v435 = vpop.f32.mrb[0].mxu0
  %v436 = vpop.f32.mrb[0].mxu0
  %v437 = vadd.f32 %v88, %v436
  %v438 = vpop.f32.mrb[0].mxu0
  %439 = vmatprep.mubr.bf16.mxu0 0
  %440 = vmatmul.mubr.bf16.gmra.mrb[0].mxu0 %v282
  %v441 = vpop.f32.mrb[0].mxu0
  %v442 = vadd.f32 %v88, %v441
  %v443 = vpop.f32.mrb[0].mxu0
  %v444 = vpop.f32.mrb[0].mxu0
  %v445 = vadd.f32 %v88, %v444
  %v446 = vpop.f32.mrb[0].mxu0
  %447 = vmatprep.mubr.bf16.mxu0 0
  %448 = vmatmul.mubr.bf16.gmra.mrb[0].mxu0 %v285
  %v449 = vpop.f32.mrb[0].mxu0
  %v450 = vadd.f32 %v88, %v449
  %v451 = vpop.f32.mrb[0].mxu0
  %v452 = vpop.f32.mrb[0].mxu0
  %v453 = vadd.f32 %v88, %v452
  %v454 = vpop.f32.mrb[0].mxu0
  %455 = vmatprep.mubr.bf16.mxu0 0
  %456 = vmatmul.mubr.bf16.gmra.mrb[0].mxu0 %v288
  %v457 = vpop.f32.mrb[0].mxu0
  %v458 = vadd.f32 %v88, %v457
  %v459 = vpop.f32.mrb[0].mxu0
  %v460 = vpop.f32.mrb[0].mxu0
  %v461 = vadd.f32 %v88, %v460
  %v462 = vpop.f32.mrb[0].mxu0
  %463 = vmatprep.mubr.bf16.mxu0 0
  %464 = vmatmul.mubr.bf16.gmra.mrb[0].mxu0 %v291
  %v465 = vpop.f32.mrb[0].mxu0
  %v466 = vadd.f32 %v88, %v465
  %v467 = vpop.f32.mrb[0].mxu0
  %v468 = vpop.f32.mrb[0].mxu0
  %v469 = vadd.f32 %v88, %v468
  %v470 = vpop.f32.mrb[0].mxu0
  %471 = vmatprep.mubr.bf16.mxu0 0
  %472 = vmatmul.mubr.bf16.gmra.mrb[0].mxu0 %v294
  %v473 = vpop.f32.mrb[0].mxu0
  %v474 = vadd.f32 %v88, %v473
  %v475 = vpop.f32.mrb[0].mxu0
  %v476 = vpop.f32.mrb[0].mxu0
  %v477 = vadd.f32 %v88, %v476
  %v478 = vpop.f32.mrb[0].mxu0
  %479 = vmatprep.mubr.bf16.mxu0 0
  %480 = vmatmul.mubr.bf16.gmra.mrb[0].mxu0 %v297
  %v481 = vpop.f32.mrb[0].mxu0
  %v482 = vadd.f32 %v88, %v481
  %v483 = vpop.f32.mrb[0].mxu0
  %v484 = vpop.f32.mrb[0].mxu0
  %v485 = vadd.f32 %v88, %v484
  %v486 = vpop.f32.mrb[0].mxu0
  %487 = vmatprep.mubr.bf16.mxu0 0
  %488 = vmatmul.mubr.bf16.gmra.mrb[0].mxu0 %v300
  %v489 = vpop.f32.mrb[0].mxu0
  %v490 = vadd.f32 %v88, %v489
  %v491 = vpop.f32.mrb[0].mxu0
  %v492 = vpop.f32.mrb[0].mxu0
  %v493 = vadd.f32 %v88, %v492
  %v494 = vpop.f32.mrb[0].mxu0
  %495 = vmatprep.mubr.bf16.mxu0 0
  %496 = vmatmul.mubr.bf16.gmra.mrb[0].mxu0 %v303
  %v497 = vpop.f32.mrb[0].mxu0
  %v498 = vadd.f32 %v88, %v497
  %v499 = vpop.f32.mrb[0].mxu0
  %v500 = vpop.f32.mrb[0].mxu0
  %v501 = vadd.f32 %v88, %v500
  %v502 = vpop.f32.mrb[0].mxu0
  %503 = vmatprep.mubr.bf16.mxu0 0
  %504 = vmatmul.mubr.bf16.gmra.mrb[0].mxu0 %v306
  %v505 = vpop.f32.mrb[0].mxu0
  %v506 = vadd.f32 %v88, %v505
  %v507 = vpop.f32.mrb[0].mxu0
  %v508 = vpop.f32.mrb[0].mxu0
  %v509 = vadd.f32 %v88, %v508
  %v510 = vpop.f32.mrb[0].mxu0
  %511 = vmatprep.mubr.bf16.mxu0 0
  %512 = vmatmul.mubr.bf16.gmra.mrb[0].mxu0 %v309
  %v513 = vpop.f32.mrb[0].mxu0
  %v514 = vadd.f32 %v88, %v513
  %v515 = vpop.f32.mrb[0].mxu0
  %v516 = vpop.f32.mrb[0].mxu0
  %v517 = vadd.f32 %v88, %v516
  %v518 = vpop.f32.mrb[0].mxu0
  %519 = vmatprep.mubr.bf16.mxu0 0
  %520 = vmatmul.mubr.bf16.gmra.mrb[0].mxu0 %v312
  %v521 = vpop.f32.mrb[0].mxu0
  %v522 = vadd.f32 %v88, %v521
  %v523 = vpop.f32.mrb[0].mxu0
  %v524 = vpop.f32.mrb[0].mxu0
  %v525 = vadd.f32 %v88, %v524
  %v526 = vpop.f32.mrb[0].mxu0
  %527 = vmatprep.mubr.bf16.mxu0 0
  %528 = vmatmul.mubr.bf16.gmra.mrb[0].mxu0 %v315
  %v529 = vpop.f32.mrb[0].mxu0
  %v530 = vadd.f32 %v88, %v529
  %v531 = vpop.f32.mrb[0].mxu0
  %v532 = vpop.f32.mrb[0].mxu0
  %v533 = vadd.f32 %v88, %v532
  %v534 = vpop.f32.mrb[0].mxu0
  %535 = vmatprep.mubr.bf16.mxu0 0
  %536 = vmatmul.mubr.bf16.gmra.mrb[0].mxu0 %v318
  %v537 = vpop.f32.mrb[0].mxu0
  %v538 = vadd.f32 %v88, %v537
  %v539 = vpop.f32.mrb[0].mxu0
  %v540 = vpop.f32.mrb[0].mxu0
  %v541 = vadd.f32 %v88, %v540
  %v542 = vpop.f32.mrb[0].mxu0
  %543 = vmatprep.mubr.bf16.mxu0 0
  %544 = vmatmul.mubr.bf16.gmra.mrb[0].mxu0 %v321
  %v545 = vpop.f32.mrb[0].mxu0
  %v546 = vadd.f32 %v88, %v545
  %v547 = vpop.f32.mrb[0].mxu0
  %v548 = vpop.f32.mrb[0].mxu0
  %v549 = vadd.f32 %v88, %v548
  %v550 = vpop.f32.mrb[0].mxu0
  %551 = vmatprep.mubr.bf16.mxu0 0
  %552 = vmatmul.mubr.bf16.gmra.mrb[0].mxu0 %v324
  %v553 = vpop.f32.mrb[0].mxu0
  %v554 = vadd.f32 %v88, %v553
  %v555 = vpop.f32.mrb[0].mxu0
  %v556 = vpop.f32.mrb[0].mxu0
  %v557 = vadd.f32 %v88, %v556
  %v558 = vpop.f32.mrb[0].mxu0
  %559 = vmatprep.mubr.bf16.mxu0 0
  %560 = vmatmul.mubr.bf16.gmra.mrb[0].mxu0 %v327
  %v561 = vpop.f32.mrb[0].mxu0
  %v562 = vadd.f32 %v88, %v561
  %v563 = vpop.f32.mrb[0].mxu0
  %v564 = vpop.f32.mrb[0].mxu0
  %v565 = vadd.f32 %v88, %v564
  %v566 = vpop.f32.mrb[0].mxu0
  %567 = vmatprep.mubr.bf16.mxu0 0
  %568 = vmatmul.mubr.bf16.gmra.mrb[0].mxu0 %v330
  %v569 = vpop.f32.mrb[0].mxu0
  %v570 = vadd.f32 %v88, %v569
  %v571 = vpop.f32.mrb[0].mxu0
  %v572 = vpop.f32.mrb[0].mxu0
  %v573 = vadd.f32 %v88, %v572
  %v574 = vpop.f32.mrb[0].mxu0
  %575 = vmatprep.mubr.bf16.mxu0 0
  %576 = vmatmul.mubr.bf16.gmra.mrb[0].mxu0 %v333
  %v577 = vpop.f32.mrb[0].mxu0
  %v578 = vadd.f32 %v88, %v577
  %v579 = vpop.f32.mrb[0].mxu0
  %v580 = vpop.f32.mrb[0].mxu0
  %v581 = vadd.f32 %v88, %v580
  %v582 = vpop.f32.mrb[0].mxu0
  %583 = vmatprep.mubr.bf16.mxu0 0
  %584 = vmatmul.mubr.bf16.gmra.mrb[0].mxu0 %v336
  %v585 = vpop.f32.mrb[0].mxu0
  %v586 = vadd.f32 %v88, %v585
  %v587 = vpop.f32.mrb[0].mxu0
  %v588 = vpop.f32.mrb[0].mxu0
  %v589 = vadd.f32 %v88, %v588
  %v590 = vpop.f32.mrb[0].mxu0
  %591 = vmatprep.mubr.bf16.mxu0 0
  %592 = vmatmul.mubr.bf16.gmra.mrb[0].mxu0 %v339
  %v593 = vpop.f32.mrb[0].mxu0
  %v594 = vadd.f32 %v88, %v593
  %v595 = vpop.f32.mrb[0].mxu0
  %v596 = vpop.f32.mrb[0].mxu0
  %v597 = vadd.f32 %v88, %v596
  %v598 = vpop.f32.mrb[0].mxu0
  %599 = vmatprep.mubr.bf16.mxu0 0
  %600 = vmatmul.mubr.bf16.gmra.mrb[0].mxu0 %v342
  %v601 = vpop.f32.mrb[0].mxu0
  %v602 = vadd.f32 %v88, %v601
  %v603 = vpop.f32.mrb[0].mxu0
  %v604 = vpop.f32.mrb[0].mxu0
  %v605 = vadd.f32 %v88, %v604
  %v606 = vpop.f32.mrb[0].mxu0
  %607 = vmatprep.mubr.bf16.mxu0 0
  %608 = vmatmul.mubr.bf16.gmra.mrb[0].mxu0 %v345
  %v609 = vpop.f32.mrb[0].mxu0
  %v610 = vadd.f32 %v88, %v609
  %v611 = vpop.f32.mrb[0].mxu0
  %v612 = vpop.f32.mrb[0].mxu0
  %v613 = vadd.f32 %v88, %v612
  %v614 = vpop.f32.mrb[0].mxu0
  %615 = vmatprep.mubr.bf16.mxu0 0
  %616 = vmatmul.mubr.bf16.gmra.mrb[0].mxu0 %v348
  %v617 = vpop.f32.mrb[0].mxu0
  %v618 = vadd.f32 %v88, %v617
  %v619 = vpop.f32.mrb[0].mxu0
  %v620 = vpop.f32.mrb[0].mxu0
  %v621 = vadd.f32 %v88, %v620
  %v622 = vpop.f32.mrb[0].mxu0
  %623 = vmatprep.mubr.bf16.mxu0 0
  %624 = vmatmul.mubr.bf16.gmra.mrb[0].mxu0 %v351
  %v625 = vpop.f32.mrb[0].mxu0
  %v626 = vadd.f32 %v88, %v625
  %v627 = vpop.f32.mrb[0].mxu0
  %v628 = vpop.f32.mrb[0].mxu0
  %v629 = vadd.f32 %v88, %v628
  %v630 = vpop.f32.mrb[0].mxu0
  %631 = vmatprep.mubr.bf16.mxu0 0
  %632 = vmatmul.mubr.bf16.gmra.mrb[0].mxu0 %v354
  %v633 = vpop.f32.mrb[0].mxu0
  %v634 = vadd.f32 %v88, %v633
  %v635 = vpop.f32.mrb[0].mxu0
  %v636 = vpop.f32.mrb[0].mxu0
  %v637 = vadd.f32 %v88, %v636
  %v638 = vpop.f32.mrb[0].mxu0
  %639 = vmatprep.mubr.bf16.mxu0 0
  %640 = vmatmul.mubr.bf16.gmra.mrb[0].mxu0 %v357
  %v641 = vpop.f32.mrb[0].mxu0
  %v642 = vadd.f32 %v88, %v641
  %v643 = vpop.f32.mrb[0].mxu0
  %v644 = vpop.f32.mrb[0].mxu0
  %v645 = vadd.f32 %v88, %v644
  %v646 = vpop.f32.mrb[0].mxu0
  %647 = vdwg.mxu0
  %v648 = vmax.f32 %v394, 0.0
  %v649 = vmax.f32 %v397, 0.0
  %v650 = vmax.f32 %v402, 0.0
  %v651 = vmax.f32 %v405, 0.0
  %v652 = vmax.f32 %v410, 0.0
  %v653 = vmax.f32 %v413, 0.0
  %v654 = vmax.f32 %v418, 0.0
  %v655 = vmax.f32 %v421, 0.0
  %v656 = vmax.f32 %v426, 0.0
  %v657 = vmax.f32 %v429, 0.0
  %v658 = vmax.f32 %v434, 0.0
  %v659 = vmax.f32 %v437, 0.0
  %v660 = vmax.f32 %v442, 0.0
  %v661 = vmax.f32 %v445, 0.0
  %v662 = vmax.f32 %v450, 0.0
  %v663 = vmax.f32 %v453, 0.0
  %v664 = vmax.f32 %v458, 0.0
  %v665 = vmax.f32 %v461, 0.0
  %v666 = vmax.f32 %v466, 0.0
  %v667 = vmax.f32 %v469, 0.0
  %v668 = vmax.f32 %v474, 0.0
  %v669 = vmax.f32 %v477, 0.0
  %v670 = vmax.f32 %v482, 0.0
  %v671 = vmax.f32 %v485, 0.0
  %v672 = vmax.f32 %v490, 0.0
  %v673 = vmax.f32 %v493, 0.0
  %v674 = vmax.f32 %v498, 0.0
  %v675 = vmax.f32 %v501, 0.0
  %v676 = vmax.f32 %v506, 0.0
  %v677 = vmax.f32 %v509, 0.0
  %v678 = vmax.f32 %v514, 0.0
  %v679 = vmax.f32 %v517, 0.0
  %v680 = vmax.f32 %v522, 0.0
  %v681 = vmax.f32 %v525, 0.0
  %v682 = vmax.f32 %v530, 0.0
  %v683 = vmax.f32 %v533, 0.0
  %v684 = vmax.f32 %v538, 0.0
  %v685 = vmax.f32 %v541, 0.0
  %v686 = vmax.f32 %v546, 0.0
  %v687 = vmax.f32 %v549, 0.0
  %v688 = vmax.f32 %v554, 0.0
  %v689 = vmax.f32 %v557, 0.0
  %v690 = vmax.f32 %v562, 0.0
  %v691 = vmax.f32 %v565, 0.0
  %v692 = vmax.f32 %v570, 0.0
  %v693 = vmax.f32 %v573, 0.0
  %v694 = vmax.f32 %v578, 0.0
  %v695 = vmax.f32 %v581, 0.0
  %v696 = vmax.f32 %v586, 0.0
  %v697 = vmax.f32 %v589, 0.0
  %v698 = vmax.f32 %v594, 0.0
  %v699 = vmax.f32 %v597, 0.0
  %v700 = vmax.f32 %v602, 0.0
  %v701 = vmax.f32 %v605, 0.0
  %v702 = vmax.f32 %v610, 0.0
  %v703 = vmax.f32 %v613, 0.0
  %v704 = vmax.f32 %v618, 0.0
  %v705 = vmax.f32 %v621, 0.0
  %v706 = vmax.f32 %v626, 0.0
  %v707 = vmax.f32 %v629, 0.0
  %v708 = vmax.f32 %v634, 0.0
  %v709 = vmax.f32 %v637, 0.0
  %v710 = vmax.f32 %v642, 0.0
  %v711 = vmax.f32 %v645, 0.0
  %v712 = vpack.c.bf16 %v649, %v648
  %v713 = vpack.c.bf16 %v651, %v650
  %v714 = vpack.c.bf16 %v653, %v652
  %v715 = vpack.c.bf16 %v655, %v654
  %v716 = vpack.c.bf16 %v657, %v656
  %v717 = vpack.c.bf16 %v659, %v658
  %v718 = vpack.c.bf16 %v661, %v660
  %v719 = vpack.c.bf16 %v663, %v662
  %v720 = vpack.c.bf16 %v665, %v664
  %v721 = vpack.c.bf16 %v667, %v666
  %v722 = vpack.c.bf16 %v669, %v668
  %v723 = vpack.c.bf16 %v671, %v670
  %v724 = vpack.c.bf16 %v673, %v672
  %v725 = vpack.c.bf16 %v675, %v674
  %v726 = vpack.c.bf16 %v677, %v676
  %v727 = vpack.c.bf16 %v679, %v678
  %v728 = vpack.c.bf16 %v681, %v680
  %v729 = vpack.c.bf16 %v683, %v682
  %v730 = vpack.c.bf16 %v685, %v684
  %v731 = vpack.c.bf16 %v687, %v686
  %v732 = vpack.c.bf16 %v689, %v688
  %v733 = vpack.c.bf16 %v691, %v690
  %v734 = vpack.c.bf16 %v693, %v692
  %v735 = vpack.c.bf16 %v695, %v694
  %v736 = vpack.c.bf16 %v697, %v696
  %v737 = vpack.c.bf16 %v699, %v698
  %v738 = vpack.c.bf16 %v701, %v700
  %v739 = vpack.c.bf16 %v703, %v702
  %v740 = vpack.c.bf16 %v705, %v704
  %v741 = vpack.c.bf16 %v707, %v706
  %v742 = vpack.c.bf16 %v709, %v708
  %v743 = vpack.c.bf16 %v711, %v710
  %v776 = vunpack.c.l.b16 %v712
  %v777 = vunpack.c.h.b16 %v712
  %v778 = vunpack.c.l.b16 %v713
  %v779 = vunpack.c.h.b16 %v713
  %v780 = vunpack.c.l.b16 %v714
  %v781 = vunpack.c.h.b16 %v714
  %v782 = vunpack.c.l.b16 %v715
  %v783 = vunpack.c.h.b16 %v715
  %v784 = vunpack.c.l.b16 %v716
  %v785 = vunpack.c.h.b16 %v716
  %v786 = vunpack.c.l.b16 %v717
  %v787 = vunpack.c.h.b16 %v717
  %v788 = vunpack.c.l.b16 %v718
  %v789 = vunpack.c.h.b16 %v718
  %v790 = vunpack.c.l.b16 %v719
  %v791 = vunpack.c.h.b16 %v719
  %v792 = vunpack.c.l.b16 %v720
  %v793 = vunpack.c.h.b16 %v720
  %v794 = vunpack.c.l.b16 %v721
  %v795 = vunpack.c.h.b16 %v721
  %v796 = vunpack.c.l.b16 %v722
  %v797 = vunpack.c.h.b16 %v722
  %v798 = vunpack.c.l.b16 %v723
  %v799 = vunpack.c.h.b16 %v723
  %v800 = vunpack.c.l.b16 %v724
  %v801 = vunpack.c.h.b16 %v724
  %v802 = vunpack.c.l.b16 %v725
  %v803 = vunpack.c.h.b16 %v725
  %v804 = vunpack.c.l.b16 %v726
  %v805 = vunpack.c.h.b16 %v726
  %v806 = vunpack.c.l.b16 %v727
  %v807 = vunpack.c.h.b16 %v727
  %v808 = vunpack.c.l.b16 %v728
  %v809 = vunpack.c.h.b16 %v728
  %v810 = vunpack.c.l.b16 %v729
  %v811 = vunpack.c.h.b16 %v729
  %v812 = vunpack.c.l.b16 %v730
  %v813 = vunpack.c.h.b16 %v730
  %v814 = vunpack.c.l.b16 %v731
  %v815 = vunpack.c.h.b16 %v731
  %v816 = vunpack.c.l.b16 %v732
  %v817 = vunpack.c.h.b16 %v732
  %v818 = vunpack.c.l.b16 %v733
  %v819 = vunpack.c.h.b16 %v733
  %v820 = vunpack.c.l.b16 %v734
  %v821 = vunpack.c.h.b16 %v734
  %v822 = vunpack.c.l.b16 %v735
  %v823 = vunpack.c.h.b16 %v735
  %v824 = vunpack.c.l.b16 %v736
  %v825 = vunpack.c.h.b16 %v736
  %v826 = vunpack.c.l.b16 %v737
  %v827 = vunpack.c.h.b16 %v737
  %v828 = vunpack.c.l.b16 %v738
  %v829 = vunpack.c.h.b16 %v738
  %v830 = vunpack.c.l.b16 %v739
  %v831 = vunpack.c.h.b16 %v739
  %v832 = vunpack.c.l.b16 %v740
  %v833 = vunpack.c.h.b16 %v740
  %v834 = vunpack.c.l.b16 %v741
  %v835 = vunpack.c.h.b16 %v741
  %v836 = vunpack.c.l.b16 %v742
  %v837 = vunpack.c.h.b16 %v742
  %v838 = vunpack.c.l.b16 %v743
  %v839 = vunpack.c.h.b16 %v743
  %v840 = vpack.c.b16 %v776, %v776
  %v841 = vpack.c.b16 %v777, %v777
  %v842 = vpack.c.b16 %v778, %v778
  %v843 = vpack.c.b16 %v779, %v779
  %v844 = vpack.c.b16 %v780, %v780
  %v845 = vpack.c.b16 %v781, %v781
  %v846 = vpack.c.b16 %v782, %v782
  %v847 = vpack.c.b16 %v783, %v783
  %v848 = vpack.c.b16 %v784, %v784
  %v849 = vpack.c.b16 %v785, %v785
  %v850 = vpack.c.b16 %v786, %v786
  %v851 = vpack.c.b16 %v787, %v787
  %v852 = vpack.c.b16 %v788, %v788
  %v853 = vpack.c.b16 %v789, %v789
  %v854 = vpack.c.b16 %v790, %v790
  %v855 = vpack.c.b16 %v791, %v791
  %v856 = vpack.c.b16 %v792, %v792
  %v857 = vpack.c.b16 %v793, %v793
  %v858 = vpack.c.b16 %v794, %v794
  %v859 = vpack.c.b16 %v795, %v795
  %v860 = vpack.c.b16 %v796, %v796
  %v861 = vpack.c.b16 %v797, %v797
  %v862 = vpack.c.b16 %v798, %v798
  %v863 = vpack.c.b16 %v799, %v799
  %v864 = vpack.c.b16 %v800, %v800
  %v865 = vpack.c.b16 %v801, %v801
  %v866 = vpack.c.b16 %v802, %v802
  %v867 = vpack.c.b16 %v803, %v803
  %v868 = vpack.c.b16 %v804, %v804
  %v869 = vpack.c.b16 %v805, %v805
  %v870 = vpack.c.b16 %v806, %v806
  %v871 = vpack.c.b16 %v807, %v807
  %v872 = vpack.c.b16 %v808, %v808
  %v873 = vpack.c.b16 %v809, %v809
  %v874 = vpack.c.b16 %v810, %v810
  %v875 = vpack.c.b16 %v811, %v811
  %v876 = vpack.c.b16 %v812, %v812
  %v877 = vpack.c.b16 %v813, %v813
  %v878 = vpack.c.b16 %v814, %v814
  %v879 = vpack.c.b16 %v815, %v815
  %v880 = vpack.c.b16 %v816, %v816
  %v881 = vpack.c.b16 %v817, %v817
  %v882 = vpack.c.b16 %v818, %v818
  %v883 = vpack.c.b16 %v819, %v819
  %v884 = vpack.c.b16 %v820, %v820
  %v885 = vpack.c.b16 %v821, %v821
  %v886 = vpack.c.b16 %v822, %v822
  %v887 = vpack.c.b16 %v823, %v823
  %v888 = vpack.c.b16 %v824, %v824
  %v889 = vpack.c.b16 %v825, %v825
  %v890 = vpack.c.b16 %v826, %v826
  %v891 = vpack.c.b16 %v827, %v827
  %v892 = vpack.c.b16 %v828, %v828
  %v893 = vpack.c.b16 %v829, %v829
  %v894 = vpack.c.b16 %v830, %v830
  %v895 = vpack.c.b16 %v831, %v831
  %v896 = vpack.c.b16 %v832, %v832
  %v897 = vpack.c.b16 %v833, %v833
  %v898 = vpack.c.b16 %v834, %v834
  %v899 = vpack.c.b16 %v835, %v835
  %v900 = vpack.c.b16 %v836, %v836
  %v901 = vpack.c.b16 %v837, %v837
  %v902 = vpack.c.b16 %v838, %v838
  %v903 = vpack.c.b16 %v839, %v839
  %968 = vst [vmem:[%s3] sm:$0xf] %v840
  %969 = vst [vmem:[%s3 + $0x4] sm:$0xf] %v841
  %970 = vst [vmem:[%s3 + $0x8] sm:$0xf] %v842
  %971 = vst [vmem:[%s3 + $0xc] sm:$0xf] %v843
  %972 = vst [vmem:[%s3 + $0x10] sm:$0xf] %v844
  %973 = vst [vmem:[%s3 + $0x14] sm:$0xf] %v845
  %974 = vst [vmem:[%s3 + $0x18] sm:$0xf] %v846
  %975 = vst [vmem:[%s3 + $0x1c] sm:$0xf] %v847
  %976 = vst [vmem:[%s3 + $0x20] sm:$0xf] %v848
  %977 = vst [vmem:[%s3 + $0x24] sm:$0xf] %v849
  %978 = vst [vmem:[%s3 + $0x28] sm:$0xf] %v850
  %979 = vst [vmem:[%s3 + $0x2c] sm:$0xf] %v851
  %980 = vst [vmem:[%s3 + $0x30] sm:$0xf] %v852
  %981 = vst [vmem:[%s3 + $0x34] sm:$0xf] %v853
  %982 = vst [vmem:[%s3 + $0x38] sm:$0xf] %v854
  %983 = vst [vmem:[%s3 + $0x3c] sm:$0xf] %v855
  %984 = vst [vmem:[%s3 + $0x40] sm:$0xf] %v856
  %985 = vst [vmem:[%s3 + $0x44] sm:$0xf] %v857
  %986 = vst [vmem:[%s3 + $0x48] sm:$0xf] %v858
  %987 = vst [vmem:[%s3 + $0x4c] sm:$0xf] %v859
  %988 = vst [vmem:[%s3 + $0x50] sm:$0xf] %v860
  %989 = vst [vmem:[%s3 + $0x54] sm:$0xf] %v861
  %990 = vst [vmem:[%s3 + $0x58] sm:$0xf] %v862
  %991 = vst [vmem:[%s3 + $0x5c] sm:$0xf] %v863
  %992 = vst [vmem:[%s3 + $0x60] sm:$0xf] %v864
  %993 = vst [vmem:[%s3 + $0x64] sm:$0xf] %v865
  %994 = vst [vmem:[%s3 + $0x68] sm:$0xf] %v866
  %995 = vst [vmem:[%s3 + $0x6c] sm:$0xf] %v867
  %996 = vst [vmem:[%s3 + $0x70] sm:$0xf] %v868
  %997 = vst [vmem:[%s3 + $0x74] sm:$0xf] %v869
  %998 = vst [vmem:[%s3 + $0x78] sm:$0xf] %v870
  %999 = vst [vmem:[%s3 + $0x7c] sm:$0xf] %v871
  %1000 = vst [vmem:[%s3 + $0x80] sm:$0xf] %v872
  %1001 = vst [vmem:[%s3 + $0x84] sm:$0xf] %v873
  %1002 = vst [vmem:[%s3 + $0x88] sm:$0xf] %v874
  %1003 = vst [vmem:[%s3 + $0x8c] sm:$0xf] %v875
  %1004 = vst [vmem:[%s3 + $0x90] sm:$0xf] %v876
  %1005 = vst [vmem:[%s3 + $0x94] sm:$0xf] %v877
  %1006 = vst [vmem:[%s3 + $0x98] sm:$0xf] %v878
  %1007 = vst [vmem:[%s3 + $0x9c] sm:$0xf] %v879
  %1008 = vst [vmem:[%s3 + $0xa0] sm:$0xf] %v880
  %1009 = vst [vmem:[%s3 + $0xa4] sm:$0xf] %v881
  %1010 = vst [vmem:[%s3 + $0xa8] sm:$0xf] %v882
  %1011 = vst [vmem:[%s3 + $0xac] sm:$0xf] %v883
  %1012 = vst [vmem:[%s3 + $0xb0] sm:$0xf] %v884
  %1013 = vst [vmem:[%s3 + $0xb4] sm:$0xf] %v885
  %1014 = vst [vmem:[%s3 + $0xb8] sm:$0xf] %v886
  %1015 = vst [vmem:[%s3 + $0xbc] sm:$0xf] %v887
  %1016 = vst [vmem:[%s3 + $0xc0] sm:$0xf] %v888
  %1017 = vst [vmem:[%s3 + $0xc4] sm:$0xf] %v889
  %1018 = vst [vmem:[%s3 + $0xc8] sm:$0xf] %v890
  %1019 = vst [vmem:[%s3 + $0xcc] sm:$0xf] %v891
  %1020 = vst [vmem:[%s3 + $0xd0] sm:$0xf] %v892
  %1021 = vst [vmem:[%s3 + $0xd4] sm:$0xf] %v893
  %1022 = vst [vmem:[%s3 + $0xd8] sm:$0xf] %v894
  %1023 = vst [vmem:[%s3 + $0xdc] sm:$0xf] %v895
  %1024 = vst [vmem:[%s3 + $0xe0] sm:$0xf] %v896
  %1025 = vst [vmem:[%s3 + $0xe4] sm:$0xf] %v897
  %1026 = vst [vmem:[%s3 + $0xe8] sm:$0xf] %v898
  %1027 = vst [vmem:[%s3 + $0xec] sm:$0xf] %v899
  %1028 = vst [vmem:[%s3 + $0xf0] sm:$0xf] %v900
  %1029 = vst [vmem:[%s3 + $0xf4] sm:$0xf] %v901
  %1030 = vst [vmem:[%s3 + $0xf8] sm:$0xf] %v902
  %1031 = vst [vmem:[%s3 + $0xfc] sm:$0xf] %v903
  // Predicated region
  $region14: #{resnet_forward.24} parent=0 // pred_check
    _
  $region15: #{resnet_forward.24} parent=0 // pred_check_branch
    %1033 = sbr.rel (0) target = $region17
  $region16: #{resnet_forward.24} parent=0 // pred_region
    _
  $region17: #{resnet_forward.24} parent=0 // pred_fallthru
    _
  // Predicated region
  $region18: #{resnet_forward.24} parent=0 // pred_check
    _
  $region19: #{resnet_forward.24} parent=0 // pred_check_branch
    %1035 = sbr.rel (0) target = $region21
  $region20: #{resnet_forward.24} parent=0 // pred_region
    _
  $region21: #{resnet_forward.24} parent=0 // pred_fallthru
    _

// kernel: resnet_forward.25
$region0: #{resnet_forward.25}
  #allocation0 [shape = 'u32[]', space=smem, size = 0x4, offset = 0x4, fixed_abs, tag = 'smem constant byte address 0x4 - core index']
  #allocation1 [shape = 'u32[144,128]{1,0:T(1,128)}', space=vmem, size = 0x12000, scoped, tag = 'internal scratch']
  %s0 = inlined_call_operand.vmem [shape: bf16[512,72], index: 0, kind: input, shape index: {}]
  %s1 = inlined_call_operand.vmem [shape: bf16[72,128], index: 1, kind: input, shape index: {}]
  %s2 = inlined_call_operand.vmem [shape: f32[1,128], index: 2, kind: input, shape index: {}]
  %s3 = inlined_call_operand.vmem [shape: bf16[512,128], index: 3, kind: output, shape index: {}]
  %s4 = sld [smem:[#allocation0]]
  $region22: #{resnet_forward.25} parent=0
    _
  %s6 = ssub.s32 1, %s4
  %s7 = scalar_select 0, %s6, %s4
  // Predicated region
  $region2: #{resnet_forward.25} parent=0 // pred_check
    _
  $region3: #{resnet_forward.25} parent=0 // pred_check_branch
    %9 = sbr.rel (0) target = $region5
  $region4: #{resnet_forward.25} parent=0 // pred_region
    _
  $region5: #{resnet_forward.25} parent=0 // pred_fallthru
    _
  // Predicated region
  $region6: #{resnet_forward.25} parent=0 // pred_check
    _
  $region7: #{resnet_forward.25} parent=0 // pred_check_branch
    %11 = sbr.rel (0) target = $region9
  $region8: #{resnet_forward.25} parent=0 // pred_region
    _
  $region9: #{resnet_forward.25} parent=0 // pred_fallthru
    _
  // Predicated region
  $region10: #{resnet_forward.25} parent=0 // pred_check
    _
  $region11: #{resnet_forward.25} parent=0 // pred_check_branch
    %13 = sbr.rel (0) target = $region13
  $region12: #{resnet_forward.25} parent=0 // pred_region
    _
  $region13: #{resnet_forward.25} parent=0 // pred_fallthru
    _
  %v15 = vld [vmem:[%s0] sm:$0xf]
  %v16 = vld [vmem:[%s0 + $0x4] sm:$0xf]
  %v17 = vld [vmem:[%s0 + $0x8] sm:$0xf]
  %v18 = vld [vmem:[%s0 + $0xc] sm:$0xf]
  %v19 = vld [vmem:[%s0 + $0x10] sm:$0xf]
  %v20 = vld [vmem:[%s0 + $0x14] sm:$0xf]
  %v21 = vld [vmem:[%s0 + $0x18] sm:$0xf]
  %v22 = vld [vmem:[%s0 + $0x1c] sm:$0xf]
  %v23 = vld [vmem:[%s0 + $0x20] sm:$0xf]
  %v24 = vld [vmem:[%s0 + $0x24] sm:$0xf]
  %v25 = vld [vmem:[%s0 + $0x28] sm:$0xf]
  %v26 = vld [vmem:[%s0 + $0x2c] sm:$0xf]
  %v27 = vld [vmem:[%s0 + $0x30] sm:$0xf]
  %v28 = vld [vmem:[%s0 + $0x34] sm:$0xf]
  %v29 = vld [vmem:[%s0 + $0x38] sm:$0xf]
  %v30 = vld [vmem:[%s0 + $0x3c] sm:$0xf]
  %v31 = vld [vmem:[%s0 + $0x40] sm:$0xf]
  %v32 = vld [vmem:[%s0 + $0x44] sm:$0xf]
  %v33 = vld [vmem:[%s0 + $0x48] sm:$0xf]
  %v34 = vld [vmem:[%s0 + $0x4c] sm:$0xf]
  %v35 = vld [vmem:[%s0 + $0x50] sm:$0xf]
  %v36 = vld [vmem:[%s0 + $0x54] sm:$0xf]
  %v37 = vld [vmem:[%s0 + $0x58] sm:$0xf]
  %v38 = vld [vmem:[%s0 + $0x5c] sm:$0xf]
  %v39 = vld [vmem:[%s0 + $0x60] sm:$0xf]
  %v40 = vld [vmem:[%s0 + $0x64] sm:$0xf]
  %v41 = vld [vmem:[%s0 + $0x68] sm:$0xf]
  %v42 = vld [vmem:[%s0 + $0x6c] sm:$0xf]
  %v43 = vld [vmem:[%s0 + $0x70] sm:$0xf]
  %v44 = vld [vmem:[%s0 + $0x74] sm:$0xf]
  %v45 = vld [vmem:[%s0 + $0x78] sm:$0xf]
  %v46 = vld [vmem:[%s0 + $0x7c] sm:$0xf]
  %v47 = vld [vmem:[%s0 + $0x80] sm:$0xf]
  %v48 = vld [vmem:[%s0 + $0x84] sm:$0xf]
  %v49 = vld [vmem:[%s0 + $0x88] sm:$0xf]
  %v50 = vld [vmem:[%s0 + $0x8c] sm:$0xf]
  %v51 = vld [vmem:[%s0 + $0x90] sm:$0xf]
  %v52 = vld [vmem:[%s0 + $0x94] sm:$0xf]
  %v53 = vld [vmem:[%s0 + $0x98] sm:$0xf]
  %v54 = vld [vmem:[%s0 + $0x9c] sm:$0xf]
  %v55 = vld [vmem:[%s0 + $0xa0] sm:$0xf]
  %v56 = vld [vmem:[%s0 + $0xa4] sm:$0xf]
  %v57 = vld [vmem:[%s0 + $0xa8] sm:$0xf]
  %v58 = vld [vmem:[%s0 + $0xac] sm:$0xf]
  %v59 = vld [vmem:[%s0 + $0xb0] sm:$0xf]
  %v60 = vld [vmem:[%s0 + $0xb4] sm:$0xf]
  %v61 = vld [vmem:[%s0 + $0xb8] sm:$0xf]
  %v62 = vld [vmem:[%s0 + $0xbc] sm:$0xf]
  %v63 = vld [vmem:[%s0 + $0xc0] sm:$0xf]
  %v64 = vld [vmem:[%s0 + $0xc4] sm:$0xf]
  %v65 = vld [vmem:[%s0 + $0xc8] sm:$0xf]
  %v66 = vld [vmem:[%s0 + $0xcc] sm:$0xf]
  %v67 = vld [vmem:[%s0 + $0xd0] sm:$0xf]
  %v68 = vld [vmem:[%s0 + $0xd4] sm:$0xf]
  %v69 = vld [vmem:[%s0 + $0xd8] sm:$0xf]
  %v70 = vld [vmem:[%s0 + $0xdc] sm:$0xf]
  %v71 = vld [vmem:[%s0 + $0xe0] sm:$0xf]
  %v72 = vld [vmem:[%s0 + $0xe4] sm:$0xf]
  %v73 = vld [vmem:[%s0 + $0xe8] sm:$0xf]
  %v74 = vld [vmem:[%s0 + $0xec] sm:$0xf]
  %v75 = vld [vmem:[%s0 + $0xf0] sm:$0xf]
  %v76 = vld [vmem:[%s0 + $0xf4] sm:$0xf]
  %v77 = vld [vmem:[%s0 + $0xf8] sm:$0xf]
  %v78 = vld [vmem:[%s0 + $0xfc] sm:$0xf]
  %v79 = vld [vmem:[%s1] sm:$0xf]
  %v80 = vld [vmem:[%s1 + $0x4] sm:$0xf]
  %v81 = vld [vmem:[%s1 + $0x8] sm:$0xf]
  %v82 = vld [vmem:[%s1 + $0xc] sm:$0xf]
  %v83 = vld [vmem:[%s1 + $0x10] sm:$0xf]
  %v84 = vld [vmem:[%s1 + $0x14] sm:$0xf]
  %v85 = vld [vmem:[%s1 + $0x18] sm:$0xf]
  %v86 = vld [vmem:[%s1 + $0x1c] sm:$0xf]
  %v87 = vld [vmem:[%s1 + $0x20] sm:$0xf]
  %v88 = vld [vmem:[%s2] sm:$0x1]
  %v90 = vlaneseq
  %v91 = vshrl.u32 %v90, 7
  %v92 = vsub.s32 0, %v91
  %v93 = vrot.slane %v88, %v92
  %v159 = vunpack.c.l.b16 %v15
  %v160 = vunpack.c.l.b16 %v16
  %v161 = vunpack.c.l.b16 %v17
  %v162 = vunpack.c.l.b16 %v18
  %v163 = vunpack.c.l.b16 %v19
  %v164 = vunpack.c.l.b16 %v20
  %v165 = vunpack.c.l.b16 %v21
  %v166 = vunpack.c.l.b16 %v22
  %v167 = vunpack.c.l.b16 %v23
  %v168 = vunpack.c.l.b16 %v24
  %v169 = vunpack.c.l.b16 %v25
  %v170 = vunpack.c.l.b16 %v26
  %v171 = vunpack.c.l.b16 %v27
  %v172 = vunpack.c.l.b16 %v28
  %v173 = vunpack.c.l.b16 %v29
  %v174 = vunpack.c.l.b16 %v30
  %v175 = vunpack.c.l.b16 %v31
  %v176 = vunpack.c.l.b16 %v32
  %v177 = vunpack.c.l.b16 %v33
  %v178 = vunpack.c.l.b16 %v34
  %v179 = vunpack.c.l.b16 %v35
  %v180 = vunpack.c.l.b16 %v36
  %v181 = vunpack.c.l.b16 %v37
  %v182 = vunpack.c.l.b16 %v38
  %v183 = vunpack.c.l.b16 %v39
  %v184 = vunpack.c.l.b16 %v40
  %v185 = vunpack.c.l.b16 %v41
  %v186 = vunpack.c.l.b16 %v42
  %v187 = vunpack.c.l.b16 %v43
  %v188 = vunpack.c.l.b16 %v44
  %v189 = vunpack.c.l.b16 %v45
  %v190 = vunpack.c.l.b16 %v46
  %v191 = vunpack.c.l.b16 %v47
  %v192 = vunpack.c.l.b16 %v48
  %v193 = vunpack.c.l.b16 %v49
  %v194 = vunpack.c.l.b16 %v50
  %v195 = vunpack.c.l.b16 %v51
  %v196 = vunpack.c.l.b16 %v52
  %v197 = vunpack.c.l.b16 %v53
  %v198 = vunpack.c.l.b16 %v54
  %v199 = vunpack.c.l.b16 %v55
  %v200 = vunpack.c.l.b16 %v56
  %v201 = vunpack.c.l.b16 %v57
  %v202 = vunpack.c.l.b16 %v58
  %v203 = vunpack.c.l.b16 %v59
  %v204 = vunpack.c.l.b16 %v60
  %v205 = vunpack.c.l.b16 %v61
  %v206 = vunpack.c.l.b16 %v62
  %v207 = vunpack.c.l.b16 %v63
  %v208 = vunpack.c.l.b16 %v64
  %v209 = vunpack.c.l.b16 %v65
  %v210 = vunpack.c.l.b16 %v66
  %v211 = vunpack.c.l.b16 %v67
  %v212 = vunpack.c.l.b16 %v68
  %v213 = vunpack.c.l.b16 %v69
  %v214 = vunpack.c.l.b16 %v70
  %v215 = vunpack.c.l.b16 %v71
  %v216 = vunpack.c.l.b16 %v72
  %v217 = vunpack.c.l.b16 %v73
  %v218 = vunpack.c.l.b16 %v74
  %v219 = vunpack.c.l.b16 %v75
  %v220 = vunpack.c.l.b16 %v76
  %v221 = vunpack.c.l.b16 %v77
  %v222 = vunpack.c.l.b16 %v78
  %v223 = vpack.c.b16 %v160, %v159
  %v224 = vpack.c.b16 %v162, %v161
  %v225 = vpack.c.b16 %v164, %v163
  %v226 = vpack.c.b16 %v166, %v165
  %v227 = vpack.c.b16 %v168, %v167
  %v228 = vpack.c.b16 %v170, %v169
  %v229 = vpack.c.b16 %v172, %v171
  %v230 = vpack.c.b16 %v174, %v173
  %v231 = vpack.c.b16 %v176, %v175
  %v232 = vpack.c.b16 %v178, %v177
  %v233 = vpack.c.b16 %v180, %v179
  %v234 = vpack.c.b16 %v182, %v181
  %v235 = vpack.c.b16 %v184, %v183
  %v236 = vpack.c.b16 %v186, %v185
  %v237 = vpack.c.b16 %v188, %v187
  %v238 = vpack.c.b16 %v190, %v189
  %v239 = vpack.c.b16 %v192, %v191
  %v240 = vpack.c.b16 %v194, %v193
  %v241 = vpack.c.b16 %v196, %v195
  %v242 = vpack.c.b16 %v198, %v197
  %v243 = vpack.c.b16 %v200, %v199
  %v244 = vpack.c.b16 %v202, %v201
  %v245 = vpack.c.b16 %v204, %v203
  %v246 = vpack.c.b16 %v206, %v205
  %v247 = vpack.c.b16 %v208, %v207
  %v248 = vpack.c.b16 %v210, %v209
  %v249 = vpack.c.b16 %v212, %v211
  %v250 = vpack.c.b16 %v214, %v213
  %v251 = vpack.c.b16 %v216, %v215
  %v252 = vpack.c.b16 %v218, %v217
  %v253 = vpack.c.b16 %v220, %v219
  %v254 = vpack.c.b16 %v222, %v221
  %v264 = vunpack.c.l.b16 %v79
  %v265 = vunpack.c.l.b16 %v80
  %v266 = vunpack.c.l.b16 %v81
  %v267 = vunpack.c.l.b16 %v82
  %v268 = vunpack.c.l.b16 %v83
  %v269 = vunpack.c.l.b16 %v84
  %v270 = vunpack.c.l.b16 %v85
  %v271 = vunpack.c.l.b16 %v86
  %v272 = vunpack.c.l.b16 %v87
  %v273 = vpack.c.b16 %v265, %v264
  %v274 = vpack.c.b16 %v267, %v266
  %v275 = vpack.c.b16 %v269, %v268
  %v276 = vpack.c.b16 %v271, %v270
  %v277 = vpack.c.b16 %v272, %v272
  %vm282 = vcmask 588800
  %v284 = vsel %vm282, %v223, 0
  %v287 = vsel %vm282, %v224, 0
  %v290 = vsel %vm282, %v225, 0
  %v293 = vsel %vm282, %v226, 0
  %v296 = vsel %vm282, %v227, 0
  %v299 = vsel %vm282, %v228, 0
  %v302 = vsel %vm282, %v229, 0
  %v305 = vsel %vm282, %v230, 0
  %v308 = vsel %vm282, %v231, 0
  %v311 = vsel %vm282, %v232, 0
  %v314 = vsel %vm282, %v233, 0
  %v317 = vsel %vm282, %v234, 0
  %v320 = vsel %vm282, %v235, 0
  %v323 = vsel %vm282, %v236, 0
  %v326 = vsel %vm282, %v237, 0
  %v329 = vsel %vm282, %v238, 0
  %v332 = vsel %vm282, %v239, 0
  %v335 = vsel %vm282, %v240, 0
  %v338 = vsel %vm282, %v241, 0
  %v341 = vsel %vm282, %v242, 0
  %v344 = vsel %vm282, %v243, 0
  %v347 = vsel %vm282, %v244, 0
  %v350 = vsel %vm282, %v245, 0
  %v353 = vsel %vm282, %v246, 0
  %v356 = vsel %vm282, %v247, 0
  %v359 = vsel %vm282, %v248, 0
  %v362 = vsel %vm282, %v249, 0
  %v365 = vsel %vm282, %v250, 0
  %v368 = vsel %vm282, %v251, 0
  %v371 = vsel %vm282, %v252, 0
  %v374 = vsel %vm282, %v253, 0
  %v377 = vsel %vm282, %v254, 0
  %vm379 = vcmask 1043456
  %v381 = vsel %vm379, %v277, 0
  %383 = vmatprep.subr.bf16.mxu0 0
  %384 = vmatpush1.bf16.msra.mxu0 %v273
  %385 = vmatprep.subr.bf16.mxu0 0
  %386 = vmatpush1.bf16.msra.mxu0 %v274
  %387 = vmatprep.subr.bf16.mxu0 0
  %388 = vmatpush1.bf16.msra.mxu0 %v275
  %389 = vmatprep.subr.bf16.mxu0 0
  %390 = vmatpush1.bf16.msra.mxu0 %v276
  %391 = vmatprep.subr.bf16.mxu0 0
  %392 = vmatpush1.bf16.msra.mxu0 %v381
  %393 = vmatprep.subr.bf16.mxu0 0
  %394 = vmatpush1.bf16.msra.mxu0 0
  %395 = vmatprep.subr.bf16.mxu0 0
  %396 = vmatpush1.bf16.msra.mxu0 0
  %397 = vmatprep.subr.bf16.mxu0 0
  %398 = vmatpush1.bf16.msra.mxu0 0
  %399 = vmatprep.subr.bf16.mxu0 0
  %400 = vmatpush1.bf16.msra.mxu0 0
  %401 = vmatprep.subr.bf16.mxu0 0
  %402 = vmatpush1.bf16.msra.mxu0 0
  %403 = vmatprep.subr.bf16.mxu0 0
  %404 = vmatpush1.bf16.msra.mxu0 0
  %405 = vmatprep.subr.bf16.mxu0 0
  %406 = vmatpush1.bf16.msra.mxu0 0
  %407 = vmatprep.subr.bf16.mxu0 0
  %408 = vmatpush1.bf16.msra.mxu0 0
  %409 = vmatprep.subr.bf16.mxu0 0
  %410 = vmatpush1.bf16.msra.mxu0 0
  %411 = vmatprep.subr.bf16.mxu0 0
  %412 = vmatpush1.bf16.msra.mxu0 0
  %413 = vmatprep.subr.bf16.mxu0 0
  %414 = vmatpush1.bf16.msra.mxu0 0
  %415 = vmatprep.mubr.bf16.mxu0 0
  %416 = vmatmul.mubr.bf16.gmra.mrb[0].mxu0 %v284
  %v417 = vpop.f32.mrb[0].mxu0
  %v418 = vadd.f32 %v93, %v417
  %v419 = vpop.f32.mrb[0].mxu0
  %v420 = vpop.f32.mrb[0].mxu0
  %v421 = vadd.f32 %v93, %v420
  %v422 = vpop.f32.mrb[0].mxu0
  %423 = vmatprep.mubr.bf16.mxu0 0
  %424 = vmatmul.mubr.bf16.gmra.mrb[0].mxu0 %v287
  %v425 = vpop.f32.mrb[0].mxu0
  %v426 = vadd.f32 %v93, %v425
  %v427 = vpop.f32.mrb[0].mxu0
  %v428 = vpop.f32.mrb[0].mxu0
  %v429 = vadd.f32 %v93, %v428
  %v430 = vpop.f32.mrb[0].mxu0
  %431 = vmatprep.mubr.bf16.mxu0 0
  %432 = vmatmul.mubr.bf16.gmra.mrb[0].mxu0 %v290
  %v433 = vpop.f32.mrb[0].mxu0
  %v434 = vadd.f32 %v93, %v433
  %v435 = vpop.f32.mrb[0].mxu0
  %v436 = vpop.f32.mrb[0].mxu0
  %v437 = vadd.f32 %v93, %v436
  %v438 = vpop.f32.mrb[0].mxu0
  %439 = vmatprep.mubr.bf16.mxu0 0
  %440 = vmatmul.mubr.bf16.gmra.mrb[0].mxu0 %v293
  %v441 = vpop.f32.mrb[0].mxu0
  %v442 = vadd.f32 %v93, %v441
  %v443 = vpop.f32.mrb[0].mxu0
  %v444 = vpop.f32.mrb[0].mxu0
  %v445 = vadd.f32 %v93, %v444
  %v446 = vpop.f32.mrb[0].mxu0
  %447 = vmatprep.mubr.bf16.mxu0 0
  %448 = vmatmul.mubr.bf16.gmra.mrb[0].mxu0 %v296
  %v449 = vpop.f32.mrb[0].mxu0
  %v450 = vadd.f32 %v93, %v449
  %v451 = vpop.f32.mrb[0].mxu0
  %v452 = vpop.f32.mrb[0].mxu0
  %v453 = vadd.f32 %v93, %v452
  %v454 = vpop.f32.mrb[0].mxu0
  %455 = vmatprep.mubr.bf16.mxu0 0
  %456 = vmatmul.mubr.bf16.gmra.mrb[0].mxu0 %v299
  %v457 = vpop.f32.mrb[0].mxu0
  %v458 = vadd.f32 %v93, %v457
  %v459 = vpop.f32.mrb[0].mxu0
  %v460 = vpop.f32.mrb[0].mxu0
  %v461 = vadd.f32 %v93, %v460
  %v462 = vpop.f32.mrb[0].mxu0
  %463 = vmatprep.mubr.bf16.mxu0 0
  %464 = vmatmul.mubr.bf16.gmra.mrb[0].mxu0 %v302
  %v465 = vpop.f32.mrb[0].mxu0
  %v466 = vadd.f32 %v93, %v465
  %v467 = vpop.f32.mrb[0].mxu0
  %v468 = vpop.f32.mrb[0].mxu0
  %v469 = vadd.f32 %v93, %v468
  %v470 = vpop.f32.mrb[0].mxu0
  %471 = vmatprep.mubr.bf16.mxu0 0
  %472 = vmatmul.mubr.bf16.gmra.mrb[0].mxu0 %v305
  %v473 = vpop.f32.mrb[0].mxu0
  %v474 = vadd.f32 %v93, %v473
  %v475 = vpop.f32.mrb[0].mxu0
  %v476 = vpop.f32.mrb[0].mxu0
  %v477 = vadd.f32 %v93, %v476
  %v478 = vpop.f32.mrb[0].mxu0
  %479 = vmatprep.mubr.bf16.mxu0 0
  %480 = vmatmul.mubr.bf16.gmra.mrb[0].mxu0 %v308
  %v481 = vpop.f32.mrb[0].mxu0
  %v482 = vadd.f32 %v93, %v481
  %v483 = vpop.f32.mrb[0].mxu0
  %v484 = vpop.f32.mrb[0].mxu0
  %v485 = vadd.f32 %v93, %v484
  %v486 = vpop.f32.mrb[0].mxu0
  %487 = vmatprep.mubr.bf16.mxu0 0
  %488 = vmatmul.mubr.bf16.gmra.mrb[0].mxu0 %v311
  %v489 = vpop.f32.mrb[0].mxu0
  %v490 = vadd.f32 %v93, %v489
  %v491 = vpop.f32.mrb[0].mxu0
  %v492 = vpop.f32.mrb[0].mxu0
  %v493 = vadd.f32 %v93, %v492
  %v494 = vpop.f32.mrb[0].mxu0
  %495 = vmatprep.mubr.bf16.mxu0 0
  %496 = vmatmul.mubr.bf16.gmra.mrb[0].mxu0 %v314
  %v497 = vpop.f32.mrb[0].mxu0
  %v498 = vadd.f32 %v93, %v497
  %v499 = vpop.f32.mrb[0].mxu0
  %v500 = vpop.f32.mrb[0].mxu0
  %v501 = vadd.f32 %v93, %v500
  %v502 = vpop.f32.mrb[0].mxu0
  %503 = vmatprep.mubr.bf16.mxu0 0
  %504 = vmatmul.mubr.bf16.gmra.mrb[0].mxu0 %v317
  %v505 = vpop.f32.mrb[0].mxu0
  %v506 = vadd.f32 %v93, %v505
  %v507 = vpop.f32.mrb[0].mxu0
  %v508 = vpop.f32.mrb[0].mxu0
  %v509 = vadd.f32 %v93, %v508
  %v510 = vpop.f32.mrb[0].mxu0
  %511 = vmatprep.mubr.bf16.mxu0 0
  %512 = vmatmul.mubr.bf16.gmra.mrb[0].mxu0 %v320
  %v513 = vpop.f32.mrb[0].mxu0
  %v514 = vadd.f32 %v93, %v513
  %v515 = vpop.f32.mrb[0].mxu0
  %v516 = vpop.f32.mrb[0].mxu0
  %v517 = vadd.f32 %v93, %v516
  %v518 = vpop.f32.mrb[0].mxu0
  %519 = vmatprep.mubr.bf16.mxu0 0
  %520 = vmatmul.mubr.bf16.gmra.mrb[0].mxu0 %v323
  %v521 = vpop.f32.mrb[0].mxu0
  %v522 = vadd.f32 %v93, %v521
  %v523 = vpop.f32.mrb[0].mxu0
  %v524 = vpop.f32.mrb[0].mxu0
  %v525 = vadd.f32 %v93, %v524
  %v526 = vpop.f32.mrb[0].mxu0
  %527 = vmatprep.mubr.bf16.mxu0 0
  %528 = vmatmul.mubr.bf16.gmra.mrb[0].mxu0 %v326
  %v529 = vpop.f32.mrb[0].mxu0
  %v530 = vadd.f32 %v93, %v529
  %v531 = vpop.f32.mrb[0].mxu0
  %v532 = vpop.f32.mrb[0].mxu0
  %v533 = vadd.f32 %v93, %v532
  %v534 = vpop.f32.mrb[0].mxu0
  %535 = vmatprep.mubr.bf16.mxu0 0
  %536 = vmatmul.mubr.bf16.gmra.mrb[0].mxu0 %v329
  %v537 = vpop.f32.mrb[0].mxu0
  %v538 = vadd.f32 %v93, %v537
  %v539 = vpop.f32.mrb[0].mxu0
  %v540 = vpop.f32.mrb[0].mxu0
  %v541 = vadd.f32 %v93, %v540
  %v542 = vpop.f32.mrb[0].mxu0
  %543 = vmatprep.mubr.bf16.mxu0 0
  %544 = vmatmul.mubr.bf16.gmra.mrb[0].mxu0 %v332
  %v545 = vpop.f32.mrb[0].mxu0
  %v546 = vadd.f32 %v93, %v545
  %v547 = vpop.f32.mrb[0].mxu0
  %v548 = vpop.f32.mrb[0].mxu0
  %v549 = vadd.f32 %v93, %v548
  %v550 = vpop.f32.mrb[0].mxu0
  %551 = vmatprep.mubr.bf16.mxu0 0
  %552 = vmatmul.mubr.bf16.gmra.mrb[0].mxu0 %v335
  %v553 = vpop.f32.mrb[0].mxu0
  %v554 = vadd.f32 %v93, %v553
  %v555 = vpop.f32.mrb[0].mxu0
  %v556 = vpop.f32.mrb[0].mxu0
  %v557 = vadd.f32 %v93, %v556
  %v558 = vpop.f32.mrb[0].mxu0
  %559 = vmatprep.mubr.bf16.mxu0 0
  %560 = vmatmul.mubr.bf16.gmra.mrb[0].mxu0 %v338
  %v561 = vpop.f32.mrb[0].mxu0
  %v562 = vadd.f32 %v93, %v561
  %v563 = vpop.f32.mrb[0].mxu0
  %v564 = vpop.f32.mrb[0].mxu0
  %v565 = vadd.f32 %v93, %v564
  %v566 = vpop.f32.mrb[0].mxu0
  %567 = vmatprep.mubr.bf16.mxu0 0
  %568 = vmatmul.mubr.bf16.gmra.mrb[0].mxu0 %v341
  %v569 = vpop.f32.mrb[0].mxu0
  %v570 = vadd.f32 %v93, %v569
  %v571 = vpop.f32.mrb[0].mxu0
  %v572 = vpop.f32.mrb[0].mxu0
  %v573 = vadd.f32 %v93, %v572
  %v574 = vpop.f32.mrb[0].mxu0
  %575 = vmatprep.mubr.bf16.mxu0 0
  %576 = vmatmul.mubr.bf16.gmra.mrb[0].mxu0 %v344
  %v577 = vpop.f32.mrb[0].mxu0
  %v578 = vadd.f32 %v93, %v577
  %v579 = vpop.f32.mrb[0].mxu0
  %v580 = vpop.f32.mrb[0].mxu0
  %v581 = vadd.f32 %v93, %v580
  %v582 = vpop.f32.mrb[0].mxu0
  %583 = vmatprep.mubr.bf16.mxu0 0
  %584 = vmatmul.mubr.bf16.gmra.mrb[0].mxu0 %v347
  %v585 = vpop.f32.mrb[0].mxu0
  %v586 = vadd.f32 %v93, %v585
  %v587 = vpop.f32.mrb[0].mxu0
  %v588 = vpop.f32.mrb[0].mxu0
  %v589 = vadd.f32 %v93, %v588
  %v590 = vpop.f32.mrb[0].mxu0
  %591 = vmatprep.mubr.bf16.mxu0 0
  %592 = vmatmul.mubr.bf16.gmra.mrb[0].mxu0 %v350
  %v593 = vpop.f32.mrb[0].mxu0
  %v594 = vadd.f32 %v93, %v593
  %v595 = vpop.f32.mrb[0].mxu0
  %v596 = vpop.f32.mrb[0].mxu0
  %v597 = vadd.f32 %v93, %v596
  %v598 = vpop.f32.mrb[0].mxu0
  %599 = vmatprep.mubr.bf16.mxu0 0
  %600 = vmatmul.mubr.bf16.gmra.mrb[0].mxu0 %v353
  %v601 = vpop.f32.mrb[0].mxu0
  %v602 = vadd.f32 %v93, %v601
  %v603 = vpop.f32.mrb[0].mxu0
  %v604 = vpop.f32.mrb[0].mxu0
  %v605 = vadd.f32 %v93, %v604
  %v606 = vpop.f32.mrb[0].mxu0
  %607 = vmatprep.mubr.bf16.mxu0 0
  %608 = vmatmul.mubr.bf16.gmra.mrb[0].mxu0 %v356
  %v609 = vpop.f32.mrb[0].mxu0
  %v610 = vadd.f32 %v93, %v609
  %v611 = vpop.f32.mrb[0].mxu0
  %v612 = vpop.f32.mrb[0].mxu0
  %v613 = vadd.f32 %v93, %v612
  %v614 = vpop.f32.mrb[0].mxu0
  %615 = vmatprep.mubr.bf16.mxu0 0
  %616 = vmatmul.mubr.bf16.gmra.mrb[0].mxu0 %v359
  %v617 = vpop.f32.mrb[0].mxu0
  %v618 = vadd.f32 %v93, %v617
  %v619 = vpop.f32.mrb[0].mxu0
  %v620 = vpop.f32.mrb[0].mxu0
  %v621 = vadd.f32 %v93, %v620
  %v622 = vpop.f32.mrb[0].mxu0
  %623 = vmatprep.mubr.bf16.mxu0 0
  %624 = vmatmul.mubr.bf16.gmra.mrb[0].mxu0 %v362
  %v625 = vpop.f32.mrb[0].mxu0
  %v626 = vadd.f32 %v93, %v625
  %v627 = vpop.f32.mrb[0].mxu0
  %v628 = vpop.f32.mrb[0].mxu0
  %v629 = vadd.f32 %v93, %v628
  %v630 = vpop.f32.mrb[0].mxu0
  %631 = vmatprep.mubr.bf16.mxu0 0
  %632 = vmatmul.mubr.bf16.gmra.mrb[0].mxu0 %v365
  %v633 = vpop.f32.mrb[0].mxu0
  %v634 = vadd.f32 %v93, %v633
  %v635 = vpop.f32.mrb[0].mxu0
  %v636 = vpop.f32.mrb[0].mxu0
  %v637 = vadd.f32 %v93, %v636
  %v638 = vpop.f32.mrb[0].mxu0
  %639 = vmatprep.mubr.bf16.mxu0 0
  %640 = vmatmul.mubr.bf16.gmra.mrb[0].mxu0 %v368
  %v641 = vpop.f32.mrb[0].mxu0
  %v642 = vadd.f32 %v93, %v641
  %v643 = vpop.f32.mrb[0].mxu0
  %v644 = vpop.f32.mrb[0].mxu0
  %v645 = vadd.f32 %v93, %v644
  %v646 = vpop.f32.mrb[0].mxu0
  %647 = vmatprep.mubr.bf16.mxu0 0
  %648 = vmatmul.mubr.bf16.gmra.mrb[0].mxu0 %v371
  %v649 = vpop.f32.mrb[0].mxu0
  %v650 = vadd.f32 %v93, %v649
  %v651 = vpop.f32.mrb[0].mxu0
  %v652 = vpop.f32.mrb[0].mxu0
  %v653 = vadd.f32 %v93, %v652
  %v654 = vpop.f32.mrb[0].mxu0
  %655 = vmatprep.mubr.bf16.mxu0 0
  %656 = vmatmul.mubr.bf16.gmra.mrb[0].mxu0 %v374
  %v657 = vpop.f32.mrb[0].mxu0
  %v658 = vadd.f32 %v93, %v657
  %v659 = vpop.f32.mrb[0].mxu0
  %v660 = vpop.f32.mrb[0].mxu0
  %v661 = vadd.f32 %v93, %v660
  %v662 = vpop.f32.mrb[0].mxu0
  %663 = vmatprep.mubr.bf16.mxu0 0
  %664 = vmatmul.mubr.bf16.gmra.mrb[0].mxu0 %v377
  %v665 = vpop.f32.mrb[0].mxu0
  %v666 = vadd.f32 %v93, %v665
  %v667 = vpop.f32.mrb[0].mxu0
  %v668 = vpop.f32.mrb[0].mxu0
  %v669 = vadd.f32 %v93, %v668
  %v670 = vpop.f32.mrb[0].mxu0
  %671 = vdwg.mxu0
  %v672 = vmax.f32 %v418, 0.0
  %v673 = vmax.f32 %v421, 0.0
  %v674 = vmax.f32 %v426, 0.0
  %v675 = vmax.f32 %v429, 0.0
  %v676 = vmax.f32 %v434, 0.0
  %v677 = vmax.f32 %v437, 0.0
  %v678 = vmax.f32 %v442, 0.0
  %v679 = vmax.f32 %v445, 0.0
  %v680 = vmax.f32 %v450, 0.0
  %v681 = vmax.f32 %v453, 0.0
  %v682 = vmax.f32 %v458, 0.0
  %v683 = vmax.f32 %v461, 0.0
  %v684 = vmax.f32 %v466, 0.0
  %v685 = vmax.f32 %v469, 0.0
  %v686 = vmax.f32 %v474, 0.0
  %v687 = vmax.f32 %v477, 0.0
  %v688 = vmax.f32 %v482, 0.0
  %v689 = vmax.f32 %v485, 0.0
  %v690 = vmax.f32 %v490, 0.0
  %v691 = vmax.f32 %v493, 0.0
  %v692 = vmax.f32 %v498, 0.0
  %v693 = vmax.f32 %v501, 0.0
  %v694 = vmax.f32 %v506, 0.0
  %v695 = vmax.f32 %v509, 0.0
  %v696 = vmax.f32 %v514, 0.0
  %v697 = vmax.f32 %v517, 0.0
  %v698 = vmax.f32 %v522, 0.0
  %v699 = vmax.f32 %v525, 0.0
  %v700 = vmax.f32 %v530, 0.0
  %v701 = vmax.f32 %v533, 0.0
  %v702 = vmax.f32 %v538, 0.0
  %v703 = vmax.f32 %v541, 0.0
  %v704 = vmax.f32 %v546, 0.0
  %v705 = vmax.f32 %v549, 0.0
  %v706 = vmax.f32 %v554, 0.0
  %v707 = vmax.f32 %v557, 0.0
  %v708 = vmax.f32 %v562, 0.0
  %v709 = vmax.f32 %v565, 0.0
  %v710 = vmax.f32 %v570, 0.0
  %v711 = vmax.f32 %v573, 0.0
  %v712 = vmax.f32 %v578, 0.0
  %v713 = vmax.f32 %v581, 0.0
  %v714 = vmax.f32 %v586, 0.0
  %v715 = vmax.f32 %v589, 0.0
  %v716 = vmax.f32 %v594, 0.0
  %v717 = vmax.f32 %v597, 0.0
  %v718 = vmax.f32 %v602, 0.0
  %v719 = vmax.f32 %v605, 0.0
  %v720 = vmax.f32 %v610, 0.0
  %v721 = vmax.f32 %v613, 0.0
  %v722 = vmax.f32 %v618, 0.0
  %v723 = vmax.f32 %v621, 0.0
  %v724 = vmax.f32 %v626, 0.0
  %v725 = vmax.f32 %v629, 0.0
  %v726 = vmax.f32 %v634, 0.0
  %v727 = vmax.f32 %v637, 0.0
  %v728 = vmax.f32 %v642, 0.0
  %v729 = vmax.f32 %v645, 0.0
  %v730 = vmax.f32 %v650, 0.0
  %v731 = vmax.f32 %v653, 0.0
  %v732 = vmax.f32 %v658, 0.0
  %v733 = vmax.f32 %v661, 0.0
  %v734 = vmax.f32 %v666, 0.0
  %v735 = vmax.f32 %v669, 0.0
  %v736 = vpack.c.bf16 %v673, %v672
  %v737 = vpack.c.bf16 %v675, %v674
  %v738 = vpack.c.bf16 %v677, %v676
  %v739 = vpack.c.bf16 %v679, %v678
  %v740 = vpack.c.bf16 %v681, %v680
  %v741 = vpack.c.bf16 %v683, %v682
  %v742 = vpack.c.bf16 %v685, %v684
  %v743 = vpack.c.bf16 %v687, %v686
  %v744 = vpack.c.bf16 %v689, %v688
  %v745 = vpack.c.bf16 %v691, %v690
  %v746 = vpack.c.bf16 %v693, %v692
  %v747 = vpack.c.bf16 %v695, %v694
  %v748 = vpack.c.bf16 %v697, %v696
  %v749 = vpack.c.bf16 %v699, %v698
  %v750 = vpack.c.bf16 %v701, %v700
  %v751 = vpack.c.bf16 %v703, %v702
  %v752 = vpack.c.bf16 %v705, %v704
  %v753 = vpack.c.bf16 %v707, %v706
  %v754 = vpack.c.bf16 %v709, %v708
  %v755 = vpack.c.bf16 %v711, %v710
  %v756 = vpack.c.bf16 %v713, %v712
  %v757 = vpack.c.bf16 %v715, %v714
  %v758 = vpack.c.bf16 %v717, %v716
  %v759 = vpack.c.bf16 %v719, %v718
  %v760 = vpack.c.bf16 %v721, %v720
  %v761 = vpack.c.bf16 %v723, %v722
  %v762 = vpack.c.bf16 %v725, %v724
  %v763 = vpack.c.bf16 %v727, %v726
  %v764 = vpack.c.bf16 %v729, %v728
  %v765 = vpack.c.bf16 %v731, %v730
  %v766 = vpack.c.bf16 %v733, %v732
  %v767 = vpack.c.bf16 %v735, %v734
  %v800 = vunpack.c.l.b16 %v736
  %v801 = vunpack.c.h.b16 %v736
  %v802 = vunpack.c.l.b16 %v737
  %v803 = vunpack.c.h.b16 %v737
  %v804 = vunpack.c.l.b16 %v738
  %v805 = vunpack.c.h.b16 %v738
  %v806 = vunpack.c.l.b16 %v739
  %v807 = vunpack.c.h.b16 %v739
  %v808 = vunpack.c.l.b16 %v740
  %v809 = vunpack.c.h.b16 %v740
  %v810 = vunpack.c.l.b16 %v741
  %v811 = vunpack.c.h.b16 %v741
  %v812 = vunpack.c.l.b16 %v742
  %v813 = vunpack.c.h.b16 %v742
  %v814 = vunpack.c.l.b16 %v743
  %v815 = vunpack.c.h.b16 %v743
  %v816 = vunpack.c.l.b16 %v744
  %v817 = vunpack.c.h.b16 %v744
  %v818 = vunpack.c.l.b16 %v745
  %v819 = vunpack.c.h.b16 %v745
  %v820 = vunpack.c.l.b16 %v746
  %v821 = vunpack.c.h.b16 %v746
  %v822 = vunpack.c.l.b16 %v747
  %v823 = vunpack.c.h.b16 %v747
  %v824 = vunpack.c.l.b16 %v748
  %v825 = vunpack.c.h.b16 %v748
  %v826 = vunpack.c.l.b16 %v749
  %v827 = vunpack.c.h.b16 %v749
  %v828 = vunpack.c.l.b16 %v750
  %v829 = vunpack.c.h.b16 %v750
  %v830 = vunpack.c.l.b16 %v751
  %v831 = vunpack.c.h.b16 %v751
  %v832 = vunpack.c.l.b16 %v752
  %v833 = vunpack.c.h.b16 %v752
  %v834 = vunpack.c.l.b16 %v753
  %v835 = vunpack.c.h.b16 %v753
  %v836 = vunpack.c.l.b16 %v754
  %v837 = vunpack.c.h.b16 %v754
  %v838 = vunpack.c.l.b16 %v755
  %v839 = vunpack.c.h.b16 %v755
  %v840 = vunpack.c.l.b16 %v756
  %v841 = vunpack.c.h.b16 %v756
  %v842 = vunpack.c.l.b16 %v757
  %v843 = vunpack.c.h.b16 %v757
  %v844 = vunpack.c.l.b16 %v758
  %v845 = vunpack.c.h.b16 %v758
  %v846 = vunpack.c.l.b16 %v759
  %v847 = vunpack.c.h.b16 %v759
  %v848 = vunpack.c.l.b16 %v760
  %v849 = vunpack.c.h.b16 %v760
  %v850 = vunpack.c.l.b16 %v761
  %v851 = vunpack.c.h.b16 %v761
  %v852 = vunpack.c.l.b16 %v762
  %v853 = vunpack.c.h.b16 %v762
  %v854 = vunpack.c.l.b16 %v763
  %v855 = vunpack.c.h.b16 %v763
  %v856 = vunpack.c.l.b16 %v764
  %v857 = vunpack.c.h.b16 %v764
  %v858 = vunpack.c.l.b16 %v765
  %v859 = vunpack.c.h.b16 %v765
  %v860 = vunpack.c.l.b16 %v766
  %v861 = vunpack.c.h.b16 %v766
  %v862 = vunpack.c.l.b16 %v767
  %v863 = vunpack.c.h.b16 %v767
  %v864 = vpack.c.b16 %v800, %v800
  %v865 = vpack.c.b16 %v801, %v801
  %v866 = vpack.c.b16 %v802, %v802
  %v867 = vpack.c.b16 %v803, %v803
  %v868 = vpack.c.b16 %v804, %v804
  %v869 = vpack.c.b16 %v805, %v805
  %v870 = vpack.c.b16 %v806, %v806
  %v871 = vpack.c.b16 %v807, %v807
  %v872 = vpack.c.b16 %v808, %v808
  %v873 = vpack.c.b16 %v809, %v809
  %v874 = vpack.c.b16 %v810, %v810
  %v875 = vpack.c.b16 %v811, %v811
  %v876 = vpack.c.b16 %v812, %v812
  %v877 = vpack.c.b16 %v813, %v813
  %v878 = vpack.c.b16 %v814, %v814
  %v879 = vpack.c.b16 %v815, %v815
  %v880 = vpack.c.b16 %v816, %v816
  %v881 = vpack.c.b16 %v817, %v817
  %v882 = vpack.c.b16 %v818, %v818
  %v883 = vpack.c.b16 %v819, %v819
  %v884 = vpack.c.b16 %v820, %v820
  %v885 = vpack.c.b16 %v821, %v821
  %v886 = vpack.c.b16 %v822, %v822
  %v887 = vpack.c.b16 %v823, %v823
  %v888 = vpack.c.b16 %v824, %v824
  %v889 = vpack.c.b16 %v825, %v825
  %v890 = vpack.c.b16 %v826, %v826
  %v891 = vpack.c.b16 %v827, %v827
  %v892 = vpack.c.b16 %v828, %v828
  %v893 = vpack.c.b16 %v829, %v829
  %v894 = vpack.c.b16 %v830, %v830
  %v895 = vpack.c.b16 %v831, %v831
  %v896 = vpack.c.b16 %v832, %v832
  %v897 = vpack.c.b16 %v833, %v833
  %v898 = vpack.c.b16 %v834, %v834
  %v899 = vpack.c.b16 %v835, %v835
  %v900 = vpack.c.b16 %v836, %v836
  %v901 = vpack.c.b16 %v837, %v837
  %v902 = vpack.c.b16 %v838, %v838
  %v903 = vpack.c.b16 %v839, %v839
  %v904 = vpack.c.b16 %v840, %v840
  %v905 = vpack.c.b16 %v841, %v841
  %v906 = vpack.c.b16 %v842, %v842
  %v907 = vpack.c.b16 %v843, %v843
  %v908 = vpack.c.b16 %v844, %v844
  %v909 = vpack.c.b16 %v845, %v845
  %v910 = vpack.c.b16 %v846, %v846
  %v911 = vpack.c.b16 %v847, %v847
  %v912 = vpack.c.b16 %v848, %v848
  %v913 = vpack.c.b16 %v849, %v849
  %v914 = vpack.c.b16 %v850, %v850
  %v915 = vpack.c.b16 %v851, %v851
  %v916 = vpack.c.b16 %v852, %v852
  %v917 = vpack.c.b16 %v853, %v853
  %v918 = vpack.c.b16 %v854, %v854
  %v919 = vpack.c.b16 %v855, %v855
  %v920 = vpack.c.b16 %v856, %v856
  %v921 = vpack.c.b16 %v857, %v857
  %v922 = vpack.c.b16 %v858, %v858
  %v923 = vpack.c.b16 %v859, %v859
  %v924 = vpack.c.b16 %v860, %v860
  %v925 = vpack.c.b16 %v861, %v861
  %v926 = vpack.c.b16 %v862, %v862
  %v927 = vpack.c.b16 %v863, %v863
  %992 = vst [vmem:[%s3] sm:$0xf] %v864
  %993 = vst [vmem:[%s3 + $0x4] sm:$0xf] %v865
  %994 = vst [vmem:[%s3 + $0x8] sm:$0xf] %v866
  %995 = vst [vmem:[%s3 + $0xc] sm:$0xf] %v867
  %996 = vst [vmem:[%s3 + $0x10] sm:$0xf] %v868
  %997 = vst [vmem:[%s3 + $0x14] sm:$0xf] %v869
  %998 = vst [vmem:[%s3 + $0x18] sm:$0xf] %v870
  %999 = vst [vmem:[%s3 + $0x1c] sm:$0xf] %v871
  %1000 = vst [vmem:[%s3 + $0x20] sm:$0xf] %v872
  %1001 = vst [vmem:[%s3 + $0x24] sm:$0xf] %v873
  %1002 = vst [vmem:[%s3 + $0x28] sm:$0xf] %v874
  %1003 = vst [vmem:[%s3 + $0x2c] sm:$0xf] %v875
  %1004 = vst [vmem:[%s3 + $0x30] sm:$0xf] %v876
  %1005 = vst [vmem:[%s3 + $0x34] sm:$0xf] %v877
  %1006 = vst [vmem:[%s3 + $0x38] sm:$0xf] %v878
  %1007 = vst [vmem:[%s3 + $0x3c] sm:$0xf] %v879
  %1008 = vst [vmem:[%s3 + $0x40] sm:$0xf] %v880
  %1009 = vst [vmem:[%s3 + $0x44] sm:$0xf] %v881
  %1010 = vst [vmem:[%s3 + $0x48] sm:$0xf] %v882
  %1011 = vst [vmem:[%s3 + $0x4c] sm:$0xf] %v883
  %1012 = vst [vmem:[%s3 + $0x50] sm:$0xf] %v884
  %1013 = vst [vmem:[%s3 + $0x54] sm:$0xf] %v885
  %1014 = vst [vmem:[%s3 + $0x58] sm:$0xf] %v886
  %1015 = vst [vmem:[%s3 + $0x5c] sm:$0xf] %v887
  %1016 = vst [vmem:[%s3 + $0x60] sm:$0xf] %v888
  %1017 = vst [vmem:[%s3 + $0x64] sm:$0xf] %v889
  %1018 = vst [vmem:[%s3 + $0x68] sm:$0xf] %v890
  %1019 = vst [vmem:[%s3 + $0x6c] sm:$0xf] %v891
  %1020 = vst [vmem:[%s3 + $0x70] sm:$0xf] %v892
  %1021 = vst [vmem:[%s3 + $0x74] sm:$0xf] %v893
  %1022 = vst [vmem:[%s3 + $0x78] sm:$0xf] %v894
  %1023 = vst [vmem:[%s3 + $0x7c] sm:$0xf] %v895
  %1024 = vst [vmem:[%s3 + $0x80] sm:$0xf] %v896
  %1025 = vst [vmem:[%s3 + $0x84] sm:$0xf] %v897
  %1026 = vst [vmem:[%s3 + $0x88] sm:$0xf] %v898
  %1027 = vst [vmem:[%s3 + $0x8c] sm:$0xf] %v899
  %1028 = vst [vmem:[%s3 + $0x90] sm:$0xf] %v900
  %1029 = vst [vmem:[%s3 + $0x94] sm:$0xf] %v901
  %1030 = vst [vmem:[%s3 + $0x98] sm:$0xf] %v902
  %1031 = vst [vmem:[%s3 + $0x9c] sm:$0xf] %v903
  %1032 = vst [vmem:[%s3 + $0xa0] sm:$0xf] %v904
  %1033 = vst [vmem:[%s3 + $0xa4] sm:$0xf] %v905
  %1034 = vst [vmem:[%s3 + $0xa8] sm:$0xf] %v906
  %1035 = vst [vmem:[%s3 + $0xac] sm:$0xf] %v907
  %1036 = vst [vmem:[%s3 + $0xb0] sm:$0xf] %v908
  %1037 = vst [vmem:[%s3 + $0xb4] sm:$0xf] %v909
  %1038 = vst [vmem:[%s3 + $0xb8] sm:$0xf] %v910
  %1039 = vst [vmem:[%s3 + $0xbc] sm:$0xf] %v911
  %1040 = vst [vmem:[%s3 + $0xc0] sm:$0xf] %v912
  %1041 = vst [vmem:[%s3 + $0xc4] sm:$0xf] %v913
  %1042 = vst [vmem:[%s3 + $0xc8] sm:$0xf] %v914
  %1043 = vst [vmem:[%s3 + $0xcc] sm:$0xf] %v915
  %1044 = vst [vmem:[%s3 + $0xd0] sm:$0xf] %v916
  %1045 = vst [vmem:[%s3 + $0xd4] sm:$0xf] %v917
  %1046 = vst [vmem:[%s3 + $0xd8] sm:$0xf] %v918
  %1047 = vst [vmem:[%s3 + $0xdc] sm:$0xf] %v919
  %1048 = vst [vmem:[%s3 + $0xe0] sm:$0xf] %v920
  %1049 = vst [vmem:[%s3 + $0xe4] sm:$0xf] %v921
  %1050 = vst [vmem:[%s3 + $0xe8] sm:$0xf] %v922
  %1051 = vst [vmem:[%s3 + $0xec] sm:$0xf] %v923
  %1052 = vst [vmem:[%s3 + $0xf0] sm:$0xf] %v924
  %1053 = vst [vmem:[%s3 + $0xf4] sm:$0xf] %v925
  %1054 = vst [vmem:[%s3 + $0xf8] sm:$0xf] %v926
  %1055 = vst [vmem:[%s3 + $0xfc] sm:$0xf] %v927
  // Predicated region
  $region14: #{resnet_forward.25} parent=0 // pred_check
    _
  $region15: #{resnet_forward.25} parent=0 // pred_check_branch
    %1057 = sbr.rel (0) target = $region17
  $region16: #{resnet_forward.25} parent=0 // pred_region
    _
  $region17: #{resnet_forward.25} parent=0 // pred_fallthru
    _
  // Predicated region
  $region18: #{resnet_forward.25} parent=0 // pred_check
    _
  $region19: #{resnet_forward.25} parent=0 // pred_check_branch
    %1059 = sbr.rel (0) target = $region21
  $region20: #{resnet_forward.25} parent=0 // pred_region
    _
  $region21: #{resnet_forward.25} parent=0 // pred_fallthru
    _

// kernel: resnet_forward.28
$region0: #{resnet_forward.28}
  #allocation0 [shape = 'u32[]', space=smem, size = 0x4, offset = 0x4, fixed_abs, tag = 'smem constant byte address 0x4 - core index']
  #allocation1 [shape = 'u32[144,128]{1,0:T(1,128)}', space=vmem, size = 0x12000, scoped, tag = 'internal scratch']
  %s0 = inlined_call_operand.vmem [shape: bf16[128,144], index: 0, kind: input, shape index: {}]
  %s1 = inlined_call_operand.vmem [shape: bf16[144,128], index: 1, kind: input, shape index: {}]
  %s2 = inlined_call_operand.vmem [shape: f32[1,128], index: 2, kind: input, shape index: {}]
  %s3 = inlined_call_operand.vmem [shape: bf16[128,128], index: 3, kind: output, shape index: {}]
  %s4 = sld [smem:[#allocation0]]
  $region22: #{resnet_forward.28} parent=0
    _
  %s6 = ssub.s32 1, %s4
  %s7 = scalar_select 0, %s6, %s4
  // Predicated region
  $region2: #{resnet_forward.28} parent=0 // pred_check
    _
  $region3: #{resnet_forward.28} parent=0 // pred_check_branch
    %9 = sbr.rel (0) target = $region5
  $region4: #{resnet_forward.28} parent=0 // pred_region
    _
  $region5: #{resnet_forward.28} parent=0 // pred_fallthru
    _
  // Predicated region
  $region6: #{resnet_forward.28} parent=0 // pred_check
    _
  $region7: #{resnet_forward.28} parent=0 // pred_check_branch
    %11 = sbr.rel (0) target = $region9
  $region8: #{resnet_forward.28} parent=0 // pred_region
    _
  $region9: #{resnet_forward.28} parent=0 // pred_fallthru
    _
  // Predicated region
  $region10: #{resnet_forward.28} parent=0 // pred_check
    _
  $region11: #{resnet_forward.28} parent=0 // pred_check_branch
    %13 = sbr.rel (0) target = $region13
  $region12: #{resnet_forward.28} parent=0 // pred_region
    _
  $region13: #{resnet_forward.28} parent=0 // pred_fallthru
    _
  %v15 = vld [vmem:[%s0] sm:$0xff]
  %v16 = vld [vmem:[%s0 + $0x8] sm:$0xff]
  %v17 = vld [vmem:[%s0 + $0x10] sm:$0xff]
  %v18 = vld [vmem:[%s0 + $0x18] sm:$0xff]
  %v19 = vld [vmem:[%s0 + $0x20] sm:$0xff]
  %v20 = vld [vmem:[%s0 + $0x28] sm:$0xff]
  %v21 = vld [vmem:[%s0 + $0x30] sm:$0xff]
  %v22 = vld [vmem:[%s0 + $0x38] sm:$0xff]
  %v23 = vld [vmem:[%s0 + $0x40] sm:$0xff]
  %v24 = vld [vmem:[%s0 + $0x48] sm:$0xff]
  %v25 = vld [vmem:[%s0 + $0x50] sm:$0xff]
  %v26 = vld [vmem:[%s0 + $0x58] sm:$0xff]
  %v27 = vld [vmem:[%s0 + $0x60] sm:$0xff]
  %v28 = vld [vmem:[%s0 + $0x68] sm:$0xff]
  %v29 = vld [vmem:[%s0 + $0x70] sm:$0xff]
  %v30 = vld [vmem:[%s0 + $0x78] sm:$0xff]
  %v31 = vld [vmem:[%s1] sm:$0xf]
  %v32 = vld [vmem:[%s1 + $0x4] sm:$0xf]
  %v33 = vld [vmem:[%s1 + $0x8] sm:$0xf]
  %v34 = vld [vmem:[%s1 + $0xc] sm:$0xf]
  %v35 = vld [vmem:[%s1 + $0x10] sm:$0xf]
  %v36 = vld [vmem:[%s1 + $0x14] sm:$0xf]
  %v37 = vld [vmem:[%s1 + $0x18] sm:$0xf]
  %v38 = vld [vmem:[%s1 + $0x1c] sm:$0xf]
  %v39 = vld [vmem:[%s1 + $0x20] sm:$0xf]
  %v40 = vld [vmem:[%s1 + $0x24] sm:$0xf]
  %v41 = vld [vmem:[%s1 + $0x28] sm:$0xf]
  %v42 = vld [vmem:[%s1 + $0x2c] sm:$0xf]
  %v43 = vld [vmem:[%s1 + $0x30] sm:$0xf]
  %v44 = vld [vmem:[%s1 + $0x34] sm:$0xf]
  %v45 = vld [vmem:[%s1 + $0x38] sm:$0xf]
  %v46 = vld [vmem:[%s1 + $0x3c] sm:$0xf]
  %v47 = vld [vmem:[%s1 + $0x40] sm:$0xf]
  %v48 = vld [vmem:[%s1 + $0x44] sm:$0xf]
  %v49 = vld [vmem:[%s2] sm:$0x1]
  %v51 = vlaneseq
  %v52 = vshrl.u32 %v51, 7
  %v53 = vsub.s32 0, %v52
  %v54 = vrot.slane %v49, %v53
  %v72 = vunpack.c.l.b16 %v15
  %v73 = vunpack.c.h.b16 %v15
  %v74 = vunpack.c.l.b16 %v16
  %v75 = vunpack.c.h.b16 %v16
  %v76 = vunpack.c.l.b16 %v17
  %v77 = vunpack.c.h.b16 %v17
  %v78 = vunpack.c.l.b16 %v18
  %v79 = vunpack.c.h.b16 %v18
  %v80 = vunpack.c.l.b16 %v19
  %v81 = vunpack.c.h.b16 %v19
  %v82 = vunpack.c.l.b16 %v20
  %v83 = vunpack.c.h.b16 %v20
  %v84 = vunpack.c.l.b16 %v21
  %v85 = vunpack.c.h.b16 %v21
  %v86 = vunpack.c.l.b16 %v22
  %v87 = vunpack.c.h.b16 %v22
  %v88 = vunpack.c.l.b16 %v23
  %v89 = vunpack.c.h.b16 %v23
  %v90 = vunpack.c.l.b16 %v24
  %v91 = vunpack.c.h.b16 %v24
  %v92 = vunpack.c.l.b16 %v25
  %v93 = vunpack.c.h.b16 %v25
  %v94 = vunpack.c.l.b16 %v26
  %v95 = vunpack.c.h.b16 %v26
  %v96 = vunpack.c.l.b16 %v27
  %v97 = vunpack.c.h.b16 %v27
  %v98 = vunpack.c.l.b16 %v28
  %v99 = vunpack.c.h.b16 %v28
  %v100 = vunpack.c.l.b16 %v29
  %v101 = vunpack.c.h.b16 %v29
  %v102 = vunpack.c.l.b16 %v30
  %v103 = vunpack.c.h.b16 %v30
  %v104 = vpack.c.b16 %v74, %v72
  %v105 = vpack.c.b16 %v75, %v73
  %v106 = vpack.c.b16 %v78, %v76
  %v107 = vpack.c.b16 %v79, %v77
  %v108 = vpack.c.b16 %v82, %v80
  %v109 = vpack.c.b16 %v83, %v81
  %v110 = vpack.c.b16 %v86, %v84
  %v111 = vpack.c.b16 %v87, %v85
  %v112 = vpack.c.b16 %v90, %v88
  %v113 = vpack.c.b16 %v91, %v89
  %v114 = vpack.c.b16 %v94, %v92
  %v115 = vpack.c.b16 %v95, %v93
  %v116 = vpack.c.b16 %v98, %v96
  %v117 = vpack.c.b16 %v99, %v97
  %v118 = vpack.c.b16 %v102, %v100
  %v119 = vpack.c.b16 %v103, %v101
  %v146 = vunpack.c.l.b16 %v31
  %v147 = vunpack.c.l.b16 %v32
  %v148 = vunpack.c.l.b16 %v33
  %v149 = vunpack.c.l.b16 %v34
  %v150 = vunpack.c.l.b16 %v35
  %v151 = vunpack.c.l.b16 %v36
  %v152 = vunpack.c.l.b16 %v37
  %v153 = vunpack.c.l.b16 %v38
  %v154 = vunpack.c.l.b16 %v39
  %v155 = vunpack.c.l.b16 %v40
  %v156 = vunpack.c.l.b16 %v41
  %v157 = vunpack.c.l.b16 %v42
  %v158 = vunpack.c.l.b16 %v43
  %v159 = vunpack.c.l.b16 %v44
  %v160 = vunpack.c.l.b16 %v45
  %v161 = vunpack.c.l.b16 %v46
  %v162 = vunpack.c.l.b16 %v47
  %v163 = vunpack.c.l.b16 %v48
  %v164 = vpack.c.b16 %v147, %v146
  %v165 = vpack.c.b16 %v149, %v148
  %v166 = vpack.c.b16 %v151, %v150
  %v167 = vpack.c.b16 %v153, %v152
  %v168 = vpack.c.b16 %v155, %v154
  %v169 = vpack.c.b16 %v157, %v156
  %v170 = vpack.c.b16 %v159, %v158
  %v171 = vpack.c.b16 %v161, %v160
  %v172 = vpack.c.b16 %v163, %v162
  %vm182 = vcmask 130048
  %v184 = vsel %vm182, %v105, 0
  %v187 = vsel %vm182, %v107, 0
  %v190 = vsel %vm182, %v109, 0
  %v193 = vsel %vm182, %v111, 0
  %v196 = vsel %vm182, %v113, 0
  %v199 = vsel %vm182, %v115, 0
  %v202 = vsel %vm182, %v117, 0
  %v205 = vsel %vm182, %v119, 0
  %207 = vmatprep.subr.bf16.mxu0 0
  %208 = vmatpush1.bf16.msra.mxu0 %v164
  %209 = vmatprep.subr.bf16.mxu0 0
  %210 = vmatpush1.bf16.msra.mxu0 %v165
  %211 = vmatprep.subr.bf16.mxu0 0
  %212 = vmatpush1.bf16.msra.mxu0 %v166
  %213 = vmatprep.subr.bf16.mxu0 0
  %214 = vmatpush1.bf16.msra.mxu0 %v167
  %215 = vmatprep.subr.bf16.mxu0 0
  %216 = vmatpush1.bf16.msra.mxu0 %v168
  %217 = vmatprep.subr.bf16.mxu0 0
  %218 = vmatpush1.bf16.msra.mxu0 %v169
  %219 = vmatprep.subr.bf16.mxu0 0
  %220 = vmatpush1.bf16.msra.mxu0 %v170
  %221 = vmatprep.subr.bf16.mxu0 0
  %222 = vmatpush1.bf16.msra.mxu0 %v171
  %223 = vmatprep.subr.bf16.mxu0 0
  %224 = vmatpush1.bf16.msra.mxu0 %v172
  %225 = vmatprep.subr.bf16.mxu0 0
  %226 = vmatpush1.bf16.msra.mxu0 0
  %227 = vmatprep.subr.bf16.mxu0 0
  %228 = vmatpush1.bf16.msra.mxu0 0
  %229 = vmatprep.subr.bf16.mxu0 0
  %230 = vmatpush1.bf16.msra.mxu0 0
  %231 = vmatprep.subr.bf16.mxu0 0
  %232 = vmatpush1.bf16.msra.mxu0 0
  %233 = vmatprep.subr.bf16.mxu0 0
  %234 = vmatpush1.bf16.msra.mxu0 0
  %235 = vmatprep.subr.bf16.mxu0 0
  %236 = vmatpush1.bf16.msra.mxu0 0
  %237 = vmatprep.subr.bf16.mxu0 0
  %238 = vmatpush1.bf16.msra.mxu0 0
  %239 = vmatprep.mubr.bf16.mxu0 %v184
  %240 = vmatmul.mubr.bf16.gmra.mrb[0].mxu0 %v104
  %v241 = vpop.f32.mrb[0].mxu0
  %v242 = vadd.f32 %v54, %v241
  %v243 = vpop.f32.mrb[0].mxu0
  %v244 = vpop.f32.mrb[0].mxu0
  %v245 = vadd.f32 %v54, %v244
  %v246 = vpop.f32.mrb[0].mxu0
  %247 = vmatprep.mubr.bf16.mxu0 %v187
  %248 = vmatmul.mubr.bf16.gmra.mrb[0].mxu0 %v106
  %v249 = vpop.f32.mrb[0].mxu0
  %v250 = vadd.f32 %v54, %v249
  %v251 = vpop.f32.mrb[0].mxu0
  %v252 = vpop.f32.mrb[0].mxu0
  %v253 = vadd.f32 %v54, %v252
  %v254 = vpop.f32.mrb[0].mxu0
  %255 = vmatprep.mubr.bf16.mxu0 %v190
  %256 = vmatmul.mubr.bf16.gmra.mrb[0].mxu0 %v108
  %v257 = vpop.f32.mrb[0].mxu0
  %v258 = vadd.f32 %v54, %v257
  %v259 = vpop.f32.mrb[0].mxu0
  %v260 = vpop.f32.mrb[0].mxu0
  %v261 = vadd.f32 %v54, %v260
  %v262 = vpop.f32.mrb[0].mxu0
  %263 = vmatprep.mubr.bf16.mxu0 %v193
  %264 = vmatmul.mubr.bf16.gmra.mrb[0].mxu0 %v110
  %v265 = vpop.f32.mrb[0].mxu0
  %v266 = vadd.f32 %v54, %v265
  %v267 = vpop.f32.mrb[0].mxu0
  %v268 = vpop.f32.mrb[0].mxu0
  %v269 = vadd.f32 %v54, %v268
  %v270 = vpop.f32.mrb[0].mxu0
  %271 = vmatprep.mubr.bf16.mxu0 %v196
  %272 = vmatmul.mubr.bf16.gmra.mrb[0].mxu0 %v112
  %v273 = vpop.f32.mrb[0].mxu0
  %v274 = vadd.f32 %v54, %v273
  %v275 = vpop.f32.mrb[0].mxu0
  %v276 = vpop.f32.mrb[0].mxu0
  %v277 = vadd.f32 %v54, %v276
  %v278 = vpop.f32.mrb[0].mxu0
  %279 = vmatprep.mubr.bf16.mxu0 %v199
  %280 = vmatmul.mubr.bf16.gmra.mrb[0].mxu0 %v114
  %v281 = vpop.f32.mrb[0].mxu0
  %v282 = vadd.f32 %v54, %v281
  %v283 = vpop.f32.mrb[0].mxu0
  %v284 = vpop.f32.mrb[0].mxu0
  %v285 = vadd.f32 %v54, %v284
  %v286 = vpop.f32.mrb[0].mxu0
  %287 = vmatprep.mubr.bf16.mxu0 %v202
  %288 = vmatmul.mubr.bf16.gmra.mrb[0].mxu0 %v116
  %v289 = vpop.f32.mrb[0].mxu0
  %v290 = vadd.f32 %v54, %v289
  %v291 = vpop.f32.mrb[0].mxu0
  %v292 = vpop.f32.mrb[0].mxu0
  %v293 = vadd.f32 %v54, %v292
  %v294 = vpop.f32.mrb[0].mxu0
  %295 = vmatprep.mubr.bf16.mxu0 %v205
  %296 = vmatmul.mubr.bf16.gmra.mrb[0].mxu0 %v118
  %v297 = vpop.f32.mrb[0].mxu0
  %v298 = vadd.f32 %v54, %v297
  %v299 = vpop.f32.mrb[0].mxu0
  %v300 = vpop.f32.mrb[0].mxu0
  %v301 = vadd.f32 %v54, %v300
  %v302 = vpop.f32.mrb[0].mxu0
  %303 = vdwg.mxu0
  %v304 = vmax.f32 %v242, 0.0
  %v305 = vmax.f32 %v245, 0.0
  %v306 = vmax.f32 %v250, 0.0
  %v307 = vmax.f32 %v253, 0.0
  %v308 = vmax.f32 %v258, 0.0
  %v309 = vmax.f32 %v261, 0.0
  %v310 = vmax.f32 %v266, 0.0
  %v311 = vmax.f32 %v269, 0.0
  %v312 = vmax.f32 %v274, 0.0
  %v313 = vmax.f32 %v277, 0.0
  %v314 = vmax.f32 %v282, 0.0
  %v315 = vmax.f32 %v285, 0.0
  %v316 = vmax.f32 %v290, 0.0
  %v317 = vmax.f32 %v293, 0.0
  %v318 = vmax.f32 %v298, 0.0
  %v319 = vmax.f32 %v301, 0.0
  %v320 = vpack.c.bf16 %v305, %v304
  %v321 = vpack.c.bf16 %v307, %v306
  %v322 = vpack.c.bf16 %v309, %v308
  %v323 = vpack.c.bf16 %v311, %v310
  %v324 = vpack.c.bf16 %v313, %v312
  %v325 = vpack.c.bf16 %v315, %v314
  %v326 = vpack.c.bf16 %v317, %v316
  %v327 = vpack.c.bf16 %v319, %v318
  %v336 = vunpack.c.l.b16 %v320
  %v337 = vunpack.c.h.b16 %v320
  %v338 = vunpack.c.l.b16 %v321
  %v339 = vunpack.c.h.b16 %v321
  %v340 = vunpack.c.l.b16 %v322
  %v341 = vunpack.c.h.b16 %v322
  %v342 = vunpack.c.l.b16 %v323
  %v343 = vunpack.c.h.b16 %v323
  %v344 = vunpack.c.l.b16 %v324
  %v345 = vunpack.c.h.b16 %v324
  %v346 = vunpack.c.l.b16 %v325
  %v347 = vunpack.c.h.b16 %v325
  %v348 = vunpack.c.l.b16 %v326
  %v349 = vunpack.c.h.b16 %v326
  %v350 = vunpack.c.l.b16 %v327
  %v351 = vunpack.c.h.b16 %v327
  %v352 = vpack.c.b16 %v336, %v336
  %v353 = vpack.c.b16 %v337, %v337
  %v354 = vpack.c.b16 %v338, %v338
  %v355 = vpack.c.b16 %v339, %v339
  %v356 = vpack.c.b16 %v340, %v340
  %v357 = vpack.c.b16 %v341, %v341
  %v358 = vpack.c.b16 %v342, %v342
  %v359 = vpack.c.b16 %v343, %v343
  %v360 = vpack.c.b16 %v344, %v344
  %v361 = vpack.c.b16 %v345, %v345
  %v362 = vpack.c.b16 %v346, %v346
  %v363 = vpack.c.b16 %v347, %v347
  %v364 = vpack.c.b16 %v348, %v348
  %v365 = vpack.c.b16 %v349, %v349
  %v366 = vpack.c.b16 %v350, %v350
  %v367 = vpack.c.b16 %v351, %v351
  %384 = vst [vmem:[%s3] sm:$0xf] %v352
  %385 = vst [vmem:[%s3 + $0x4] sm:$0xf] %v353
  %386 = vst [vmem:[%s3 + $0x8] sm:$0xf] %v354
  %387 = vst [vmem:[%s3 + $0xc] sm:$0xf] %v355
  %388 = vst [vmem:[%s3 + $0x10] sm:$0xf] %v356
  %389 = vst [vmem:[%s3 + $0x14] sm:$0xf] %v357
  %390 = vst [vmem:[%s3 + $0x18] sm:$0xf] %v358
  %391 = vst [vmem:[%s3 + $0x1c] sm:$0xf] %v359
  %392 = vst [vmem:[%s3 + $0x20] sm:$0xf] %v360
  %393 = vst [vmem:[%s3 + $0x24] sm:$0xf] %v361
  %394 = vst [vmem:[%s3 + $0x28] sm:$0xf] %v362
  %395 = vst [vmem:[%s3 + $0x2c] sm:$0xf] %v363
  %396 = vst [vmem:[%s3 + $0x30] sm:$0xf] %v364
  %397 = vst [vmem:[%s3 + $0x34] sm:$0xf] %v365
  %398 = vst [vmem:[%s3 + $0x38] sm:$0xf] %v366
  %399 = vst [vmem:[%s3 + $0x3c] sm:$0xf] %v367
  // Predicated region
  $region14: #{resnet_forward.28} parent=0 // pred_check
    _
  $region15: #{resnet_forward.28} parent=0 // pred_check_branch
    %401 = sbr.rel (0) target = $region17
  $region16: #{resnet_forward.28} parent=0 // pred_region
    _
  $region17: #{resnet_forward.28} parent=0 // pred_fallthru
    _
  // Predicated region
  $region18: #{resnet_forward.28} parent=0 // pred_check
    _
  $region19: #{resnet_forward.28} parent=0 // pred_check_branch
    %403 = sbr.rel (0) target = $region21
  $region20: #{resnet_forward.28} parent=0 // pred_region
    _
  $region21: #{resnet_forward.28} parent=0 // pred_fallthru
    _

// kernel: resnet_forward.27
$region0: #{resnet_forward.27}
  #allocation0 [shape = 'u32[]', space=smem, size = 0x4, offset = 0x4, fixed_abs, tag = 'smem constant byte address 0x4 - core index']
  #allocation1 [shape = 'u32[144,128]{1,0:T(1,128)}', space=vmem, size = 0x12000, scoped, tag = 'internal scratch']
  %s0 = inlined_call_operand.vmem [shape: bf16[9,128,128], index: 0, kind: input, shape index: {}]
  %s1 = inlined_call_operand.vmem [shape: bf16[128,128], index: 1, kind: output, shape index: {}]
  %s2 = sld [smem:[#allocation0]]
  $region14: #{resnet_forward.27} parent=0
    _
  %s4 = ssub.s32 1, %s2
  %s5 = scalar_select 0, %s4, %s2
  // Predicated region
  $region2: #{resnet_forward.27} parent=0 // pred_check
    _
  $region3: #{resnet_forward.27} parent=0 // pred_check_branch
    %7 = sbr.rel (0) target = $region5
  $region4: #{resnet_forward.27} parent=0 // pred_region
    _
  $region5: #{resnet_forward.27} parent=0 // pred_fallthru
    _
  %v9 = vld [vmem:[%s0] sm:$0xf]
  %v10 = vld [vmem:[%s0 + $0x4] sm:$0xf]
  %v11 = vld [vmem:[%s0 + $0x8] sm:$0xf]
  %v12 = vld [vmem:[%s0 + $0xc] sm:$0xf]
  %v13 = vld [vmem:[%s0 + $0x10] sm:$0xf]
  %v14 = vld [vmem:[%s0 + $0x14] sm:$0xf]
  %v15 = vld [vmem:[%s0 + $0x18] sm:$0xf]
  %v16 = vld [vmem:[%s0 + $0x1c] sm:$0xf]
  %v17 = vld [vmem:[%s0 + $0x20] sm:$0xf]
  %v18 = vld [vmem:[%s0 + $0x24] sm:$0xf]
  %v19 = vld [vmem:[%s0 + $0x28] sm:$0xf]
  %v20 = vld [vmem:[%s0 + $0x2c] sm:$0xf]
  %v21 = vld [vmem:[%s0 + $0x30] sm:$0xf]
  %v22 = vld [vmem:[%s0 + $0x34] sm:$0xf]
  %v23 = vld [vmem:[%s0 + $0x38] sm:$0xf]
  %v24 = vld [vmem:[%s0 + $0x3c] sm:$0xf]
  %v25 = vld [vmem:[%s0 + $0x40] sm:$0xf]
  %v26 = vld [vmem:[%s0 + $0x44] sm:$0xf]
  %v27 = vld [vmem:[%s0 + $0x48] sm:$0xf]
  %v28 = vld [vmem:[%s0 + $0x4c] sm:$0xf]
  %v29 = vld [vmem:[%s0 + $0x50] sm:$0xf]
  %v30 = vld [vmem:[%s0 + $0x54] sm:$0xf]
  %v31 = vld [vmem:[%s0 + $0x58] sm:$0xf]
  %v32 = vld [vmem:[%s0 + $0x5c] sm:$0xf]
  %v33 = vld [vmem:[%s0 + $0x60] sm:$0xf]
  %v34 = vld [vmem:[%s0 + $0x64] sm:$0xf]
  %v35 = vld [vmem:[%s0 + $0x68] sm:$0xf]
  %v36 = vld [vmem:[%s0 + $0x6c] sm:$0xf]
  %v37 = vld [vmem:[%s0 + $0x70] sm:$0xf]
  %v38 = vld [vmem:[%s0 + $0x74] sm:$0xf]
  %v39 = vld [vmem:[%s0 + $0x78] sm:$0xf]
  %v40 = vld [vmem:[%s0 + $0x7c] sm:$0xf]
  %v41 = vld [vmem:[%s0 + $0x80] sm:$0xf]
  %v42 = vld [vmem:[%s0 + $0x84] sm:$0xf]
  %v43 = vld [vmem:[%s0 + $0x88] sm:$0xf]
  %v44 = vld [vmem:[%s0 + $0x8c] sm:$0xf]
  %v45 = vld [vmem:[%s0 + $0x90] sm:$0xf]
  %v46 = vld [vmem:[%s0 + $0x94] sm:$0xf]
  %v47 = vld [vmem:[%s0 + $0x98] sm:$0xf]
  %v48 = vld [vmem:[%s0 + $0x9c] sm:$0xf]
  %v49 = vld [vmem:[%s0 + $0xa0] sm:$0xf]
  %v50 = vld [vmem:[%s0 + $0xa4] sm:$0xf]
  %v51 = vld [vmem:[%s0 + $0xa8] sm:$0xf]
  %v52 = vld [vmem:[%s0 + $0xac] sm:$0xf]
  %v53 = vld [vmem:[%s0 + $0xb0] sm:$0xf]
  %v54 = vld [vmem:[%s0 + $0xb4] sm:$0xf]
  %v55 = vld [vmem:[%s0 + $0xb8] sm:$0xf]
  %v56 = vld [vmem:[%s0 + $0xbc] sm:$0xf]
  %v57 = vld [vmem:[%s0 + $0xc0] sm:$0xf]
  %v58 = vld [vmem:[%s0 + $0xc4] sm:$0xf]
  %v59 = vld [vmem:[%s0 + $0xc8] sm:$0xf]
  %v60 = vld [vmem:[%s0 + $0xcc] sm:$0xf]
  %v61 = vld [vmem:[%s0 + $0xd0] sm:$0xf]
  %v62 = vld [vmem:[%s0 + $0xd4] sm:$0xf]
  %v63 = vld [vmem:[%s0 + $0xd8] sm:$0xf]
  %v64 = vld [vmem:[%s0 + $0xdc] sm:$0xf]
  %v65 = vld [vmem:[%s0 + $0xe0] sm:$0xf]
  %v66 = vld [vmem:[%s0 + $0xe4] sm:$0xf]
  %v67 = vld [vmem:[%s0 + $0xe8] sm:$0xf]
  %v68 = vld [vmem:[%s0 + $0xec] sm:$0xf]
  %v69 = vld [vmem:[%s0 + $0xf0] sm:$0xf]
  %v70 = vld [vmem:[%s0 + $0xf4] sm:$0xf]
  %v71 = vld [vmem:[%s0 + $0xf8] sm:$0xf]
  %v72 = vld [vmem:[%s0 + $0xfc] sm:$0xf]
  %v73 = vld [vmem:[%s0 + $0x100] sm:$0xf]
  %v74 = vld [vmem:[%s0 + $0x104] sm:$0xf]
  %v75 = vld [vmem:[%s0 + $0x108] sm:$0xf]
  %v76 = vld [vmem:[%s0 + $0x10c] sm:$0xf]
  %v77 = vld [vmem:[%s0 + $0x110] sm:$0xf]
  %v78 = vld [vmem:[%s0 + $0x114] sm:$0xf]
  %v79 = vld [vmem:[%s0 + $0x118] sm:$0xf]
  %v80 = vld [vmem:[%s0 + $0x11c] sm:$0xf]
  %v81 = vld [vmem:[%s0 + $0x120] sm:$0xf]
  %v82 = vld [vmem:[%s0 + $0x124] sm:$0xf]
  %v83 = vld [vmem:[%s0 + $0x128] sm:$0xf]
  %v84 = vld [vmem:[%s0 + $0x12c] sm:$0xf]
  %v85 = vld [vmem:[%s0 + $0x130] sm:$0xf]
  %v86 = vld [vmem:[%s0 + $0x134] sm:$0xf]
  %v87 = vld [vmem:[%s0 + $0x138] sm:$0xf]
  %v88 = vld [vmem:[%s0 + $0x13c] sm:$0xf]
  %v89 = vld [vmem:[%s0 + $0x140] sm:$0xf]
  %v90 = vld [vmem:[%s0 + $0x144] sm:$0xf]
  %v91 = vld [vmem:[%s0 + $0x148] sm:$0xf]
  %v92 = vld [vmem:[%s0 + $0x14c] sm:$0xf]
  %v93 = vld [vmem:[%s0 + $0x150] sm:$0xf]
  %v94 = vld [vmem:[%s0 + $0x154] sm:$0xf]
  %v95 = vld [vmem:[%s0 + $0x158] sm:$0xf]
  %v96 = vld [vmem:[%s0 + $0x15c] sm:$0xf]
  %v97 = vld [vmem:[%s0 + $0x160] sm:$0xf]
  %v98 = vld [vmem:[%s0 + $0x164] sm:$0xf]
  %v99 = vld [vmem:[%s0 + $0x168] sm:$0xf]
  %v100 = vld [vmem:[%s0 + $0x16c] sm:$0xf]
  %v101 = vld [vmem:[%s0 + $0x170] sm:$0xf]
  %v102 = vld [vmem:[%s0 + $0x174] sm:$0xf]
  %v103 = vld [vmem:[%s0 + $0x178] sm:$0xf]
  %v104 = vld [vmem:[%s0 + $0x17c] sm:$0xf]
  %v105 = vld [vmem:[%s0 + $0x180] sm:$0xf]
  %v106 = vld [vmem:[%s0 + $0x184] sm:$0xf]
  %v107 = vld [vmem:[%s0 + $0x188] sm:$0xf]
  %v108 = vld [vmem:[%s0 + $0x18c] sm:$0xf]
  %v109 = vld [vmem:[%s0 + $0x190] sm:$0xf]
  %v110 = vld [vmem:[%s0 + $0x194] sm:$0xf]
  %v111 = vld [vmem:[%s0 + $0x198] sm:$0xf]
  %v112 = vld [vmem:[%s0 + $0x19c] sm:$0xf]
  %v113 = vld [vmem:[%s0 + $0x1a0] sm:$0xf]
  %v114 = vld [vmem:[%s0 + $0x1a4] sm:$0xf]
  %v115 = vld [vmem:[%s0 + $0x1a8] sm:$0xf]
  %v116 = vld [vmem:[%s0 + $0x1ac] sm:$0xf]
  %v117 = vld [vmem:[%s0 + $0x1b0] sm:$0xf]
  %v118 = vld [vmem:[%s0 + $0x1b4] sm:$0xf]
  %v119 = vld [vmem:[%s0 + $0x1b8] sm:$0xf]
  %v120 = vld [vmem:[%s0 + $0x1bc] sm:$0xf]
  %v121 = vld [vmem:[%s0 + $0x1c0] sm:$0xf]
  %v122 = vld [vmem:[%s0 + $0x1c4] sm:$0xf]
  %v123 = vld [vmem:[%s0 + $0x1c8] sm:$0xf]
  %v124 = vld [vmem:[%s0 + $0x1cc] sm:$0xf]
  %v125 = vld [vmem:[%s0 + $0x1d0] sm:$0xf]
  %v126 = vld [vmem:[%s0 + $0x1d4] sm:$0xf]
  %v127 = vld [vmem:[%s0 + $0x1d8] sm:$0xf]
  %v128 = vld [vmem:[%s0 + $0x1dc] sm:$0xf]
  %v129 = vld [vmem:[%s0 + $0x1e0] sm:$0xf]
  %v130 = vld [vmem:[%s0 + $0x1e4] sm:$0xf]
  %v131 = vld [vmem:[%s0 + $0x1e8] sm:$0xf]
  %v132 = vld [vmem:[%s0 + $0x1ec] sm:$0xf]
  %v133 = vld [vmem:[%s0 + $0x1f0] sm:$0xf]
  %v134 = vld [vmem:[%s0 + $0x1f4] sm:$0xf]
  %v135 = vld [vmem:[%s0 + $0x1f8] sm:$0xf]
  %v136 = vld [vmem:[%s0 + $0x1fc] sm:$0xf]
  %v137 = vld [vmem:[%s0 + $0x200] sm:$0xf]
  %v138 = vld [vmem:[%s0 + $0x204] sm:$0xf]
  %v139 = vld [vmem:[%s0 + $0x208] sm:$0xf]
  %v140 = vld [vmem:[%s0 + $0x20c] sm:$0xf]
  %v141 = vld [vmem:[%s0 + $0x210] sm:$0xf]
  %v142 = vld [vmem:[%s0 + $0x214] sm:$0xf]
  %v143 = vld [vmem:[%s0 + $0x218] sm:$0xf]
  %v144 = vld [vmem:[%s0 + $0x21c] sm:$0xf]
  %v145 = vld [vmem:[%s0 + $0x220] sm:$0xf]
  %v146 = vld [vmem:[%s0 + $0x224] sm:$0xf]
  %v147 = vld [vmem:[%s0 + $0x228] sm:$0xf]
  %v148 = vld [vmem:[%s0 + $0x22c] sm:$0xf]
  %v149 = vld [vmem:[%s0 + $0x230] sm:$0xf]
  %v150 = vld [vmem:[%s0 + $0x234] sm:$0xf]
  %v151 = vld [vmem:[%s0 + $0x238] sm:$0xf]
  %v152 = vld [vmem:[%s0 + $0x23c] sm:$0xf]
  %vm153 = vcmask 1043456
  %v156 = vsel %vm153, %v9, 4286644096
  %v159 = vsel %vm153, %v25, 4286644096
  %v161 = vmax.bf16 %v156, %v159
  %v163 = vsel %vm153, %v41, 4286644096
  %v165 = vmax.bf16 %v161, %v163
  %v167 = vsel %vm153, %v57, 4286644096
  %v169 = vmax.bf16 %v165, %v167
  %v171 = vsel %vm153, %v73, 4286644096
  %v173 = vmax.bf16 %v169, %v171
  %v175 = vsel %vm153, %v89, 4286644096
  %v177 = vmax.bf16 %v173, %v175
  %v179 = vsel %vm153, %v105, 4286644096
  %v181 = vmax.bf16 %v177, %v179
  %v183 = vsel %vm153, %v121, 4286644096
  %v185 = vmax.bf16 %v181, %v183
  %v187 = vsel %vm153, %v137, 4286644096
  %v189 = vmax.bf16 %v185, %v187
  %v191 = vsel %vm153, %v10, 4286644096
  %v194 = vsel %vm153, %v26, 4286644096
  %v196 = vmax.bf16 %v191, %v194
  %v198 = vsel %vm153, %v42, 4286644096
  %v200 = vmax.bf16 %v196, %v198
  %v202 = vsel %vm153, %v58, 4286644096
  %v204 = vmax.bf16 %v200, %v202
  %v206 = vsel %vm153, %v74, 4286644096
  %v208 = vmax.bf16 %v204, %v206
  %v210 = vsel %vm153, %v90, 4286644096
  %v212 = vmax.bf16 %v208, %v210
  %v214 = vsel %vm153, %v106, 4286644096
  %v216 = vmax.bf16 %v212, %v214
  %v218 = vsel %vm153, %v122, 4286644096
  %v220 = vmax.bf16 %v216, %v218
  %v222 = vsel %vm153, %v138, 4286644096
  %v224 = vmax.bf16 %v220, %v222
  %v226 = vsel %vm153, %v11, 4286644096
  %v229 = vsel %vm153, %v27, 4286644096
  %v231 = vmax.bf16 %v226, %v229
  %v233 = vsel %vm153, %v43, 4286644096
  %v235 = vmax.bf16 %v231, %v233
  %v237 = vsel %vm153, %v59, 4286644096
  %v239 = vmax.bf16 %v235, %v237
  %v241 = vsel %vm153, %v75, 4286644096
  %v243 = vmax.bf16 %v239, %v241
  %v245 = vsel %vm153, %v91, 4286644096
  %v247 = vmax.bf16 %v243, %v245
  %v249 = vsel %vm153, %v107, 4286644096
  %v251 = vmax.bf16 %v247, %v249
  %v253 = vsel %vm153, %v123, 4286644096
  %v255 = vmax.bf16 %v251, %v253
  %v257 = vsel %vm153, %v139, 4286644096
  %v259 = vmax.bf16 %v255, %v257
  %v261 = vsel %vm153, %v12, 4286644096
  %v264 = vsel %vm153, %v28, 4286644096
  %v266 = vmax.bf16 %v261, %v264
  %v268 = vsel %vm153, %v44, 4286644096
  %v270 = vmax.bf16 %v266, %v268
  %v272 = vsel %vm153, %v60, 4286644096
  %v274 = vmax.bf16 %v270, %v272
  %v276 = vsel %vm153, %v76, 4286644096
  %v278 = vmax.bf16 %v274, %v276
  %v280 = vsel %vm153, %v92, 4286644096
  %v282 = vmax.bf16 %v278, %v280
  %v284 = vsel %vm153, %v108, 4286644096
  %v286 = vmax.bf16 %v282, %v284
  %v288 = vsel %vm153, %v124, 4286644096
  %v290 = vmax.bf16 %v286, %v288
  %v292 = vsel %vm153, %v140, 4286644096
  %v294 = vmax.bf16 %v290, %v292
  %v296 = vsel %vm153, %v13, 4286644096
  %v299 = vsel %vm153, %v29, 4286644096
  %v301 = vmax.bf16 %v296, %v299
  %v303 = vsel %vm153, %v45, 4286644096
  %v305 = vmax.bf16 %v301, %v303
  %v307 = vsel %vm153, %v61, 4286644096
  %v309 = vmax.bf16 %v305, %v307
  %v311 = vsel %vm153, %v77, 4286644096
  %v313 = vmax.bf16 %v309, %v311
  %v315 = vsel %vm153, %v93, 4286644096
  %v317 = vmax.bf16 %v313, %v315
  %v319 = vsel %vm153, %v109, 4286644096
  %v321 = vmax.bf16 %v317, %v319
  %v323 = vsel %vm153, %v125, 4286644096
  %v325 = vmax.bf16 %v321, %v323
  %v327 = vsel %vm153, %v141, 4286644096
  %v329 = vmax.bf16 %v325, %v327
  %v331 = vsel %vm153, %v14, 4286644096
  %v334 = vsel %vm153, %v30, 4286644096
  %v336 = vmax.bf16 %v331, %v334
  %v338 = vsel %vm153, %v46, 4286644096
  %v340 = vmax.bf16 %v336, %v338
  %v342 = vsel %vm153, %v62, 4286644096
  %v344 = vmax.bf16 %v340, %v342
  %v346 = vsel %vm153, %v78, 4286644096
  %v348 = vmax.bf16 %v344, %v346
  %v350 = vsel %vm153, %v94, 4286644096
  %v352 = vmax.bf16 %v348, %v350
  %v354 = vsel %vm153, %v110, 4286644096
  %v356 = vmax.bf16 %v352, %v354
  %v358 = vsel %vm153, %v126, 4286644096
  %v360 = vmax.bf16 %v356, %v358
  %v362 = vsel %vm153, %v142, 4286644096
  %v364 = vmax.bf16 %v360, %v362
  %v366 = vsel %vm153, %v15, 4286644096
  %v369 = vsel %vm153, %v31, 4286644096
  %v371 = vmax.bf16 %v366, %v369
  %v373 = vsel %vm153, %v47, 4286644096
  %v375 = vmax.bf16 %v371, %v373
  %v377 = vsel %vm153, %v63, 4286644096
  %v379 = vmax.bf16 %v375, %v377
  %v381 = vsel %vm153, %v79, 4286644096
  %v383 = vmax.bf16 %v379, %v381
  %v385 = vsel %vm153, %v95, 4286644096
  %v387 = vmax.bf16 %v383, %v385
  %v389 = vsel %vm153, %v111, 4286644096
  %v391 = vmax.bf16 %v387, %v389
  %v393 = vsel %vm153, %v127, 4286644096
  %v395 = vmax.bf16 %v391, %v393
  %v397 = vsel %vm153, %v143, 4286644096
  %v399 = vmax.bf16 %v395, %v397
  %v401 = vsel %vm153, %v16, 4286644096
  %v404 = vsel %vm153, %v32, 4286644096
  %v406 = vmax.bf16 %v401, %v404
  %v408 = vsel %vm153, %v48, 4286644096
  %v410 = vmax.bf16 %v406, %v408
  %v412 = vsel %vm153, %v64, 4286644096
  %v414 = vmax.bf16 %v410, %v412
  %v416 = vsel %vm153, %v80, 4286644096
  %v418 = vmax.bf16 %v414, %v416
  %v420 = vsel %vm153, %v96, 4286644096
  %v422 = vmax.bf16 %v418, %v420
  %v424 = vsel %vm153, %v112, 4286644096
  %v426 = vmax.bf16 %v422, %v424
  %v428 = vsel %vm153, %v128, 4286644096
  %v430 = vmax.bf16 %v426, %v428
  %v432 = vsel %vm153, %v144, 4286644096
  %v434 = vmax.bf16 %v430, %v432
  %v436 = vsel %vm153, %v17, 4286644096
  %v439 = vsel %vm153, %v33, 4286644096
  %v441 = vmax.bf16 %v436, %v439
  %v443 = vsel %vm153, %v49, 4286644096
  %v445 = vmax.bf16 %v441, %v443
  %v447 = vsel %vm153, %v65, 4286644096
  %v449 = vmax.bf16 %v445, %v447
  %v451 = vsel %vm153, %v81, 4286644096
  %v453 = vmax.bf16 %v449, %v451
  %v455 = vsel %vm153, %v97, 4286644096
  %v457 = vmax.bf16 %v453, %v455
  %v459 = vsel %vm153, %v113, 4286644096
  %v461 = vmax.bf16 %v457, %v459
  %v463 = vsel %vm153, %v129, 4286644096
  %v465 = vmax.bf16 %v461, %v463
  %v467 = vsel %vm153, %v145, 4286644096
  %v469 = vmax.bf16 %v465, %v467
  %v471 = vsel %vm153, %v18, 4286644096
  %v474 = vsel %vm153, %v34, 4286644096
  %v476 = vmax.bf16 %v471, %v474
  %v478 = vsel %vm153, %v50, 4286644096
  %v480 = vmax.bf16 %v476, %v478
  %v482 = vsel %vm153, %v66, 4286644096
  %v484 = vmax.bf16 %v480, %v482
  %v486 = vsel %vm153, %v82, 4286644096
  %v488 = vmax.bf16 %v484, %v486
  %v490 = vsel %vm153, %v98, 4286644096
  %v492 = vmax.bf16 %v488, %v490
  %v494 = vsel %vm153, %v114, 4286644096
  %v496 = vmax.bf16 %v492, %v494
  %v498 = vsel %vm153, %v130, 4286644096
  %v500 = vmax.bf16 %v496, %v498
  %v502 = vsel %vm153, %v146, 4286644096
  %v504 = vmax.bf16 %v500, %v502
  %v506 = vsel %vm153, %v19, 4286644096
  %v509 = vsel %vm153, %v35, 4286644096
  %v511 = vmax.bf16 %v506, %v509
  %v513 = vsel %vm153, %v51, 4286644096
  %v515 = vmax.bf16 %v511, %v513
  %v517 = vsel %vm153, %v67, 4286644096
  %v519 = vmax.bf16 %v515, %v517
  %v521 = vsel %vm153, %v83, 4286644096
  %v523 = vmax.bf16 %v519, %v521
  %v525 = vsel %vm153, %v99, 4286644096
  %v527 = vmax.bf16 %v523, %v525
  %v529 = vsel %vm153, %v115, 4286644096
  %v531 = vmax.bf16 %v527, %v529
  %v533 = vsel %vm153, %v131, 4286644096
  %v535 = vmax.bf16 %v531, %v533
  %v537 = vsel %vm153, %v147, 4286644096
  %v539 = vmax.bf16 %v535, %v537
  %v541 = vsel %vm153, %v20, 4286644096
  %v544 = vsel %vm153, %v36, 4286644096
  %v546 = vmax.bf16 %v541, %v544
  %v548 = vsel %vm153, %v52, 4286644096
  %v550 = vmax.bf16 %v546, %v548
  %v552 = vsel %vm153, %v68, 4286644096
  %v554 = vmax.bf16 %v550, %v552
  %v556 = vsel %vm153, %v84, 4286644096
  %v558 = vmax.bf16 %v554, %v556
  %v560 = vsel %vm153, %v100, 4286644096
  %v562 = vmax.bf16 %v558, %v560
  %v564 = vsel %vm153, %v116, 4286644096
  %v566 = vmax.bf16 %v562, %v564
  %v568 = vsel %vm153, %v132, 4286644096
  %v570 = vmax.bf16 %v566, %v568
  %v572 = vsel %vm153, %v148, 4286644096
  %v574 = vmax.bf16 %v570, %v572
  %v576 = vsel %vm153, %v21, 4286644096
  %v579 = vsel %vm153, %v37, 4286644096
  %v581 = vmax.bf16 %v576, %v579
  %v583 = vsel %vm153, %v53, 4286644096
  %v585 = vmax.bf16 %v581, %v583
  %v587 = vsel %vm153, %v69, 4286644096
  %v589 = vmax.bf16 %v585, %v587
  %v591 = vsel %vm153, %v85, 4286644096
  %v593 = vmax.bf16 %v589, %v591
  %v595 = vsel %vm153, %v101, 4286644096
  %v597 = vmax.bf16 %v593, %v595
  %v599 = vsel %vm153, %v117, 4286644096
  %v601 = vmax.bf16 %v597, %v599
  %v603 = vsel %vm153, %v133, 4286644096
  %v605 = vmax.bf16 %v601, %v603
  %v607 = vsel %vm153, %v149, 4286644096
  %v609 = vmax.bf16 %v605, %v607
  %v611 = vsel %vm153, %v22, 4286644096
  %v614 = vsel %vm153, %v38, 4286644096
  %v616 = vmax.bf16 %v611, %v614
  %v618 = vsel %vm153, %v54, 4286644096
  %v620 = vmax.bf16 %v616, %v618
  %v622 = vsel %vm153, %v70, 4286644096
  %v624 = vmax.bf16 %v620, %v622
  %v626 = vsel %vm153, %v86, 4286644096
  %v628 = vmax.bf16 %v624, %v626
  %v630 = vsel %vm153, %v102, 4286644096
  %v632 = vmax.bf16 %v628, %v630
  %v634 = vsel %vm153, %v118, 4286644096
  %v636 = vmax.bf16 %v632, %v634
  %v638 = vsel %vm153, %v134, 4286644096
  %v640 = vmax.bf16 %v636, %v638
  %v642 = vsel %vm153, %v150, 4286644096
  %v644 = vmax.bf16 %v640, %v642
  %v646 = vsel %vm153, %v23, 4286644096
  %v649 = vsel %vm153, %v39, 4286644096
  %v651 = vmax.bf16 %v646, %v649
  %v653 = vsel %vm153, %v55, 4286644096
  %v655 = vmax.bf16 %v651, %v653
  %v657 = vsel %vm153, %v71, 4286644096
  %v659 = vmax.bf16 %v655, %v657
  %v661 = vsel %vm153, %v87, 4286644096
  %v663 = vmax.bf16 %v659, %v661
  %v665 = vsel %vm153, %v103, 4286644096
  %v667 = vmax.bf16 %v663, %v665
  %v669 = vsel %vm153, %v119, 4286644096
  %v671 = vmax.bf16 %v667, %v669
  %v673 = vsel %vm153, %v135, 4286644096
  %v675 = vmax.bf16 %v671, %v673
  %v677 = vsel %vm153, %v151, 4286644096
  %v679 = vmax.bf16 %v675, %v677
  %v681 = vsel %vm153, %v24, 4286644096
  %v684 = vsel %vm153, %v40, 4286644096
  %v686 = vmax.bf16 %v681, %v684
  %v688 = vsel %vm153, %v56, 4286644096
  %v690 = vmax.bf16 %v686, %v688
  %v692 = vsel %vm153, %v72, 4286644096
  %v694 = vmax.bf16 %v690, %v692
  %v696 = vsel %vm153, %v88, 4286644096
  %v698 = vmax.bf16 %v694, %v696
  %v700 = vsel %vm153, %v104, 4286644096
  %v702 = vmax.bf16 %v698, %v700
  %v704 = vsel %vm153, %v120, 4286644096
  %v706 = vmax.bf16 %v702, %v704
  %v708 = vsel %vm153, %v136, 4286644096
  %v710 = vmax.bf16 %v706, %v708
  %v712 = vsel %vm153, %v152, 4286644096
  %v714 = vmax.bf16 %v710, %v712
  %715 = vst [vmem:[%s1] sm:$0xf] %v189
  %716 = vst [vmem:[%s1 + $0x4] sm:$0xf] %v224
  %717 = vst [vmem:[%s1 + $0x8] sm:$0xf] %v259
  %718 = vst [vmem:[%s1 + $0xc] sm:$0xf] %v294
  %719 = vst [vmem:[%s1 + $0x10] sm:$0xf] %v329
  %720 = vst [vmem:[%s1 + $0x14] sm:$0xf] %v364
  %721 = vst [vmem:[%s1 + $0x18] sm:$0xf] %v399
  %722 = vst [vmem:[%s1 + $0x1c] sm:$0xf] %v434
  %723 = vst [vmem:[%s1 + $0x20] sm:$0xf] %v469
  %724 = vst [vmem:[%s1 + $0x24] sm:$0xf] %v504
  %725 = vst [vmem:[%s1 + $0x28] sm:$0xf] %v539
  %726 = vst [vmem:[%s1 + $0x2c] sm:$0xf] %v574
  %727 = vst [vmem:[%s1 + $0x30] sm:$0xf] %v609
  %728 = vst [vmem:[%s1 + $0x34] sm:$0xf] %v644
  %729 = vst [vmem:[%s1 + $0x38] sm:$0xf] %v679
  %730 = vst [vmem:[%s1 + $0x3c] sm:$0xf] %v714
  // Predicated region
  $region6: #{resnet_forward.27} parent=0 // pred_check
    _
  $region7: #{resnet_forward.27} parent=0 // pred_check_branch
    %732 = sbr.rel (0) target = $region9
  $region8: #{resnet_forward.27} parent=0 // pred_region
    _
  $region9: #{resnet_forward.27} parent=0 // pred_fallthru
    _
  // Predicated region
  $region10: #{resnet_forward.27} parent=0 // pred_check
    _
  $region11: #{resnet_forward.27} parent=0 // pred_check_branch
    %734 = sbr.rel (0) target = $region13
  $region12: #{resnet_forward.27} parent=0 // pred_region
    _
  $region13: #{resnet_forward.27} parent=0 // pred_fallthru
    _

// kernel: resnet_forward.29
$region0: #{resnet_forward.29}
  #allocation0 [shape = 'u32[]', space=smem, size = 0x4, offset = 0x4, fixed_abs, tag = 'smem constant byte address 0x4 - core index']
  #allocation1 [shape = 'u32[144,128]{1,0:T(1,128)}', space=vmem, size = 0x12000, scoped, tag = 'internal scratch']
  %s0 = inlined_call_operand.vmem [shape: bf16[128,144], index: 0, kind: input, shape index: {}]
  %s1 = inlined_call_operand.vmem [shape: bf16[144,128], index: 1, kind: input, shape index: {}]
  %s2 = inlined_call_operand.vmem [shape: f32[1,128], index: 2, kind: input, shape index: {}]
  %s3 = inlined_call_operand.vmem [shape: bf16[128,128], index: 3, kind: input, shape index: {}, may-alias: {3,4}]
  %s4 = inlined_call_operand.vmem [shape: bf16[128,128], index: 4, kind: output, shape index: {}, may-alias: {3,4}]
  %s5 = sld [smem:[#allocation0]]
  $region26: #{resnet_forward.29} parent=0
    _
  %s7 = ssub.s32 1, %s5
  %s8 = scalar_select 0, %s7, %s5
  // Predicated region
  $region2: #{resnet_forward.29} parent=0 // pred_check
    _
  $region3: #{resnet_forward.29} parent=0 // pred_check_branch
    %10 = sbr.rel (0) target = $region5
  $region4: #{resnet_forward.29} parent=0 // pred_region
    _
  $region5: #{resnet_forward.29} parent=0 // pred_fallthru
    _
  // Predicated region
  $region6: #{resnet_forward.29} parent=0 // pred_check
    _
  $region7: #{resnet_forward.29} parent=0 // pred_check_branch
    %12 = sbr.rel (0) target = $region9
  $region8: #{resnet_forward.29} parent=0 // pred_region
    _
  $region9: #{resnet_forward.29} parent=0 // pred_fallthru
    _
  // Predicated region
  $region10: #{resnet_forward.29} parent=0 // pred_check
    _
  $region11: #{resnet_forward.29} parent=0 // pred_check_branch
    %14 = sbr.rel (0) target = $region13
  $region12: #{resnet_forward.29} parent=0 // pred_region
    _
  $region13: #{resnet_forward.29} parent=0 // pred_fallthru
    _
  // Predicated region
  $region14: #{resnet_forward.29} parent=0 // pred_check
    _
  $region15: #{resnet_forward.29} parent=0 // pred_check_branch
    %16 = sbr.rel (0) target = $region17
  $region16: #{resnet_forward.29} parent=0 // pred_region
    _
  $region17: #{resnet_forward.29} parent=0 // pred_fallthru
    _
  %v18 = vld [vmem:[%s0] sm:$0xff]
  %v19 = vld [vmem:[%s0 + $0x8] sm:$0xff]
  %v20 = vld [vmem:[%s0 + $0x10] sm:$0xff]
  %v21 = vld [vmem:[%s0 + $0x18] sm:$0xff]
  %v22 = vld [vmem:[%s0 + $0x20] sm:$0xff]
  %v23 = vld [vmem:[%s0 + $0x28] sm:$0xff]
  %v24 = vld [vmem:[%s0 + $0x30] sm:$0xff]
  %v25 = vld [vmem:[%s0 + $0x38] sm:$0xff]
  %v26 = vld [vmem:[%s0 + $0x40] sm:$0xff]
  %v27 = vld [vmem:[%s0 + $0x48] sm:$0xff]
  %v28 = vld [vmem:[%s0 + $0x50] sm:$0xff]
  %v29 = vld [vmem:[%s0 + $0x58] sm:$0xff]
  %v30 = vld [vmem:[%s0 + $0x60] sm:$0xff]
  %v31 = vld [vmem:[%s0 + $0x68] sm:$0xff]
  %v32 = vld [vmem:[%s0 + $0x70] sm:$0xff]
  %v33 = vld [vmem:[%s0 + $0x78] sm:$0xff]
  %v34 = vld [vmem:[%s1] sm:$0xf]
  %v35 = vld [vmem:[%s1 + $0x4] sm:$0xf]
  %v36 = vld [vmem:[%s1 + $0x8] sm:$0xf]
  %v37 = vld [vmem:[%s1 + $0xc] sm:$0xf]
  %v38 = vld [vmem:[%s1 + $0x10] sm:$0xf]
  %v39 = vld [vmem:[%s1 + $0x14] sm:$0xf]
  %v40 = vld [vmem:[%s1 + $0x18] sm:$0xf]
  %v41 = vld [vmem:[%s1 + $0x1c] sm:$0xf]
  %v42 = vld [vmem:[%s1 + $0x20] sm:$0xf]
  %v43 = vld [vmem:[%s1 + $0x24] sm:$0xf]
  %v44 = vld [vmem:[%s1 + $0x28] sm:$0xf]
  %v45 = vld [vmem:[%s1 + $0x2c] sm:$0xf]
  %v46 = vld [vmem:[%s1 + $0x30] sm:$0xf]
  %v47 = vld [vmem:[%s1 + $0x34] sm:$0xf]
  %v48 = vld [vmem:[%s1 + $0x38] sm:$0xf]
  %v49 = vld [vmem:[%s1 + $0x3c] sm:$0xf]
  %v50 = vld [vmem:[%s1 + $0x40] sm:$0xf]
  %v51 = vld [vmem:[%s1 + $0x44] sm:$0xf]
  %v52 = vld [vmem:[%s2] sm:$0x1]
  %v54 = vlaneseq
  %v55 = vshrl.u32 %v54, 7
  %v56 = vsub.s32 0, %v55
  %v57 = vrot.slane %v52, %v56
  %v75 = vunpack.c.l.b16 %v18
  %v76 = vunpack.c.h.b16 %v18
  %v77 = vunpack.c.l.b16 %v19
  %v78 = vunpack.c.h.b16 %v19
  %v79 = vunpack.c.l.b16 %v20
  %v80 = vunpack.c.h.b16 %v20
  %v81 = vunpack.c.l.b16 %v21
  %v82 = vunpack.c.h.b16 %v21
  %v83 = vunpack.c.l.b16 %v22
  %v84 = vunpack.c.h.b16 %v22
  %v85 = vunpack.c.l.b16 %v23
  %v86 = vunpack.c.h.b16 %v23
  %v87 = vunpack.c.l.b16 %v24
  %v88 = vunpack.c.h.b16 %v24
  %v89 = vunpack.c.l.b16 %v25
  %v90 = vunpack.c.h.b16 %v25
  %v91 = vunpack.c.l.b16 %v26
  %v92 = vunpack.c.h.b16 %v26
  %v93 = vunpack.c.l.b16 %v27
  %v94 = vunpack.c.h.b16 %v27
  %v95 = vunpack.c.l.b16 %v28
  %v96 = vunpack.c.h.b16 %v28
  %v97 = vunpack.c.l.b16 %v29
  %v98 = vunpack.c.h.b16 %v29
  %v99 = vunpack.c.l.b16 %v30
  %v100 = vunpack.c.h.b16 %v30
  %v101 = vunpack.c.l.b16 %v31
  %v102 = vunpack.c.h.b16 %v31
  %v103 = vunpack.c.l.b16 %v32
  %v104 = vunpack.c.h.b16 %v32
  %v105 = vunpack.c.l.b16 %v33
  %v106 = vunpack.c.h.b16 %v33
  %v107 = vpack.c.b16 %v77, %v75
  %v108 = vpack.c.b16 %v78, %v76
  %v109 = vpack.c.b16 %v81, %v79
  %v110 = vpack.c.b16 %v82, %v80
  %v111 = vpack.c.b16 %v85, %v83
  %v112 = vpack.c.b16 %v86, %v84
  %v113 = vpack.c.b16 %v89, %v87
  %v114 = vpack.c.b16 %v90, %v88
  %v115 = vpack.c.b16 %v93, %v91
  %v116 = vpack.c.b16 %v94, %v92
  %v117 = vpack.c.b16 %v97, %v95
  %v118 = vpack.c.b16 %v98, %v96
  %v119 = vpack.c.b16 %v101, %v99
  %v120 = vpack.c.b16 %v102, %v100
  %v121 = vpack.c.b16 %v105, %v103
  %v122 = vpack.c.b16 %v106, %v104
  %v149 = vunpack.c.l.b16 %v34
  %v150 = vunpack.c.l.b16 %v35
  %v151 = vunpack.c.l.b16 %v36
  %v152 = vunpack.c.l.b16 %v37
  %v153 = vunpack.c.l.b16 %v38
  %v154 = vunpack.c.l.b16 %v39
  %v155 = vunpack.c.l.b16 %v40
  %v156 = vunpack.c.l.b16 %v41
  %v157 = vunpack.c.l.b16 %v42
  %v158 = vunpack.c.l.b16 %v43
  %v159 = vunpack.c.l.b16 %v44
  %v160 = vunpack.c.l.b16 %v45
  %v161 = vunpack.c.l.b16 %v46
  %v162 = vunpack.c.l.b16 %v47
  %v163 = vunpack.c.l.b16 %v48
  %v164 = vunpack.c.l.b16 %v49
  %v165 = vunpack.c.l.b16 %v50
  %v166 = vunpack.c.l.b16 %v51
  %v167 = vpack.c.b16 %v150, %v149
  %v168 = vpack.c.b16 %v152, %v151
  %v169 = vpack.c.b16 %v154, %v153
  %v170 = vpack.c.b16 %v156, %v155
  %v171 = vpack.c.b16 %v158, %v157
  %v172 = vpack.c.b16 %v160, %v159
  %v173 = vpack.c.b16 %v162, %v161
  %v174 = vpack.c.b16 %v164, %v163
  %v175 = vpack.c.b16 %v166, %v165
  %vm185 = vcmask 130048
  %v187 = vsel %vm185, %v108, 0
  %v190 = vsel %vm185, %v110, 0
  %v193 = vsel %vm185, %v112, 0
  %v196 = vsel %vm185, %v114, 0
  %v199 = vsel %vm185, %v116, 0
  %v202 = vsel %vm185, %v118, 0
  %v205 = vsel %vm185, %v120, 0
  %v208 = vsel %vm185, %v122, 0
  %210 = vmatprep.subr.bf16.mxu0 0
  %211 = vmatpush1.bf16.msra.mxu0 %v167
  %212 = vmatprep.subr.bf16.mxu0 0
  %213 = vmatpush1.bf16.msra.mxu0 %v168
  %214 = vmatprep.subr.bf16.mxu0 0
  %215 = vmatpush1.bf16.msra.mxu0 %v169
  %216 = vmatprep.subr.bf16.mxu0 0
  %217 = vmatpush1.bf16.msra.mxu0 %v170
  %218 = vmatprep.subr.bf16.mxu0 0
  %219 = vmatpush1.bf16.msra.mxu0 %v171
  %220 = vmatprep.subr.bf16.mxu0 0
  %221 = vmatpush1.bf16.msra.mxu0 %v172
  %222 = vmatprep.subr.bf16.mxu0 0
  %223 = vmatpush1.bf16.msra.mxu0 %v173
  %224 = vmatprep.subr.bf16.mxu0 0
  %225 = vmatpush1.bf16.msra.mxu0 %v174
  %226 = vmatprep.subr.bf16.mxu0 0
  %227 = vmatpush1.bf16.msra.mxu0 %v175
  %228 = vmatprep.subr.bf16.mxu0 0
  %229 = vmatpush1.bf16.msra.mxu0 0
  %230 = vmatprep.subr.bf16.mxu0 0
  %231 = vmatpush1.bf16.msra.mxu0 0
  %232 = vmatprep.subr.bf16.mxu0 0
  %233 = vmatpush1.bf16.msra.mxu0 0
  %234 = vmatprep.subr.bf16.mxu0 0
  %235 = vmatpush1.bf16.msra.mxu0 0
  %236 = vmatprep.subr.bf16.mxu0 0
  %237 = vmatpush1.bf16.msra.mxu0 0
  %238 = vmatprep.subr.bf16.mxu0 0
  %239 = vmatpush1.bf16.msra.mxu0 0
  %240 = vmatprep.subr.bf16.mxu0 0
  %241 = vmatpush1.bf16.msra.mxu0 0
  %242 = vmatprep.mubr.bf16.mxu0 %v187
  %243 = vmatmul.mubr.bf16.gmra.mrb[0].mxu0 %v107
  %v244 = vpop.f32.mrb[0].mxu0
  %v245 = vadd.f32 %v57, %v244
  %v246 = vpop.f32.mrb[0].mxu0
  %v247 = vpop.f32.mrb[0].mxu0
  %v248 = vadd.f32 %v57, %v247
  %v249 = vpop.f32.mrb[0].mxu0
  %250 = vmatprep.mubr.bf16.mxu0 %v190
  %251 = vmatmul.mubr.bf16.gmra.mrb[0].mxu0 %v109
  %v252 = vpop.f32.mrb[0].mxu0
  %v253 = vadd.f32 %v57, %v252
  %v254 = vpop.f32.mrb[0].mxu0
  %v255 = vpop.f32.mrb[0].mxu0
  %v256 = vadd.f32 %v57, %v255
  %v257 = vpop.f32.mrb[0].mxu0
  %258 = vmatprep.mubr.bf16.mxu0 %v193
  %259 = vmatmul.mubr.bf16.gmra.mrb[0].mxu0 %v111
  %v260 = vpop.f32.mrb[0].mxu0
  %v261 = vadd.f32 %v57, %v260
  %v262 = vpop.f32.mrb[0].mxu0
  %v263 = vpop.f32.mrb[0].mxu0
  %v264 = vadd.f32 %v57, %v263
  %v265 = vpop.f32.mrb[0].mxu0
  %266 = vmatprep.mubr.bf16.mxu0 %v196
  %267 = vmatmul.mubr.bf16.gmra.mrb[0].mxu0 %v113
  %v268 = vpop.f32.mrb[0].mxu0
  %v269 = vadd.f32 %v57, %v268
  %v270 = vpop.f32.mrb[0].mxu0
  %v271 = vpop.f32.mrb[0].mxu0
  %v272 = vadd.f32 %v57, %v271
  %v273 = vpop.f32.mrb[0].mxu0
  %274 = vmatprep.mubr.bf16.mxu0 %v199
  %275 = vmatmul.mubr.bf16.gmra.mrb[0].mxu0 %v115
  %v276 = vpop.f32.mrb[0].mxu0
  %v277 = vadd.f32 %v57, %v276
  %v278 = vpop.f32.mrb[0].mxu0
  %v279 = vpop.f32.mrb[0].mxu0
  %v280 = vadd.f32 %v57, %v279
  %v281 = vpop.f32.mrb[0].mxu0
  %282 = vmatprep.mubr.bf16.mxu0 %v202
  %283 = vmatmul.mubr.bf16.gmra.mrb[0].mxu0 %v117
  %v284 = vpop.f32.mrb[0].mxu0
  %v285 = vadd.f32 %v57, %v284
  %v286 = vpop.f32.mrb[0].mxu0
  %v287 = vpop.f32.mrb[0].mxu0
  %v288 = vadd.f32 %v57, %v287
  %v289 = vpop.f32.mrb[0].mxu0
  %290 = vmatprep.mubr.bf16.mxu0 %v205
  %291 = vmatmul.mubr.bf16.gmra.mrb[0].mxu0 %v119
  %v292 = vpop.f32.mrb[0].mxu0
  %v293 = vadd.f32 %v57, %v292
  %v294 = vpop.f32.mrb[0].mxu0
  %v295 = vpop.f32.mrb[0].mxu0
  %v296 = vadd.f32 %v57, %v295
  %v297 = vpop.f32.mrb[0].mxu0
  %298 = vmatprep.mubr.bf16.mxu0 %v208
  %299 = vmatmul.mubr.bf16.gmra.mrb[0].mxu0 %v121
  %v300 = vpop.f32.mrb[0].mxu0
  %v301 = vadd.f32 %v57, %v300
  %v302 = vpop.f32.mrb[0].mxu0
  %v303 = vpop.f32.mrb[0].mxu0
  %v304 = vadd.f32 %v57, %v303
  %v305 = vpop.f32.mrb[0].mxu0
  %306 = vdwg.mxu0
  %v307 = vld [vmem:[%s3] sm:$0xf]
  %v308 = vld [vmem:[%s3 + $0x4] sm:$0xf]
  %v309 = vld [vmem:[%s3 + $0x8] sm:$0xf]
  %v310 = vld [vmem:[%s3 + $0xc] sm:$0xf]
  %v311 = vld [vmem:[%s3 + $0x10] sm:$0xf]
  %v312 = vld [vmem:[%s3 + $0x14] sm:$0xf]
  %v313 = vld [vmem:[%s3 + $0x18] sm:$0xf]
  %v314 = vld [vmem:[%s3 + $0x1c] sm:$0xf]
  %v315 = vld [vmem:[%s3 + $0x20] sm:$0xf]
  %v316 = vld [vmem:[%s3 + $0x24] sm:$0xf]
  %v317 = vld [vmem:[%s3 + $0x28] sm:$0xf]
  %v318 = vld [vmem:[%s3 + $0x2c] sm:$0xf]
  %v319 = vld [vmem:[%s3 + $0x30] sm:$0xf]
  %v320 = vld [vmem:[%s3 + $0x34] sm:$0xf]
  %v321 = vld [vmem:[%s3 + $0x38] sm:$0xf]
  %v322 = vld [vmem:[%s3 + $0x3c] sm:$0xf]
  %v323 = vunpack.c.l.bf16 %v307
  %v324 = vunpack.c.l.bf16 %v308
  %v325 = vunpack.c.l.bf16 %v309
  %v326 = vunpack.c.l.bf16 %v310
  %v327 = vunpack.c.l.bf16 %v311
  %v328 = vunpack.c.l.bf16 %v312
  %v329 = vunpack.c.l.bf16 %v313
  %v330 = vunpack.c.l.bf16 %v314
  %v331 = vunpack.c.l.bf16 %v315
  %v332 = vunpack.c.l.bf16 %v316
  %v333 = vunpack.c.l.bf16 %v317
  %v334 = vunpack.c.l.bf16 %v318
  %v335 = vunpack.c.l.bf16 %v319
  %v336 = vunpack.c.l.bf16 %v320
  %v337 = vunpack.c.l.bf16 %v321
  %v338 = vunpack.c.l.bf16 %v322
  %v339 = vadd.f32 %v245, %v323
  %v340 = vadd.f32 %v248, %v324
  %v341 = vadd.f32 %v253, %v325
  %v342 = vadd.f32 %v256, %v326
  %v343 = vadd.f32 %v261, %v327
  %v344 = vadd.f32 %v264, %v328
  %v345 = vadd.f32 %v269, %v329
  %v346 = vadd.f32 %v272, %v330
  %v347 = vadd.f32 %v277, %v331
  %v348 = vadd.f32 %v280, %v332
  %v349 = vadd.f32 %v285, %v333
  %v350 = vadd.f32 %v288, %v334
  %v351 = vadd.f32 %v293, %v335
  %v352 = vadd.f32 %v296, %v336
  %v353 = vadd.f32 %v301, %v337
  %v354 = vadd.f32 %v304, %v338
  %v355 = vmax.f32 %v339, 0.0
  %v356 = vmax.f32 %v340, 0.0
  %v357 = vmax.f32 %v341, 0.0
  %v358 = vmax.f32 %v342, 0.0
  %v359 = vmax.f32 %v343, 0.0
  %v360 = vmax.f32 %v344, 0.0
  %v361 = vmax.f32 %v345, 0.0
  %v362 = vmax.f32 %v346, 0.0
  %v363 = vmax.f32 %v347, 0.0
  %v364 = vmax.f32 %v348, 0.0
  %v365 = vmax.f32 %v349, 0.0
  %v366 = vmax.f32 %v350, 0.0
  %v367 = vmax.f32 %v351, 0.0
  %v368 = vmax.f32 %v352, 0.0
  %v369 = vmax.f32 %v353, 0.0
  %v370 = vmax.f32 %v354, 0.0
  %v371 = vpack.c.bf16 %v356, %v355
  %v372 = vpack.c.bf16 %v358, %v357
  %v373 = vpack.c.bf16 %v360, %v359
  %v374 = vpack.c.bf16 %v362, %v361
  %v375 = vpack.c.bf16 %v364, %v363
  %v376 = vpack.c.bf16 %v366, %v365
  %v377 = vpack.c.bf16 %v368, %v367
  %v378 = vpack.c.bf16 %v370, %v369
  %v387 = vunpack.c.l.b16 %v371
  %v388 = vunpack.c.h.b16 %v371
  %v389 = vunpack.c.l.b16 %v372
  %v390 = vunpack.c.h.b16 %v372
  %v391 = vunpack.c.l.b16 %v373
  %v392 = vunpack.c.h.b16 %v373
  %v393 = vunpack.c.l.b16 %v374
  %v394 = vunpack.c.h.b16 %v374
  %v395 = vunpack.c.l.b16 %v375
  %v396 = vunpack.c.h.b16 %v375
  %v397 = vunpack.c.l.b16 %v376
  %v398 = vunpack.c.h.b16 %v376
  %v399 = vunpack.c.l.b16 %v377
  %v400 = vunpack.c.h.b16 %v377
  %v401 = vunpack.c.l.b16 %v378
  %v402 = vunpack.c.h.b16 %v378
  %v403 = vpack.c.b16 %v387, %v387
  %v404 = vpack.c.b16 %v388, %v388
  %v405 = vpack.c.b16 %v389, %v389
  %v406 = vpack.c.b16 %v390, %v390
  %v407 = vpack.c.b16 %v391, %v391
  %v408 = vpack.c.b16 %v392, %v392
  %v409 = vpack.c.b16 %v393, %v393
  %v410 = vpack.c.b16 %v394, %v394
  %v411 = vpack.c.b16 %v395, %v395
  %v412 = vpack.c.b16 %v396, %v396
  %v413 = vpack.c.b16 %v397, %v397
  %v414 = vpack.c.b16 %v398, %v398
  %v415 = vpack.c.b16 %v399, %v399
  %v416 = vpack.c.b16 %v400, %v400
  %v417 = vpack.c.b16 %v401, %v401
  %v418 = vpack.c.b16 %v402, %v402
  %435 = vst [vmem:[%s4] sm:$0xf] %v403
  %436 = vst [vmem:[%s4 + $0x4] sm:$0xf] %v404
  %437 = vst [vmem:[%s4 + $0x8] sm:$0xf] %v405
  %438 = vst [vmem:[%s4 + $0xc] sm:$0xf] %v406
  %439 = vst [vmem:[%s4 + $0x10] sm:$0xf] %v407
  %440 = vst [vmem:[%s4 + $0x14] sm:$0xf] %v408
  %441 = vst [vmem:[%s4 + $0x18] sm:$0xf] %v409
  %442 = vst [vmem:[%s4 + $0x1c] sm:$0xf] %v410
  %443 = vst [vmem:[%s4 + $0x20] sm:$0xf] %v411
  %444 = vst [vmem:[%s4 + $0x24] sm:$0xf] %v412
  %445 = vst [vmem:[%s4 + $0x28] sm:$0xf] %v413
  %446 = vst [vmem:[%s4 + $0x2c] sm:$0xf] %v414
  %447 = vst [vmem:[%s4 + $0x30] sm:$0xf] %v415
  %448 = vst [vmem:[%s4 + $0x34] sm:$0xf] %v416
  %449 = vst [vmem:[%s4 + $0x38] sm:$0xf] %v417
  %450 = vst [vmem:[%s4 + $0x3c] sm:$0xf] %v418
  // Predicated region
  $region18: #{resnet_forward.29} parent=0 // pred_check
    _
  $region19: #{resnet_forward.29} parent=0 // pred_check_branch
    %452 = sbr.rel (0) target = $region21
  $region20: #{resnet_forward.29} parent=0 // pred_region
    _
  $region21: #{resnet_forward.29} parent=0 // pred_fallthru
    _
  // Predicated region
  $region22: #{resnet_forward.29} parent=0 // pred_check
    _
  $region23: #{resnet_forward.29} parent=0 // pred_check_branch
    %454 = sbr.rel (0) target = $region25
  $region24: #{resnet_forward.29} parent=0 // pred_region
    _
  $region25: #{resnet_forward.29} parent=0 // pred_fallthru
    _

// kernel: resnet_forward.32
$region0: #{resnet_forward.32}
  #allocation0 [shape = 'u32[]', space=smem, size = 0x4, offset = 0x4, fixed_abs, tag = 'smem constant byte address 0x4 - core index']
  #allocation1 [shape = 'u32[144,128]{1,0:T(1,128)}', space=vmem, size = 0x12000, scoped, tag = 'internal scratch']
  %s0 = inlined_call_operand.vmem [shape: bf16[32,144], index: 0, kind: input, shape index: {}]
  %s1 = inlined_call_operand.vmem [shape: bf16[144,128], index: 1, kind: input, shape index: {}]
  %s2 = inlined_call_operand.vmem [shape: f32[1,128], index: 2, kind: input, shape index: {}]
  %s3 = inlined_call_operand.vmem [shape: bf16[32,128], index: 3, kind: output, shape index: {}]
  %s4 = sld [smem:[#allocation0]]
  $region22: #{resnet_forward.32} parent=0
    _
  %s6 = ssub.s32 1, %s4
  %s7 = scalar_select 0, %s6, %s4
  // Predicated region
  $region2: #{resnet_forward.32} parent=0 // pred_check
    _
  $region3: #{resnet_forward.32} parent=0 // pred_check_branch
    %9 = sbr.rel (0) target = $region5
  $region4: #{resnet_forward.32} parent=0 // pred_region
    _
  $region5: #{resnet_forward.32} parent=0 // pred_fallthru
    _
  // Predicated region
  $region6: #{resnet_forward.32} parent=0 // pred_check
    _
  $region7: #{resnet_forward.32} parent=0 // pred_check_branch
    %11 = sbr.rel (0) target = $region9
  $region8: #{resnet_forward.32} parent=0 // pred_region
    _
  $region9: #{resnet_forward.32} parent=0 // pred_fallthru
    _
  // Predicated region
  $region10: #{resnet_forward.32} parent=0 // pred_check
    _
  $region11: #{resnet_forward.32} parent=0 // pred_check_branch
    %13 = sbr.rel (0) target = $region13
  $region12: #{resnet_forward.32} parent=0 // pred_region
    _
  $region13: #{resnet_forward.32} parent=0 // pred_fallthru
    _
  %v15 = vld [vmem:[%s0] sm:$0xff]
  %v16 = vld [vmem:[%s0 + $0x8] sm:$0xff]
  %v17 = vld [vmem:[%s0 + $0x10] sm:$0xff]
  %v18 = vld [vmem:[%s0 + $0x18] sm:$0xff]
  %v19 = vld [vmem:[%s1] sm:$0xf]
  %v20 = vld [vmem:[%s1 + $0x4] sm:$0xf]
  %v21 = vld [vmem:[%s1 + $0x8] sm:$0xf]
  %v22 = vld [vmem:[%s1 + $0xc] sm:$0xf]
  %v23 = vld [vmem:[%s1 + $0x10] sm:$0xf]
  %v24 = vld [vmem:[%s1 + $0x14] sm:$0xf]
  %v25 = vld [vmem:[%s1 + $0x18] sm:$0xf]
  %v26 = vld [vmem:[%s1 + $0x1c] sm:$0xf]
  %v27 = vld [vmem:[%s1 + $0x20] sm:$0xf]
  %v28 = vld [vmem:[%s1 + $0x24] sm:$0xf]
  %v29 = vld [vmem:[%s1 + $0x28] sm:$0xf]
  %v30 = vld [vmem:[%s1 + $0x2c] sm:$0xf]
  %v31 = vld [vmem:[%s1 + $0x30] sm:$0xf]
  %v32 = vld [vmem:[%s1 + $0x34] sm:$0xf]
  %v33 = vld [vmem:[%s1 + $0x38] sm:$0xf]
  %v34 = vld [vmem:[%s1 + $0x3c] sm:$0xf]
  %v35 = vld [vmem:[%s1 + $0x40] sm:$0xf]
  %v36 = vld [vmem:[%s1 + $0x44] sm:$0xf]
  %v37 = vld [vmem:[%s2] sm:$0x1]
  %v39 = vlaneseq
  %v40 = vshrl.u32 %v39, 7
  %v41 = vsub.s32 0, %v40
  %v42 = vrot.slane %v37, %v41
  %v48 = vunpack.c.l.b16 %v15
  %v49 = vunpack.c.h.b16 %v15
  %v50 = vunpack.c.l.b16 %v16
  %v51 = vunpack.c.h.b16 %v16
  %v52 = vunpack.c.l.b16 %v17
  %v53 = vunpack.c.h.b16 %v17
  %v54 = vunpack.c.l.b16 %v18
  %v55 = vunpack.c.h.b16 %v18
  %v56 = vpack.c.b16 %v50, %v48
  %v57 = vpack.c.b16 %v51, %v49
  %v58 = vpack.c.b16 %v54, %v52
  %v59 = vpack.c.b16 %v55, %v53
  %v80 = vunpack.c.l.b16 %v19
  %v81 = vunpack.c.l.b16 %v20
  %v82 = vunpack.c.l.b16 %v21
  %v83 = vunpack.c.l.b16 %v22
  %v84 = vunpack.c.l.b16 %v23
  %v85 = vunpack.c.l.b16 %v24
  %v86 = vunpack.c.l.b16 %v25
  %v87 = vunpack.c.l.b16 %v26
  %v88 = vunpack.c.l.b16 %v27
  %v89 = vunpack.c.l.b16 %v28
  %v90 = vunpack.c.l.b16 %v29
  %v91 = vunpack.c.l.b16 %v30
  %v92 = vunpack.c.l.b16 %v31
  %v93 = vunpack.c.l.b16 %v32
  %v94 = vunpack.c.l.b16 %v33
  %v95 = vunpack.c.l.b16 %v34
  %v96 = vunpack.c.l.b16 %v35
  %v97 = vunpack.c.l.b16 %v36
  %v98 = vpack.c.b16 %v81, %v80
  %v99 = vpack.c.b16 %v83, %v82
  %v100 = vpack.c.b16 %v85, %v84
  %v101 = vpack.c.b16 %v87, %v86
  %v102 = vpack.c.b16 %v89, %v88
  %v103 = vpack.c.b16 %v91, %v90
  %v104 = vpack.c.b16 %v93, %v92
  %v105 = vpack.c.b16 %v95, %v94
  %v106 = vpack.c.b16 %v97, %v96
  %vm116 = vcmask 130048
  %v118 = vsel %vm116, %v57, 0
  %v121 = vsel %vm116, %v59, 0
  %123 = vmatprep.subr.bf16.mxu0 0
  %124 = vmatpush1.bf16.msra.mxu0 %v98
  %125 = vmatprep.subr.bf16.mxu0 0
  %126 = vmatpush1.bf16.msra.mxu0 %v99
  %127 = vmatprep.subr.bf16.mxu0 0
  %128 = vmatpush1.bf16.msra.mxu0 %v100
  %129 = vmatprep.subr.bf16.mxu0 0
  %130 = vmatpush1.bf16.msra.mxu0 %v101
  %131 = vmatprep.subr.bf16.mxu0 0
  %132 = vmatpush1.bf16.msra.mxu0 %v102
  %133 = vmatprep.subr.bf16.mxu0 0
  %134 = vmatpush1.bf16.msra.mxu0 %v103
  %135 = vmatprep.subr.bf16.mxu0 0
  %136 = vmatpush1.bf16.msra.mxu0 %v104
  %137 = vmatprep.subr.bf16.mxu0 0
  %138 = vmatpush1.bf16.msra.mxu0 %v105
  %139 = vmatprep.subr.bf16.mxu0 0
  %140 = vmatpush1.bf16.msra.mxu0 %v106
  %141 = vmatprep.subr.bf16.mxu0 0
  %142 = vmatpush1.bf16.msra.mxu0 0
  %143 = vmatprep.subr.bf16.mxu0 0
  %144 = vmatpush1.bf16.msra.mxu0 0
  %145 = vmatprep.subr.bf16.mxu0 0
  %146 = vmatpush1.bf16.msra.mxu0 0
  %147 = vmatprep.subr.bf16.mxu0 0
  %148 = vmatpush1.bf16.msra.mxu0 0
  %149 = vmatprep.subr.bf16.mxu0 0
  %150 = vmatpush1.bf16.msra.mxu0 0
  %151 = vmatprep.subr.bf16.mxu0 0
  %152 = vmatpush1.bf16.msra.mxu0 0
  %153 = vmatprep.subr.bf16.mxu0 0
  %154 = vmatpush1.bf16.msra.mxu0 0
  %155 = vmatprep.mubr.bf16.mxu0 %v118
  %156 = vmatmul.mubr.bf16.gmra.mrb[0].mxu0 %v56
  %v157 = vpop.f32.mrb[0].mxu0
  %v158 = vadd.f32 %v42, %v157
  %v159 = vpop.f32.mrb[0].mxu0
  %v160 = vpop.f32.mrb[0].mxu0
  %v161 = vadd.f32 %v42, %v160
  %v162 = vpop.f32.mrb[0].mxu0
  %163 = vmatprep.mubr.bf16.mxu0 %v121
  %164 = vmatmul.mubr.bf16.gmra.mrb[0].mxu0 %v58
  %v165 = vpop.f32.mrb[0].mxu0
  %v166 = vadd.f32 %v42, %v165
  %v167 = vpop.f32.mrb[0].mxu0
  %v168 = vpop.f32.mrb[0].mxu0
  %v169 = vadd.f32 %v42, %v168
  %v170 = vpop.f32.mrb[0].mxu0
  %171 = vdwg.mxu0
  %v172 = vmax.f32 %v158, 0.0
  %v173 = vmax.f32 %v161, 0.0
  %v174 = vmax.f32 %v166, 0.0
  %v175 = vmax.f32 %v169, 0.0
  %v176 = vpack.c.bf16 %v173, %v172
  %v177 = vpack.c.bf16 %v175, %v174
  %v180 = vunpack.c.l.b16 %v176
  %v181 = vunpack.c.h.b16 %v176
  %v182 = vunpack.c.l.b16 %v177
  %v183 = vunpack.c.h.b16 %v177
  %v184 = vpack.c.b16 %v180, %v180
  %v185 = vpack.c.b16 %v181, %v181
  %v186 = vpack.c.b16 %v182, %v182
  %v187 = vpack.c.b16 %v183, %v183
  %192 = vst [vmem:[%s3] sm:$0xf] %v184
  %193 = vst [vmem:[%s3 + $0x4] sm:$0xf] %v185
  %194 = vst [vmem:[%s3 + $0x8] sm:$0xf] %v186
  %195 = vst [vmem:[%s3 + $0xc] sm:$0xf] %v187
  // Predicated region
  $region14: #{resnet_forward.32} parent=0 // pred_check
    _
  $region15: #{resnet_forward.32} parent=0 // pred_check_branch
    %197 = sbr.rel (0) target = $region17
  $region16: #{resnet_forward.32} parent=0 // pred_region
    _
  $region17: #{resnet_forward.32} parent=0 // pred_fallthru
    _
  // Predicated region
  $region18: #{resnet_forward.32} parent=0 // pred_check
    _
  $region19: #{resnet_forward.32} parent=0 // pred_check_branch
    %199 = sbr.rel (0) target = $region21
  $region20: #{resnet_forward.32} parent=0 // pred_region
    _
  $region21: #{resnet_forward.32} parent=0 // pred_fallthru
    _

// kernel: resnet_forward.33
$region0: #{resnet_forward.33}
  #allocation0 [shape = 'u32[]', space=smem, size = 0x4, offset = 0x4, fixed_abs, tag = 'smem constant byte address 0x4 - core index']
  #allocation1 [shape = 'u32[144,128]{1,0:T(1,128)}', space=vmem, size = 0x12000, scoped, tag = 'internal scratch']
  %s0 = inlined_call_operand.vmem [shape: bf16[32,16], index: 0, kind: input, shape index: {}]
  %s1 = inlined_call_operand.vmem [shape: bf16[16,128], index: 1, kind: input, shape index: {}]
  %s2 = inlined_call_operand.vmem [shape: f32[1,128], index: 2, kind: input, shape index: {}]
  %s3 = inlined_call_operand.vmem [shape: bf16[32,128], index: 3, kind: output, shape index: {}]
  %s4 = sld [smem:[#allocation0]]
  $region22: #{resnet_forward.33} parent=0
    _
  %s6 = ssub.s32 1, %s4
  %s7 = scalar_select 0, %s6, %s4
  // Predicated region
  $region2: #{resnet_forward.33} parent=0 // pred_check
    _
  $region3: #{resnet_forward.33} parent=0 // pred_check_branch
    %9 = sbr.rel (0) target = $region5
  $region4: #{resnet_forward.33} parent=0 // pred_region
    _
  $region5: #{resnet_forward.33} parent=0 // pred_fallthru
    _
  // Predicated region
  $region6: #{resnet_forward.33} parent=0 // pred_check
    _
  $region7: #{resnet_forward.33} parent=0 // pred_check_branch
    %11 = sbr.rel (0) target = $region9
  $region8: #{resnet_forward.33} parent=0 // pred_region
    _
  $region9: #{resnet_forward.33} parent=0 // pred_fallthru
    _
  // Predicated region
  $region10: #{resnet_forward.33} parent=0 // pred_check
    _
  $region11: #{resnet_forward.33} parent=0 // pred_check_branch
    %13 = sbr.rel (0) target = $region13
  $region12: #{resnet_forward.33} parent=0 // pred_region
    _
  $region13: #{resnet_forward.33} parent=0 // pred_fallthru
    _
  %v15 = vld [vmem:[%s0] sm:$0xf]
  %v16 = vld [vmem:[%s0 + $0x4] sm:$0xf]
  %v17 = vld [vmem:[%s0 + $0x8] sm:$0xf]
  %v18 = vld [vmem:[%s0 + $0xc] sm:$0xf]
  %v19 = vld [vmem:[%s1] sm:$0xf]
  %v20 = vld [vmem:[%s1 + $0x4] sm:$0xf]
  %v21 = vld [vmem:[%s2] sm:$0x1]
  %v23 = vlaneseq
  %v24 = vshrl.u32 %v23, 7
  %v25 = vsub.s32 0, %v24
  %v26 = vrot.slane %v21, %v25
  %v32 = vunpack.c.l.b16 %v15
  %v33 = vunpack.c.l.b16 %v16
  %v34 = vunpack.c.l.b16 %v17
  %v35 = vunpack.c.l.b16 %v18
  %v36 = vpack.c.b16 %v33, %v32
  %v37 = vpack.c.b16 %v35, %v34
  %v40 = vunpack.c.l.b16 %v19
  %v41 = vunpack.c.l.b16 %v20
  %v42 = vpack.c.b16 %v41, %v40
  %vm44 = vcmask 130048
  %v46 = vsel %vm44, %v36, 0
  %v49 = vsel %vm44, %v37, 0
  %51 = vmatprep.subr.bf16.mxu0 0
  %52 = vmatpush1.bf16.msra.mxu0 %v42
  %53 = vmatprep.subr.bf16.mxu0 0
  %54 = vmatpush1.bf16.msra.mxu0 0
  %55 = vmatprep.subr.bf16.mxu0 0
  %56 = vmatpush1.bf16.msra.mxu0 0
  %57 = vmatprep.subr.bf16.mxu0 0
  %58 = vmatpush1.bf16.msra.mxu0 0
  %59 = vmatprep.subr.bf16.mxu0 0
  %60 = vmatpush1.bf16.msra.mxu0 0
  %61 = vmatprep.subr.bf16.mxu0 0
  %62 = vmatpush1.bf16.msra.mxu0 0
  %63 = vmatprep.subr.bf16.mxu0 0
  %64 = vmatpush1.bf16.msra.mxu0 0
  %65 = vmatprep.subr.bf16.mxu0 0
  %66 = vmatpush1.bf16.msra.mxu0 0
  %67 = vmatprep.subr.bf16.mxu0 0
  %68 = vmatpush1.bf16.msra.mxu0 0
  %69 = vmatprep.subr.bf16.mxu0 0
  %70 = vmatpush1.bf16.msra.mxu0 0
  %71 = vmatprep.subr.bf16.mxu0 0
  %72 = vmatpush1.bf16.msra.mxu0 0
  %73 = vmatprep.subr.bf16.mxu0 0
  %74 = vmatpush1.bf16.msra.mxu0 0
  %75 = vmatprep.subr.bf16.mxu0 0
  %76 = vmatpush1.bf16.msra.mxu0 0
  %77 = vmatprep.subr.bf16.mxu0 0
  %78 = vmatpush1.bf16.msra.mxu0 0
  %79 = vmatprep.subr.bf16.mxu0 0
  %80 = vmatpush1.bf16.msra.mxu0 0
  %81 = vmatprep.subr.bf16.mxu0 0
  %82 = vmatpush1.bf16.msra.mxu0 0
  %83 = vmatprep.mubr.bf16.mxu0 0
  %84 = vmatmul.mubr.bf16.gmra.mrb[0].mxu0 %v46
  %v85 = vpop.f32.mrb[0].mxu0
  %v86 = vadd.f32 %v26, %v85
  %v87 = vpop.f32.mrb[0].mxu0
  %v88 = vpop.f32.mrb[0].mxu0
  %v89 = vadd.f32 %v26, %v88
  %v90 = vpop.f32.mrb[0].mxu0
  %91 = vmatprep.mubr.bf16.mxu0 0
  %92 = vmatmul.mubr.bf16.gmra.mrb[0].mxu0 %v49
  %v93 = vpop.f32.mrb[0].mxu0
  %v94 = vadd.f32 %v26, %v93
  %v95 = vpop.f32.mrb[0].mxu0
  %v96 = vpop.f32.mrb[0].mxu0
  %v97 = vadd.f32 %v26, %v96
  %v98 = vpop.f32.mrb[0].mxu0
  %99 = vdwg.mxu0
  %v100 = vpack.c.bf16 %v89, %v86
  %v101 = vpack.c.bf16 %v97, %v94
  %v104 = vunpack.c.l.b16 %v100
  %v105 = vunpack.c.h.b16 %v100
  %v106 = vunpack.c.l.b16 %v101
  %v107 = vunpack.c.h.b16 %v101
  %v108 = vpack.c.b16 %v104, %v104
  %v109 = vpack.c.b16 %v105, %v105
  %v110 = vpack.c.b16 %v106, %v106
  %v111 = vpack.c.b16 %v107, %v107
  %116 = vst [vmem:[%s3] sm:$0xf] %v108
  %117 = vst [vmem:[%s3 + $0x4] sm:$0xf] %v109
  %118 = vst [vmem:[%s3 + $0x8] sm:$0xf] %v110
  %119 = vst [vmem:[%s3 + $0xc] sm:$0xf] %v111
  // Predicated region
  $region14: #{resnet_forward.33} parent=0 // pred_check
    _
  $region15: #{resnet_forward.33} parent=0 // pred_check_branch
    %121 = sbr.rel (0) target = $region17
  $region16: #{resnet_forward.33} parent=0 // pred_region
    _
  $region17: #{resnet_forward.33} parent=0 // pred_fallthru
    _
  // Predicated region
  $region18: #{resnet_forward.33} parent=0 // pred_check
    _
  $region19: #{resnet_forward.33} parent=0 // pred_check_branch
    %123 = sbr.rel (0) target = $region21
  $region20: #{resnet_forward.33} parent=0 // pred_region
    _
  $region21: #{resnet_forward.33} parent=0 // pred_fallthru
    _

// kernel: resnet_forward.35
$region0: #{resnet_forward.35}
  #allocation0 [shape = 'u32[]', space=smem, size = 0x4, offset = 0x4, fixed_abs, tag = 'smem constant byte address 0x4 - core index']
  #allocation1 [shape = 'u32[144,128]{1,0:T(1,128)}', space=vmem, size = 0x12000, scoped, tag = 'internal scratch']
  %s0 = inlined_call_operand.vmem [shape: bf16[32,288], index: 0, kind: input, shape index: {}]
  %s1 = inlined_call_operand.vmem [shape: bf16[288,128], index: 1, kind: input, shape index: {}]
  %s2 = inlined_call_operand.vmem [shape: f32[1,128], index: 2, kind: input, shape index: {}]
  %s3 = inlined_call_operand.vmem [shape: bf16[32,128], index: 3, kind: output, shape index: {}]
  %s4 = sld [smem:[#allocation0]]
  $region22: #{resnet_forward.35} parent=0
    _
  %s6 = ssub.s32 1, %s4
  %s7 = scalar_select 0, %s6, %s4
  // Predicated region
  $region2: #{resnet_forward.35} parent=0 // pred_check
    _
  $region3: #{resnet_forward.35} parent=0 // pred_check_branch
    %9 = sbr.rel (0) target = $region5
  $region4: #{resnet_forward.35} parent=0 // pred_region
    _
  $region5: #{resnet_forward.35} parent=0 // pred_fallthru
    _
  // Predicated region
  $region6: #{resnet_forward.35} parent=0 // pred_check
    _
  $region7: #{resnet_forward.35} parent=0 // pred_check_branch
    %11 = sbr.rel (0) target = $region9
  $region8: #{resnet_forward.35} parent=0 // pred_region
    _
  $region9: #{resnet_forward.35} parent=0 // pred_fallthru
    _
  // Predicated region
  $region10: #{resnet_forward.35} parent=0 // pred_check
    _
  $region11: #{resnet_forward.35} parent=0 // pred_check_branch
    %13 = sbr.rel (0) target = $region13
  $region12: #{resnet_forward.35} parent=0 // pred_region
    _
  $region13: #{resnet_forward.35} parent=0 // pred_fallthru
    _
  %v15 = vld [vmem:[%s0] sm:$0xff]
  %v16 = vld [vmem:[%s0 + $0x8] sm:$0xf]
  %v17 = vld [vmem:[%s0 + $0xc] sm:$0xff]
  %v18 = vld [vmem:[%s0 + $0x14] sm:$0xf]
  %v19 = vld [vmem:[%s0 + $0x18] sm:$0xff]
  %v20 = vld [vmem:[%s0 + $0x20] sm:$0xf]
  %v21 = vld [vmem:[%s0 + $0x24] sm:$0xff]
  %v22 = vld [vmem:[%s0 + $0x2c] sm:$0xf]
  %v23 = vld [vmem:[%s1] sm:$0xf]
  %v24 = vld [vmem:[%s1 + $0x4] sm:$0xf]
  %v25 = vld [vmem:[%s1 + $0x8] sm:$0xf]
  %v26 = vld [vmem:[%s1 + $0xc] sm:$0xf]
  %v27 = vld [vmem:[%s1 + $0x10] sm:$0xf]
  %v28 = vld [vmem:[%s1 + $0x14] sm:$0xf]
  %v29 = vld [vmem:[%s1 + $0x18] sm:$0xf]
  %v30 = vld [vmem:[%s1 + $0x1c] sm:$0xf]
  %v31 = vld [vmem:[%s1 + $0x20] sm:$0xf]
  %v32 = vld [vmem:[%s1 + $0x24] sm:$0xf]
  %v33 = vld [vmem:[%s1 + $0x28] sm:$0xf]
  %v34 = vld [vmem:[%s1 + $0x2c] sm:$0xf]
  %v35 = vld [vmem:[%s1 + $0x30] sm:$0xf]
  %v36 = vld [vmem:[%s1 + $0x34] sm:$0xf]
  %v37 = vld [vmem:[%s1 + $0x38] sm:$0xf]
  %v38 = vld [vmem:[%s1 + $0x3c] sm:$0xf]
  %v39 = vld [vmem:[%s1 + $0x40] sm:$0xf]
  %v40 = vld [vmem:[%s1 + $0x44] sm:$0xf]
  %v41 = vld [vmem:[%s1 + $0x48] sm:$0xf]
  %v42 = vld [vmem:[%s1 + $0x4c] sm:$0xf]
  %v43 = vld [vmem:[%s1 + $0x50] sm:$0xf]
  %v44 = vld [vmem:[%s1 + $0x54] sm:$0xf]
  %v45 = vld [vmem:[%s1 + $0x58] sm:$0xf]
  %v46 = vld [vmem:[%s1 + $0x5c] sm:$0xf]
  %v47 = vld [vmem:[%s1 + $0x60] sm:$0xf]
  %v48 = vld [vmem:[%s1 + $0x64] sm:$0xf]
  %v49 = vld [vmem:[%s1 + $0x68] sm:$0xf]
  %v50 = vld [vmem:[%s1 + $0x6c] sm:$0xf]
  %v51 = vld [vmem:[%s1 + $0x70] sm:$0xf]
  %v52 = vld [vmem:[%s1 + $0x74] sm:$0xf]
  %v53 = vld [vmem:[%s1 + $0x78] sm:$0xf]
  %v54 = vld [vmem:[%s1 + $0x7c] sm:$0xf]
  %v55 = vld [vmem:[%s1 + $0x80] sm:$0xf]
  %v56 = vld [vmem:[%s1 + $0x84] sm:$0xf]
  %v57 = vld [vmem:[%s1 + $0x88] sm:$0xf]
  %v58 = vld [vmem:[%s1 + $0x8c] sm:$0xf]
  %v59 = vld [vmem:[%s2] sm:$0x1]
  %v61 = vlaneseq
  %v62 = vshrl.u32 %v61, 7
  %v63 = vsub.s32 0, %v62
  %v64 = vrot.slane %v59, %v63
  %v74 = vunpack.c.l.b16 %v15
  %v75 = vunpack.c.h.b16 %v15
  %v76 = vunpack.c.l.b16 %v16
  %v77 = vunpack.c.l.b16 %v17
  %v78 = vunpack.c.h.b16 %v17
  %v79 = vunpack.c.l.b16 %v18
  %v80 = vunpack.c.l.b16 %v19
  %v81 = vunpack.c.h.b16 %v19
  %v82 = vunpack.c.l.b16 %v20
  %v83 = vunpack.c.l.b16 %v21
  %v84 = vunpack.c.h.b16 %v21
  %v85 = vunpack.c.l.b16 %v22
  %v86 = vpack.c.b16 %v77, %v74
  %v87 = vpack.c.b16 %v78, %v75
  %v88 = vpack.c.b16 %v79, %v76
  %v89 = vpack.c.b16 %v83, %v80
  %v90 = vpack.c.b16 %v84, %v81
  %v91 = vpack.c.b16 %v85, %v82
  %v132 = vunpack.c.l.b16 %v23
  %v133 = vunpack.c.l.b16 %v24
  %v134 = vunpack.c.l.b16 %v25
  %v135 = vunpack.c.l.b16 %v26
  %v136 = vunpack.c.l.b16 %v27
  %v137 = vunpack.c.l.b16 %v28
  %v138 = vunpack.c.l.b16 %v29
  %v139 = vunpack.c.l.b16 %v30
  %v140 = vunpack.c.l.b16 %v31
  %v141 = vunpack.c.l.b16 %v32
  %v142 = vunpack.c.l.b16 %v33
  %v143 = vunpack.c.l.b16 %v34
  %v144 = vunpack.c.l.b16 %v35
  %v145 = vunpack.c.l.b16 %v36
  %v146 = vunpack.c.l.b16 %v37
  %v147 = vunpack.c.l.b16 %v38
  %v148 = vunpack.c.l.b16 %v39
  %v149 = vunpack.c.l.b16 %v40
  %v150 = vunpack.c.l.b16 %v41
  %v151 = vunpack.c.l.b16 %v42
  %v152 = vunpack.c.l.b16 %v43
  %v153 = vunpack.c.l.b16 %v44
  %v154 = vunpack.c.l.b16 %v45
  %v155 = vunpack.c.l.b16 %v46
  %v156 = vunpack.c.l.b16 %v47
  %v157 = vunpack.c.l.b16 %v48
  %v158 = vunpack.c.l.b16 %v49
  %v159 = vunpack.c.l.b16 %v50
  %v160 = vunpack.c.l.b16 %v51
  %v161 = vunpack.c.l.b16 %v52
  %v162 = vunpack.c.l.b16 %v53
  %v163 = vunpack.c.l.b16 %v54
  %v164 = vunpack.c.l.b16 %v55
  %v165 = vunpack.c.l.b16 %v56
  %v166 = vunpack.c.l.b16 %v57
  %v167 = vunpack.c.l.b16 %v58
  %v168 = vpack.c.b16 %v133, %v132
  %v169 = vpack.c.b16 %v135, %v134
  %v170 = vpack.c.b16 %v137, %v136
  %v171 = vpack.c.b16 %v139, %v138
  %v172 = vpack.c.b16 %v141, %v140
  %v173 = vpack.c.b16 %v143, %v142
  %v174 = vpack.c.b16 %v145, %v144
  %v175 = vpack.c.b16 %v147, %v146
  %v176 = vpack.c.b16 %v149, %v148
  %v177 = vpack.c.b16 %v151, %v150
  %v178 = vpack.c.b16 %v153, %v152
  %v179 = vpack.c.b16 %v155, %v154
  %v180 = vpack.c.b16 %v157, %v156
  %v181 = vpack.c.b16 %v159, %v158
  %v182 = vpack.c.b16 %v161, %v160
  %v183 = vpack.c.b16 %v163, %v162
  %v184 = vpack.c.b16 %v165, %v164
  %v185 = vpack.c.b16 %v167, %v166
  %vm204 = vcmask 261120
  %v206 = vsel %vm204, %v88, 0
  %v209 = vsel %vm204, %v91, 0
  %211 = vmatprep.subr.bf16.mxu0 0
  %212 = vmatpush1.bf16.msra.mxu0 %v168
  %213 = vmatprep.subr.bf16.mxu0 0
  %214 = vmatpush1.bf16.msra.mxu0 %v169
  %215 = vmatprep.subr.bf16.mxu0 0
  %216 = vmatpush1.bf16.msra.mxu0 %v170
  %217 = vmatprep.subr.bf16.mxu0 0
  %218 = vmatpush1.bf16.msra.mxu0 %v171
  %219 = vmatprep.subr.bf16.mxu0 0
  %220 = vmatpush1.bf16.msra.mxu0 %v172
  %221 = vmatprep.subr.bf16.mxu0 0
  %222 = vmatpush1.bf16.msra.mxu0 %v173
  %223 = vmatprep.subr.bf16.mxu0 0
  %224 = vmatpush1.bf16.msra.mxu0 %v174
  %225 = vmatprep.subr.bf16.mxu0 0
  %226 = vmatpush1.bf16.msra.mxu0 %v175
  %227 = vmatprep.subr.bf16.mxu0 0
  %228 = vmatpush1.bf16.msra.mxu0 %v176
  %229 = vmatprep.subr.bf16.mxu0 0
  %230 = vmatpush1.bf16.msra.mxu0 %v177
  %231 = vmatprep.subr.bf16.mxu0 0
  %232 = vmatpush1.bf16.msra.mxu0 %v178
  %233 = vmatprep.subr.bf16.mxu0 0
  %234 = vmatpush1.bf16.msra.mxu0 %v179
  %235 = vmatprep.subr.bf16.mxu0 0
  %236 = vmatpush1.bf16.msra.mxu0 %v180
  %237 = vmatprep.subr.bf16.mxu0 0
  %238 = vmatpush1.bf16.msra.mxu0 %v181
  %239 = vmatprep.subr.bf16.mxu0 0
  %240 = vmatpush1.bf16.msra.mxu0 %v182
  %241 = vmatprep.subr.bf16.mxu0 0
  %242 = vmatpush1.bf16.msra.mxu0 %v183
  %243 = vmatprep.mubr.bf16.mxu0 %v87
  %244 = vmatmul.mubr.bf16.gmra.mrb[0].mxu0 %v86
  %v245 = vpop.f32.mrb[0].mxu0
  %v246 = vadd.f32 %v64, %v245
  %v247 = vpop.f32.mrb[0].mxu0
  %v248 = vpop.f32.mrb[0].mxu0
  %v249 = vadd.f32 %v64, %v248
  %v250 = vpop.f32.mrb[0].mxu0
  %251 = vmatprep.mubr.bf16.mxu0 %v90
  %252 = vmatmul.mubr.bf16.gmra.mrb[0].mxu0 %v89
  %v253 = vpop.f32.mrb[0].mxu0
  %v254 = vadd.f32 %v64, %v253
  %v255 = vpop.f32.mrb[0].mxu0
  %v256 = vpop.f32.mrb[0].mxu0
  %v257 = vadd.f32 %v64, %v256
  %v258 = vpop.f32.mrb[0].mxu0
  %259 = vdwg.mxu0
  %260 = vmatprep.subr.bf16.mxu0 0
  %261 = vmatpush1.bf16.msra.mxu0 %v184
  %262 = vmatprep.subr.bf16.mxu0 0
  %263 = vmatpush1.bf16.msra.mxu0 %v185
  %264 = vmatprep.subr.bf16.mxu0 0
  %265 = vmatpush1.bf16.msra.mxu0 0
  %266 = vmatprep.subr.bf16.mxu0 0
  %267 = vmatpush1.bf16.msra.mxu0 0
  %268 = vmatprep.subr.bf16.mxu0 0
  %269 = vmatpush1.bf16.msra.mxu0 0
  %270 = vmatprep.subr.bf16.mxu0 0
  %271 = vmatpush1.bf16.msra.mxu0 0
  %272 = vmatprep.subr.bf16.mxu0 0
  %273 = vmatpush1.bf16.msra.mxu0 0
  %274 = vmatprep.subr.bf16.mxu0 0
  %275 = vmatpush1.bf16.msra.mxu0 0
  %276 = vmatprep.subr.bf16.mxu0 0
  %277 = vmatpush1.bf16.msra.mxu0 0
  %278 = vmatprep.subr.bf16.mxu0 0
  %279 = vmatpush1.bf16.msra.mxu0 0
  %280 = vmatprep.subr.bf16.mxu0 0
  %281 = vmatpush1.bf16.msra.mxu0 0
  %282 = vmatprep.subr.bf16.mxu0 0
  %283 = vmatpush1.bf16.msra.mxu0 0
  %284 = vmatprep.subr.bf16.mxu0 0
  %285 = vmatpush1.bf16.msra.mxu0 0
  %286 = vmatprep.subr.bf16.mxu0 0
  %287 = vmatpush1.bf16.msra.mxu0 0
  %288 = vmatprep.subr.bf16.mxu0 0
  %289 = vmatpush1.bf16.msra.mxu0 0
  %290 = vmatprep.subr.bf16.mxu0 0
  %291 = vmatpush1.bf16.msra.mxu0 0
  %292 = vmatprep.mubr.bf16.mxu0 0
  %293 = vmatmul.mubr.bf16.gmra.mrb[0].mxu0 %v206
  %v294 = vpop.f32.mrb[0].mxu0
  %v295 = vadd.f32 %v246, %v294
  %v296 = vpop.f32.mrb[0].mxu0
  %v297 = vpop.f32.mrb[0].mxu0
  %v298 = vadd.f32 %v249, %v297
  %v299 = vpop.f32.mrb[0].mxu0
  %300 = vmatprep.mubr.bf16.mxu0 0
  %301 = vmatmul.mubr.bf16.gmra.mrb[0].mxu0 %v209
  %v302 = vpop.f32.mrb[0].mxu0
  %v303 = vadd.f32 %v254, %v302
  %v304 = vpop.f32.mrb[0].mxu0
  %v305 = vpop.f32.mrb[0].mxu0
  %v306 = vadd.f32 %v257, %v305
  %v307 = vpop.f32.mrb[0].mxu0
  %308 = vdwg.mxu0
  %v309 = vmax.f32 %v295, 0.0
  %v310 = vmax.f32 %v298, 0.0
  %v311 = vmax.f32 %v303, 0.0
  %v312 = vmax.f32 %v306, 0.0
  %v313 = vpack.c.bf16 %v310, %v309
  %v314 = vpack.c.bf16 %v312, %v311
  %v317 = vunpack.c.l.b16 %v313
  %v318 = vunpack.c.h.b16 %v313
  %v319 = vunpack.c.l.b16 %v314
  %v320 = vunpack.c.h.b16 %v314
  %v321 = vpack.c.b16 %v317, %v317
  %v322 = vpack.c.b16 %v318, %v318
  %v323 = vpack.c.b16 %v319, %v319
  %v324 = vpack.c.b16 %v320, %v320
  %329 = vst [vmem:[%s3] sm:$0xf] %v321
  %330 = vst [vmem:[%s3 + $0x4] sm:$0xf] %v322
  %331 = vst [vmem:[%s3 + $0x8] sm:$0xf] %v323
  %332 = vst [vmem:[%s3 + $0xc] sm:$0xf] %v324
  // Predicated region
  $region14: #{resnet_forward.35} parent=0 // pred_check
    _
  $region15: #{resnet_forward.35} parent=0 // pred_check_branch
    %334 = sbr.rel (0) target = $region17
  $region16: #{resnet_forward.35} parent=0 // pred_region
    _
  $region17: #{resnet_forward.35} parent=0 // pred_fallthru
    _
  // Predicated region
  $region18: #{resnet_forward.35} parent=0 // pred_check
    _
  $region19: #{resnet_forward.35} parent=0 // pred_check_branch
    %336 = sbr.rel (0) target = $region21
  $region20: #{resnet_forward.35} parent=0 // pred_region
    _
  $region21: #{resnet_forward.35} parent=0 // pred_fallthru
    _

// kernel: resnet_forward.34
$region0: #{resnet_forward.34}
  #allocation0 [shape = 'u32[]', space=smem, size = 0x4, offset = 0x4, fixed_abs, tag = 'smem constant byte address 0x4 - core index']
  #allocation1 [shape = 'u32[144,128]{1,0:T(1,128)}', space=vmem, size = 0x12000, scoped, tag = 'internal scratch']
  %s0 = inlined_call_operand.vmem [shape: bf16[32,288], index: 0, kind: input, shape index: {}]
  %s1 = inlined_call_operand.vmem [shape: bf16[288,128], index: 1, kind: input, shape index: {}]
  %s2 = inlined_call_operand.vmem [shape: f32[1,128], index: 2, kind: input, shape index: {}]
  %s3 = inlined_call_operand.vmem [shape: bf16[32,128], index: 3, kind: input, shape index: {}, may-alias: {3,4}]
  %s4 = inlined_call_operand.vmem [shape: bf16[32,128], index: 4, kind: output, shape index: {}, may-alias: {3,4}]
  %s5 = sld [smem:[#allocation0]]
  $region26: #{resnet_forward.34} parent=0
    _
  %s7 = ssub.s32 1, %s5
  %s8 = scalar_select 0, %s7, %s5
  // Predicated region
  $region2: #{resnet_forward.34} parent=0 // pred_check
    _
  $region3: #{resnet_forward.34} parent=0 // pred_check_branch
    %10 = sbr.rel (0) target = $region5
  $region4: #{resnet_forward.34} parent=0 // pred_region
    _
  $region5: #{resnet_forward.34} parent=0 // pred_fallthru
    _
  // Predicated region
  $region6: #{resnet_forward.34} parent=0 // pred_check
    _
  $region7: #{resnet_forward.34} parent=0 // pred_check_branch
    %12 = sbr.rel (0) target = $region9
  $region8: #{resnet_forward.34} parent=0 // pred_region
    _
  $region9: #{resnet_forward.34} parent=0 // pred_fallthru
    _
  // Predicated region
  $region10: #{resnet_forward.34} parent=0 // pred_check
    _
  $region11: #{resnet_forward.34} parent=0 // pred_check_branch
    %14 = sbr.rel (0) target = $region13
  $region12: #{resnet_forward.34} parent=0 // pred_region
    _
  $region13: #{resnet_forward.34} parent=0 // pred_fallthru
    _
  // Predicated region
  $region14: #{resnet_forward.34} parent=0 // pred_check
    _
  $region15: #{resnet_forward.34} parent=0 // pred_check_branch
    %16 = sbr.rel (0) target = $region17
  $region16: #{resnet_forward.34} parent=0 // pred_region
    _
  $region17: #{resnet_forward.34} parent=0 // pred_fallthru
    _
  %v18 = vld [vmem:[%s0] sm:$0xff]
  %v19 = vld [vmem:[%s0 + $0x8] sm:$0xf]
  %v20 = vld [vmem:[%s0 + $0xc] sm:$0xff]
  %v21 = vld [vmem:[%s0 + $0x14] sm:$0xf]
  %v22 = vld [vmem:[%s0 + $0x18] sm:$0xff]
  %v23 = vld [vmem:[%s0 + $0x20] sm:$0xf]
  %v24 = vld [vmem:[%s0 + $0x24] sm:$0xff]
  %v25 = vld [vmem:[%s0 + $0x2c] sm:$0xf]
  %v26 = vld [vmem:[%s1] sm:$0xf]
  %v27 = vld [vmem:[%s1 + $0x4] sm:$0xf]
  %v28 = vld [vmem:[%s1 + $0x8] sm:$0xf]
  %v29 = vld [vmem:[%s1 + $0xc] sm:$0xf]
  %v30 = vld [vmem:[%s1 + $0x10] sm:$0xf]
  %v31 = vld [vmem:[%s1 + $0x14] sm:$0xf]
  %v32 = vld [vmem:[%s1 + $0x18] sm:$0xf]
  %v33 = vld [vmem:[%s1 + $0x1c] sm:$0xf]
  %v34 = vld [vmem:[%s1 + $0x20] sm:$0xf]
  %v35 = vld [vmem:[%s1 + $0x24] sm:$0xf]
  %v36 = vld [vmem:[%s1 + $0x28] sm:$0xf]
  %v37 = vld [vmem:[%s1 + $0x2c] sm:$0xf]
  %v38 = vld [vmem:[%s1 + $0x30] sm:$0xf]
  %v39 = vld [vmem:[%s1 + $0x34] sm:$0xf]
  %v40 = vld [vmem:[%s1 + $0x38] sm:$0xf]
  %v41 = vld [vmem:[%s1 + $0x3c] sm:$0xf]
  %v42 = vld [vmem:[%s1 + $0x40] sm:$0xf]
  %v43 = vld [vmem:[%s1 + $0x44] sm:$0xf]
  %v44 = vld [vmem:[%s1 + $0x48] sm:$0xf]
  %v45 = vld [vmem:[%s1 + $0x4c] sm:$0xf]
  %v46 = vld [vmem:[%s1 + $0x50] sm:$0xf]
  %v47 = vld [vmem:[%s1 + $0x54] sm:$0xf]
  %v48 = vld [vmem:[%s1 + $0x58] sm:$0xf]
  %v49 = vld [vmem:[%s1 + $0x5c] sm:$0xf]
  %v50 = vld [vmem:[%s1 + $0x60] sm:$0xf]
  %v51 = vld [vmem:[%s1 + $0x64] sm:$0xf]
  %v52 = vld [vmem:[%s1 + $0x68] sm:$0xf]
  %v53 = vld [vmem:[%s1 + $0x6c] sm:$0xf]
  %v54 = vld [vmem:[%s1 + $0x70] sm:$0xf]
  %v55 = vld [vmem:[%s1 + $0x74] sm:$0xf]
  %v56 = vld [vmem:[%s1 + $0x78] sm:$0xf]
  %v57 = vld [vmem:[%s1 + $0x7c] sm:$0xf]
  %v58 = vld [vmem:[%s1 + $0x80] sm:$0xf]
  %v59 = vld [vmem:[%s1 + $0x84] sm:$0xf]
  %v60 = vld [vmem:[%s1 + $0x88] sm:$0xf]
  %v61 = vld [vmem:[%s1 + $0x8c] sm:$0xf]
  %v62 = vld [vmem:[%s2] sm:$0x1]
  %v64 = vlaneseq
  %v65 = vshrl.u32 %v64, 7
  %v66 = vsub.s32 0, %v65
  %v67 = vrot.slane %v62, %v66
  %v77 = vunpack.c.l.b16 %v18
  %v78 = vunpack.c.h.b16 %v18
  %v79 = vunpack.c.l.b16 %v19
  %v80 = vunpack.c.l.b16 %v20
  %v81 = vunpack.c.h.b16 %v20
  %v82 = vunpack.c.l.b16 %v21
  %v83 = vunpack.c.l.b16 %v22
  %v84 = vunpack.c.h.b16 %v22
  %v85 = vunpack.c.l.b16 %v23
  %v86 = vunpack.c.l.b16 %v24
  %v87 = vunpack.c.h.b16 %v24
  %v88 = vunpack.c.l.b16 %v25
  %v89 = vpack.c.b16 %v80, %v77
  %v90 = vpack.c.b16 %v81, %v78
  %v91 = vpack.c.b16 %v82, %v79
  %v92 = vpack.c.b16 %v86, %v83
  %v93 = vpack.c.b16 %v87, %v84
  %v94 = vpack.c.b16 %v88, %v85
  %v135 = vunpack.c.l.b16 %v26
  %v136 = vunpack.c.l.b16 %v27
  %v137 = vunpack.c.l.b16 %v28
  %v138 = vunpack.c.l.b16 %v29
  %v139 = vunpack.c.l.b16 %v30
  %v140 = vunpack.c.l.b16 %v31
  %v141 = vunpack.c.l.b16 %v32
  %v142 = vunpack.c.l.b16 %v33
  %v143 = vunpack.c.l.b16 %v34
  %v144 = vunpack.c.l.b16 %v35
  %v145 = vunpack.c.l.b16 %v36
  %v146 = vunpack.c.l.b16 %v37
  %v147 = vunpack.c.l.b16 %v38
  %v148 = vunpack.c.l.b16 %v39
  %v149 = vunpack.c.l.b16 %v40
  %v150 = vunpack.c.l.b16 %v41
  %v151 = vunpack.c.l.b16 %v42
  %v152 = vunpack.c.l.b16 %v43
  %v153 = vunpack.c.l.b16 %v44
  %v154 = vunpack.c.l.b16 %v45
  %v155 = vunpack.c.l.b16 %v46
  %v156 = vunpack.c.l.b16 %v47
  %v157 = vunpack.c.l.b16 %v48
  %v158 = vunpack.c.l.b16 %v49
  %v159 = vunpack.c.l.b16 %v50
  %v160 = vunpack.c.l.b16 %v51
  %v161 = vunpack.c.l.b16 %v52
  %v162 = vunpack.c.l.b16 %v53
  %v163 = vunpack.c.l.b16 %v54
  %v164 = vunpack.c.l.b16 %v55
  %v165 = vunpack.c.l.b16 %v56
  %v166 = vunpack.c.l.b16 %v57
  %v167 = vunpack.c.l.b16 %v58
  %v168 = vunpack.c.l.b16 %v59
  %v169 = vunpack.c.l.b16 %v60
  %v170 = vunpack.c.l.b16 %v61
  %v171 = vpack.c.b16 %v136, %v135
  %v172 = vpack.c.b16 %v138, %v137
  %v173 = vpack.c.b16 %v140, %v139
  %v174 = vpack.c.b16 %v142, %v141
  %v175 = vpack.c.b16 %v144, %v143
  %v176 = vpack.c.b16 %v146, %v145
  %v177 = vpack.c.b16 %v148, %v147
  %v178 = vpack.c.b16 %v150, %v149
  %v179 = vpack.c.b16 %v152, %v151
  %v180 = vpack.c.b16 %v154, %v153
  %v181 = vpack.c.b16 %v156, %v155
  %v182 = vpack.c.b16 %v158, %v157
  %v183 = vpack.c.b16 %v160, %v159
  %v184 = vpack.c.b16 %v162, %v161
  %v185 = vpack.c.b16 %v164, %v163
  %v186 = vpack.c.b16 %v166, %v165
  %v187 = vpack.c.b16 %v168, %v167
  %v188 = vpack.c.b16 %v170, %v169
  %vm207 = vcmask 261120
  %v209 = vsel %vm207, %v91, 0
  %v212 = vsel %vm207, %v94, 0
  %214 = vmatprep.subr.bf16.mxu0 0
  %215 = vmatpush1.bf16.msra.mxu0 %v171
  %216 = vmatprep.subr.bf16.mxu0 0
  %217 = vmatpush1.bf16.msra.mxu0 %v172
  %218 = vmatprep.subr.bf16.mxu0 0
  %219 = vmatpush1.bf16.msra.mxu0 %v173
  %220 = vmatprep.subr.bf16.mxu0 0
  %221 = vmatpush1.bf16.msra.mxu0 %v174
  %222 = vmatprep.subr.bf16.mxu0 0
  %223 = vmatpush1.bf16.msra.mxu0 %v175
  %224 = vmatprep.subr.bf16.mxu0 0
  %225 = vmatpush1.bf16.msra.mxu0 %v176
  %226 = vmatprep.subr.bf16.mxu0 0
  %227 = vmatpush1.bf16.msra.mxu0 %v177
  %228 = vmatprep.subr.bf16.mxu0 0
  %229 = vmatpush1.bf16.msra.mxu0 %v178
  %230 = vmatprep.subr.bf16.mxu0 0
  %231 = vmatpush1.bf16.msra.mxu0 %v179
  %232 = vmatprep.subr.bf16.mxu0 0
  %233 = vmatpush1.bf16.msra.mxu0 %v180
  %234 = vmatprep.subr.bf16.mxu0 0
  %235 = vmatpush1.bf16.msra.mxu0 %v181
  %236 = vmatprep.subr.bf16.mxu0 0
  %237 = vmatpush1.bf16.msra.mxu0 %v182
  %238 = vmatprep.subr.bf16.mxu0 0
  %239 = vmatpush1.bf16.msra.mxu0 %v183
  %240 = vmatprep.subr.bf16.mxu0 0
  %241 = vmatpush1.bf16.msra.mxu0 %v184
  %242 = vmatprep.subr.bf16.mxu0 0
  %243 = vmatpush1.bf16.msra.mxu0 %v185
  %244 = vmatprep.subr.bf16.mxu0 0
  %245 = vmatpush1.bf16.msra.mxu0 %v186
  %246 = vmatprep.mubr.bf16.mxu0 %v90
  %247 = vmatmul.mubr.bf16.gmra.mrb[0].mxu0 %v89
  %v248 = vpop.f32.mrb[0].mxu0
  %v249 = vadd.f32 %v67, %v248
  %v250 = vpop.f32.mrb[0].mxu0
  %v251 = vpop.f32.mrb[0].mxu0
  %v252 = vadd.f32 %v67, %v251
  %v253 = vpop.f32.mrb[0].mxu0
  %254 = vmatprep.mubr.bf16.mxu0 %v93
  %255 = vmatmul.mubr.bf16.gmra.mrb[0].mxu0 %v92
  %v256 = vpop.f32.mrb[0].mxu0
  %v257 = vadd.f32 %v67, %v256
  %v258 = vpop.f32.mrb[0].mxu0
  %v259 = vpop.f32.mrb[0].mxu0
  %v260 = vadd.f32 %v67, %v259
  %v261 = vpop.f32.mrb[0].mxu0
  %262 = vdwg.mxu0
  %263 = vmatprep.subr.bf16.mxu0 0
  %264 = vmatpush1.bf16.msra.mxu0 %v187
  %265 = vmatprep.subr.bf16.mxu0 0
  %266 = vmatpush1.bf16.msra.mxu0 %v188
  %267 = vmatprep.subr.bf16.mxu0 0
  %268 = vmatpush1.bf16.msra.mxu0 0
  %269 = vmatprep.subr.bf16.mxu0 0
  %270 = vmatpush1.bf16.msra.mxu0 0
  %271 = vmatprep.subr.bf16.mxu0 0
  %272 = vmatpush1.bf16.msra.mxu0 0
  %273 = vmatprep.subr.bf16.mxu0 0
  %274 = vmatpush1.bf16.msra.mxu0 0
  %275 = vmatprep.subr.bf16.mxu0 0
  %276 = vmatpush1.bf16.msra.mxu0 0
  %277 = vmatprep.subr.bf16.mxu0 0
  %278 = vmatpush1.bf16.msra.mxu0 0
  %279 = vmatprep.subr.bf16.mxu0 0
  %280 = vmatpush1.bf16.msra.mxu0 0
  %281 = vmatprep.subr.bf16.mxu0 0
  %282 = vmatpush1.bf16.msra.mxu0 0
  %283 = vmatprep.subr.bf16.mxu0 0
  %284 = vmatpush1.bf16.msra.mxu0 0
  %285 = vmatprep.subr.bf16.mxu0 0
  %286 = vmatpush1.bf16.msra.mxu0 0
  %287 = vmatprep.subr.bf16.mxu0 0
  %288 = vmatpush1.bf16.msra.mxu0 0
  %289 = vmatprep.subr.bf16.mxu0 0
  %290 = vmatpush1.bf16.msra.mxu0 0
  %291 = vmatprep.subr.bf16.mxu0 0
  %292 = vmatpush1.bf16.msra.mxu0 0
  %293 = vmatprep.subr.bf16.mxu0 0
  %294 = vmatpush1.bf16.msra.mxu0 0
  %295 = vmatprep.mubr.bf16.mxu0 0
  %296 = vmatmul.mubr.bf16.gmra.mrb[0].mxu0 %v209
  %v297 = vpop.f32.mrb[0].mxu0
  %v298 = vadd.f32 %v249, %v297
  %v299 = vpop.f32.mrb[0].mxu0
  %v300 = vpop.f32.mrb[0].mxu0
  %v301 = vadd.f32 %v252, %v300
  %v302 = vpop.f32.mrb[0].mxu0
  %303 = vmatprep.mubr.bf16.mxu0 0
  %304 = vmatmul.mubr.bf16.gmra.mrb[0].mxu0 %v212
  %v305 = vpop.f32.mrb[0].mxu0
  %v306 = vadd.f32 %v257, %v305
  %v307 = vpop.f32.mrb[0].mxu0
  %v308 = vpop.f32.mrb[0].mxu0
  %v309 = vadd.f32 %v260, %v308
  %v310 = vpop.f32.mrb[0].mxu0
  %311 = vdwg.mxu0
  %v312 = vld [vmem:[%s3] sm:$0xf]
  %v313 = vld [vmem:[%s3 + $0x4] sm:$0xf]
  %v314 = vld [vmem:[%s3 + $0x8] sm:$0xf]
  %v315 = vld [vmem:[%s3 + $0xc] sm:$0xf]
  %v316 = vunpack.c.l.bf16 %v312
  %v317 = vunpack.c.l.bf16 %v313
  %v318 = vunpack.c.l.bf16 %v314
  %v319 = vunpack.c.l.bf16 %v315
  %v320 = vadd.f32 %v298, %v316
  %v321 = vadd.f32 %v301, %v317
  %v322 = vadd.f32 %v306, %v318
  %v323 = vadd.f32 %v309, %v319
  %v324 = vmax.f32 %v320, 0.0
  %v325 = vmax.f32 %v321, 0.0
  %v326 = vmax.f32 %v322, 0.0
  %v327 = vmax.f32 %v323, 0.0
  %v328 = vpack.c.bf16 %v325, %v324
  %v329 = vpack.c.bf16 %v327, %v326
  %v332 = vunpack.c.l.b16 %v328
  %v333 = vunpack.c.h.b16 %v328
  %v334 = vunpack.c.l.b16 %v329
  %v335 = vunpack.c.h.b16 %v329
  %v336 = vpack.c.b16 %v332, %v332
  %v337 = vpack.c.b16 %v333, %v333
  %v338 = vpack.c.b16 %v334, %v334
  %v339 = vpack.c.b16 %v335, %v335
  %344 = vst [vmem:[%s4] sm:$0xf] %v336
  %345 = vst [vmem:[%s4 + $0x4] sm:$0xf] %v337
  %346 = vst [vmem:[%s4 + $0x8] sm:$0xf] %v338
  %347 = vst [vmem:[%s4 + $0xc] sm:$0xf] %v339
  // Predicated region
  $region18: #{resnet_forward.34} parent=0 // pred_check
    _
  $region19: #{resnet_forward.34} parent=0 // pred_check_branch
    %349 = sbr.rel (0) target = $region21
  $region20: #{resnet_forward.34} parent=0 // pred_region
    _
  $region21: #{resnet_forward.34} parent=0 // pred_fallthru
    _
  // Predicated region
  $region22: #{resnet_forward.34} parent=0 // pred_check
    _
  $region23: #{resnet_forward.34} parent=0 // pred_check_branch
    %351 = sbr.rel (0) target = $region25
  $region24: #{resnet_forward.34} parent=0 // pred_region
    _
  $region25: #{resnet_forward.34} parent=0 // pred_fallthru
    _

// kernel: resnet_forward.38
$region0: #{resnet_forward.38}
  #allocation0 [shape = 'u32[]', space=smem, size = 0x4, offset = 0x4, fixed_abs, tag = 'smem constant byte address 0x4 - core index']
  #allocation1 [shape = 'u32[144,128]{1,0:T(1,128)}', space=vmem, size = 0x12000, scoped, tag = 'internal scratch']
  %s0 = inlined_call_operand.vmem [shape: bf16[8,32], index: 0, kind: input, shape index: {}]
  %s1 = inlined_call_operand.vmem [shape: bf16[32,128], index: 1, kind: input, shape index: {}]
  %s2 = inlined_call_operand.vmem [shape: f32[1,128], index: 2, kind: input, shape index: {}]
  %s3 = inlined_call_operand.vmem [shape: bf16[8,128], index: 3, kind: output, shape index: {}]
  %s4 = sld [smem:[#allocation0]]
  $region22: #{resnet_forward.38} parent=0
    _
  %s6 = ssub.s32 1, %s4
  %s7 = scalar_select 0, %s6, %s4
  // Predicated region
  $region2: #{resnet_forward.38} parent=0 // pred_check
    _
  $region3: #{resnet_forward.38} parent=0 // pred_check_branch
    %9 = sbr.rel (0) target = $region5
  $region4: #{resnet_forward.38} parent=0 // pred_region
    _
  $region5: #{resnet_forward.38} parent=0 // pred_fallthru
    _
  // Predicated region
  $region6: #{resnet_forward.38} parent=0 // pred_check
    _
  $region7: #{resnet_forward.38} parent=0 // pred_check_branch
    %11 = sbr.rel (0) target = $region9
  $region8: #{resnet_forward.38} parent=0 // pred_region
    _
  $region9: #{resnet_forward.38} parent=0 // pred_fallthru
    _
  // Predicated region
  $region10: #{resnet_forward.38} parent=0 // pred_check
    _
  $region11: #{resnet_forward.38} parent=0 // pred_check_branch
    %13 = sbr.rel (0) target = $region13
  $region12: #{resnet_forward.38} parent=0 // pred_region
    _
  $region13: #{resnet_forward.38} parent=0 // pred_fallthru
    _
  %v15 = vld [vmem:[%s0] sm:$0xf]
  %v16 = vld [vmem:[%s1] sm:$0xf]
  %v17 = vld [vmem:[%s1 + $0x4] sm:$0xf]
  %v18 = vld [vmem:[%s1 + $0x8] sm:$0xf]
  %v19 = vld [vmem:[%s1 + $0xc] sm:$0xf]
  %v20 = vld [vmem:[%s2] sm:$0x1]
  %v22 = vlaneseq
  %v23 = vshrl.u32 %v22, 7
  %v24 = vsub.s32 0, %v23
  %v25 = vrot.slane %v20, %v24
  %v31 = vunpack.c.l.b16 %v16
  %v32 = vunpack.c.l.b16 %v17
  %v33 = vunpack.c.l.b16 %v18
  %v34 = vunpack.c.l.b16 %v19
  %v35 = vpack.c.b16 %v32, %v31
  %v36 = vpack.c.b16 %v34, %v33
  %vm39 = vcmask 261120
  %v41 = vsel %vm39, %v15, 0
  %43 = vmatprep.subr.bf16.mxu0 0
  %44 = vmatpush1.bf16.msra.mxu0 %v35
  %45 = vmatprep.subr.bf16.mxu0 0
  %46 = vmatpush1.bf16.msra.mxu0 %v36
  %47 = vmatprep.subr.bf16.mxu0 0
  %48 = vmatpush1.bf16.msra.mxu0 0
  %49 = vmatprep.subr.bf16.mxu0 0
  %50 = vmatpush1.bf16.msra.mxu0 0
  %51 = vmatprep.subr.bf16.mxu0 0
  %52 = vmatpush1.bf16.msra.mxu0 0
  %53 = vmatprep.subr.bf16.mxu0 0
  %54 = vmatpush1.bf16.msra.mxu0 0
  %55 = vmatprep.subr.bf16.mxu0 0
  %56 = vmatpush1.bf16.msra.mxu0 0
  %57 = vmatprep.subr.bf16.mxu0 0
  %58 = vmatpush1.bf16.msra.mxu0 0
  %59 = vmatprep.subr.bf16.mxu0 0
  %60 = vmatpush1.bf16.msra.mxu0 0
  %61 = vmatprep.subr.bf16.mxu0 0
  %62 = vmatpush1.bf16.msra.mxu0 0
  %63 = vmatprep.subr.bf16.mxu0 0
  %64 = vmatpush1.bf16.msra.mxu0 0
  %65 = vmatprep.subr.bf16.mxu0 0
  %66 = vmatpush1.bf16.msra.mxu0 0
  %67 = vmatprep.subr.bf16.mxu0 0
  %68 = vmatpush1.bf16.msra.mxu0 0
  %69 = vmatprep.subr.bf16.mxu0 0
  %70 = vmatpush1.bf16.msra.mxu0 0
  %71 = vmatprep.subr.bf16.mxu0 0
  %72 = vmatpush1.bf16.msra.mxu0 0
  %73 = vmatprep.subr.bf16.mxu0 0
  %74 = vmatpush1.bf16.msra.mxu0 0
  %75 = vmatprep.mubr.bf16.mxu0 0
  %76 = vmatmul.mubr.bf16.gmra.mrb[0].mxu0 %v41
  %v77 = vpop.f32.mrb[0].mxu0
  %v78 = vadd.f32 %v25, %v77
  %v79 = vpop.f32.mrb[0].mxu0
  %v80 = vpop.f32.mrb[0].mxu0
  %v81 = vpop.f32.mrb[0].mxu0
  %82 = vdwg.mxu0
  %v83 = vpack.c.bf16 %v78, %v78
  %84 = vst [vmem:[%s3] sm:$0xf] %v83
  // Predicated region
  $region14: #{resnet_forward.38} parent=0 // pred_check
    _
  $region15: #{resnet_forward.38} parent=0 // pred_check_branch
    %86 = sbr.rel (0) target = $region17
  $region16: #{resnet_forward.38} parent=0 // pred_region
    _
  $region17: #{resnet_forward.38} parent=0 // pred_fallthru
    _
  // Predicated region
  $region18: #{resnet_forward.38} parent=0 // pred_check
    _
  $region19: #{resnet_forward.38} parent=0 // pred_check_branch
    %88 = sbr.rel (0) target = $region21
  $region20: #{resnet_forward.38} parent=0 // pred_region
    _
  $region21: #{resnet_forward.38} parent=0 // pred_fallthru
    _

// kernel: resnet_forward.37
$region0: #{resnet_forward.37}
  #allocation0 [shape = 'u32[]', space=smem, size = 0x4, offset = 0x4, fixed_abs, tag = 'smem constant byte address 0x4 - core index']
  #allocation1 [shape = 'u32[144,128]{1,0:T(1,128)}', space=vmem, size = 0x12000, scoped, tag = 'internal scratch']
  %s0 = inlined_call_operand.vmem [shape: bf16[8,288], index: 0, kind: input, shape index: {}]
  %s1 = inlined_call_operand.vmem [shape: bf16[288,128], index: 1, kind: input, shape index: {}]
  %s2 = inlined_call_operand.vmem [shape: f32[1,128], index: 2, kind: input, shape index: {}]
  %s3 = inlined_call_operand.vmem [shape: bf16[8,128], index: 3, kind: output, shape index: {}]
  %s4 = sld [smem:[#allocation0]]
  $region22: #{resnet_forward.37} parent=0
    _
  %s6 = ssub.s32 1, %s4
  %s7 = scalar_select 0, %s6, %s4
  // Predicated region
  $region2: #{resnet_forward.37} parent=0 // pred_check
    _
  $region3: #{resnet_forward.37} parent=0 // pred_check_branch
    %9 = sbr.rel (0) target = $region5
  $region4: #{resnet_forward.37} parent=0 // pred_region
    _
  $region5: #{resnet_forward.37} parent=0 // pred_fallthru
    _
  // Predicated region
  $region6: #{resnet_forward.37} parent=0 // pred_check
    _
  $region7: #{resnet_forward.37} parent=0 // pred_check_branch
    %11 = sbr.rel (0) target = $region9
  $region8: #{resnet_forward.37} parent=0 // pred_region
    _
  $region9: #{resnet_forward.37} parent=0 // pred_fallthru
    _
  // Predicated region
  $region10: #{resnet_forward.37} parent=0 // pred_check
    _
  $region11: #{resnet_forward.37} parent=0 // pred_check_branch
    %13 = sbr.rel (0) target = $region13
  $region12: #{resnet_forward.37} parent=0 // pred_region
    _
  $region13: #{resnet_forward.37} parent=0 // pred_fallthru
    _
  %v15 = vld [vmem:[%s0] sm:$0xff]
  %v16 = vld [vmem:[%s0 + $0x8] sm:$0xf]
  %v17 = vld [vmem:[%s1] sm:$0xf]
  %v18 = vld [vmem:[%s1 + $0x4] sm:$0xf]
  %v19 = vld [vmem:[%s1 + $0x8] sm:$0xf]
  %v20 = vld [vmem:[%s1 + $0xc] sm:$0xf]
  %v21 = vld [vmem:[%s1 + $0x10] sm:$0xf]
  %v22 = vld [vmem:[%s1 + $0x14] sm:$0xf]
  %v23 = vld [vmem:[%s1 + $0x18] sm:$0xf]
  %v24 = vld [vmem:[%s1 + $0x1c] sm:$0xf]
  %v25 = vld [vmem:[%s1 + $0x20] sm:$0xf]
  %v26 = vld [vmem:[%s1 + $0x24] sm:$0xf]
  %v27 = vld [vmem:[%s1 + $0x28] sm:$0xf]
  %v28 = vld [vmem:[%s1 + $0x2c] sm:$0xf]
  %v29 = vld [vmem:[%s1 + $0x30] sm:$0xf]
  %v30 = vld [vmem:[%s1 + $0x34] sm:$0xf]
  %v31 = vld [vmem:[%s1 + $0x38] sm:$0xf]
  %v32 = vld [vmem:[%s1 + $0x3c] sm:$0xf]
  %v33 = vld [vmem:[%s1 + $0x40] sm:$0xf]
  %v34 = vld [vmem:[%s1 + $0x44] sm:$0xf]
  %v35 = vld [vmem:[%s1 + $0x48] sm:$0xf]
  %v36 = vld [vmem:[%s1 + $0x4c] sm:$0xf]
  %v37 = vld [vmem:[%s1 + $0x50] sm:$0xf]
  %v38 = vld [vmem:[%s1 + $0x54] sm:$0xf]
  %v39 = vld [vmem:[%s1 + $0x58] sm:$0xf]
  %v40 = vld [vmem:[%s1 + $0x5c] sm:$0xf]
  %v41 = vld [vmem:[%s1 + $0x60] sm:$0xf]
  %v42 = vld [vmem:[%s1 + $0x64] sm:$0xf]
  %v43 = vld [vmem:[%s1 + $0x68] sm:$0xf]
  %v44 = vld [vmem:[%s1 + $0x6c] sm:$0xf]
  %v45 = vld [vmem:[%s1 + $0x70] sm:$0xf]
  %v46 = vld [vmem:[%s1 + $0x74] sm:$0xf]
  %v47 = vld [vmem:[%s1 + $0x78] sm:$0xf]
  %v48 = vld [vmem:[%s1 + $0x7c] sm:$0xf]
  %v49 = vld [vmem:[%s1 + $0x80] sm:$0xf]
  %v50 = vld [vmem:[%s1 + $0x84] sm:$0xf]
  %v51 = vld [vmem:[%s1 + $0x88] sm:$0xf]
  %v52 = vld [vmem:[%s1 + $0x8c] sm:$0xf]
  %v53 = vld [vmem:[%s2] sm:$0x1]
  %v55 = vlaneseq
  %v56 = vshrl.u32 %v55, 7
  %v57 = vsub.s32 0, %v56
  %v58 = vrot.slane %v53, %v57
  %v62 = vunpack.c.l.b16 %v15
  %v63 = vunpack.c.h.b16 %v15
  %v64 = vunpack.c.l.b16 %v16
  %v65 = vpack.c.b16 %v62, %v62
  %v66 = vpack.c.b16 %v63, %v63
  %v67 = vpack.c.b16 %v64, %v64
  %v106 = vunpack.c.l.b16 %v17
  %v107 = vunpack.c.l.b16 %v18
  %v108 = vunpack.c.l.b16 %v19
  %v109 = vunpack.c.l.b16 %v20
  %v110 = vunpack.c.l.b16 %v21
  %v111 = vunpack.c.l.b16 %v22
  %v112 = vunpack.c.l.b16 %v23
  %v113 = vunpack.c.l.b16 %v24
  %v114 = vunpack.c.l.b16 %v25
  %v115 = vunpack.c.l.b16 %v26
  %v116 = vunpack.c.l.b16 %v27
  %v117 = vunpack.c.l.b16 %v28
  %v118 = vunpack.c.l.b16 %v29
  %v119 = vunpack.c.l.b16 %v30
  %v120 = vunpack.c.l.b16 %v31
  %v121 = vunpack.c.l.b16 %v32
  %v122 = vunpack.c.l.b16 %v33
  %v123 = vunpack.c.l.b16 %v34
  %v124 = vunpack.c.l.b16 %v35
  %v125 = vunpack.c.l.b16 %v36
  %v126 = vunpack.c.l.b16 %v37
  %v127 = vunpack.c.l.b16 %v38
  %v128 = vunpack.c.l.b16 %v39
  %v129 = vunpack.c.l.b16 %v40
  %v130 = vunpack.c.l.b16 %v41
  %v131 = vunpack.c.l.b16 %v42
  %v132 = vunpack.c.l.b16 %v43
  %v133 = vunpack.c.l.b16 %v44
  %v134 = vunpack.c.l.b16 %v45
  %v135 = vunpack.c.l.b16 %v46
  %v136 = vunpack.c.l.b16 %v47
  %v137 = vunpack.c.l.b16 %v48
  %v138 = vunpack.c.l.b16 %v49
  %v139 = vunpack.c.l.b16 %v50
  %v140 = vunpack.c.l.b16 %v51
  %v141 = vunpack.c.l.b16 %v52
  %v142 = vpack.c.b16 %v107, %v106
  %v143 = vpack.c.b16 %v109, %v108
  %v144 = vpack.c.b16 %v111, %v110
  %v145 = vpack.c.b16 %v113, %v112
  %v146 = vpack.c.b16 %v115, %v114
  %v147 = vpack.c.b16 %v117, %v116
  %v148 = vpack.c.b16 %v119, %v118
  %v149 = vpack.c.b16 %v121, %v120
  %v150 = vpack.c.b16 %v123, %v122
  %v151 = vpack.c.b16 %v125, %v124
  %v152 = vpack.c.b16 %v127, %v126
  %v153 = vpack.c.b16 %v129, %v128
  %v154 = vpack.c.b16 %v131, %v130
  %v155 = vpack.c.b16 %v133, %v132
  %v156 = vpack.c.b16 %v135, %v134
  %v157 = vpack.c.b16 %v137, %v136
  %v158 = vpack.c.b16 %v139, %v138
  %v159 = vpack.c.b16 %v141, %v140
  %vm178 = vcmask 261120
  %v180 = vsel %vm178, %v67, 0
  %182 = vmatprep.subr.bf16.mxu0 0
  %183 = vmatpush1.bf16.msra.mxu0 %v142
  %184 = vmatprep.subr.bf16.mxu0 0
  %185 = vmatpush1.bf16.msra.mxu0 %v143
  %186 = vmatprep.subr.bf16.mxu0 0
  %187 = vmatpush1.bf16.msra.mxu0 %v144
  %188 = vmatprep.subr.bf16.mxu0 0
  %189 = vmatpush1.bf16.msra.mxu0 %v145
  %190 = vmatprep.subr.bf16.mxu0 0
  %191 = vmatpush1.bf16.msra.mxu0 %v146
  %192 = vmatprep.subr.bf16.mxu0 0
  %193 = vmatpush1.bf16.msra.mxu0 %v147
  %194 = vmatprep.subr.bf16.mxu0 0
  %195 = vmatpush1.bf16.msra.mxu0 %v148
  %196 = vmatprep.subr.bf16.mxu0 0
  %197 = vmatpush1.bf16.msra.mxu0 %v149
  %198 = vmatprep.subr.bf16.mxu0 0
  %199 = vmatpush1.bf16.msra.mxu0 %v150
  %200 = vmatprep.subr.bf16.mxu0 0
  %201 = vmatpush1.bf16.msra.mxu0 %v151
  %202 = vmatprep.subr.bf16.mxu0 0
  %203 = vmatpush1.bf16.msra.mxu0 %v152
  %204 = vmatprep.subr.bf16.mxu0 0
  %205 = vmatpush1.bf16.msra.mxu0 %v153
  %206 = vmatprep.subr.bf16.mxu0 0
  %207 = vmatpush1.bf16.msra.mxu0 %v154
  %208 = vmatprep.subr.bf16.mxu0 0
  %209 = vmatpush1.bf16.msra.mxu0 %v155
  %210 = vmatprep.subr.bf16.mxu0 0
  %211 = vmatpush1.bf16.msra.mxu0 %v156
  %212 = vmatprep.subr.bf16.mxu0 0
  %213 = vmatpush1.bf16.msra.mxu0 %v157
  %214 = vmatprep.mubr.bf16.mxu0 %v66
  %215 = vmatmul.mubr.bf16.gmra.mrb[0].mxu0 %v65
  %v216 = vpop.f32.mrb[0].mxu0
  %v217 = vadd.f32 %v58, %v216
  %v218 = vpop.f32.mrb[0].mxu0
  %v219 = vpop.f32.mrb[0].mxu0
  %v220 = vpop.f32.mrb[0].mxu0
  %221 = vdwg.mxu0
  %222 = vmatprep.subr.bf16.mxu0 0
  %223 = vmatpush1.bf16.msra.mxu0 %v158
  %224 = vmatprep.subr.bf16.mxu0 0
  %225 = vmatpush1.bf16.msra.mxu0 %v159
  %226 = vmatprep.subr.bf16.mxu0 0
  %227 = vmatpush1.bf16.msra.mxu0 0
  %228 = vmatprep.subr.bf16.mxu0 0
  %229 = vmatpush1.bf16.msra.mxu0 0
  %230 = vmatprep.subr.bf16.mxu0 0
  %231 = vmatpush1.bf16.msra.mxu0 0
  %232 = vmatprep.subr.bf16.mxu0 0
  %233 = vmatpush1.bf16.msra.mxu0 0
  %234 = vmatprep.subr.bf16.mxu0 0
  %235 = vmatpush1.bf16.msra.mxu0 0
  %236 = vmatprep.subr.bf16.mxu0 0
  %237 = vmatpush1.bf16.msra.mxu0 0
  %238 = vmatprep.subr.bf16.mxu0 0
  %239 = vmatpush1.bf16.msra.mxu0 0
  %240 = vmatprep.subr.bf16.mxu0 0
  %241 = vmatpush1.bf16.msra.mxu0 0
  %242 = vmatprep.subr.bf16.mxu0 0
  %243 = vmatpush1.bf16.msra.mxu0 0
  %244 = vmatprep.subr.bf16.mxu0 0
  %245 = vmatpush1.bf16.msra.mxu0 0
  %246 = vmatprep.subr.bf16.mxu0 0
  %247 = vmatpush1.bf16.msra.mxu0 0
  %248 = vmatprep.subr.bf16.mxu0 0
  %249 = vmatpush1.bf16.msra.mxu0 0
  %250 = vmatprep.subr.bf16.mxu0 0
  %251 = vmatpush1.bf16.msra.mxu0 0
  %252 = vmatprep.subr.bf16.mxu0 0
  %253 = vmatpush1.bf16.msra.mxu0 0
  %254 = vmatprep.mubr.bf16.mxu0 0
  %255 = vmatmul.mubr.bf16.gmra.mrb[0].mxu0 %v180
  %v256 = vpop.f32.mrb[0].mxu0
  %v257 = vadd.f32 %v217, %v256
  %v258 = vpop.f32.mrb[0].mxu0
  %v259 = vpop.f32.mrb[0].mxu0
  %v260 = vpop.f32.mrb[0].mxu0
  %261 = vdwg.mxu0
  %v262 = vmax.f32 %v257, 0.0
  %v263 = vpack.c.bf16 %v262, %v262
  %264 = vst [vmem:[%s3] sm:$0xf] %v263
  // Predicated region
  $region14: #{resnet_forward.37} parent=0 // pred_check
    _
  $region15: #{resnet_forward.37} parent=0 // pred_check_branch
    %266 = sbr.rel (0) target = $region17
  $region16: #{resnet_forward.37} parent=0 // pred_region
    _
  $region17: #{resnet_forward.37} parent=0 // pred_fallthru
    _
  // Predicated region
  $region18: #{resnet_forward.37} parent=0 // pred_check
    _
  $region19: #{resnet_forward.37} parent=0 // pred_check_branch
    %268 = sbr.rel (0) target = $region21
  $region20: #{resnet_forward.37} parent=0 // pred_region
    _
  $region21: #{resnet_forward.37} parent=0 // pred_fallthru
    _

// kernel: resnet_forward.40
$region0: #{resnet_forward.40}
  #allocation0 [shape = 'u32[]', space=smem, size = 0x4, offset = 0x4, fixed_abs, tag = 'smem constant byte address 0x4 - core index']
  #allocation1 [shape = 'u32[144,128]{1,0:T(1,128)}', space=vmem, size = 0x12000, scoped, tag = 'internal scratch']
  %s0 = inlined_call_operand.vmem [shape: bf16[8,576], index: 0, kind: input, shape index: {}]
  %s1 = inlined_call_operand.vmem [shape: bf16[576,128], index: 1, kind: input, shape index: {}]
  %s2 = inlined_call_operand.vmem [shape: f32[1,128], index: 2, kind: input, shape index: {}]
  %s3 = inlined_call_operand.vmem [shape: bf16[8,128], index: 3, kind: output, shape index: {}]
  %s4 = sld [smem:[#allocation0]]
  $region22: #{resnet_forward.40} parent=0
    _
  %s6 = ssub.s32 1, %s4
  %s7 = scalar_select 0, %s6, %s4
  // Predicated region
  $region2: #{resnet_forward.40} parent=0 // pred_check
    _
  $region3: #{resnet_forward.40} parent=0 // pred_check_branch
    %9 = sbr.rel (0) target = $region5
  $region4: #{resnet_forward.40} parent=0 // pred_region
    _
  $region5: #{resnet_forward.40} parent=0 // pred_fallthru
    _
  // Predicated region
  $region6: #{resnet_forward.40} parent=0 // pred_check
    _
  $region7: #{resnet_forward.40} parent=0 // pred_check_branch
    %11 = sbr.rel (0) target = $region9
  $region8: #{resnet_forward.40} parent=0 // pred_region
    _
  $region9: #{resnet_forward.40} parent=0 // pred_fallthru
    _
  // Predicated region
  $region10: #{resnet_forward.40} parent=0 // pred_check
    _
  $region11: #{resnet_forward.40} parent=0 // pred_check_branch
    %13 = sbr.rel (0) target = $region13
  $region12: #{resnet_forward.40} parent=0 // pred_region
    _
  $region13: #{resnet_forward.40} parent=0 // pred_fallthru
    _
  %v15 = vld [vmem:[%s0] sm:$0xff]
  %v16 = vld [vmem:[%s0 + $0x8] sm:$0xff]
  %v17 = vld [vmem:[%s0 + $0x10] sm:$0xf]
  %v18 = vld [vmem:[%s1] sm:$0xf]
  %v19 = vld [vmem:[%s1 + $0x4] sm:$0xf]
  %v20 = vld [vmem:[%s1 + $0x8] sm:$0xf]
  %v21 = vld [vmem:[%s1 + $0xc] sm:$0xf]
  %v22 = vld [vmem:[%s1 + $0x10] sm:$0xf]
  %v23 = vld [vmem:[%s1 + $0x14] sm:$0xf]
  %v24 = vld [vmem:[%s1 + $0x18] sm:$0xf]
  %v25 = vld [vmem:[%s1 + $0x1c] sm:$0xf]
  %v26 = vld [vmem:[%s1 + $0x20] sm:$0xf]
  %v27 = vld [vmem:[%s1 + $0x24] sm:$0xf]
  %v28 = vld [vmem:[%s1 + $0x28] sm:$0xf]
  %v29 = vld [vmem:[%s1 + $0x2c] sm:$0xf]
  %v30 = vld [vmem:[%s1 + $0x30] sm:$0xf]
  %v31 = vld [vmem:[%s1 + $0x34] sm:$0xf]
  %v32 = vld [vmem:[%s1 + $0x38] sm:$0xf]
  %v33 = vld [vmem:[%s1 + $0x3c] sm:$0xf]
  %v34 = vld [vmem:[%s1 + $0x40] sm:$0xf]
  %v35 = vld [vmem:[%s1 + $0x44] sm:$0xf]
  %v36 = vld [vmem:[%s1 + $0x48] sm:$0xf]
  %v37 = vld [vmem:[%s1 + $0x4c] sm:$0xf]
  %v38 = vld [vmem:[%s1 + $0x50] sm:$0xf]
  %v39 = vld [vmem:[%s1 + $0x54] sm:$0xf]
  %v40 = vld [vmem:[%s1 + $0x58] sm:$0xf]
  %v41 = vld [vmem:[%s1 + $0x5c] sm:$0xf]
  %v42 = vld [vmem:[%s1 + $0x60] sm:$0xf]
  %v43 = vld [vmem:[%s1 + $0x64] sm:$0xf]
  %v44 = vld [vmem:[%s1 + $0x68] sm:$0xf]
  %v45 = vld [vmem:[%s1 + $0x6c] sm:$0xf]
  %v46 = vld [vmem:[%s1 + $0x70] sm:$0xf]
  %v47 = vld [vmem:[%s1 + $0x74] sm:$0xf]
  %v48 = vld [vmem:[%s1 + $0x78] sm:$0xf]
  %v49 = vld [vmem:[%s1 + $0x7c] sm:$0xf]
  %v50 = vld [vmem:[%s1 + $0x80] sm:$0xf]
  %v51 = vld [vmem:[%s1 + $0x84] sm:$0xf]
  %v52 = vld [vmem:[%s1 + $0x88] sm:$0xf]
  %v53 = vld [vmem:[%s1 + $0x8c] sm:$0xf]
  %v54 = vld [vmem:[%s1 + $0x90] sm:$0xf]
  %v55 = vld [vmem:[%s1 + $0x94] sm:$0xf]
  %v56 = vld [vmem:[%s1 + $0x98] sm:$0xf]
  %v57 = vld [vmem:[%s1 + $0x9c] sm:$0xf]
  %v58 = vld [vmem:[%s1 + $0xa0] sm:$0xf]
  %v59 = vld [vmem:[%s1 + $0xa4] sm:$0xf]
  %v60 = vld [vmem:[%s1 + $0xa8] sm:$0xf]
  %v61 = vld [vmem:[%s1 + $0xac] sm:$0xf]
  %v62 = vld [vmem:[%s1 + $0xb0] sm:$0xf]
  %v63 = vld [vmem:[%s1 + $0xb4] sm:$0xf]
  %v64 = vld [vmem:[%s1 + $0xb8] sm:$0xf]
  %v65 = vld [vmem:[%s1 + $0xbc] sm:$0xf]
  %v66 = vld [vmem:[%s1 + $0xc0] sm:$0xf]
  %v67 = vld [vmem:[%s1 + $0xc4] sm:$0xf]
  %v68 = vld [vmem:[%s1 + $0xc8] sm:$0xf]
  %v69 = vld [vmem:[%s1 + $0xcc] sm:$0xf]
  %v70 = vld [vmem:[%s1 + $0xd0] sm:$0xf]
  %v71 = vld [vmem:[%s1 + $0xd4] sm:$0xf]
  %v72 = vld [vmem:[%s1 + $0xd8] sm:$0xf]
  %v73 = vld [vmem:[%s1 + $0xdc] sm:$0xf]
  %v74 = vld [vmem:[%s1 + $0xe0] sm:$0xf]
  %v75 = vld [vmem:[%s1 + $0xe4] sm:$0xf]
  %v76 = vld [vmem:[%s1 + $0xe8] sm:$0xf]
  %v77 = vld [vmem:[%s1 + $0xec] sm:$0xf]
  %v78 = vld [vmem:[%s1 + $0xf0] sm:$0xf]
  %v79 = vld [vmem:[%s1 + $0xf4] sm:$0xf]
  %v80 = vld [vmem:[%s1 + $0xf8] sm:$0xf]
  %v81 = vld [vmem:[%s1 + $0xfc] sm:$0xf]
  %v82 = vld [vmem:[%s1 + $0x100] sm:$0xf]
  %v83 = vld [vmem:[%s1 + $0x104] sm:$0xf]
  %v84 = vld [vmem:[%s1 + $0x108] sm:$0xf]
  %v85 = vld [vmem:[%s1 + $0x10c] sm:$0xf]
  %v86 = vld [vmem:[%s1 + $0x110] sm:$0xf]
  %v87 = vld [vmem:[%s1 + $0x114] sm:$0xf]
  %v88 = vld [vmem:[%s1 + $0x118] sm:$0xf]
  %v89 = vld [vmem:[%s1 + $0x11c] sm:$0xf]
  %v90 = vld [vmem:[%s2] sm:$0x1]
  %v92 = vlaneseq
  %v93 = vshrl.u32 %v92, 7
  %v94 = vsub.s32 0, %v93
  %v95 = vrot.slane %v90, %v94
  %v100 = vunpack.c.l.b16 %v15
  %v101 = vunpack.c.h.b16 %v15
  %v102 = vunpack.c.l.b16 %v16
  %v103 = vunpack.c.h.b16 %v16
  %v104 = vunpack.c.l.b16 %v17
  %v105 = vpack.c.b16 %v100, %v100
  %v106 = vpack.c.b16 %v101, %v101
  %v107 = vpack.c.b16 %v102, %v102
  %v108 = vpack.c.b16 %v103, %v103
  %v109 = vpack.c.b16 %v104, %v104
  %v186 = vunpack.c.l.b16 %v18
  %v187 = vunpack.c.l.b16 %v19
  %v188 = vunpack.c.l.b16 %v20
  %v189 = vunpack.c.l.b16 %v21
  %v190 = vunpack.c.l.b16 %v22
  %v191 = vunpack.c.l.b16 %v23
  %v192 = vunpack.c.l.b16 %v24
  %v193 = vunpack.c.l.b16 %v25
  %v194 = vunpack.c.l.b16 %v26
  %v195 = vunpack.c.l.b16 %v27
  %v196 = vunpack.c.l.b16 %v28
  %v197 = vunpack.c.l.b16 %v29
  %v198 = vunpack.c.l.b16 %v30
  %v199 = vunpack.c.l.b16 %v31
  %v200 = vunpack.c.l.b16 %v32
  %v201 = vunpack.c.l.b16 %v33
  %v202 = vunpack.c.l.b16 %v34
  %v203 = vunpack.c.l.b16 %v35
  %v204 = vunpack.c.l.b16 %v36
  %v205 = vunpack.c.l.b16 %v37
  %v206 = vunpack.c.l.b16 %v38
  %v207 = vunpack.c.l.b16 %v39
  %v208 = vunpack.c.l.b16 %v40
  %v209 = vunpack.c.l.b16 %v41
  %v210 = vunpack.c.l.b16 %v42
  %v211 = vunpack.c.l.b16 %v43
  %v212 = vunpack.c.l.b16 %v44
  %v213 = vunpack.c.l.b16 %v45
  %v214 = vunpack.c.l.b16 %v46
  %v215 = vunpack.c.l.b16 %v47
  %v216 = vunpack.c.l.b16 %v48
  %v217 = vunpack.c.l.b16 %v49
  %v218 = vunpack.c.l.b16 %v50
  %v219 = vunpack.c.l.b16 %v51
  %v220 = vunpack.c.l.b16 %v52
  %v221 = vunpack.c.l.b16 %v53
  %v222 = vunpack.c.l.b16 %v54
  %v223 = vunpack.c.l.b16 %v55
  %v224 = vunpack.c.l.b16 %v56
  %v225 = vunpack.c.l.b16 %v57
  %v226 = vunpack.c.l.b16 %v58
  %v227 = vunpack.c.l.b16 %v59
  %v228 = vunpack.c.l.b16 %v60
  %v229 = vunpack.c.l.b16 %v61
  %v230 = vunpack.c.l.b16 %v62
  %v231 = vunpack.c.l.b16 %v63
  %v232 = vunpack.c.l.b16 %v64
  %v233 = vunpack.c.l.b16 %v65
  %v234 = vunpack.c.l.b16 %v66
  %v235 = vunpack.c.l.b16 %v67
  %v236 = vunpack.c.l.b16 %v68
  %v237 = vunpack.c.l.b16 %v69
  %v238 = vunpack.c.l.b16 %v70
  %v239 = vunpack.c.l.b16 %v71
  %v240 = vunpack.c.l.b16 %v72
  %v241 = vunpack.c.l.b16 %v73
  %v242 = vunpack.c.l.b16 %v74
  %v243 = vunpack.c.l.b16 %v75
  %v244 = vunpack.c.l.b16 %v76
  %v245 = vunpack.c.l.b16 %v77
  %v246 = vunpack.c.l.b16 %v78
  %v247 = vunpack.c.l.b16 %v79
  %v248 = vunpack.c.l.b16 %v80
  %v249 = vunpack.c.l.b16 %v81
  %v250 = vunpack.c.l.b16 %v82
  %v251 = vunpack.c.l.b16 %v83
  %v252 = vunpack.c.l.b16 %v84
  %v253 = vunpack.c.l.b16 %v85
  %v254 = vunpack.c.l.b16 %v86
  %v255 = vunpack.c.l.b16 %v87
  %v256 = vunpack.c.l.b16 %v88
  %v257 = vunpack.c.l.b16 %v89
  %v258 = vpack.c.b16 %v187, %v186
  %v259 = vpack.c.b16 %v189, %v188
  %v260 = vpack.c.b16 %v191, %v190
  %v261 = vpack.c.b16 %v193, %v192
  %v262 = vpack.c.b16 %v195, %v194
  %v263 = vpack.c.b16 %v197, %v196
  %v264 = vpack.c.b16 %v199, %v198
  %v265 = vpack.c.b16 %v201, %v200
  %v266 = vpack.c.b16 %v203, %v202
  %v267 = vpack.c.b16 %v205, %v204
  %v268 = vpack.c.b16 %v207, %v206
  %v269 = vpack.c.b16 %v209, %v208
  %v270 = vpack.c.b16 %v211, %v210
  %v271 = vpack.c.b16 %v213, %v212
  %v272 = vpack.c.b16 %v215, %v214
  %v273 = vpack.c.b16 %v217, %v216
  %v274 = vpack.c.b16 %v219, %v218
  %v275 = vpack.c.b16 %v221, %v220
  %v276 = vpack.c.b16 %v223, %v222
  %v277 = vpack.c.b16 %v225, %v224
  %v278 = vpack.c.b16 %v227, %v226
  %v279 = vpack.c.b16 %v229, %v228
  %v280 = vpack.c.b16 %v231, %v230
  %v281 = vpack.c.b16 %v233, %v232
  %v282 = vpack.c.b16 %v235, %v234
  %v283 = vpack.c.b16 %v237, %v236
  %v284 = vpack.c.b16 %v239, %v238
  %v285 = vpack.c.b16 %v241, %v240
  %v286 = vpack.c.b16 %v243, %v242
  %v287 = vpack.c.b16 %v245, %v244
  %v288 = vpack.c.b16 %v247, %v246
  %v289 = vpack.c.b16 %v249, %v248
  %v290 = vpack.c.b16 %v251, %v250
  %v291 = vpack.c.b16 %v253, %v252
  %v292 = vpack.c.b16 %v255, %v254
  %v293 = vpack.c.b16 %v257, %v256
  %vm330 = vcmask 523264
  %v332 = vsel %vm330, %v109, 0
  %334 = vmatprep.subr.bf16.mxu0 0
  %335 = vmatpush1.bf16.msra.mxu0 %v258
  %336 = vmatprep.subr.bf16.mxu0 0
  %337 = vmatpush1.bf16.msra.mxu0 %v259
  %338 = vmatprep.subr.bf16.mxu0 0
  %339 = vmatpush1.bf16.msra.mxu0 %v260
  %340 = vmatprep.subr.bf16.mxu0 0
  %341 = vmatpush1.bf16.msra.mxu0 %v261
  %342 = vmatprep.subr.bf16.mxu0 0
  %343 = vmatpush1.bf16.msra.mxu0 %v262
  %344 = vmatprep.subr.bf16.mxu0 0
  %345 = vmatpush1.bf16.msra.mxu0 %v263
  %346 = vmatprep.subr.bf16.mxu0 0
  %347 = vmatpush1.bf16.msra.mxu0 %v264
  %348 = vmatprep.subr.bf16.mxu0 0
  %349 = vmatpush1.bf16.msra.mxu0 %v265
  %350 = vmatprep.subr.bf16.mxu0 0
  %351 = vmatpush1.bf16.msra.mxu0 %v266
  %352 = vmatprep.subr.bf16.mxu0 0
  %353 = vmatpush1.bf16.msra.mxu0 %v267
  %354 = vmatprep.subr.bf16.mxu0 0
  %355 = vmatpush1.bf16.msra.mxu0 %v268
  %356 = vmatprep.subr.bf16.mxu0 0
  %357 = vmatpush1.bf16.msra.mxu0 %v269
  %358 = vmatprep.subr.bf16.mxu0 0
  %359 = vmatpush1.bf16.msra.mxu0 %v270
  %360 = vmatprep.subr.bf16.mxu0 0
  %361 = vmatpush1.bf16.msra.mxu0 %v271
  %362 = vmatprep.subr.bf16.mxu0 0
  %363 = vmatpush1.bf16.msra.mxu0 %v272
  %364 = vmatprep.subr.bf16.mxu0 0
  %365 = vmatpush1.bf16.msra.mxu0 %v273
  %366 = vmatprep.mubr.bf16.mxu0 %v106
  %367 = vmatmul.mubr.bf16.gmra.mrb[0].mxu0 %v105
  %v368 = vpop.f32.mrb[0].mxu0
  %v369 = vadd.f32 %v95, %v368
  %v370 = vpop.f32.mrb[0].mxu0
  %v371 = vpop.f32.mrb[0].mxu0
  %v372 = vpop.f32.mrb[0].mxu0
  %373 = vdwg.mxu0
  %374 = vmatprep.subr.bf16.mxu0 0
  %375 = vmatpush1.bf16.msra.mxu0 %v274
  %376 = vmatprep.subr.bf16.mxu0 0
  %377 = vmatpush1.bf16.msra.mxu0 %v275
  %378 = vmatprep.subr.bf16.mxu0 0
  %379 = vmatpush1.bf16.msra.mxu0 %v276
  %380 = vmatprep.subr.bf16.mxu0 0
  %381 = vmatpush1.bf16.msra.mxu0 %v277
  %382 = vmatprep.subr.bf16.mxu0 0
  %383 = vmatpush1.bf16.msra.mxu0 %v278
  %384 = vmatprep.subr.bf16.mxu0 0
  %385 = vmatpush1.bf16.msra.mxu0 %v279
  %386 = vmatprep.subr.bf16.mxu0 0
  %387 = vmatpush1.bf16.msra.mxu0 %v280
  %388 = vmatprep.subr.bf16.mxu0 0
  %389 = vmatpush1.bf16.msra.mxu0 %v281
  %390 = vmatprep.subr.bf16.mxu0 0
  %391 = vmatpush1.bf16.msra.mxu0 %v282
  %392 = vmatprep.subr.bf16.mxu0 0
  %393 = vmatpush1.bf16.msra.mxu0 %v283
  %394 = vmatprep.subr.bf16.mxu0 0
  %395 = vmatpush1.bf16.msra.mxu0 %v284
  %396 = vmatprep.subr.bf16.mxu0 0
  %397 = vmatpush1.bf16.msra.mxu0 %v285
  %398 = vmatprep.subr.bf16.mxu0 0
  %399 = vmatpush1.bf16.msra.mxu0 %v286
  %400 = vmatprep.subr.bf16.mxu0 0
  %401 = vmatpush1.bf16.msra.mxu0 %v287
  %402 = vmatprep.subr.bf16.mxu0 0
  %403 = vmatpush1.bf16.msra.mxu0 %v288
  %404 = vmatprep.subr.bf16.mxu0 0
  %405 = vmatpush1.bf16.msra.mxu0 %v289
  %406 = vmatprep.mubr.bf16.mxu0 %v108
  %407 = vmatmul.mubr.bf16.gmra.mrb[0].mxu0 %v107
  %v408 = vpop.f32.mrb[0].mxu0
  %v409 = vadd.f32 %v369, %v408
  %v410 = vpop.f32.mrb[0].mxu0
  %v411 = vpop.f32.mrb[0].mxu0
  %v412 = vpop.f32.mrb[0].mxu0
  %413 = vdwg.mxu0
  %414 = vmatprep.subr.bf16.mxu0 0
  %415 = vmatpush1.bf16.msra.mxu0 %v290
  %416 = vmatprep.subr.bf16.mxu0 0
  %417 = vmatpush1.bf16.msra.mxu0 %v291
  %418 = vmatprep.subr.bf16.mxu0 0
  %419 = vmatpush1.bf16.msra.mxu0 %v292
  %420 = vmatprep.subr.bf16.mxu0 0
  %421 = vmatpush1.bf16.msra.mxu0 %v293
  %422 = vmatprep.subr.bf16.mxu0 0
  %423 = vmatpush1.bf16.msra.mxu0 0
  %424 = vmatprep.subr.bf16.mxu0 0
  %425 = vmatpush1.bf16.msra.mxu0 0
  %426 = vmatprep.subr.bf16.mxu0 0
  %427 = vmatpush1.bf16.msra.mxu0 0
  %428 = vmatprep.subr.bf16.mxu0 0
  %429 = vmatpush1.bf16.msra.mxu0 0
  %430 = vmatprep.subr.bf16.mxu0 0
  %431 = vmatpush1.bf16.msra.mxu0 0
  %432 = vmatprep.subr.bf16.mxu0 0
  %433 = vmatpush1.bf16.msra.mxu0 0
  %434 = vmatprep.subr.bf16.mxu0 0
  %435 = vmatpush1.bf16.msra.mxu0 0
  %436 = vmatprep.subr.bf16.mxu0 0
  %437 = vmatpush1.bf16.msra.mxu0 0
  %438 = vmatprep.subr.bf16.mxu0 0
  %439 = vmatpush1.bf16.msra.mxu0 0
  %440 = vmatprep.subr.bf16.mxu0 0
  %441 = vmatpush1.bf16.msra.mxu0 0
  %442 = vmatprep.subr.bf16.mxu0 0
  %443 = vmatpush1.bf16.msra.mxu0 0
  %444 = vmatprep.subr.bf16.mxu0 0
  %445 = vmatpush1.bf16.msra.mxu0 0
  %446 = vmatprep.mubr.bf16.mxu0 0
  %447 = vmatmul.mubr.bf16.gmra.mrb[0].mxu0 %v332
  %v448 = vpop.f32.mrb[0].mxu0
  %v449 = vadd.f32 %v409, %v448
  %v450 = vpop.f32.mrb[0].mxu0
  %v451 = vpop.f32.mrb[0].mxu0
  %v452 = vpop.f32.mrb[0].mxu0
  %453 = vdwg.mxu0
  %v454 = vmax.f32 %v449, 0.0
  %v455 = vpack.c.bf16 %v454, %v454
  %456 = vst [vmem:[%s3] sm:$0xf] %v455
  // Predicated region
  $region14: #{resnet_forward.40} parent=0 // pred_check
    _
  $region15: #{resnet_forward.40} parent=0 // pred_check_branch
    %458 = sbr.rel (0) target = $region17
  $region16: #{resnet_forward.40} parent=0 // pred_region
    _
  $region17: #{resnet_forward.40} parent=0 // pred_fallthru
    _
  // Predicated region
  $region18: #{resnet_forward.40} parent=0 // pred_check
    _
  $region19: #{resnet_forward.40} parent=0 // pred_check_branch
    %460 = sbr.rel (0) target = $region21
  $region20: #{resnet_forward.40} parent=0 // pred_region
    _
  $region21: #{resnet_forward.40} parent=0 // pred_fallthru
    _

// kernel: resnet_forward.39
$region0: #{resnet_forward.39}
  #allocation0 [shape = 'u32[]', space=smem, size = 0x4, offset = 0x4, fixed_abs, tag = 'smem constant byte address 0x4 - core index']
  #allocation1 [shape = 'u32[144,128]{1,0:T(1,128)}', space=vmem, size = 0x12000, scoped, tag = 'internal scratch']
  %s0 = inlined_call_operand.vmem [shape: bf16[8,576], index: 0, kind: input, shape index: {}]
  %s1 = inlined_call_operand.vmem [shape: bf16[576,128], index: 1, kind: input, shape index: {}]
  %s2 = inlined_call_operand.vmem [shape: f32[1,128], index: 2, kind: input, shape index: {}]
  %s3 = inlined_call_operand.vmem [shape: bf16[8,128], index: 3, kind: input, shape index: {}, may-alias: {3,4}]
  %s4 = inlined_call_operand.vmem [shape: bf16[8,128], index: 4, kind: output, shape index: {}, may-alias: {3,4}]
  %s5 = sld [smem:[#allocation0]]
  $region26: #{resnet_forward.39} parent=0
    _
  %s7 = ssub.s32 1, %s5
  %s8 = scalar_select 0, %s7, %s5
  // Predicated region
  $region2: #{resnet_forward.39} parent=0 // pred_check
    _
  $region3: #{resnet_forward.39} parent=0 // pred_check_branch
    %10 = sbr.rel (0) target = $region5
  $region4: #{resnet_forward.39} parent=0 // pred_region
    _
  $region5: #{resnet_forward.39} parent=0 // pred_fallthru
    _
  // Predicated region
  $region6: #{resnet_forward.39} parent=0 // pred_check
    _
  $region7: #{resnet_forward.39} parent=0 // pred_check_branch
    %12 = sbr.rel (0) target = $region9
  $region8: #{resnet_forward.39} parent=0 // pred_region
    _
  $region9: #{resnet_forward.39} parent=0 // pred_fallthru
    _
  // Predicated region
  $region10: #{resnet_forward.39} parent=0 // pred_check
    _
  $region11: #{resnet_forward.39} parent=0 // pred_check_branch
    %14 = sbr.rel (0) target = $region13
  $region12: #{resnet_forward.39} parent=0 // pred_region
    _
  $region13: #{resnet_forward.39} parent=0 // pred_fallthru
    _
  // Predicated region
  $region14: #{resnet_forward.39} parent=0 // pred_check
    _
  $region15: #{resnet_forward.39} parent=0 // pred_check_branch
    %16 = sbr.rel (0) target = $region17
  $region16: #{resnet_forward.39} parent=0 // pred_region
    _
  $region17: #{resnet_forward.39} parent=0 // pred_fallthru
    _
  %v18 = vld [vmem:[%s0] sm:$0xff]
  %v19 = vld [vmem:[%s0 + $0x8] sm:$0xff]
  %v20 = vld [vmem:[%s0 + $0x10] sm:$0xf]
  %v21 = vld [vmem:[%s1] sm:$0xf]
  %v22 = vld [vmem:[%s1 + $0x4] sm:$0xf]
  %v23 = vld [vmem:[%s1 + $0x8] sm:$0xf]
  %v24 = vld [vmem:[%s1 + $0xc] sm:$0xf]
  %v25 = vld [vmem:[%s1 + $0x10] sm:$0xf]
  %v26 = vld [vmem:[%s1 + $0x14] sm:$0xf]
  %v27 = vld [vmem:[%s1 + $0x18] sm:$0xf]
  %v28 = vld [vmem:[%s1 + $0x1c] sm:$0xf]
  %v29 = vld [vmem:[%s1 + $0x20] sm:$0xf]
  %v30 = vld [vmem:[%s1 + $0x24] sm:$0xf]
  %v31 = vld [vmem:[%s1 + $0x28] sm:$0xf]
  %v32 = vld [vmem:[%s1 + $0x2c] sm:$0xf]
  %v33 = vld [vmem:[%s1 + $0x30] sm:$0xf]
  %v34 = vld [vmem:[%s1 + $0x34] sm:$0xf]
  %v35 = vld [vmem:[%s1 + $0x38] sm:$0xf]
  %v36 = vld [vmem:[%s1 + $0x3c] sm:$0xf]
  %v37 = vld [vmem:[%s1 + $0x40] sm:$0xf]
  %v38 = vld [vmem:[%s1 + $0x44] sm:$0xf]
  %v39 = vld [vmem:[%s1 + $0x48] sm:$0xf]
  %v40 = vld [vmem:[%s1 + $0x4c] sm:$0xf]
  %v41 = vld [vmem:[%s1 + $0x50] sm:$0xf]
  %v42 = vld [vmem:[%s1 + $0x54] sm:$0xf]
  %v43 = vld [vmem:[%s1 + $0x58] sm:$0xf]
  %v44 = vld [vmem:[%s1 + $0x5c] sm:$0xf]
  %v45 = vld [vmem:[%s1 + $0x60] sm:$0xf]
  %v46 = vld [vmem:[%s1 + $0x64] sm:$0xf]
  %v47 = vld [vmem:[%s1 + $0x68] sm:$0xf]
  %v48 = vld [vmem:[%s1 + $0x6c] sm:$0xf]
  %v49 = vld [vmem:[%s1 + $0x70] sm:$0xf]
  %v50 = vld [vmem:[%s1 + $0x74] sm:$0xf]
  %v51 = vld [vmem:[%s1 + $0x78] sm:$0xf]
  %v52 = vld [vmem:[%s1 + $0x7c] sm:$0xf]
  %v53 = vld [vmem:[%s1 + $0x80] sm:$0xf]
  %v54 = vld [vmem:[%s1 + $0x84] sm:$0xf]
  %v55 = vld [vmem:[%s1 + $0x88] sm:$0xf]
  %v56 = vld [vmem:[%s1 + $0x8c] sm:$0xf]
  %v57 = vld [vmem:[%s1 + $0x90] sm:$0xf]
  %v58 = vld [vmem:[%s1 + $0x94] sm:$0xf]
  %v59 = vld [vmem:[%s1 + $0x98] sm:$0xf]
  %v60 = vld [vmem:[%s1 + $0x9c] sm:$0xf]
  %v61 = vld [vmem:[%s1 + $0xa0] sm:$0xf]
  %v62 = vld [vmem:[%s1 + $0xa4] sm:$0xf]
  %v63 = vld [vmem:[%s1 + $0xa8] sm:$0xf]
  %v64 = vld [vmem:[%s1 + $0xac] sm:$0xf]
  %v65 = vld [vmem:[%s1 + $0xb0] sm:$0xf]
  %v66 = vld [vmem:[%s1 + $0xb4] sm:$0xf]
  %v67 = vld [vmem:[%s1 + $0xb8] sm:$0xf]
  %v68 = vld [vmem:[%s1 + $0xbc] sm:$0xf]
  %v69 = vld [vmem:[%s1 + $0xc0] sm:$0xf]
  %v70 = vld [vmem:[%s1 + $0xc4] sm:$0xf]
  %v71 = vld [vmem:[%s1 + $0xc8] sm:$0xf]
  %v72 = vld [vmem:[%s1 + $0xcc] sm:$0xf]
  %v73 = vld [vmem:[%s1 + $0xd0] sm:$0xf]
  %v74 = vld [vmem:[%s1 + $0xd4] sm:$0xf]
  %v75 = vld [vmem:[%s1 + $0xd8] sm:$0xf]
  %v76 = vld [vmem:[%s1 + $0xdc] sm:$0xf]
  %v77 = vld [vmem:[%s1 + $0xe0] sm:$0xf]
  %v78 = vld [vmem:[%s1 + $0xe4] sm:$0xf]
  %v79 = vld [vmem:[%s1 + $0xe8] sm:$0xf]
  %v80 = vld [vmem:[%s1 + $0xec] sm:$0xf]
  %v81 = vld [vmem:[%s1 + $0xf0] sm:$0xf]
  %v82 = vld [vmem:[%s1 + $0xf4] sm:$0xf]
  %v83 = vld [vmem:[%s1 + $0xf8] sm:$0xf]
  %v84 = vld [vmem:[%s1 + $0xfc] sm:$0xf]
  %v85 = vld [vmem:[%s1 + $0x100] sm:$0xf]
  %v86 = vld [vmem:[%s1 + $0x104] sm:$0xf]
  %v87 = vld [vmem:[%s1 + $0x108] sm:$0xf]
  %v88 = vld [vmem:[%s1 + $0x10c] sm:$0xf]
  %v89 = vld [vmem:[%s1 + $0x110] sm:$0xf]
  %v90 = vld [vmem:[%s1 + $0x114] sm:$0xf]
  %v91 = vld [vmem:[%s1 + $0x118] sm:$0xf]
  %v92 = vld [vmem:[%s1 + $0x11c] sm:$0xf]
  %v93 = vld [vmem:[%s2] sm:$0x1]
  %v95 = vlaneseq
  %v96 = vshrl.u32 %v95, 7
  %v97 = vsub.s32 0, %v96
  %v98 = vrot.slane %v93, %v97
  %v103 = vunpack.c.l.b16 %v18
  %v104 = vunpack.c.h.b16 %v18
  %v105 = vunpack.c.l.b16 %v19
  %v106 = vunpack.c.h.b16 %v19
  %v107 = vunpack.c.l.b16 %v20
  %v108 = vpack.c.b16 %v103, %v103
  %v109 = vpack.c.b16 %v104, %v104
  %v110 = vpack.c.b16 %v105, %v105
  %v111 = vpack.c.b16 %v106, %v106
  %v112 = vpack.c.b16 %v107, %v107
  %v189 = vunpack.c.l.b16 %v21
  %v190 = vunpack.c.l.b16 %v22
  %v191 = vunpack.c.l.b16 %v23
  %v192 = vunpack.c.l.b16 %v24
  %v193 = vunpack.c.l.b16 %v25
  %v194 = vunpack.c.l.b16 %v26
  %v195 = vunpack.c.l.b16 %v27
  %v196 = vunpack.c.l.b16 %v28
  %v197 = vunpack.c.l.b16 %v29
  %v198 = vunpack.c.l.b16 %v30
  %v199 = vunpack.c.l.b16 %v31
  %v200 = vunpack.c.l.b16 %v32
  %v201 = vunpack.c.l.b16 %v33
  %v202 = vunpack.c.l.b16 %v34
  %v203 = vunpack.c.l.b16 %v35
  %v204 = vunpack.c.l.b16 %v36
  %v205 = vunpack.c.l.b16 %v37
  %v206 = vunpack.c.l.b16 %v38
  %v207 = vunpack.c.l.b16 %v39
  %v208 = vunpack.c.l.b16 %v40
  %v209 = vunpack.c.l.b16 %v41
  %v210 = vunpack.c.l.b16 %v42
  %v211 = vunpack.c.l.b16 %v43
  %v212 = vunpack.c.l.b16 %v44
  %v213 = vunpack.c.l.b16 %v45
  %v214 = vunpack.c.l.b16 %v46
  %v215 = vunpack.c.l.b16 %v47
  %v216 = vunpack.c.l.b16 %v48
  %v217 = vunpack.c.l.b16 %v49
  %v218 = vunpack.c.l.b16 %v50
  %v219 = vunpack.c.l.b16 %v51
  %v220 = vunpack.c.l.b16 %v52
  %v221 = vunpack.c.l.b16 %v53
  %v222 = vunpack.c.l.b16 %v54
  %v223 = vunpack.c.l.b16 %v55
  %v224 = vunpack.c.l.b16 %v56
  %v225 = vunpack.c.l.b16 %v57
  %v226 = vunpack.c.l.b16 %v58
  %v227 = vunpack.c.l.b16 %v59
  %v228 = vunpack.c.l.b16 %v60
  %v229 = vunpack.c.l.b16 %v61
  %v230 = vunpack.c.l.b16 %v62
  %v231 = vunpack.c.l.b16 %v63
  %v232 = vunpack.c.l.b16 %v64
  %v233 = vunpack.c.l.b16 %v65
  %v234 = vunpack.c.l.b16 %v66
  %v235 = vunpack.c.l.b16 %v67
  %v236 = vunpack.c.l.b16 %v68
  %v237 = vunpack.c.l.b16 %v69
  %v238 = vunpack.c.l.b16 %v70
  %v239 = vunpack.c.l.b16 %v71
  %v240 = vunpack.c.l.b16 %v72
  %v241 = vunpack.c.l.b16 %v73
  %v242 = vunpack.c.l.b16 %v74
  %v243 = vunpack.c.l.b16 %v75
  %v244 = vunpack.c.l.b16 %v76
  %v245 = vunpack.c.l.b16 %v77
  %v246 = vunpack.c.l.b16 %v78
  %v247 = vunpack.c.l.b16 %v79
  %v248 = vunpack.c.l.b16 %v80
  %v249 = vunpack.c.l.b16 %v81
  %v250 = vunpack.c.l.b16 %v82
  %v251 = vunpack.c.l.b16 %v83
  %v252 = vunpack.c.l.b16 %v84
  %v253 = vunpack.c.l.b16 %v85
  %v254 = vunpack.c.l.b16 %v86
  %v255 = vunpack.c.l.b16 %v87
  %v256 = vunpack.c.l.b16 %v88
  %v257 = vunpack.c.l.b16 %v89
  %v258 = vunpack.c.l.b16 %v90
  %v259 = vunpack.c.l.b16 %v91
  %v260 = vunpack.c.l.b16 %v92
  %v261 = vpack.c.b16 %v190, %v189
  %v262 = vpack.c.b16 %v192, %v191
  %v263 = vpack.c.b16 %v194, %v193
  %v264 = vpack.c.b16 %v196, %v195
  %v265 = vpack.c.b16 %v198, %v197
  %v266 = vpack.c.b16 %v200, %v199
  %v267 = vpack.c.b16 %v202, %v201
  %v268 = vpack.c.b16 %v204, %v203
  %v269 = vpack.c.b16 %v206, %v205
  %v270 = vpack.c.b16 %v208, %v207
  %v271 = vpack.c.b16 %v210, %v209
  %v272 = vpack.c.b16 %v212, %v211
  %v273 = vpack.c.b16 %v214, %v213
  %v274 = vpack.c.b16 %v216, %v215
  %v275 = vpack.c.b16 %v218, %v217
  %v276 = vpack.c.b16 %v220, %v219
  %v277 = vpack.c.b16 %v222, %v221
  %v278 = vpack.c.b16 %v224, %v223
  %v279 = vpack.c.b16 %v226, %v225
  %v280 = vpack.c.b16 %v228, %v227
  %v281 = vpack.c.b16 %v230, %v229
  %v282 = vpack.c.b16 %v232, %v231
  %v283 = vpack.c.b16 %v234, %v233
  %v284 = vpack.c.b16 %v236, %v235
  %v285 = vpack.c.b16 %v238, %v237
  %v286 = vpack.c.b16 %v240, %v239
  %v287 = vpack.c.b16 %v242, %v241
  %v288 = vpack.c.b16 %v244, %v243
  %v289 = vpack.c.b16 %v246, %v245
  %v290 = vpack.c.b16 %v248, %v247
  %v291 = vpack.c.b16 %v250, %v249
  %v292 = vpack.c.b16 %v252, %v251
  %v293 = vpack.c.b16 %v254, %v253
  %v294 = vpack.c.b16 %v256, %v255
  %v295 = vpack.c.b16 %v258, %v257
  %v296 = vpack.c.b16 %v260, %v259
  %vm333 = vcmask 523264
  %v335 = vsel %vm333, %v112, 0
  %337 = vmatprep.subr.bf16.mxu0 0
  %338 = vmatpush1.bf16.msra.mxu0 %v261
  %339 = vmatprep.subr.bf16.mxu0 0
  %340 = vmatpush1.bf16.msra.mxu0 %v262
  %341 = vmatprep.subr.bf16.mxu0 0
  %342 = vmatpush1.bf16.msra.mxu0 %v263
  %343 = vmatprep.subr.bf16.mxu0 0
  %344 = vmatpush1.bf16.msra.mxu0 %v264
  %345 = vmatprep.subr.bf16.mxu0 0
  %346 = vmatpush1.bf16.msra.mxu0 %v265
  %347 = vmatprep.subr.bf16.mxu0 0
  %348 = vmatpush1.bf16.msra.mxu0 %v266
  %349 = vmatprep.subr.bf16.mxu0 0
  %350 = vmatpush1.bf16.msra.mxu0 %v267
  %351 = vmatprep.subr.bf16.mxu0 0
  %352 = vmatpush1.bf16.msra.mxu0 %v268
  %353 = vmatprep.subr.bf16.mxu0 0
  %354 = vmatpush1.bf16.msra.mxu0 %v269
  %355 = vmatprep.subr.bf16.mxu0 0
  %356 = vmatpush1.bf16.msra.mxu0 %v270
  %357 = vmatprep.subr.bf16.mxu0 0
  %358 = vmatpush1.bf16.msra.mxu0 %v271
  %359 = vmatprep.subr.bf16.mxu0 0
  %360 = vmatpush1.bf16.msra.mxu0 %v272
  %361 = vmatprep.subr.bf16.mxu0 0
  %362 = vmatpush1.bf16.msra.mxu0 %v273
  %363 = vmatprep.subr.bf16.mxu0 0
  %364 = vmatpush1.bf16.msra.mxu0 %v274
  %365 = vmatprep.subr.bf16.mxu0 0
  %366 = vmatpush1.bf16.msra.mxu0 %v275
  %367 = vmatprep.subr.bf16.mxu0 0
  %368 = vmatpush1.bf16.msra.mxu0 %v276
  %369 = vmatprep.mubr.bf16.mxu0 %v109
  %370 = vmatmul.mubr.bf16.gmra.mrb[0].mxu0 %v108
  %v371 = vpop.f32.mrb[0].mxu0
  %v372 = vadd.f32 %v98, %v371
  %v373 = vpop.f32.mrb[0].mxu0
  %v374 = vpop.f32.mrb[0].mxu0
  %v375 = vpop.f32.mrb[0].mxu0
  %376 = vdwg.mxu0
  %377 = vmatprep.subr.bf16.mxu0 0
  %378 = vmatpush1.bf16.msra.mxu0 %v277
  %379 = vmatprep.subr.bf16.mxu0 0
  %380 = vmatpush1.bf16.msra.mxu0 %v278
  %381 = vmatprep.subr.bf16.mxu0 0
  %382 = vmatpush1.bf16.msra.mxu0 %v279
  %383 = vmatprep.subr.bf16.mxu0 0
  %384 = vmatpush1.bf16.msra.mxu0 %v280
  %385 = vmatprep.subr.bf16.mxu0 0
  %386 = vmatpush1.bf16.msra.mxu0 %v281
  %387 = vmatprep.subr.bf16.mxu0 0
  %388 = vmatpush1.bf16.msra.mxu0 %v282
  %389 = vmatprep.subr.bf16.mxu0 0
  %390 = vmatpush1.bf16.msra.mxu0 %v283
  %391 = vmatprep.subr.bf16.mxu0 0
  %392 = vmatpush1.bf16.msra.mxu0 %v284
  %393 = vmatprep.subr.bf16.mxu0 0
  %394 = vmatpush1.bf16.msra.mxu0 %v285
  %395 = vmatprep.subr.bf16.mxu0 0
  %396 = vmatpush1.bf16.msra.mxu0 %v286
  %397 = vmatprep.subr.bf16.mxu0 0
  %398 = vmatpush1.bf16.msra.mxu0 %v287
  %399 = vmatprep.subr.bf16.mxu0 0
  %400 = vmatpush1.bf16.msra.mxu0 %v288
  %401 = vmatprep.subr.bf16.mxu0 0
  %402 = vmatpush1.bf16.msra.mxu0 %v289
  %403 = vmatprep.subr.bf16.mxu0 0
  %404 = vmatpush1.bf16.msra.mxu0 %v290
  %405 = vmatprep.subr.bf16.mxu0 0
  %406 = vmatpush1.bf16.msra.mxu0 %v291
  %407 = vmatprep.subr.bf16.mxu0 0
  %408 = vmatpush1.bf16.msra.mxu0 %v292
  %409 = vmatprep.mubr.bf16.mxu0 %v111
  %410 = vmatmul.mubr.bf16.gmra.mrb[0].mxu0 %v110
  %v411 = vpop.f32.mrb[0].mxu0
  %v412 = vadd.f32 %v372, %v411
  %v413 = vpop.f32.mrb[0].mxu0
  %v414 = vpop.f32.mrb[0].mxu0
  %v415 = vpop.f32.mrb[0].mxu0
  %416 = vdwg.mxu0
  %417 = vmatprep.subr.bf16.mxu0 0
  %418 = vmatpush1.bf16.msra.mxu0 %v293
  %419 = vmatprep.subr.bf16.mxu0 0
  %420 = vmatpush1.bf16.msra.mxu0 %v294
  %421 = vmatprep.subr.bf16.mxu0 0
  %422 = vmatpush1.bf16.msra.mxu0 %v295
  %423 = vmatprep.subr.bf16.mxu0 0
  %424 = vmatpush1.bf16.msra.mxu0 %v296
  %425 = vmatprep.subr.bf16.mxu0 0
  %426 = vmatpush1.bf16.msra.mxu0 0
  %427 = vmatprep.subr.bf16.mxu0 0
  %428 = vmatpush1.bf16.msra.mxu0 0
  %429 = vmatprep.subr.bf16.mxu0 0
  %430 = vmatpush1.bf16.msra.mxu0 0
  %431 = vmatprep.subr.bf16.mxu0 0
  %432 = vmatpush1.bf16.msra.mxu0 0
  %433 = vmatprep.subr.bf16.mxu0 0
  %434 = vmatpush1.bf16.msra.mxu0 0
  %435 = vmatprep.subr.bf16.mxu0 0
  %436 = vmatpush1.bf16.msra.mxu0 0
  %437 = vmatprep.subr.bf16.mxu0 0
  %438 = vmatpush1.bf16.msra.mxu0 0
  %439 = vmatprep.subr.bf16.mxu0 0
  %440 = vmatpush1.bf16.msra.mxu0 0
  %441 = vmatprep.subr.bf16.mxu0 0
  %442 = vmatpush1.bf16.msra.mxu0 0
  %443 = vmatprep.subr.bf16.mxu0 0
  %444 = vmatpush1.bf16.msra.mxu0 0
  %445 = vmatprep.subr.bf16.mxu0 0
  %446 = vmatpush1.bf16.msra.mxu0 0
  %447 = vmatprep.subr.bf16.mxu0 0
  %448 = vmatpush1.bf16.msra.mxu0 0
  %449 = vmatprep.mubr.bf16.mxu0 0
  %450 = vmatmul.mubr.bf16.gmra.mrb[0].mxu0 %v335
  %v451 = vpop.f32.mrb[0].mxu0
  %v452 = vadd.f32 %v412, %v451
  %v453 = vpop.f32.mrb[0].mxu0
  %v454 = vpop.f32.mrb[0].mxu0
  %v455 = vpop.f32.mrb[0].mxu0
  %456 = vdwg.mxu0
  %v457 = vld [vmem:[%s3] sm:$0xf]
  %v458 = vunpack.c.l.bf16 %v457
  %v459 = vadd.f32 %v452, %v458
  %v460 = vmax.f32 %v459, 0.0
  %v461 = vpack.c.bf16 %v460, %v460
  %462 = vst [vmem:[%s4] sm:$0xf] %v461
  // Predicated region
  $region18: #{resnet_forward.39} parent=0 // pred_check
    _
  $region19: #{resnet_forward.39} parent=0 // pred_check_branch
    %464 = sbr.rel (0) target = $region21
  $region20: #{resnet_forward.39} parent=0 // pred_region
    _
  $region21: #{resnet_forward.39} parent=0 // pred_fallthru
    _
  // Predicated region
  $region22: #{resnet_forward.39} parent=0 // pred_check
    _
  $region23: #{resnet_forward.39} parent=0 // pred_check_branch
    %466 = sbr.rel (0) target = $region25
  $region24: #{resnet_forward.39} parent=0 // pred_region
    _
  $region25: #{resnet_forward.39} parent=0 // pred_fallthru
    _

// kernel: resnet_forward.43
$region0: #{resnet_forward.43}
  #allocation0 [shape = 'u32[]', space=smem, size = 0x4, offset = 0x4, fixed_abs, tag = 'smem constant byte address 0x4 - core index']
  #allocation1 [shape = 'u32[144,128]{1,0:T(1,128)}', space=vmem, size = 0x12000, scoped, tag = 'internal scratch']
  %s0 = inlined_call_operand.vmem [shape: bf16[8,64], index: 0, kind: input, shape index: {}]
  %s1 = inlined_call_operand.vmem [shape: bf16[64,128], index: 1, kind: input, shape index: {}]
  %s2 = inlined_call_operand.vmem [shape: f32[1,128], index: 2, kind: input, shape index: {}]
  %s3 = inlined_call_operand.vmem [shape: bf16[8,128], index: 3, kind: output, shape index: {}]
  %s4 = sld [smem:[#allocation0]]
  $region22: #{resnet_forward.43} parent=0
    _
  %s6 = ssub.s32 1, %s4
  %s7 = scalar_select 0, %s6, %s4
  // Predicated region
  $region2: #{resnet_forward.43} parent=0 // pred_check
    _
  $region3: #{resnet_forward.43} parent=0 // pred_check_branch
    %9 = sbr.rel (0) target = $region5
  $region4: #{resnet_forward.43} parent=0 // pred_region
    _
  $region5: #{resnet_forward.43} parent=0 // pred_fallthru
    _
  // Predicated region
  $region6: #{resnet_forward.43} parent=0 // pred_check
    _
  $region7: #{resnet_forward.43} parent=0 // pred_check_branch
    %11 = sbr.rel (0) target = $region9
  $region8: #{resnet_forward.43} parent=0 // pred_region
    _
  $region9: #{resnet_forward.43} parent=0 // pred_fallthru
    _
  // Predicated region
  $region10: #{resnet_forward.43} parent=0 // pred_check
    _
  $region11: #{resnet_forward.43} parent=0 // pred_check_branch
    %13 = sbr.rel (0) target = $region13
  $region12: #{resnet_forward.43} parent=0 // pred_region
    _
  $region13: #{resnet_forward.43} parent=0 // pred_fallthru
    _
  %v15 = vld [vmem:[%s0] sm:$0xf]
  %v16 = vld [vmem:[%s1] sm:$0xf]
  %v17 = vld [vmem:[%s1 + $0x4] sm:$0xf]
  %v18 = vld [vmem:[%s1 + $0x8] sm:$0xf]
  %v19 = vld [vmem:[%s1 + $0xc] sm:$0xf]
  %v20 = vld [vmem:[%s1 + $0x10] sm:$0xf]
  %v21 = vld [vmem:[%s1 + $0x14] sm:$0xf]
  %v22 = vld [vmem:[%s1 + $0x18] sm:$0xf]
  %v23 = vld [vmem:[%s1 + $0x1c] sm:$0xf]
  %v24 = vld [vmem:[%s2] sm:$0x1]
  %v26 = vlaneseq
  %v27 = vshrl.u32 %v26, 7
  %v28 = vsub.s32 0, %v27
  %v29 = vrot.slane %v24, %v28
  %v39 = vunpack.c.l.b16 %v16
  %v40 = vunpack.c.l.b16 %v17
  %v41 = vunpack.c.l.b16 %v18
  %v42 = vunpack.c.l.b16 %v19
  %v43 = vunpack.c.l.b16 %v20
  %v44 = vunpack.c.l.b16 %v21
  %v45 = vunpack.c.l.b16 %v22
  %v46 = vunpack.c.l.b16 %v23
  %v47 = vpack.c.b16 %v40, %v39
  %v48 = vpack.c.b16 %v42, %v41
  %v49 = vpack.c.b16 %v44, %v43
  %v50 = vpack.c.b16 %v46, %v45
  %vm55 = vcmask 523264
  %v57 = vsel %vm55, %v15, 0
  %59 = vmatprep.subr.bf16.mxu0 0
  %60 = vmatpush1.bf16.msra.mxu0 %v47
  %61 = vmatprep.subr.bf16.mxu0 0
  %62 = vmatpush1.bf16.msra.mxu0 %v48
  %63 = vmatprep.subr.bf16.mxu0 0
  %64 = vmatpush1.bf16.msra.mxu0 %v49
  %65 = vmatprep.subr.bf16.mxu0 0
  %66 = vmatpush1.bf16.msra.mxu0 %v50
  %67 = vmatprep.subr.bf16.mxu0 0
  %68 = vmatpush1.bf16.msra.mxu0 0
  %69 = vmatprep.subr.bf16.mxu0 0
  %70 = vmatpush1.bf16.msra.mxu0 0
  %71 = vmatprep.subr.bf16.mxu0 0
  %72 = vmatpush1.bf16.msra.mxu0 0
  %73 = vmatprep.subr.bf16.mxu0 0
  %74 = vmatpush1.bf16.msra.mxu0 0
  %75 = vmatprep.subr.bf16.mxu0 0
  %76 = vmatpush1.bf16.msra.mxu0 0
  %77 = vmatprep.subr.bf16.mxu0 0
  %78 = vmatpush1.bf16.msra.mxu0 0
  %79 = vmatprep.subr.bf16.mxu0 0
  %80 = vmatpush1.bf16.msra.mxu0 0
  %81 = vmatprep.subr.bf16.mxu0 0
  %82 = vmatpush1.bf16.msra.mxu0 0
  %83 = vmatprep.subr.bf16.mxu0 0
  %84 = vmatpush1.bf16.msra.mxu0 0
  %85 = vmatprep.subr.bf16.mxu0 0
  %86 = vmatpush1.bf16.msra.mxu0 0
  %87 = vmatprep.subr.bf16.mxu0 0
  %88 = vmatpush1.bf16.msra.mxu0 0
  %89 = vmatprep.subr.bf16.mxu0 0
  %90 = vmatpush1.bf16.msra.mxu0 0
  %91 = vmatprep.mubr.bf16.mxu0 0
  %92 = vmatmul.mubr.bf16.gmra.mrb[0].mxu0 %v57
  %v93 = vpop.f32.mrb[0].mxu0
  %v94 = vadd.f32 %v29, %v93
  %v95 = vpop.f32.mrb[0].mxu0
  %v96 = vpop.f32.mrb[0].mxu0
  %v97 = vpop.f32.mrb[0].mxu0
  %98 = vdwg.mxu0
  %v99 = vpack.c.bf16 %v94, %v94
  %100 = vst [vmem:[%s3] sm:$0xf] %v99
  // Predicated region
  $region14: #{resnet_forward.43} parent=0 // pred_check
    _
  $region15: #{resnet_forward.43} parent=0 // pred_check_branch
    %102 = sbr.rel (0) target = $region17
  $region16: #{resnet_forward.43} parent=0 // pred_region
    _
  $region17: #{resnet_forward.43} parent=0 // pred_fallthru
    _
  // Predicated region
  $region18: #{resnet_forward.43} parent=0 // pred_check
    _
  $region19: #{resnet_forward.43} parent=0 // pred_check_branch
    %104 = sbr.rel (0) target = $region21
  $region20: #{resnet_forward.43} parent=0 // pred_region
    _
  $region21: #{resnet_forward.43} parent=0 // pred_fallthru
    _

// kernel: resnet_forward.47
$region0: #{resnet_forward.47}
  #allocation0 [shape = 'u32[]', space=smem, size = 0x4, offset = 0x4, fixed_abs, tag = 'smem constant byte address 0x4 - core index']
  #allocation1 [shape = 'u32[144,128]{1,0:T(1,128)}', space=vmem, size = 0x12000, scoped, tag = 'internal scratch']
  %s0 = inlined_call_operand.vmem [shape: bf16[8,1,128], index: 0, kind: input, shape index: {}]
  %s1 = inlined_call_operand.vmem [shape: f32[128,128], index: 1, kind: input, shape index: {}]
  %s2 = inlined_call_operand.vmem [shape: f32[1,128], index: 2, kind: input, shape index: {}]
  %s3 = inlined_call_operand.vmem [shape: f32[8,128], index: 3, kind: output, shape index: {}]
  %s4 = sld [smem:[#allocation0]]
  $region22: #{resnet_forward.47} parent=0
    _
  %s6 = ssub.s32 1, %s4
  %s7 = scalar_select 0, %s6, %s4
  // Predicated region
  $region2: #{resnet_forward.47} parent=0 // pred_check
    _
  $region3: #{resnet_forward.47} parent=0 // pred_check_branch
    %9 = sbr.rel (0) target = $region5
  $region4: #{resnet_forward.47} parent=0 // pred_region
    _
  $region5: #{resnet_forward.47} parent=0 // pred_fallthru
    _
  // Predicated region
  $region6: #{resnet_forward.47} parent=0 // pred_check
    _
  $region7: #{resnet_forward.47} parent=0 // pred_check_branch
    %11 = sbr.rel (0) target = $region9
  $region8: #{resnet_forward.47} parent=0 // pred_region
    _
  $region9: #{resnet_forward.47} parent=0 // pred_fallthru
    _
  // Predicated region
  $region10: #{resnet_forward.47} parent=0 // pred_check
    _
  $region11: #{resnet_forward.47} parent=0 // pred_check_branch
    %13 = sbr.rel (0) target = $region13
  $region12: #{resnet_forward.47} parent=0 // pred_region
    _
  $region13: #{resnet_forward.47} parent=0 // pred_fallthru
    _
  %v14 = vld [vmem:[%s0] sm:$0x1]
  %v15 = vld [vmem:[%s0 + $0x1] sm:$0x1]
  %v16 = vld [vmem:[%s0 + $0x2] sm:$0x1]
  %v17 = vld [vmem:[%s0 + $0x3] sm:$0x1]
  %v18 = vld [vmem:[%s0 + $0x4] sm:$0x1]
  %v19 = vld [vmem:[%s0 + $0x5] sm:$0x1]
  %v20 = vld [vmem:[%s0 + $0x6] sm:$0x1]
  %v21 = vld [vmem:[%s0 + $0x7] sm:$0x1]
  %v22 = vunpack.c.l.bf16 %v14
  %v23 = vunpack.c.l.bf16 %v15
  %v24 = vunpack.c.l.bf16 %v16
  %v25 = vunpack.c.l.bf16 %v17
  %v26 = vunpack.c.l.bf16 %v18
  %v27 = vunpack.c.l.bf16 %v19
  %v28 = vunpack.c.l.bf16 %v20
  %v29 = vunpack.c.l.bf16 %v21
  %v30 = vadd.f32 %v22, 0.0
  %v31 = vadd.f32 %v23, 0.0
  %v32 = vadd.f32 %v24, 0.0
  %v33 = vadd.f32 %v25, 0.0
  %v34 = vadd.f32 %v26, 0.0
  %v35 = vadd.f32 %v27, 0.0
  %v36 = vadd.f32 %v28, 0.0
  %v37 = vadd.f32 %v29, 0.0
  %v38 = vld [vmem:[%s1] sm:$0xff]
  %v39 = vld [vmem:[%s1 + $0x8] sm:$0xff]
  %v40 = vld [vmem:[%s1 + $0x10] sm:$0xff]
  %v41 = vld [vmem:[%s1 + $0x18] sm:$0xff]
  %v42 = vld [vmem:[%s1 + $0x20] sm:$0xff]
  %v43 = vld [vmem:[%s1 + $0x28] sm:$0xff]
  %v44 = vld [vmem:[%s1 + $0x30] sm:$0xff]
  %v45 = vld [vmem:[%s1 + $0x38] sm:$0xff]
  %v46 = vld [vmem:[%s1 + $0x40] sm:$0xff]
  %v47 = vld [vmem:[%s1 + $0x48] sm:$0xff]
  %v48 = vld [vmem:[%s1 + $0x50] sm:$0xff]
  %v49 = vld [vmem:[%s1 + $0x58] sm:$0xff]
  %v50 = vld [vmem:[%s1 + $0x60] sm:$0xff]
  %v51 = vld [vmem:[%s1 + $0x68] sm:$0xff]
  %v52 = vld [vmem:[%s1 + $0x70] sm:$0xff]
  %v53 = vld [vmem:[%s1 + $0x78] sm:$0xff]
  %v54 = vld [vmem:[%s2] sm:$0x1]
  %v56 = vlaneseq
  %v57 = vshrl.u32 %v56, 7
  %v58 = vsub.s32 0, %v57
  %v59 = vrot.slane %v54, %v58
  %v69 = vlaneseq
  %v70 = vshrl.u32 %v69, 7
  %v71 = vsub.s32 0, %v70
  %v72 = vrot.slane %v30, %v71
  %v73 = vlaneseq
  %v74 = vshrl.u32 %v73, 7
  %v75 = vsub.s32 0, %v74
  %v76 = vrot.slane %v31, %v75
  %v77 = vlaneseq
  %v78 = vshrl.u32 %v77, 7
  %v79 = vsub.s32 0, %v78
  %v80 = vrot.slane %v32, %v79
  %v81 = vlaneseq
  %v82 = vshrl.u32 %v81, 7
  %v83 = vsub.s32 0, %v82
  %v84 = vrot.slane %v33, %v83
  %v85 = vlaneseq
  %v86 = vshrl.u32 %v85, 7
  %v87 = vsub.s32 0, %v86
  %v88 = vrot.slane %v34, %v87
  %v89 = vlaneseq
  %v90 = vshrl.u32 %v89, 7
  %v91 = vsub.s32 0, %v90
  %v92 = vrot.slane %v35, %v91
  %v93 = vlaneseq
  %v94 = vshrl.u32 %v93, 7
  %v95 = vsub.s32 0, %v94
  %v96 = vrot.slane %v36, %v95
  %v97 = vlaneseq
  %v98 = vshrl.u32 %v97, 7
  %v99 = vsub.s32 0, %v98
  %v100 = vrot.slane %v37, %v99
  %vm101 = vcmask 1041409
  %v102 = vsel %vm101, %v76, %v72
  %vm103 = vcmask 1042434
  %v104 = vsel %vm103, %v80, %v102
  %vm105 = vcmask 1043459
  %v106 = vsel %vm105, %v84, %v104
  %vm107 = vcmask 1044484
  %v108 = vsel %vm107, %v88, %v106
  %vm109 = vcmask 1045509
  %v110 = vsel %vm109, %v92, %v108
  %vm111 = vcmask 1046534
  %v112 = vsel %vm111, %v96, %v110
  %vm113 = vcmask 1047559
  %v114 = vsel %vm113, %v100, %v112
  %116 = vmatprep.subr.mxu0 0.0
  %117 = vmatpush1.msra.mxu0 %v38
  %118 = vmatprep.subr.mxu0 0.0
  %119 = vmatpush1.msra.mxu0 %v39
  %120 = vmatprep.subr.mxu0 0.0
  %121 = vmatpush1.msra.mxu0 %v40
  %122 = vmatprep.subr.mxu0 0.0
  %123 = vmatpush1.msra.mxu0 %v41
  %124 = vmatprep.subr.mxu0 0.0
  %125 = vmatpush1.msra.mxu0 %v42
  %126 = vmatprep.subr.mxu0 0.0
  %127 = vmatpush1.msra.mxu0 %v43
  %128 = vmatprep.subr.mxu0 0.0
  %129 = vmatpush1.msra.mxu0 %v44
  %130 = vmatprep.subr.mxu0 0.0
  %131 = vmatpush1.msra.mxu0 %v45
  %132 = vmatprep.subr.mxu0 0.0
  %133 = vmatpush1.msra.mxu0 %v46
  %134 = vmatprep.subr.mxu0 0.0
  %135 = vmatpush1.msra.mxu0 %v47
  %136 = vmatprep.subr.mxu0 0.0
  %137 = vmatpush1.msra.mxu0 %v48
  %138 = vmatprep.subr.mxu0 0.0
  %139 = vmatpush1.msra.mxu0 %v49
  %140 = vmatprep.subr.mxu0 0.0
  %141 = vmatpush1.msra.mxu0 %v50
  %142 = vmatprep.subr.mxu0 0.0
  %143 = vmatpush1.msra.mxu0 %v51
  %144 = vmatprep.subr.mxu0 0.0
  %145 = vmatpush1.msra.mxu0 %v52
  %146 = vmatprep.subr.mxu0 0.0
  %147 = vmatpush1.msra.mxu0 %v53
  %148 = vmatprep.subr.mxu0 0.0
  %149 = vmatpush1.msra.mxu0 0.0
  %150 = vmatprep.subr.mxu0 0.0
  %151 = vmatpush1.msra.mxu0 0.0
  %152 = vmatprep.subr.mxu0 0.0
  %153 = vmatpush1.msra.mxu0 0.0
  %154 = vmatprep.subr.mxu0 0.0
  %155 = vmatpush1.msra.mxu0 0.0
  %156 = vmatprep.subr.mxu0 0.0
  %157 = vmatpush1.msra.mxu0 0.0
  %158 = vmatprep.subr.mxu0 0.0
  %159 = vmatpush1.msra.mxu0 0.0
  %160 = vmatprep.subr.mxu0 0.0
  %161 = vmatpush1.msra.mxu0 0.0
  %162 = vmatprep.subr.mxu0 0.0
  %163 = vmatpush1.msra.mxu0 0.0
  %164 = vmatprep.subr.mxu0 0.0
  %165 = vmatpush1.msra.mxu0 0.0
  %166 = vmatprep.subr.mxu0 0.0
  %167 = vmatpush1.msra.mxu0 0.0
  %168 = vmatprep.subr.mxu0 0.0
  %169 = vmatpush1.msra.mxu0 0.0
  %170 = vmatprep.subr.mxu0 0.0
  %171 = vmatpush1.msra.mxu0 0.0
  %172 = vmatprep.subr.mxu0 0.0
  %173 = vmatpush1.msra.mxu0 0.0
  %174 = vmatprep.subr.mxu0 0.0
  %175 = vmatpush1.msra.mxu0 0.0
  %176 = vmatprep.subr.mxu0 0.0
  %177 = vmatpush1.msra.mxu0 0.0
  %178 = vmatprep.subr.mxu0 0.0
  %179 = vmatpush1.msra.mxu0 0.0
  %180 = vmatprep.mubr.f32.mxu0 0.0
  %181 = vmatmul.mubr.f32.gmra.mrb[0].mxu0 %v114
  %v182 = vpop.f32.mrb[0].mxu0
  %v183 = vadd.f32 %v59, %v182
  %v184 = vpop.f32.mrb[0].mxu0
  %185 = vdwg.mxu0
  %186 = vst [vmem:[%s3] sm:$0xff] %v183
  // Predicated region
  $region14: #{resnet_forward.47} parent=0 // pred_check
    _
  $region15: #{resnet_forward.47} parent=0 // pred_check_branch
    %188 = sbr.rel (0) target = $region17
  $region16: #{resnet_forward.47} parent=0 // pred_region
    _
  $region17: #{resnet_forward.47} parent=0 // pred_fallthru
    _
  // Predicated region
  $region18: #{resnet_forward.47} parent=0 // pred_check
    _
  $region19: #{resnet_forward.47} parent=0 // pred_check_branch
    %190 = sbr.rel (0) target = $region21
  $region20: #{resnet_forward.47} parent=0 // pred_region
    _
  $region21: #{resnet_forward.47} parent=0 // pred_fallthru
    _

// kernel: resnet_forward.44
$region0: #{resnet_forward.44}
  #allocation0 [shape = 'u32[]', space=smem, size = 0x4, offset = 0x4, fixed_abs, tag = 'smem constant byte address 0x4 - core index']
  #allocation1 [shape = 'u32[144,128]{1,0:T(1,128)}', space=vmem, size = 0x12000, scoped, tag = 'internal scratch']
  %s0 = inlined_call_operand.vmem [shape: bf16[8,1152], index: 0, kind: input, shape index: {}]
  %s1 = inlined_call_operand.vmem [shape: bf16[1152,128], index: 1, kind: input, shape index: {}]
  %s2 = inlined_call_operand.vmem [shape: f32[1,128], index: 2, kind: input, shape index: {}]
  %s3 = inlined_call_operand.vmem [shape: bf16[8,128], index: 3, kind: input, shape index: {}, may-alias: {3,4}]
  %s4 = inlined_call_operand.vmem [shape: bf16[8,128], index: 4, kind: output, shape index: {}, may-alias: {3,4}]
  %s5 = sld [smem:[#allocation0]]
  $region26: #{resnet_forward.44} parent=0
    _
  %s7 = ssub.s32 1, %s5
  %s8 = scalar_select 0, %s7, %s5
  // Predicated region
  $region2: #{resnet_forward.44} parent=0 // pred_check
    _
  $region3: #{resnet_forward.44} parent=0 // pred_check_branch
    %10 = sbr.rel (0) target = $region5
  $region4: #{resnet_forward.44} parent=0 // pred_region
    _
  $region5: #{resnet_forward.44} parent=0 // pred_fallthru
    _
  // Predicated region
  $region6: #{resnet_forward.44} parent=0 // pred_check
    _
  $region7: #{resnet_forward.44} parent=0 // pred_check_branch
    %12 = sbr.rel (0) target = $region9
  $region8: #{resnet_forward.44} parent=0 // pred_region
    _
  $region9: #{resnet_forward.44} parent=0 // pred_fallthru
    _
  // Predicated region
  $region10: #{resnet_forward.44} parent=0 // pred_check
    _
  $region11: #{resnet_forward.44} parent=0 // pred_check_branch
    %14 = sbr.rel (0) target = $region13
  $region12: #{resnet_forward.44} parent=0 // pred_region
    _
  $region13: #{resnet_forward.44} parent=0 // pred_fallthru
    _
  // Predicated region
  $region14: #{resnet_forward.44} parent=0 // pred_check
    _
  $region15: #{resnet_forward.44} parent=0 // pred_check_branch
    %16 = sbr.rel (0) target = $region17
  $region16: #{resnet_forward.44} parent=0 // pred_region
    _
  $region17: #{resnet_forward.44} parent=0 // pred_fallthru
    _
  %v18 = vld [vmem:[%s0] sm:$0xff]
  %v19 = vld [vmem:[%s0 + $0x8] sm:$0xff]
  %v20 = vld [vmem:[%s0 + $0x10] sm:$0xff]
  %v21 = vld [vmem:[%s0 + $0x18] sm:$0xff]
  %v22 = vld [vmem:[%s0 + $0x20] sm:$0xf]
  %v23 = vld [vmem:[%s1] sm:$0xf]
  %v24 = vld [vmem:[%s1 + $0x4] sm:$0xf]
  %v25 = vld [vmem:[%s1 + $0x8] sm:$0xf]
  %v26 = vld [vmem:[%s1 + $0xc] sm:$0xf]
  %v27 = vld [vmem:[%s1 + $0x10] sm:$0xf]
  %v28 = vld [vmem:[%s1 + $0x14] sm:$0xf]
  %v29 = vld [vmem:[%s1 + $0x18] sm:$0xf]
  %v30 = vld [vmem:[%s1 + $0x1c] sm:$0xf]
  %v31 = vld [vmem:[%s1 + $0x20] sm:$0xf]
  %v32 = vld [vmem:[%s1 + $0x24] sm:$0xf]
  %v33 = vld [vmem:[%s1 + $0x28] sm:$0xf]
  %v34 = vld [vmem:[%s1 + $0x2c] sm:$0xf]
  %v35 = vld [vmem:[%s1 + $0x30] sm:$0xf]
  %v36 = vld [vmem:[%s1 + $0x34] sm:$0xf]
  %v37 = vld [vmem:[%s1 + $0x38] sm:$0xf]
  %v38 = vld [vmem:[%s1 + $0x3c] sm:$0xf]
  %v39 = vld [vmem:[%s1 + $0x40] sm:$0xf]
  %v40 = vld [vmem:[%s1 + $0x44] sm:$0xf]
  %v41 = vld [vmem:[%s1 + $0x48] sm:$0xf]
  %v42 = vld [vmem:[%s1 + $0x4c] sm:$0xf]
  %v43 = vld [vmem:[%s1 + $0x50] sm:$0xf]
  %v44 = vld [vmem:[%s1 + $0x54] sm:$0xf]
  %v45 = vld [vmem:[%s1 + $0x58] sm:$0xf]
  %v46 = vld [vmem:[%s1 + $0x5c] sm:$0xf]
  %v47 = vld [vmem:[%s1 + $0x60] sm:$0xf]
  %v48 = vld [vmem:[%s1 + $0x64] sm:$0xf]
  %v49 = vld [vmem:[%s1 + $0x68] sm:$0xf]
  %v50 = vld [vmem:[%s1 + $0x6c] sm:$0xf]
  %v51 = vld [vmem:[%s1 + $0x70] sm:$0xf]
  %v52 = vld [vmem:[%s1 + $0x74] sm:$0xf]
  %v53 = vld [vmem:[%s1 + $0x78] sm:$0xf]
  %v54 = vld [vmem:[%s1 + $0x7c] sm:$0xf]
  %v55 = vld [vmem:[%s1 + $0x80] sm:$0xf]
  %v56 = vld [vmem:[%s1 + $0x84] sm:$0xf]
  %v57 = vld [vmem:[%s1 + $0x88] sm:$0xf]
  %v58 = vld [vmem:[%s1 + $0x8c] sm:$0xf]
  %v59 = vld [vmem:[%s1 + $0x90] sm:$0xf]
  %v60 = vld [vmem:[%s1 + $0x94] sm:$0xf]
  %v61 = vld [vmem:[%s1 + $0x98] sm:$0xf]
  %v62 = vld [vmem:[%s1 + $0x9c] sm:$0xf]
  %v63 = vld [vmem:[%s1 + $0xa0] sm:$0xf]
  %v64 = vld [vmem:[%s1 + $0xa4] sm:$0xf]
  %v65 = vld [vmem:[%s1 + $0xa8] sm:$0xf]
  %v66 = vld [vmem:[%s1 + $0xac] sm:$0xf]
  %v67 = vld [vmem:[%s1 + $0xb0] sm:$0xf]
  %v68 = vld [vmem:[%s1 + $0xb4] sm:$0xf]
  %v69 = vld [vmem:[%s1 + $0xb8] sm:$0xf]
  %v70 = vld [vmem:[%s1 + $0xbc] sm:$0xf]
  %v71 = vld [vmem:[%s1 + $0xc0] sm:$0xf]
  %v72 = vld [vmem:[%s1 + $0xc4] sm:$0xf]
  %v73 = vld [vmem:[%s1 + $0xc8] sm:$0xf]
  %v74 = vld [vmem:[%s1 + $0xcc] sm:$0xf]
  %v75 = vld [vmem:[%s1 + $0xd0] sm:$0xf]
  %v76 = vld [vmem:[%s1 + $0xd4] sm:$0xf]
  %v77 = vld [vmem:[%s1 + $0xd8] sm:$0xf]
  %v78 = vld [vmem:[%s1 + $0xdc] sm:$0xf]
  %v79 = vld [vmem:[%s1 + $0xe0] sm:$0xf]
  %v80 = vld [vmem:[%s1 + $0xe4] sm:$0xf]
  %v81 = vld [vmem:[%s1 + $0xe8] sm:$0xf]
  %v82 = vld [vmem:[%s1 + $0xec] sm:$0xf]
  %v83 = vld [vmem:[%s1 + $0xf0] sm:$0xf]
  %v84 = vld [vmem:[%s1 + $0xf4] sm:$0xf]
  %v85 = vld [vmem:[%s1 + $0xf8] sm:$0xf]
  %v86 = vld [vmem:[%s1 + $0xfc] sm:$0xf]
  %v87 = vld [vmem:[%s1 + $0x100] sm:$0xf]
  %v88 = vld [vmem:[%s1 + $0x104] sm:$0xf]
  %v89 = vld [vmem:[%s1 + $0x108] sm:$0xf]
  %v90 = vld [vmem:[%s1 + $0x10c] sm:$0xf]
  %v91 = vld [vmem:[%s1 + $0x110] sm:$0xf]
  %v92 = vld [vmem:[%s1 + $0x114] sm:$0xf]
  %v93 = vld [vmem:[%s1 + $0x118] sm:$0xf]
  %v94 = vld [vmem:[%s1 + $0x11c] sm:$0xf]
  %v95 = vld [vmem:[%s1 + $0x120] sm:$0xf]
  %v96 = vld [vmem:[%s1 + $0x124] sm:$0xf]
  %v97 = vld [vmem:[%s1 + $0x128] sm:$0xf]
  %v98 = vld [vmem:[%s1 + $0x12c] sm:$0xf]
  %v99 = vld [vmem:[%s1 + $0x130] sm:$0xf]
  %v100 = vld [vmem:[%s1 + $0x134] sm:$0xf]
  %v101 = vld [vmem:[%s1 + $0x138] sm:$0xf]
  %v102 = vld [vmem:[%s1 + $0x13c] sm:$0xf]
  %v103 = vld [vmem:[%s1 + $0x140] sm:$0xf]
  %v104 = vld [vmem:[%s1 + $0x144] sm:$0xf]
  %v105 = vld [vmem:[%s1 + $0x148] sm:$0xf]
  %v106 = vld [vmem:[%s1 + $0x14c] sm:$0xf]
  %v107 = vld [vmem:[%s1 + $0x150] sm:$0xf]
  %v108 = vld [vmem:[%s1 + $0x154] sm:$0xf]
  %v109 = vld [vmem:[%s1 + $0x158] sm:$0xf]
  %v110 = vld [vmem:[%s1 + $0x15c] sm:$0xf]
  %v111 = vld [vmem:[%s1 + $0x160] sm:$0xf]
  %v112 = vld [vmem:[%s1 + $0x164] sm:$0xf]
  %v113 = vld [vmem:[%s1 + $0x168] sm:$0xf]
  %v114 = vld [vmem:[%s1 + $0x16c] sm:$0xf]
  %v115 = vld [vmem:[%s1 + $0x170] sm:$0xf]
  %v116 = vld [vmem:[%s1 + $0x174] sm:$0xf]
  %v117 = vld [vmem:[%s1 + $0x178] sm:$0xf]
  %v118 = vld [vmem:[%s1 + $0x17c] sm:$0xf]
  %v119 = vld [vmem:[%s1 + $0x180] sm:$0xf]
  %v120 = vld [vmem:[%s1 + $0x184] sm:$0xf]
  %v121 = vld [vmem:[%s1 + $0x188] sm:$0xf]
  %v122 = vld [vmem:[%s1 + $0x18c] sm:$0xf]
  %v123 = vld [vmem:[%s1 + $0x190] sm:$0xf]
  %v124 = vld [vmem:[%s1 + $0x194] sm:$0xf]
  %v125 = vld [vmem:[%s1 + $0x198] sm:$0xf]
  %v126 = vld [vmem:[%s1 + $0x19c] sm:$0xf]
  %v127 = vld [vmem:[%s1 + $0x1a0] sm:$0xf]
  %v128 = vld [vmem:[%s1 + $0x1a4] sm:$0xf]
  %v129 = vld [vmem:[%s1 + $0x1a8] sm:$0xf]
  %v130 = vld [vmem:[%s1 + $0x1ac] sm:$0xf]
  %v131 = vld [vmem:[%s1 + $0x1b0] sm:$0xf]
  %v132 = vld [vmem:[%s1 + $0x1b4] sm:$0xf]
  %v133 = vld [vmem:[%s1 + $0x1b8] sm:$0xf]
  %v134 = vld [vmem:[%s1 + $0x1bc] sm:$0xf]
  %v135 = vld [vmem:[%s1 + $0x1c0] sm:$0xf]
  %v136 = vld [vmem:[%s1 + $0x1c4] sm:$0xf]
  %v137 = vld [vmem:[%s1 + $0x1c8] sm:$0xf]
  %v138 = vld [vmem:[%s1 + $0x1cc] sm:$0xf]
  %v139 = vld [vmem:[%s1 + $0x1d0] sm:$0xf]
  %v140 = vld [vmem:[%s1 + $0x1d4] sm:$0xf]
  %v141 = vld [vmem:[%s1 + $0x1d8] sm:$0xf]
  %v142 = vld [vmem:[%s1 + $0x1dc] sm:$0xf]
  %v143 = vld [vmem:[%s1 + $0x1e0] sm:$0xf]
  %v144 = vld [vmem:[%s1 + $0x1e4] sm:$0xf]
  %v145 = vld [vmem:[%s1 + $0x1e8] sm:$0xf]
  %v146 = vld [vmem:[%s1 + $0x1ec] sm:$0xf]
  %v147 = vld [vmem:[%s1 + $0x1f0] sm:$0xf]
  %v148 = vld [vmem:[%s1 + $0x1f4] sm:$0xf]
  %v149 = vld [vmem:[%s1 + $0x1f8] sm:$0xf]
  %v150 = vld [vmem:[%s1 + $0x1fc] sm:$0xf]
  %v151 = vld [vmem:[%s1 + $0x200] sm:$0xf]
  %v152 = vld [vmem:[%s1 + $0x204] sm:$0xf]
  %v153 = vld [vmem:[%s1 + $0x208] sm:$0xf]
  %v154 = vld [vmem:[%s1 + $0x20c] sm:$0xf]
  %v155 = vld [vmem:[%s1 + $0x210] sm:$0xf]
  %v156 = vld [vmem:[%s1 + $0x214] sm:$0xf]
  %v157 = vld [vmem:[%s1 + $0x218] sm:$0xf]
  %v158 = vld [vmem:[%s1 + $0x21c] sm:$0xf]
  %v159 = vld [vmem:[%s1 + $0x220] sm:$0xf]
  %v160 = vld [vmem:[%s1 + $0x224] sm:$0xf]
  %v161 = vld [vmem:[%s1 + $0x228] sm:$0xf]
  %v162 = vld [vmem:[%s1 + $0x22c] sm:$0xf]
  %v163 = vld [vmem:[%s1 + $0x230] sm:$0xf]
  %v164 = vld [vmem:[%s1 + $0x234] sm:$0xf]
  %v165 = vld [vmem:[%s1 + $0x238] sm:$0xf]
  %v166 = vld [vmem:[%s1 + $0x23c] sm:$0xf]
  %v167 = vld [vmem:[%s2] sm:$0x1]
  %v169 = vlaneseq
  %v170 = vshrl.u32 %v169, 7
  %v171 = vsub.s32 0, %v170
  %v172 = vrot.slane %v167, %v171
  %v179 = vunpack.c.l.b16 %v18
  %v180 = vunpack.c.h.b16 %v18
  %v181 = vunpack.c.l.b16 %v19
  %v182 = vunpack.c.h.b16 %v19
  %v183 = vunpack.c.l.b16 %v20
  %v184 = vunpack.c.h.b16 %v20
  %v185 = vunpack.c.l.b16 %v21
  %v186 = vunpack.c.h.b16 %v21
  %v187 = vunpack.c.l.b16 %v22
  %v188 = vpack.c.b16 %v179, %v179
  %v189 = vpack.c.b16 %v180, %v180
  %v190 = vpack.c.b16 %v181, %v181
  %v191 = vpack.c.b16 %v182, %v182
  %v192 = vpack.c.b16 %v183, %v183
  %v193 = vpack.c.b16 %v184, %v184
  %v194 = vpack.c.b16 %v185, %v185
  %v195 = vpack.c.b16 %v186, %v186
  %v196 = vpack.c.b16 %v187, %v187
  %v350 = vunpack.c.l.b16 %v23
  %v351 = vunpack.c.l.b16 %v24
  %v352 = vunpack.c.l.b16 %v25
  %v353 = vunpack.c.l.b16 %v26
  %v354 = vunpack.c.l.b16 %v27
  %v355 = vunpack.c.l.b16 %v28
  %v356 = vunpack.c.l.b16 %v29
  %v357 = vunpack.c.l.b16 %v30
  %v358 = vunpack.c.l.b16 %v31
  %v359 = vunpack.c.l.b16 %v32
  %v360 = vunpack.c.l.b16 %v33
  %v361 = vunpack.c.l.b16 %v34
  %v362 = vunpack.c.l.b16 %v35
  %v363 = vunpack.c.l.b16 %v36
  %v364 = vunpack.c.l.b16 %v37
  %v365 = vunpack.c.l.b16 %v38
  %v366 = vunpack.c.l.b16 %v39
  %v367 = vunpack.c.l.b16 %v40
  %v368 = vunpack.c.l.b16 %v41
  %v369 = vunpack.c.l.b16 %v42
  %v370 = vunpack.c.l.b16 %v43
  %v371 = vunpack.c.l.b16 %v44
  %v372 = vunpack.c.l.b16 %v45
  %v373 = vunpack.c.l.b16 %v46
  %v374 = vunpack.c.l.b16 %v47
  %v375 = vunpack.c.l.b16 %v48
  %v376 = vunpack.c.l.b16 %v49
  %v377 = vunpack.c.l.b16 %v50
  %v378 = vunpack.c.l.b16 %v51
  %v379 = vunpack.c.l.b16 %v52
  %v380 = vunpack.c.l.b16 %v53
  %v381 = vunpack.c.l.b16 %v54
  %v382 = vunpack.c.l.b16 %v55
  %v383 = vunpack.c.l.b16 %v56
  %v384 = vunpack.c.l.b16 %v57
  %v385 = vunpack.c.l.b16 %v58
  %v386 = vunpack.c.l.b16 %v59
  %v387 = vunpack.c.l.b16 %v60
  %v388 = vunpack.c.l.b16 %v61
  %v389 = vunpack.c.l.b16 %v62
  %v390 = vunpack.c.l.b16 %v63
  %v391 = vunpack.c.l.b16 %v64
  %v392 = vunpack.c.l.b16 %v65
  %v393 = vunpack.c.l.b16 %v66
  %v394 = vunpack.c.l.b16 %v67
  %v395 = vunpack.c.l.b16 %v68
  %v396 = vunpack.c.l.b16 %v69
  %v397 = vunpack.c.l.b16 %v70
  %v398 = vunpack.c.l.b16 %v71
  %v399 = vunpack.c.l.b16 %v72
  %v400 = vunpack.c.l.b16 %v73
  %v401 = vunpack.c.l.b16 %v74
  %v402 = vunpack.c.l.b16 %v75
  %v403 = vunpack.c.l.b16 %v76
  %v404 = vunpack.c.l.b16 %v77
  %v405 = vunpack.c.l.b16 %v78
  %v406 = vunpack.c.l.b16 %v79
  %v407 = vunpack.c.l.b16 %v80
  %v408 = vunpack.c.l.b16 %v81
  %v409 = vunpack.c.l.b16 %v82
  %v410 = vunpack.c.l.b16 %v83
  %v411 = vunpack.c.l.b16 %v84
  %v412 = vunpack.c.l.b16 %v85
  %v413 = vunpack.c.l.b16 %v86
  %v414 = vunpack.c.l.b16 %v87
  %v415 = vunpack.c.l.b16 %v88
  %v416 = vunpack.c.l.b16 %v89
  %v417 = vunpack.c.l.b16 %v90
  %v418 = vunpack.c.l.b16 %v91
  %v419 = vunpack.c.l.b16 %v92
  %v420 = vunpack.c.l.b16 %v93
  %v421 = vunpack.c.l.b16 %v94
  %v422 = vunpack.c.l.b16 %v95
  %v423 = vunpack.c.l.b16 %v96
  %v424 = vunpack.c.l.b16 %v97
  %v425 = vunpack.c.l.b16 %v98
  %v426 = vunpack.c.l.b16 %v99
  %v427 = vunpack.c.l.b16 %v100
  %v428 = vunpack.c.l.b16 %v101
  %v429 = vunpack.c.l.b16 %v102
  %v430 = vunpack.c.l.b16 %v103
  %v431 = vunpack.c.l.b16 %v104
  %v432 = vunpack.c.l.b16 %v105
  %v433 = vunpack.c.l.b16 %v106
  %v434 = vunpack.c.l.b16 %v107
  %v435 = vunpack.c.l.b16 %v108
  %v436 = vunpack.c.l.b16 %v109
  %v437 = vunpack.c.l.b16 %v110
  %v438 = vunpack.c.l.b16 %v111
  %v439 = vunpack.c.l.b16 %v112
  %v440 = vunpack.c.l.b16 %v113
  %v441 = vunpack.c.l.b16 %v114
  %v442 = vunpack.c.l.b16 %v115
  %v443 = vunpack.c.l.b16 %v116
  %v444 = vunpack.c.l.b16 %v117
  %v445 = vunpack.c.l.b16 %v118
  %v446 = vunpack.c.l.b16 %v119
  %v447 = vunpack.c.l.b16 %v120
  %v448 = vunpack.c.l.b16 %v121
  %v449 = vunpack.c.l.b16 %v122
  %v450 = vunpack.c.l.b16 %v123
  %v451 = vunpack.c.l.b16 %v124
  %v452 = vunpack.c.l.b16 %v125
  %v453 = vunpack.c.l.b16 %v126
  %v454 = vunpack.c.l.b16 %v127
  %v455 = vunpack.c.l.b16 %v128
  %v456 = vunpack.c.l.b16 %v129
  %v457 = vunpack.c.l.b16 %v130
  %v458 = vunpack.c.l.b16 %v131
  %v459 = vunpack.c.l.b16 %v132
  %v460 = vunpack.c.l.b16 %v133
  %v461 = vunpack.c.l.b16 %v134
  %v462 = vunpack.c.l.b16 %v135
  %v463 = vunpack.c.l.b16 %v136
  %v464 = vunpack.c.l.b16 %v137
  %v465 = vunpack.c.l.b16 %v138
  %v466 = vunpack.c.l.b16 %v139
  %v467 = vunpack.c.l.b16 %v140
  %v468 = vunpack.c.l.b16 %v141
  %v469 = vunpack.c.l.b16 %v142
  %v470 = vunpack.c.l.b16 %v143
  %v471 = vunpack.c.l.b16 %v144
  %v472 = vunpack.c.l.b16 %v145
  %v473 = vunpack.c.l.b16 %v146
  %v474 = vunpack.c.l.b16 %v147
  %v475 = vunpack.c.l.b16 %v148
  %v476 = vunpack.c.l.b16 %v149
  %v477 = vunpack.c.l.b16 %v150
  %v478 = vunpack.c.l.b16 %v151
  %v479 = vunpack.c.l.b16 %v152
  %v480 = vunpack.c.l.b16 %v153
  %v481 = vunpack.c.l.b16 %v154
  %v482 = vunpack.c.l.b16 %v155
  %v483 = vunpack.c.l.b16 %v156
  %v484 = vunpack.c.l.b16 %v157
  %v485 = vunpack.c.l.b16 %v158
  %v486 = vunpack.c.l.b16 %v159
  %v487 = vunpack.c.l.b16 %v160
  %v488 = vunpack.c.l.b16 %v161
  %v489 = vunpack.c.l.b16 %v162
  %v490 = vunpack.c.l.b16 %v163
  %v491 = vunpack.c.l.b16 %v164
  %v492 = vunpack.c.l.b16 %v165
  %v493 = vunpack.c.l.b16 %v166
  %v494 = vpack.c.b16 %v351, %v350
  %v495 = vpack.c.b16 %v353, %v352
  %v496 = vpack.c.b16 %v355, %v354
  %v497 = vpack.c.b16 %v357, %v356
  %v498 = vpack.c.b16 %v359, %v358
  %v499 = vpack.c.b16 %v361, %v360
  %v500 = vpack.c.b16 %v363, %v362
  %v501 = vpack.c.b16 %v365, %v364
  %v502 = vpack.c.b16 %v367, %v366
  %v503 = vpack.c.b16 %v369, %v368
  %v504 = vpack.c.b16 %v371, %v370
  %v505 = vpack.c.b16 %v373, %v372
  %v506 = vpack.c.b16 %v375, %v374
  %v507 = vpack.c.b16 %v377, %v376
  %v508 = vpack.c.b16 %v379, %v378
  %v509 = vpack.c.b16 %v381, %v380
  %v510 = vpack.c.b16 %v383, %v382
  %v511 = vpack.c.b16 %v385, %v384
  %v512 = vpack.c.b16 %v387, %v386
  %v513 = vpack.c.b16 %v389, %v388
  %v514 = vpack.c.b16 %v391, %v390
  %v515 = vpack.c.b16 %v393, %v392
  %v516 = vpack.c.b16 %v395, %v394
  %v517 = vpack.c.b16 %v397, %v396
  %v518 = vpack.c.b16 %v399, %v398
  %v519 = vpack.c.b16 %v401, %v400
  %v520 = vpack.c.b16 %v403, %v402
  %v521 = vpack.c.b16 %v405, %v404
  %v522 = vpack.c.b16 %v407, %v406
  %v523 = vpack.c.b16 %v409, %v408
  %v524 = vpack.c.b16 %v411, %v410
  %v525 = vpack.c.b16 %v413, %v412
  %v526 = vpack.c.b16 %v415, %v414
  %v527 = vpack.c.b16 %v417, %v416
  %v528 = vpack.c.b16 %v419, %v418
  %v529 = vpack.c.b16 %v421, %v420
  %v530 = vpack.c.b16 %v423, %v422
  %v531 = vpack.c.b16 %v425, %v424
  %v532 = vpack.c.b16 %v427, %v426
  %v533 = vpack.c.b16 %v429, %v428
  %v534 = vpack.c.b16 %v431, %v430
  %v535 = vpack.c.b16 %v433, %v432
  %v536 = vpack.c.b16 %v435, %v434
  %v537 = vpack.c.b16 %v437, %v436
  %v538 = vpack.c.b16 %v439, %v438
  %v539 = vpack.c.b16 %v441, %v440
  %v540 = vpack.c.b16 %v443, %v442
  %v541 = vpack.c.b16 %v445, %v444
  %v542 = vpack.c.b16 %v447, %v446
  %v543 = vpack.c.b16 %v449, %v448
  %v544 = vpack.c.b16 %v451, %v450
  %v545 = vpack.c.b16 %v453, %v452
  %v546 = vpack.c.b16 %v455, %v454
  %v547 = vpack.c.b16 %v457, %v456
  %v548 = vpack.c.b16 %v459, %v458
  %v549 = vpack.c.b16 %v461, %v460
  %v550 = vpack.c.b16 %v463, %v462
  %v551 = vpack.c.b16 %v465, %v464
  %v552 = vpack.c.b16 %v467, %v466
  %v553 = vpack.c.b16 %v469, %v468
  %v554 = vpack.c.b16 %v471, %v470
  %v555 = vpack.c.b16 %v473, %v472
  %v556 = vpack.c.b16 %v475, %v474
  %v557 = vpack.c.b16 %v477, %v476
  %v558 = vpack.c.b16 %v479, %v478
  %v559 = vpack.c.b16 %v481, %v480
  %v560 = vpack.c.b16 %v483, %v482
  %v561 = vpack.c.b16 %v485, %v484
  %v562 = vpack.c.b16 %v487, %v486
  %v563 = vpack.c.b16 %v489, %v488
  %v564 = vpack.c.b16 %v491, %v490
  %v565 = vpack.c.b16 %v493, %v492
  %638 = vmatprep.subr.bf16.mxu0 0
  %639 = vmatpush1.bf16.msra.mxu0 %v494
  %640 = vmatprep.subr.bf16.mxu0 0
  %641 = vmatpush1.bf16.msra.mxu0 %v495
  %642 = vmatprep.subr.bf16.mxu0 0
  %643 = vmatpush1.bf16.msra.mxu0 %v496
  %644 = vmatprep.subr.bf16.mxu0 0
  %645 = vmatpush1.bf16.msra.mxu0 %v497
  %646 = vmatprep.subr.bf16.mxu0 0
  %647 = vmatpush1.bf16.msra.mxu0 %v498
  %648 = vmatprep.subr.bf16.mxu0 0
  %649 = vmatpush1.bf16.msra.mxu0 %v499
  %650 = vmatprep.subr.bf16.mxu0 0
  %651 = vmatpush1.bf16.msra.mxu0 %v500
  %652 = vmatprep.subr.bf16.mxu0 0
  %653 = vmatpush1.bf16.msra.mxu0 %v501
  %654 = vmatprep.subr.bf16.mxu0 0
  %655 = vmatpush1.bf16.msra.mxu0 %v502
  %656 = vmatprep.subr.bf16.mxu0 0
  %657 = vmatpush1.bf16.msra.mxu0 %v503
  %658 = vmatprep.subr.bf16.mxu0 0
  %659 = vmatpush1.bf16.msra.mxu0 %v504
  %660 = vmatprep.subr.bf16.mxu0 0
  %661 = vmatpush1.bf16.msra.mxu0 %v505
  %662 = vmatprep.subr.bf16.mxu0 0
  %663 = vmatpush1.bf16.msra.mxu0 %v506
  %664 = vmatprep.subr.bf16.mxu0 0
  %665 = vmatpush1.bf16.msra.mxu0 %v507
  %666 = vmatprep.subr.bf16.mxu0 0
  %667 = vmatpush1.bf16.msra.mxu0 %v508
  %668 = vmatprep.subr.bf16.mxu0 0
  %669 = vmatpush1.bf16.msra.mxu0 %v509
  %670 = vmatprep.mubr.bf16.mxu0 %v189
  %671 = vmatmul.mubr.bf16.gmra.mrb[0].mxu0 %v188
  %v672 = vpop.f32.mrb[0].mxu0
  %v673 = vadd.f32 %v172, %v672
  %v674 = vpop.f32.mrb[0].mxu0
  %v675 = vpop.f32.mrb[0].mxu0
  %v676 = vpop.f32.mrb[0].mxu0
  %677 = vdwg.mxu0
  %678 = vmatprep.subr.bf16.mxu0 0
  %679 = vmatpush1.bf16.msra.mxu0 %v510
  %680 = vmatprep.subr.bf16.mxu0 0
  %681 = vmatpush1.bf16.msra.mxu0 %v511
  %682 = vmatprep.subr.bf16.mxu0 0
  %683 = vmatpush1.bf16.msra.mxu0 %v512
  %684 = vmatprep.subr.bf16.mxu0 0
  %685 = vmatpush1.bf16.msra.mxu0 %v513
  %686 = vmatprep.subr.bf16.mxu0 0
  %687 = vmatpush1.bf16.msra.mxu0 %v514
  %688 = vmatprep.subr.bf16.mxu0 0
  %689 = vmatpush1.bf16.msra.mxu0 %v515
  %690 = vmatprep.subr.bf16.mxu0 0
  %691 = vmatpush1.bf16.msra.mxu0 %v516
  %692 = vmatprep.subr.bf16.mxu0 0
  %693 = vmatpush1.bf16.msra.mxu0 %v517
  %694 = vmatprep.subr.bf16.mxu0 0
  %695 = vmatpush1.bf16.msra.mxu0 %v518
  %696 = vmatprep.subr.bf16.mxu0 0
  %697 = vmatpush1.bf16.msra.mxu0 %v519
  %698 = vmatprep.subr.bf16.mxu0 0
  %699 = vmatpush1.bf16.msra.mxu0 %v520
  %700 = vmatprep.subr.bf16.mxu0 0
  %701 = vmatpush1.bf16.msra.mxu0 %v521
  %702 = vmatprep.subr.bf16.mxu0 0
  %703 = vmatpush1.bf16.msra.mxu0 %v522
  %704 = vmatprep.subr.bf16.mxu0 0
  %705 = vmatpush1.bf16.msra.mxu0 %v523
  %706 = vmatprep.subr.bf16.mxu0 0
  %707 = vmatpush1.bf16.msra.mxu0 %v524
  %708 = vmatprep.subr.bf16.mxu0 0
  %709 = vmatpush1.bf16.msra.mxu0 %v525
  %710 = vmatprep.mubr.bf16.mxu0 %v191
  %711 = vmatmul.mubr.bf16.gmra.mrb[0].mxu0 %v190
  %v712 = vpop.f32.mrb[0].mxu0
  %v713 = vadd.f32 %v673, %v712
  %v714 = vpop.f32.mrb[0].mxu0
  %v715 = vpop.f32.mrb[0].mxu0
  %v716 = vpop.f32.mrb[0].mxu0
  %717 = vdwg.mxu0
  %718 = vmatprep.subr.bf16.mxu0 0
  %719 = vmatpush1.bf16.msra.mxu0 %v526
  %720 = vmatprep.subr.bf16.mxu0 0
  %721 = vmatpush1.bf16.msra.mxu0 %v527
  %722 = vmatprep.subr.bf16.mxu0 0
  %723 = vmatpush1.bf16.msra.mxu0 %v528
  %724 = vmatprep.subr.bf16.mxu0 0
  %725 = vmatpush1.bf16.msra.mxu0 %v529
  %726 = vmatprep.subr.bf16.mxu0 0
  %727 = vmatpush1.bf16.msra.mxu0 %v530
  %728 = vmatprep.subr.bf16.mxu0 0
  %729 = vmatpush1.bf16.msra.mxu0 %v531
  %730 = vmatprep.subr.bf16.mxu0 0
  %731 = vmatpush1.bf16.msra.mxu0 %v532
  %732 = vmatprep.subr.bf16.mxu0 0
  %733 = vmatpush1.bf16.msra.mxu0 %v533
  %734 = vmatprep.subr.bf16.mxu0 0
  %735 = vmatpush1.bf16.msra.mxu0 %v534
  %736 = vmatprep.subr.bf16.mxu0 0
  %737 = vmatpush1.bf16.msra.mxu0 %v535
  %738 = vmatprep.subr.bf16.mxu0 0
  %739 = vmatpush1.bf16.msra.mxu0 %v536
  %740 = vmatprep.subr.bf16.mxu0 0
  %741 = vmatpush1.bf16.msra.mxu0 %v537
  %742 = vmatprep.subr.bf16.mxu0 0
  %743 = vmatpush1.bf16.msra.mxu0 %v538
  %744 = vmatprep.subr.bf16.mxu0 0
  %745 = vmatpush1.bf16.msra.mxu0 %v539
  %746 = vmatprep.subr.bf16.mxu0 0
  %747 = vmatpush1.bf16.msra.mxu0 %v540
  %748 = vmatprep.subr.bf16.mxu0 0
  %749 = vmatpush1.bf16.msra.mxu0 %v541
  %750 = vmatprep.mubr.bf16.mxu0 %v193
  %751 = vmatmul.mubr.bf16.gmra.mrb[0].mxu0 %v192
  %v752 = vpop.f32.mrb[0].mxu0
  %v753 = vadd.f32 %v713, %v752
  %v754 = vpop.f32.mrb[0].mxu0
  %v755 = vpop.f32.mrb[0].mxu0
  %v756 = vpop.f32.mrb[0].mxu0
  %757 = vdwg.mxu0
  %758 = vmatprep.subr.bf16.mxu0 0
  %759 = vmatpush1.bf16.msra.mxu0 %v542
  %760 = vmatprep.subr.bf16.mxu0 0
  %761 = vmatpush1.bf16.msra.mxu0 %v543
  %762 = vmatprep.subr.bf16.mxu0 0
  %763 = vmatpush1.bf16.msra.mxu0 %v544
  %764 = vmatprep.subr.bf16.mxu0 0
  %765 = vmatpush1.bf16.msra.mxu0 %v545
  %766 = vmatprep.subr.bf16.mxu0 0
  %767 = vmatpush1.bf16.msra.mxu0 %v546
  %768 = vmatprep.subr.bf16.mxu0 0
  %769 = vmatpush1.bf16.msra.mxu0 %v547
  %770 = vmatprep.subr.bf16.mxu0 0
  %771 = vmatpush1.bf16.msra.mxu0 %v548
  %772 = vmatprep.subr.bf16.mxu0 0
  %773 = vmatpush1.bf16.msra.mxu0 %v549
  %774 = vmatprep.subr.bf16.mxu0 0
  %775 = vmatpush1.bf16.msra.mxu0 %v550
  %776 = vmatprep.subr.bf16.mxu0 0
  %777 = vmatpush1.bf16.msra.mxu0 %v551
  %778 = vmatprep.subr.bf16.mxu0 0
  %779 = vmatpush1.bf16.msra.mxu0 %v552
  %780 = vmatprep.subr.bf16.mxu0 0
  %781 = vmatpush1.bf16.msra.mxu0 %v553
  %782 = vmatprep.subr.bf16.mxu0 0
  %783 = vmatpush1.bf16.msra.mxu0 %v554
  %784 = vmatprep.subr.bf16.mxu0 0
  %785 = vmatpush1.bf16.msra.mxu0 %v555
  %786 = vmatprep.subr.bf16.mxu0 0
  %787 = vmatpush1.bf16.msra.mxu0 %v556
  %788 = vmatprep.subr.bf16.mxu0 0
  %789 = vmatpush1.bf16.msra.mxu0 %v557
  %790 = vmatprep.mubr.bf16.mxu0 %v195
  %791 = vmatmul.mubr.bf16.gmra.mrb[0].mxu0 %v194
  %v792 = vpop.f32.mrb[0].mxu0
  %v793 = vadd.f32 %v753, %v792
  %v794 = vpop.f32.mrb[0].mxu0
  %v795 = vpop.f32.mrb[0].mxu0
  %v796 = vpop.f32.mrb[0].mxu0
  %797 = vdwg.mxu0
  %798 = vmatprep.subr.bf16.mxu0 0
  %799 = vmatpush1.bf16.msra.mxu0 %v558
  %800 = vmatprep.subr.bf16.mxu0 0
  %801 = vmatpush1.bf16.msra.mxu0 %v559
  %802 = vmatprep.subr.bf16.mxu0 0
  %803 = vmatpush1.bf16.msra.mxu0 %v560
  %804 = vmatprep.subr.bf16.mxu0 0
  %805 = vmatpush1.bf16.msra.mxu0 %v561
  %806 = vmatprep.subr.bf16.mxu0 0
  %807 = vmatpush1.bf16.msra.mxu0 %v562
  %808 = vmatprep.subr.bf16.mxu0 0
  %809 = vmatpush1.bf16.msra.mxu0 %v563
  %810 = vmatprep.subr.bf16.mxu0 0
  %811 = vmatpush1.bf16.msra.mxu0 %v564
  %812 = vmatprep.subr.bf16.mxu0 0
  %813 = vmatpush1.bf16.msra.mxu0 %v565
  %814 = vmatprep.subr.bf16.mxu0 0
  %815 = vmatpush1.bf16.msra.mxu0 0
  %816 = vmatprep.subr.bf16.mxu0 0
  %817 = vmatpush1.bf16.msra.mxu0 0
  %818 = vmatprep.subr.bf16.mxu0 0
  %819 = vmatpush1.bf16.msra.mxu0 0
  %820 = vmatprep.subr.bf16.mxu0 0
  %821 = vmatpush1.bf16.msra.mxu0 0
  %822 = vmatprep.subr.bf16.mxu0 0
  %823 = vmatpush1.bf16.msra.mxu0 0
  %824 = vmatprep.subr.bf16.mxu0 0
  %825 = vmatpush1.bf16.msra.mxu0 0
  %826 = vmatprep.subr.bf16.mxu0 0
  %827 = vmatpush1.bf16.msra.mxu0 0
  %828 = vmatprep.subr.bf16.mxu0 0
  %829 = vmatpush1.bf16.msra.mxu0 0
  %830 = vmatprep.mubr.bf16.mxu0 0
  %831 = vmatmul.mubr.bf16.gmra.mrb[0].mxu0 %v196
  %v832 = vpop.f32.mrb[0].mxu0
  %v833 = vadd.f32 %v793, %v832
  %v834 = vpop.f32.mrb[0].mxu0
  %v835 = vpop.f32.mrb[0].mxu0
  %v836 = vpop.f32.mrb[0].mxu0
  %837 = vdwg.mxu0
  %v838 = vld [vmem:[%s3] sm:$0xf]
  %v839 = vunpack.c.l.bf16 %v838
  %v840 = vadd.f32 %v833, %v839
  %v841 = vmax.f32 %v840, 0.0
  %v842 = vpack.c.bf16 %v841, %v841
  %843 = vst [vmem:[%s4] sm:$0xf] %v842
  // Predicated region
  $region18: #{resnet_forward.44} parent=0 // pred_check
    _
  $region19: #{resnet_forward.44} parent=0 // pred_check_branch
    %845 = sbr.rel (0) target = $region21
  $region20: #{resnet_forward.44} parent=0 // pred_region
    _
  $region21: #{resnet_forward.44} parent=0 // pred_fallthru
    _
  // Predicated region
  $region22: #{resnet_forward.44} parent=0 // pred_check
    _
  $region23: #{resnet_forward.44} parent=0 // pred_check_branch
    %847 = sbr.rel (0) target = $region25
  $region24: #{resnet_forward.44} parent=0 // pred_region
    _
  $region25: #{resnet_forward.44} parent=0 // pred_fallthru
    _

// kernel: resnet_forward.45
$region0: #{resnet_forward.45}
  #allocation0 [shape = 'u32[]', space=smem, size = 0x4, offset = 0x4, fixed_abs, tag = 'smem constant byte address 0x4 - core index']
  #allocation1 [shape = 'u32[144,128]{1,0:T(1,128)}', space=vmem, size = 0x12000, scoped, tag = 'internal scratch']
  %s0 = inlined_call_operand.vmem [shape: bf16[8,1152], index: 0, kind: input, shape index: {}]
  %s1 = inlined_call_operand.vmem [shape: bf16[1152,128], index: 1, kind: input, shape index: {}]
  %s2 = inlined_call_operand.vmem [shape: f32[1,128], index: 2, kind: input, shape index: {}]
  %s3 = inlined_call_operand.vmem [shape: bf16[8,128], index: 3, kind: output, shape index: {}]
  %s4 = sld [smem:[#allocation0]]
  $region22: #{resnet_forward.45} parent=0
    _
  %s6 = ssub.s32 1, %s4
  %s7 = scalar_select 0, %s6, %s4
  // Predicated region
  $region2: #{resnet_forward.45} parent=0 // pred_check
    _
  $region3: #{resnet_forward.45} parent=0 // pred_check_branch
    %9 = sbr.rel (0) target = $region5
  $region4: #{resnet_forward.45} parent=0 // pred_region
    _
  $region5: #{resnet_forward.45} parent=0 // pred_fallthru
    _
  // Predicated region
  $region6: #{resnet_forward.45} parent=0 // pred_check
    _
  $region7: #{resnet_forward.45} parent=0 // pred_check_branch
    %11 = sbr.rel (0) target = $region9
  $region8: #{resnet_forward.45} parent=0 // pred_region
    _
  $region9: #{resnet_forward.45} parent=0 // pred_fallthru
    _
  // Predicated region
  $region10: #{resnet_forward.45} parent=0 // pred_check
    _
  $region11: #{resnet_forward.45} parent=0 // pred_check_branch
    %13 = sbr.rel (0) target = $region13
  $region12: #{resnet_forward.45} parent=0 // pred_region
    _
  $region13: #{resnet_forward.45} parent=0 // pred_fallthru
    _
  %v15 = vld [vmem:[%s0] sm:$0xff]
  %v16 = vld [vmem:[%s0 + $0x8] sm:$0xff]
  %v17 = vld [vmem:[%s0 + $0x10] sm:$0xff]
  %v18 = vld [vmem:[%s0 + $0x18] sm:$0xff]
  %v19 = vld [vmem:[%s0 + $0x20] sm:$0xf]
  %v20 = vld [vmem:[%s1] sm:$0xf]
  %v21 = vld [vmem:[%s1 + $0x4] sm:$0xf]
  %v22 = vld [vmem:[%s1 + $0x8] sm:$0xf]
  %v23 = vld [vmem:[%s1 + $0xc] sm:$0xf]
  %v24 = vld [vmem:[%s1 + $0x10] sm:$0xf]
  %v25 = vld [vmem:[%s1 + $0x14] sm:$0xf]
  %v26 = vld [vmem:[%s1 + $0x18] sm:$0xf]
  %v27 = vld [vmem:[%s1 + $0x1c] sm:$0xf]
  %v28 = vld [vmem:[%s1 + $0x20] sm:$0xf]
  %v29 = vld [vmem:[%s1 + $0x24] sm:$0xf]
  %v30 = vld [vmem:[%s1 + $0x28] sm:$0xf]
  %v31 = vld [vmem:[%s1 + $0x2c] sm:$0xf]
  %v32 = vld [vmem:[%s1 + $0x30] sm:$0xf]
  %v33 = vld [vmem:[%s1 + $0x34] sm:$0xf]
  %v34 = vld [vmem:[%s1 + $0x38] sm:$0xf]
  %v35 = vld [vmem:[%s1 + $0x3c] sm:$0xf]
  %v36 = vld [vmem:[%s1 + $0x40] sm:$0xf]
  %v37 = vld [vmem:[%s1 + $0x44] sm:$0xf]
  %v38 = vld [vmem:[%s1 + $0x48] sm:$0xf]
  %v39 = vld [vmem:[%s1 + $0x4c] sm:$0xf]
  %v40 = vld [vmem:[%s1 + $0x50] sm:$0xf]
  %v41 = vld [vmem:[%s1 + $0x54] sm:$0xf]
  %v42 = vld [vmem:[%s1 + $0x58] sm:$0xf]
  %v43 = vld [vmem:[%s1 + $0x5c] sm:$0xf]
  %v44 = vld [vmem:[%s1 + $0x60] sm:$0xf]
  %v45 = vld [vmem:[%s1 + $0x64] sm:$0xf]
  %v46 = vld [vmem:[%s1 + $0x68] sm:$0xf]
  %v47 = vld [vmem:[%s1 + $0x6c] sm:$0xf]
  %v48 = vld [vmem:[%s1 + $0x70] sm:$0xf]
  %v49 = vld [vmem:[%s1 + $0x74] sm:$0xf]
  %v50 = vld [vmem:[%s1 + $0x78] sm:$0xf]
  %v51 = vld [vmem:[%s1 + $0x7c] sm:$0xf]
  %v52 = vld [vmem:[%s1 + $0x80] sm:$0xf]
  %v53 = vld [vmem:[%s1 + $0x84] sm:$0xf]
  %v54 = vld [vmem:[%s1 + $0x88] sm:$0xf]
  %v55 = vld [vmem:[%s1 + $0x8c] sm:$0xf]
  %v56 = vld [vmem:[%s1 + $0x90] sm:$0xf]
  %v57 = vld [vmem:[%s1 + $0x94] sm:$0xf]
  %v58 = vld [vmem:[%s1 + $0x98] sm:$0xf]
  %v59 = vld [vmem:[%s1 + $0x9c] sm:$0xf]
  %v60 = vld [vmem:[%s1 + $0xa0] sm:$0xf]
  %v61 = vld [vmem:[%s1 + $0xa4] sm:$0xf]
  %v62 = vld [vmem:[%s1 + $0xa8] sm:$0xf]
  %v63 = vld [vmem:[%s1 + $0xac] sm:$0xf]
  %v64 = vld [vmem:[%s1 + $0xb0] sm:$0xf]
  %v65 = vld [vmem:[%s1 + $0xb4] sm:$0xf]
  %v66 = vld [vmem:[%s1 + $0xb8] sm:$0xf]
  %v67 = vld [vmem:[%s1 + $0xbc] sm:$0xf]
  %v68 = vld [vmem:[%s1 + $0xc0] sm:$0xf]
  %v69 = vld [vmem:[%s1 + $0xc4] sm:$0xf]
  %v70 = vld [vmem:[%s1 + $0xc8] sm:$0xf]
  %v71 = vld [vmem:[%s1 + $0xcc] sm:$0xf]
  %v72 = vld [vmem:[%s1 + $0xd0] sm:$0xf]
  %v73 = vld [vmem:[%s1 + $0xd4] sm:$0xf]
  %v74 = vld [vmem:[%s1 + $0xd8] sm:$0xf]
  %v75 = vld [vmem:[%s1 + $0xdc] sm:$0xf]
  %v76 = vld [vmem:[%s1 + $0xe0] sm:$0xf]
  %v77 = vld [vmem:[%s1 + $0xe4] sm:$0xf]
  %v78 = vld [vmem:[%s1 + $0xe8] sm:$0xf]
  %v79 = vld [vmem:[%s1 + $0xec] sm:$0xf]
  %v80 = vld [vmem:[%s1 + $0xf0] sm:$0xf]
  %v81 = vld [vmem:[%s1 + $0xf4] sm:$0xf]
  %v82 = vld [vmem:[%s1 + $0xf8] sm:$0xf]
  %v83 = vld [vmem:[%s1 + $0xfc] sm:$0xf]
  %v84 = vld [vmem:[%s1 + $0x100] sm:$0xf]
  %v85 = vld [vmem:[%s1 + $0x104] sm:$0xf]
  %v86 = vld [vmem:[%s1 + $0x108] sm:$0xf]
  %v87 = vld [vmem:[%s1 + $0x10c] sm:$0xf]
  %v88 = vld [vmem:[%s1 + $0x110] sm:$0xf]
  %v89 = vld [vmem:[%s1 + $0x114] sm:$0xf]
  %v90 = vld [vmem:[%s1 + $0x118] sm:$0xf]
  %v91 = vld [vmem:[%s1 + $0x11c] sm:$0xf]
  %v92 = vld [vmem:[%s1 + $0x120] sm:$0xf]
  %v93 = vld [vmem:[%s1 + $0x124] sm:$0xf]
  %v94 = vld [vmem:[%s1 + $0x128] sm:$0xf]
  %v95 = vld [vmem:[%s1 + $0x12c] sm:$0xf]
  %v96 = vld [vmem:[%s1 + $0x130] sm:$0xf]
  %v97 = vld [vmem:[%s1 + $0x134] sm:$0xf]
  %v98 = vld [vmem:[%s1 + $0x138] sm:$0xf]
  %v99 = vld [vmem:[%s1 + $0x13c] sm:$0xf]
  %v100 = vld [vmem:[%s1 + $0x140] sm:$0xf]
  %v101 = vld [vmem:[%s1 + $0x144] sm:$0xf]
  %v102 = vld [vmem:[%s1 + $0x148] sm:$0xf]
  %v103 = vld [vmem:[%s1 + $0x14c] sm:$0xf]
  %v104 = vld [vmem:[%s1 + $0x150] sm:$0xf]
  %v105 = vld [vmem:[%s1 + $0x154] sm:$0xf]
  %v106 = vld [vmem:[%s1 + $0x158] sm:$0xf]
  %v107 = vld [vmem:[%s1 + $0x15c] sm:$0xf]
  %v108 = vld [vmem:[%s1 + $0x160] sm:$0xf]
  %v109 = vld [vmem:[%s1 + $0x164] sm:$0xf]
  %v110 = vld [vmem:[%s1 + $0x168] sm:$0xf]
  %v111 = vld [vmem:[%s1 + $0x16c] sm:$0xf]
  %v112 = vld [vmem:[%s1 + $0x170] sm:$0xf]
  %v113 = vld [vmem:[%s1 + $0x174] sm:$0xf]
  %v114 = vld [vmem:[%s1 + $0x178] sm:$0xf]
  %v115 = vld [vmem:[%s1 + $0x17c] sm:$0xf]
  %v116 = vld [vmem:[%s1 + $0x180] sm:$0xf]
  %v117 = vld [vmem:[%s1 + $0x184] sm:$0xf]
  %v118 = vld [vmem:[%s1 + $0x188] sm:$0xf]
  %v119 = vld [vmem:[%s1 + $0x18c] sm:$0xf]
  %v120 = vld [vmem:[%s1 + $0x190] sm:$0xf]
  %v121 = vld [vmem:[%s1 + $0x194] sm:$0xf]
  %v122 = vld [vmem:[%s1 + $0x198] sm:$0xf]
  %v123 = vld [vmem:[%s1 + $0x19c] sm:$0xf]
  %v124 = vld [vmem:[%s1 + $0x1a0] sm:$0xf]
  %v125 = vld [vmem:[%s1 + $0x1a4] sm:$0xf]
  %v126 = vld [vmem:[%s1 + $0x1a8] sm:$0xf]
  %v127 = vld [vmem:[%s1 + $0x1ac] sm:$0xf]
  %v128 = vld [vmem:[%s1 + $0x1b0] sm:$0xf]
  %v129 = vld [vmem:[%s1 + $0x1b4] sm:$0xf]
  %v130 = vld [vmem:[%s1 + $0x1b8] sm:$0xf]
  %v131 = vld [vmem:[%s1 + $0x1bc] sm:$0xf]
  %v132 = vld [vmem:[%s1 + $0x1c0] sm:$0xf]
  %v133 = vld [vmem:[%s1 + $0x1c4] sm:$0xf]
  %v134 = vld [vmem:[%s1 + $0x1c8] sm:$0xf]
  %v135 = vld [vmem:[%s1 + $0x1cc] sm:$0xf]
  %v136 = vld [vmem:[%s1 + $0x1d0] sm:$0xf]
  %v137 = vld [vmem:[%s1 + $0x1d4] sm:$0xf]
  %v138 = vld [vmem:[%s1 + $0x1d8] sm:$0xf]
  %v139 = vld [vmem:[%s1 + $0x1dc] sm:$0xf]
  %v140 = vld [vmem:[%s1 + $0x1e0] sm:$0xf]
  %v141 = vld [vmem:[%s1 + $0x1e4] sm:$0xf]
  %v142 = vld [vmem:[%s1 + $0x1e8] sm:$0xf]
  %v143 = vld [vmem:[%s1 + $0x1ec] sm:$0xf]
  %v144 = vld [vmem:[%s1 + $0x1f0] sm:$0xf]
  %v145 = vld [vmem:[%s1 + $0x1f4] sm:$0xf]
  %v146 = vld [vmem:[%s1 + $0x1f8] sm:$0xf]
  %v147 = vld [vmem:[%s1 + $0x1fc] sm:$0xf]
  %v148 = vld [vmem:[%s1 + $0x200] sm:$0xf]
  %v149 = vld [vmem:[%s1 + $0x204] sm:$0xf]
  %v150 = vld [vmem:[%s1 + $0x208] sm:$0xf]
  %v151 = vld [vmem:[%s1 + $0x20c] sm:$0xf]
  %v152 = vld [vmem:[%s1 + $0x210] sm:$0xf]
  %v153 = vld [vmem:[%s1 + $0x214] sm:$0xf]
  %v154 = vld [vmem:[%s1 + $0x218] sm:$0xf]
  %v155 = vld [vmem:[%s1 + $0x21c] sm:$0xf]
  %v156 = vld [vmem:[%s1 + $0x220] sm:$0xf]
  %v157 = vld [vmem:[%s1 + $0x224] sm:$0xf]
  %v158 = vld [vmem:[%s1 + $0x228] sm:$0xf]
  %v159 = vld [vmem:[%s1 + $0x22c] sm:$0xf]
  %v160 = vld [vmem:[%s1 + $0x230] sm:$0xf]
  %v161 = vld [vmem:[%s1 + $0x234] sm:$0xf]
  %v162 = vld [vmem:[%s1 + $0x238] sm:$0xf]
  %v163 = vld [vmem:[%s1 + $0x23c] sm:$0xf]
  %v164 = vld [vmem:[%s2] sm:$0x1]
  %v166 = vlaneseq
  %v167 = vshrl.u32 %v166, 7
  %v168 = vsub.s32 0, %v167
  %v169 = vrot.slane %v164, %v168
  %v176 = vunpack.c.l.b16 %v15
  %v177 = vunpack.c.h.b16 %v15
  %v178 = vunpack.c.l.b16 %v16
  %v179 = vunpack.c.h.b16 %v16
  %v180 = vunpack.c.l.b16 %v17
  %v181 = vunpack.c.h.b16 %v17
  %v182 = vunpack.c.l.b16 %v18
  %v183 = vunpack.c.h.b16 %v18
  %v184 = vunpack.c.l.b16 %v19
  %v185 = vpack.c.b16 %v176, %v176
  %v186 = vpack.c.b16 %v177, %v177
  %v187 = vpack.c.b16 %v178, %v178
  %v188 = vpack.c.b16 %v179, %v179
  %v189 = vpack.c.b16 %v180, %v180
  %v190 = vpack.c.b16 %v181, %v181
  %v191 = vpack.c.b16 %v182, %v182
  %v192 = vpack.c.b16 %v183, %v183
  %v193 = vpack.c.b16 %v184, %v184
  %v347 = vunpack.c.l.b16 %v20
  %v348 = vunpack.c.l.b16 %v21
  %v349 = vunpack.c.l.b16 %v22
  %v350 = vunpack.c.l.b16 %v23
  %v351 = vunpack.c.l.b16 %v24
  %v352 = vunpack.c.l.b16 %v25
  %v353 = vunpack.c.l.b16 %v26
  %v354 = vunpack.c.l.b16 %v27
  %v355 = vunpack.c.l.b16 %v28
  %v356 = vunpack.c.l.b16 %v29
  %v357 = vunpack.c.l.b16 %v30
  %v358 = vunpack.c.l.b16 %v31
  %v359 = vunpack.c.l.b16 %v32
  %v360 = vunpack.c.l.b16 %v33
  %v361 = vunpack.c.l.b16 %v34
  %v362 = vunpack.c.l.b16 %v35
  %v363 = vunpack.c.l.b16 %v36
  %v364 = vunpack.c.l.b16 %v37
  %v365 = vunpack.c.l.b16 %v38
  %v366 = vunpack.c.l.b16 %v39
  %v367 = vunpack.c.l.b16 %v40
  %v368 = vunpack.c.l.b16 %v41
  %v369 = vunpack.c.l.b16 %v42
  %v370 = vunpack.c.l.b16 %v43
  %v371 = vunpack.c.l.b16 %v44
  %v372 = vunpack.c.l.b16 %v45
  %v373 = vunpack.c.l.b16 %v46
  %v374 = vunpack.c.l.b16 %v47
  %v375 = vunpack.c.l.b16 %v48
  %v376 = vunpack.c.l.b16 %v49
  %v377 = vunpack.c.l.b16 %v50
  %v378 = vunpack.c.l.b16 %v51
  %v379 = vunpack.c.l.b16 %v52
  %v380 = vunpack.c.l.b16 %v53
  %v381 = vunpack.c.l.b16 %v54
  %v382 = vunpack.c.l.b16 %v55
  %v383 = vunpack.c.l.b16 %v56
  %v384 = vunpack.c.l.b16 %v57
  %v385 = vunpack.c.l.b16 %v58
  %v386 = vunpack.c.l.b16 %v59
  %v387 = vunpack.c.l.b16 %v60
  %v388 = vunpack.c.l.b16 %v61
  %v389 = vunpack.c.l.b16 %v62
  %v390 = vunpack.c.l.b16 %v63
  %v391 = vunpack.c.l.b16 %v64
  %v392 = vunpack.c.l.b16 %v65
  %v393 = vunpack.c.l.b16 %v66
  %v394 = vunpack.c.l.b16 %v67
  %v395 = vunpack.c.l.b16 %v68
  %v396 = vunpack.c.l.b16 %v69
  %v397 = vunpack.c.l.b16 %v70
  %v398 = vunpack.c.l.b16 %v71
  %v399 = vunpack.c.l.b16 %v72
  %v400 = vunpack.c.l.b16 %v73
  %v401 = vunpack.c.l.b16 %v74
  %v402 = vunpack.c.l.b16 %v75
  %v403 = vunpack.c.l.b16 %v76
  %v404 = vunpack.c.l.b16 %v77
  %v405 = vunpack.c.l.b16 %v78
  %v406 = vunpack.c.l.b16 %v79
  %v407 = vunpack.c.l.b16 %v80
  %v408 = vunpack.c.l.b16 %v81
  %v409 = vunpack.c.l.b16 %v82
  %v410 = vunpack.c.l.b16 %v83
  %v411 = vunpack.c.l.b16 %v84
  %v412 = vunpack.c.l.b16 %v85
  %v413 = vunpack.c.l.b16 %v86
  %v414 = vunpack.c.l.b16 %v87
  %v415 = vunpack.c.l.b16 %v88
  %v416 = vunpack.c.l.b16 %v89
  %v417 = vunpack.c.l.b16 %v90
  %v418 = vunpack.c.l.b16 %v91
  %v419 = vunpack.c.l.b16 %v92
  %v420 = vunpack.c.l.b16 %v93
  %v421 = vunpack.c.l.b16 %v94
  %v422 = vunpack.c.l.b16 %v95
  %v423 = vunpack.c.l.b16 %v96
  %v424 = vunpack.c.l.b16 %v97
  %v425 = vunpack.c.l.b16 %v98
  %v426 = vunpack.c.l.b16 %v99
  %v427 = vunpack.c.l.b16 %v100
  %v428 = vunpack.c.l.b16 %v101
  %v429 = vunpack.c.l.b16 %v102
  %v430 = vunpack.c.l.b16 %v103
  %v431 = vunpack.c.l.b16 %v104
  %v432 = vunpack.c.l.b16 %v105
  %v433 = vunpack.c.l.b16 %v106
  %v434 = vunpack.c.l.b16 %v107
  %v435 = vunpack.c.l.b16 %v108
  %v436 = vunpack.c.l.b16 %v109
  %v437 = vunpack.c.l.b16 %v110
  %v438 = vunpack.c.l.b16 %v111
  %v439 = vunpack.c.l.b16 %v112
  %v440 = vunpack.c.l.b16 %v113
  %v441 = vunpack.c.l.b16 %v114
  %v442 = vunpack.c.l.b16 %v115
  %v443 = vunpack.c.l.b16 %v116
  %v444 = vunpack.c.l.b16 %v117
  %v445 = vunpack.c.l.b16 %v118
  %v446 = vunpack.c.l.b16 %v119
  %v447 = vunpack.c.l.b16 %v120
  %v448 = vunpack.c.l.b16 %v121
  %v449 = vunpack.c.l.b16 %v122
  %v450 = vunpack.c.l.b16 %v123
  %v451 = vunpack.c.l.b16 %v124
  %v452 = vunpack.c.l.b16 %v125
  %v453 = vunpack.c.l.b16 %v126
  %v454 = vunpack.c.l.b16 %v127
  %v455 = vunpack.c.l.b16 %v128
  %v456 = vunpack.c.l.b16 %v129
  %v457 = vunpack.c.l.b16 %v130
  %v458 = vunpack.c.l.b16 %v131
  %v459 = vunpack.c.l.b16 %v132
  %v460 = vunpack.c.l.b16 %v133
  %v461 = vunpack.c.l.b16 %v134
  %v462 = vunpack.c.l.b16 %v135
  %v463 = vunpack.c.l.b16 %v136
  %v464 = vunpack.c.l.b16 %v137
  %v465 = vunpack.c.l.b16 %v138
  %v466 = vunpack.c.l.b16 %v139
  %v467 = vunpack.c.l.b16 %v140
  %v468 = vunpack.c.l.b16 %v141
  %v469 = vunpack.c.l.b16 %v142
  %v470 = vunpack.c.l.b16 %v143
  %v471 = vunpack.c.l.b16 %v144
  %v472 = vunpack.c.l.b16 %v145
  %v473 = vunpack.c.l.b16 %v146
  %v474 = vunpack.c.l.b16 %v147
  %v475 = vunpack.c.l.b16 %v148
  %v476 = vunpack.c.l.b16 %v149
  %v477 = vunpack.c.l.b16 %v150
  %v478 = vunpack.c.l.b16 %v151
  %v479 = vunpack.c.l.b16 %v152
  %v480 = vunpack.c.l.b16 %v153
  %v481 = vunpack.c.l.b16 %v154
  %v482 = vunpack.c.l.b16 %v155
  %v483 = vunpack.c.l.b16 %v156
  %v484 = vunpack.c.l.b16 %v157
  %v485 = vunpack.c.l.b16 %v158
  %v486 = vunpack.c.l.b16 %v159
  %v487 = vunpack.c.l.b16 %v160
  %v488 = vunpack.c.l.b16 %v161
  %v489 = vunpack.c.l.b16 %v162
  %v490 = vunpack.c.l.b16 %v163
  %v491 = vpack.c.b16 %v348, %v347
  %v492 = vpack.c.b16 %v350, %v349
  %v493 = vpack.c.b16 %v352, %v351
  %v494 = vpack.c.b16 %v354, %v353
  %v495 = vpack.c.b16 %v356, %v355
  %v496 = vpack.c.b16 %v358, %v357
  %v497 = vpack.c.b16 %v360, %v359
  %v498 = vpack.c.b16 %v362, %v361
  %v499 = vpack.c.b16 %v364, %v363
  %v500 = vpack.c.b16 %v366, %v365
  %v501 = vpack.c.b16 %v368, %v367
  %v502 = vpack.c.b16 %v370, %v369
  %v503 = vpack.c.b16 %v372, %v371
  %v504 = vpack.c.b16 %v374, %v373
  %v505 = vpack.c.b16 %v376, %v375
  %v506 = vpack.c.b16 %v378, %v377
  %v507 = vpack.c.b16 %v380, %v379
  %v508 = vpack.c.b16 %v382, %v381
  %v509 = vpack.c.b16 %v384, %v383
  %v510 = vpack.c.b16 %v386, %v385
  %v511 = vpack.c.b16 %v388, %v387
  %v512 = vpack.c.b16 %v390, %v389
  %v513 = vpack.c.b16 %v392, %v391
  %v514 = vpack.c.b16 %v394, %v393
  %v515 = vpack.c.b16 %v396, %v395
  %v516 = vpack.c.b16 %v398, %v397
  %v517 = vpack.c.b16 %v400, %v399
  %v518 = vpack.c.b16 %v402, %v401
  %v519 = vpack.c.b16 %v404, %v403
  %v520 = vpack.c.b16 %v406, %v405
  %v521 = vpack.c.b16 %v408, %v407
  %v522 = vpack.c.b16 %v410, %v409
  %v523 = vpack.c.b16 %v412, %v411
  %v524 = vpack.c.b16 %v414, %v413
  %v525 = vpack.c.b16 %v416, %v415
  %v526 = vpack.c.b16 %v418, %v417
  %v527 = vpack.c.b16 %v420, %v419
  %v528 = vpack.c.b16 %v422, %v421
  %v529 = vpack.c.b16 %v424, %v423
  %v530 = vpack.c.b16 %v426, %v425
  %v531 = vpack.c.b16 %v428, %v427
  %v532 = vpack.c.b16 %v430, %v429
  %v533 = vpack.c.b16 %v432, %v431
  %v534 = vpack.c.b16 %v434, %v433
  %v535 = vpack.c.b16 %v436, %v435
  %v536 = vpack.c.b16 %v438, %v437
  %v537 = vpack.c.b16 %v440, %v439
  %v538 = vpack.c.b16 %v442, %v441
  %v539 = vpack.c.b16 %v444, %v443
  %v540 = vpack.c.b16 %v446, %v445
  %v541 = vpack.c.b16 %v448, %v447
  %v542 = vpack.c.b16 %v450, %v449
  %v543 = vpack.c.b16 %v452, %v451
  %v544 = vpack.c.b16 %v454, %v453
  %v545 = vpack.c.b16 %v456, %v455
  %v546 = vpack.c.b16 %v458, %v457
  %v547 = vpack.c.b16 %v460, %v459
  %v548 = vpack.c.b16 %v462, %v461
  %v549 = vpack.c.b16 %v464, %v463
  %v550 = vpack.c.b16 %v466, %v465
  %v551 = vpack.c.b16 %v468, %v467
  %v552 = vpack.c.b16 %v470, %v469
  %v553 = vpack.c.b16 %v472, %v471
  %v554 = vpack.c.b16 %v474, %v473
  %v555 = vpack.c.b16 %v476, %v475
  %v556 = vpack.c.b16 %v478, %v477
  %v557 = vpack.c.b16 %v480, %v479
  %v558 = vpack.c.b16 %v482, %v481
  %v559 = vpack.c.b16 %v484, %v483
  %v560 = vpack.c.b16 %v486, %v485
  %v561 = vpack.c.b16 %v488, %v487
  %v562 = vpack.c.b16 %v490, %v489
  %635 = vmatprep.subr.bf16.mxu0 0
  %636 = vmatpush1.bf16.msra.mxu0 %v491
  %637 = vmatprep.subr.bf16.mxu0 0
  %638 = vmatpush1.bf16.msra.mxu0 %v492
  %639 = vmatprep.subr.bf16.mxu0 0
  %640 = vmatpush1.bf16.msra.mxu0 %v493
  %641 = vmatprep.subr.bf16.mxu0 0
  %642 = vmatpush1.bf16.msra.mxu0 %v494
  %643 = vmatprep.subr.bf16.mxu0 0
  %644 = vmatpush1.bf16.msra.mxu0 %v495
  %645 = vmatprep.subr.bf16.mxu0 0
  %646 = vmatpush1.bf16.msra.mxu0 %v496
  %647 = vmatprep.subr.bf16.mxu0 0
  %648 = vmatpush1.bf16.msra.mxu0 %v497
  %649 = vmatprep.subr.bf16.mxu0 0
  %650 = vmatpush1.bf16.msra.mxu0 %v498
  %651 = vmatprep.subr.bf16.mxu0 0
  %652 = vmatpush1.bf16.msra.mxu0 %v499
  %653 = vmatprep.subr.bf16.mxu0 0
  %654 = vmatpush1.bf16.msra.mxu0 %v500
  %655 = vmatprep.subr.bf16.mxu0 0
  %656 = vmatpush1.bf16.msra.mxu0 %v501
  %657 = vmatprep.subr.bf16.mxu0 0
  %658 = vmatpush1.bf16.msra.mxu0 %v502
  %659 = vmatprep.subr.bf16.mxu0 0
  %660 = vmatpush1.bf16.msra.mxu0 %v503
  %661 = vmatprep.subr.bf16.mxu0 0
  %662 = vmatpush1.bf16.msra.mxu0 %v504
  %663 = vmatprep.subr.bf16.mxu0 0
  %664 = vmatpush1.bf16.msra.mxu0 %v505
  %665 = vmatprep.subr.bf16.mxu0 0
  %666 = vmatpush1.bf16.msra.mxu0 %v506
  %667 = vmatprep.mubr.bf16.mxu0 %v186
  %668 = vmatmul.mubr.bf16.gmra.mrb[0].mxu0 %v185
  %v669 = vpop.f32.mrb[0].mxu0
  %v670 = vadd.f32 %v169, %v669
  %v671 = vpop.f32.mrb[0].mxu0
  %v672 = vpop.f32.mrb[0].mxu0
  %v673 = vpop.f32.mrb[0].mxu0
  %674 = vdwg.mxu0
  %675 = vmatprep.subr.bf16.mxu0 0
  %676 = vmatpush1.bf16.msra.mxu0 %v507
  %677 = vmatprep.subr.bf16.mxu0 0
  %678 = vmatpush1.bf16.msra.mxu0 %v508
  %679 = vmatprep.subr.bf16.mxu0 0
  %680 = vmatpush1.bf16.msra.mxu0 %v509
  %681 = vmatprep.subr.bf16.mxu0 0
  %682 = vmatpush1.bf16.msra.mxu0 %v510
  %683 = vmatprep.subr.bf16.mxu0 0
  %684 = vmatpush1.bf16.msra.mxu0 %v511
  %685 = vmatprep.subr.bf16.mxu0 0
  %686 = vmatpush1.bf16.msra.mxu0 %v512
  %687 = vmatprep.subr.bf16.mxu0 0
  %688 = vmatpush1.bf16.msra.mxu0 %v513
  %689 = vmatprep.subr.bf16.mxu0 0
  %690 = vmatpush1.bf16.msra.mxu0 %v514
  %691 = vmatprep.subr.bf16.mxu0 0
  %692 = vmatpush1.bf16.msra.mxu0 %v515
  %693 = vmatprep.subr.bf16.mxu0 0
  %694 = vmatpush1.bf16.msra.mxu0 %v516
  %695 = vmatprep.subr.bf16.mxu0 0
  %696 = vmatpush1.bf16.msra.mxu0 %v517
  %697 = vmatprep.subr.bf16.mxu0 0
  %698 = vmatpush1.bf16.msra.mxu0 %v518
  %699 = vmatprep.subr.bf16.mxu0 0
  %700 = vmatpush1.bf16.msra.mxu0 %v519
  %701 = vmatprep.subr.bf16.mxu0 0
  %702 = vmatpush1.bf16.msra.mxu0 %v520
  %703 = vmatprep.subr.bf16.mxu0 0
  %704 = vmatpush1.bf16.msra.mxu0 %v521
  %705 = vmatprep.subr.bf16.mxu0 0
  %706 = vmatpush1.bf16.msra.mxu0 %v522
  %707 = vmatprep.mubr.bf16.mxu0 %v188
  %708 = vmatmul.mubr.bf16.gmra.mrb[0].mxu0 %v187
  %v709 = vpop.f32.mrb[0].mxu0
  %v710 = vadd.f32 %v670, %v709
  %v711 = vpop.f32.mrb[0].mxu0
  %v712 = vpop.f32.mrb[0].mxu0
  %v713 = vpop.f32.mrb[0].mxu0
  %714 = vdwg.mxu0
  %715 = vmatprep.subr.bf16.mxu0 0
  %716 = vmatpush1.bf16.msra.mxu0 %v523
  %717 = vmatprep.subr.bf16.mxu0 0
  %718 = vmatpush1.bf16.msra.mxu0 %v524
  %719 = vmatprep.subr.bf16.mxu0 0
  %720 = vmatpush1.bf16.msra.mxu0 %v525
  %721 = vmatprep.subr.bf16.mxu0 0
  %722 = vmatpush1.bf16.msra.mxu0 %v526
  %723 = vmatprep.subr.bf16.mxu0 0
  %724 = vmatpush1.bf16.msra.mxu0 %v527
  %725 = vmatprep.subr.bf16.mxu0 0
  %726 = vmatpush1.bf16.msra.mxu0 %v528
  %727 = vmatprep.subr.bf16.mxu0 0
  %728 = vmatpush1.bf16.msra.mxu0 %v529
  %729 = vmatprep.subr.bf16.mxu0 0
  %730 = vmatpush1.bf16.msra.mxu0 %v530
  %731 = vmatprep.subr.bf16.mxu0 0
  %732 = vmatpush1.bf16.msra.mxu0 %v531
  %733 = vmatprep.subr.bf16.mxu0 0
  %734 = vmatpush1.bf16.msra.mxu0 %v532
  %735 = vmatprep.subr.bf16.mxu0 0
  %736 = vmatpush1.bf16.msra.mxu0 %v533
  %737 = vmatprep.subr.bf16.mxu0 0
  %738 = vmatpush1.bf16.msra.mxu0 %v534
  %739 = vmatprep.subr.bf16.mxu0 0
  %740 = vmatpush1.bf16.msra.mxu0 %v535
  %741 = vmatprep.subr.bf16.mxu0 0
  %742 = vmatpush1.bf16.msra.mxu0 %v536
  %743 = vmatprep.subr.bf16.mxu0 0
  %744 = vmatpush1.bf16.msra.mxu0 %v537
  %745 = vmatprep.subr.bf16.mxu0 0
  %746 = vmatpush1.bf16.msra.mxu0 %v538
  %747 = vmatprep.mubr.bf16.mxu0 %v190
  %748 = vmatmul.mubr.bf16.gmra.mrb[0].mxu0 %v189
  %v749 = vpop.f32.mrb[0].mxu0
  %v750 = vadd.f32 %v710, %v749
  %v751 = vpop.f32.mrb[0].mxu0
  %v752 = vpop.f32.mrb[0].mxu0
  %v753 = vpop.f32.mrb[0].mxu0
  %754 = vdwg.mxu0
  %755 = vmatprep.subr.bf16.mxu0 0
  %756 = vmatpush1.bf16.msra.mxu0 %v539
  %757 = vmatprep.subr.bf16.mxu0 0
  %758 = vmatpush1.bf16.msra.mxu0 %v540
  %759 = vmatprep.subr.bf16.mxu0 0
  %760 = vmatpush1.bf16.msra.mxu0 %v541
  %761 = vmatprep.subr.bf16.mxu0 0
  %762 = vmatpush1.bf16.msra.mxu0 %v542
  %763 = vmatprep.subr.bf16.mxu0 0
  %764 = vmatpush1.bf16.msra.mxu0 %v543
  %765 = vmatprep.subr.bf16.mxu0 0
  %766 = vmatpush1.bf16.msra.mxu0 %v544
  %767 = vmatprep.subr.bf16.mxu0 0
  %768 = vmatpush1.bf16.msra.mxu0 %v545
  %769 = vmatprep.subr.bf16.mxu0 0
  %770 = vmatpush1.bf16.msra.mxu0 %v546
  %771 = vmatprep.subr.bf16.mxu0 0
  %772 = vmatpush1.bf16.msra.mxu0 %v547
  %773 = vmatprep.subr.bf16.mxu0 0
  %774 = vmatpush1.bf16.msra.mxu0 %v548
  %775 = vmatprep.subr.bf16.mxu0 0
  %776 = vmatpush1.bf16.msra.mxu0 %v549
  %777 = vmatprep.subr.bf16.mxu0 0
  %778 = vmatpush1.bf16.msra.mxu0 %v550
  %779 = vmatprep.subr.bf16.mxu0 0
  %780 = vmatpush1.bf16.msra.mxu0 %v551
  %781 = vmatprep.subr.bf16.mxu0 0
  %782 = vmatpush1.bf16.msra.mxu0 %v552
  %783 = vmatprep.subr.bf16.mxu0 0
  %784 = vmatpush1.bf16.msra.mxu0 %v553
  %785 = vmatprep.subr.bf16.mxu0 0
  %786 = vmatpush1.bf16.msra.mxu0 %v554
  %787 = vmatprep.mubr.bf16.mxu0 %v192
  %788 = vmatmul.mubr.bf16.gmra.mrb[0].mxu0 %v191
  %v789 = vpop.f32.mrb[0].mxu0
  %v790 = vadd.f32 %v750, %v789
  %v791 = vpop.f32.mrb[0].mxu0
  %v792 = vpop.f32.mrb[0].mxu0
  %v793 = vpop.f32.mrb[0].mxu0
  %794 = vdwg.mxu0
  %795 = vmatprep.subr.bf16.mxu0 0
  %796 = vmatpush1.bf16.msra.mxu0 %v555
  %797 = vmatprep.subr.bf16.mxu0 0
  %798 = vmatpush1.bf16.msra.mxu0 %v556
  %799 = vmatprep.subr.bf16.mxu0 0
  %800 = vmatpush1.bf16.msra.mxu0 %v557
  %801 = vmatprep.subr.bf16.mxu0 0
  %802 = vmatpush1.bf16.msra.mxu0 %v558
  %803 = vmatprep.subr.bf16.mxu0 0
  %804 = vmatpush1.bf16.msra.mxu0 %v559
  %805 = vmatprep.subr.bf16.mxu0 0
  %806 = vmatpush1.bf16.msra.mxu0 %v560
  %807 = vmatprep.subr.bf16.mxu0 0
  %808 = vmatpush1.bf16.msra.mxu0 %v561
  %809 = vmatprep.subr.bf16.mxu0 0
  %810 = vmatpush1.bf16.msra.mxu0 %v562
  %811 = vmatprep.subr.bf16.mxu0 0
  %812 = vmatpush1.bf16.msra.mxu0 0
  %813 = vmatprep.subr.bf16.mxu0 0
  %814 = vmatpush1.bf16.msra.mxu0 0
  %815 = vmatprep.subr.bf16.mxu0 0
  %816 = vmatpush1.bf16.msra.mxu0 0
  %817 = vmatprep.subr.bf16.mxu0 0
  %818 = vmatpush1.bf16.msra.mxu0 0
  %819 = vmatprep.subr.bf16.mxu0 0
  %820 = vmatpush1.bf16.msra.mxu0 0
  %821 = vmatprep.subr.bf16.mxu0 0
  %822 = vmatpush1.bf16.msra.mxu0 0
  %823 = vmatprep.subr.bf16.mxu0 0
  %824 = vmatpush1.bf16.msra.mxu0 0
  %825 = vmatprep.subr.bf16.mxu0 0
  %826 = vmatpush1.bf16.msra.mxu0 0
  %827 = vmatprep.mubr.bf16.mxu0 0
  %828 = vmatmul.mubr.bf16.gmra.mrb[0].mxu0 %v193
  %v829 = vpop.f32.mrb[0].mxu0
  %v830 = vadd.f32 %v790, %v829
  %v831 = vpop.f32.mrb[0].mxu0
  %v832 = vpop.f32.mrb[0].mxu0
  %v833 = vpop.f32.mrb[0].mxu0
  %834 = vdwg.mxu0
  %v835 = vmax.f32 %v830, 0.0
  %v836 = vpack.c.bf16 %v835, %v835
  %837 = vst [vmem:[%s3] sm:$0xf] %v836
  // Predicated region
  $region14: #{resnet_forward.45} parent=0 // pred_check
    _
  $region15: #{resnet_forward.45} parent=0 // pred_check_branch
    %839 = sbr.rel (0) target = $region17
  $region16: #{resnet_forward.45} parent=0 // pred_region
    _
  $region17: #{resnet_forward.45} parent=0 // pred_fallthru
    _
  // Predicated region
  $region18: #{resnet_forward.45} parent=0 // pred_check
    _
  $region19: #{resnet_forward.45} parent=0 // pred_check_branch
    %841 = sbr.rel (0) target = $region21
  $region20: #{resnet_forward.45} parent=0 // pred_region
    _
  $region21: #{resnet_forward.45} parent=0 // pred_fallthru
    _

</llo_original>
